<compile_context>
chip_gen: v5e
topology: v5e:2x2
jax: 0.10.0
libtpu: 0.0.40
codegen_flags: <defaults>
</compile_context>

<pallas_src>
import jax
import jax.numpy as jnp
from jax.experimental import pallas as pl
from jax.experimental.pallas import tpu as pltpu


# Model dims (PyTorch Fcn1).
IN_FEATURES = 4968
HIDDEN = 1000
OUT_FEATURES = 6

_LANE = 128
_BATCH_PAD = 16   # keep the batch dim a multiple of 16 for bf16 sublane packing
_TH = 512         # hidden-dim tile (fc1 output columns) per grid step / core


def _round_up(x, m):
    return (x + m - 1) // m * m


def _fcn1_kernel(x_ref, w1q_ref, s1_ref, b1_ref, w2_ref, o_ref):
    # Widen this hidden tile's int8 weights to bf16 for the MXU (int8 values
    # are exact in bf16).  The per-output-channel scale is applied to the small
    # f32 accumulator below, not to the 2.5M-element weight tile.
    w1b = w1q_ref[...].astype(jnp.bfloat16)
    # fc1: (Bp, Kp)bf16 @ (Kp, TH)bf16 -> f32 accumulator, then rescale + bias.
    acc = jnp.dot(x_ref[...], w1b, preferred_element_type=jnp.float32)
    h = jnp.maximum(acc * s1_ref[...] + b1_ref[...], 0.0)
    # fc2 partial contribution of this hidden tile (f32 x f32; summed in the
    # wrapper).  Full-block write, so all 6 output lanes are always defined.
    o_ref[...] = jnp.dot(
        h, w2_ref[...], preferred_element_type=jnp.float32
    ).astype(o_ref.dtype)


def prepare_fcn1_params(w1, b1, w2, b2):
    """One-time (offline) quantization + padding of the weights.

    w1: (4968, 1000) f32, b1: (1000,) f32, w2: (1000, 6) f32, b2: (6,) f32
    (already in x @ W layout, i.e. the transpose of the PyTorch weights).
    """
    K, H = w1.shape
    OUT = w2.shape[1]
    Kp = _round_up(K, _LANE)   # 4968 -> 4992 (0.5% zero padding)
    Hp = _round_up(H, _TH)     # 1000 -> 1024

    # Symmetric per-output-channel int8 quantization of w1.
    absmax = jnp.max(jnp.abs(w1), axis=0)
    s1 = (jnp.maximum(absmax, 1e-12) / 127.0).astype(jnp.float32)   # (H,)
    w1q = jnp.clip(jnp.round(w1 / s1), -127.0, 127.0).astype(jnp.int8)

    w1qp = jnp.zeros((Kp, Hp), jnp.int8).at[:K, :H].set(w1q)
    s1p = jnp.zeros((1, Hp), jnp.float32).at[0, :H].set(s1)         # 0-scale pad
    b1p = jnp.zeros((1, Hp), jnp.float32).at[0, :H].set(b1.astype(jnp.float32))
    w2p = jnp.zeros((Hp, OUT), jnp.float32).at[:H, :].set(w2.astype(jnp.float32))
    return w1qp, s1p, b1p, w2p, b2.astype(jnp.float32)


@jax.jit
def fcn1_forward(x, w1qp, s1p, b1p, w2p, b2):
    """x: (B, 4968) f32; quantized/padded params from prepare_fcn1_params."""
    B, K = x.shape
    Kp, Hp = w1qp.shape
    OUT = w2p.shape[1]
    n_h = Hp // _TH
    Bp = _round_up(B, _BATCH_PAD)

    # relu + bf16 cast hoisted out of the kernel; only the tiny activation is
    # padded inside the hot path.
    xp = jnp.zeros((Bp, Kp), jnp.bfloat16).at[:B, :K].set(
        jnp.maximum(x, 0.0).astype(jnp.bfloat16))

    flops = 2 * Bp * Kp * Hp + 2 * Bp * Hp * OUT
    bytes_accessed = (
        w1qp.size * w1qp.dtype.itemsize      # int8 w1, streamed once
        + xp.size * xp.dtype.itemsize        # x fetched once (constant block idx)
        + s1p.size * 4 + b1p.size * 4
        + w2p.size * 4                       # unpadded (Hp, 6) f32
        + n_h * Bp * OUT * 4                 # fc2 partial outputs
    )

    out_p = pl.pallas_call(
        _fcn1_kernel,
        out_shape=jax.ShapeDtypeStruct((n_h * Bp, OUT), jnp.float32),
        grid_spec=pltpu.PrefetchScalarGridSpec(
            num_scalar_prefetch=0,
            grid=(n_h,),
            in_specs=[
                pl.BlockSpec((Bp, Kp), lambda h: (0, 0)),    # x (bf16, full K)
                pl.BlockSpec((Kp, _TH), lambda h: (0, h)),   # w1 int8 hidden tile
                pl.BlockSpec((1, _TH), lambda h: (0, h)),    # per-channel scale
                pl.BlockSpec((1, _TH), lambda h: (0, h)),    # b1 hidden tile
                pl.BlockSpec((_TH, OUT), lambda h: (h, 0)),  # w2 (unpadded cols)
            ],
            out_specs=pl.BlockSpec((Bp, OUT), lambda h: (h, 0)),
        ),
        compiler_params=pltpu.CompilerParams(
            dimension_semantics=("parallel",),   # 2 hidden tiles -> 2 TCs on v7x
            vmem_limit_bytes=32 * 1024 * 1024,
        ),
        cost_estimate=pl.CostEstimate(
            flops=flops, transcendentals=0, bytes_accessed=bytes_accessed),
    )(xp, w1qp, s1p, b1p, w2p)

    # Sum the per-hidden-tile fc2 partials, add fc2 bias, strip batch padding.
    out = out_p.reshape(n_h, Bp, OUT).sum(axis=0)
    return out[:B, :] + b2


def _init_linear(key, fan_in, fan_out):
    # PyTorch nn.Linear default init: U(-1/sqrt(fan_in), 1/sqrt(fan_in)).
    kw, kb = jax.random.split(key)
    bound = 1.0 / jnp.sqrt(jnp.float32(fan_in))
    w = jax.random.uniform(kw, (fan_in, fan_out), jnp.float32, -bound, bound)
    b = jax.random.uniform(kb, (fan_out,), jnp.float32, -bound, bound)
    return w, b


if __name__ == "__main__":
    key = jax.random.PRNGKey(0)
    kx, k1, k2 = jax.random.split(key, 3)

    batch = 2
    x = jax.random.normal(kx, (batch, IN_FEATURES), jnp.float32)
    w1, b1 = _init_linear(k1, IN_FEATURES, HIDDEN)
    w2, b2 = _init_linear(k2, HIDDEN, OUT_FEATURES)

    # One-time weight prep (outside the per-call jitted path).
    params = prepare_fcn1_params(w1, b1, w2, b2)

    out = jax.block_until_ready(fcn1_forward(x, *params))

    # True f32 reference (no matching quantization) — bounds the int8-w1 /
    # bf16-x error of the kernel against the real Fcn1 forward pass.
    xr = jnp.maximum(x, 0.0)
    h_ref = jnp.maximum(
        jnp.dot(xr, w1, precision=jax.lax.Precision.HIGHEST) + b1, 0.0)
    ref = jnp.dot(h_ref, w2, precision=jax.lax.Precision.HIGHEST) + b2

    assert out.shape == (batch, OUT_FEATURES), out.shape
    max_err = float(jnp.max(jnp.abs(out - ref)))
    assert max_err < 2e-2, f"max_err={max_err}"

    print("KERNEL_OK")
</pallas_src>

<mosaic_0001>
module attributes {stable_mosaic.version = 11 : i64} {
  func.func @_fcn1_kernel(%arg0: i32, %arg1: memref<16x4992xbf16, #tpu.memory_space<vmem>>, %arg2: memref<4992x512xi8, #tpu.memory_space<vmem>>, %arg3: memref<1x512xf32, #tpu.memory_space<vmem>>, %arg4: memref<1x512xf32, #tpu.memory_space<vmem>>, %arg5: memref<512x6xf32, #tpu.memory_space<vmem>>, %arg6: memref<16x6xf32, #tpu.memory_space<vmem>>) attributes {dimension_semantics = [#tpu.dimension_semantics<parallel>], iteration_bounds = array<i64: 2>, scalar_prefetch = 0 : i64, scratch_operands = 0 : i64, tpu.core_type = #tpu.core_type<tc>, window_params = [{pipeline_mode = #tpu.pipeline_mode<synchronous>, transform_indices = @transform_0, window_bounds = array<i64: 16, 4992>}, {transform_indices = @transform_1, window_bounds = array<i64: 4992, 512>}, {transform_indices = @transform_2, window_bounds = array<i64: 1, 512>}, {transform_indices = @transform_3, window_bounds = array<i64: 1, 512>}, {transform_indices = @transform_4, window_bounds = array<i64: 512, 6>}, {transform_indices = @transform_5, window_bounds = array<i64: 16, 6>}]} {
    %c0 = arith.constant 0 : index
    %c0_0 = arith.constant 0 : index
    %0 = vector.load %arg2[%c0, %c0_0] : memref<4992x512xi8, #tpu.memory_space<vmem>>, vector<4992x512xi8>
    %1 = arith.sitofp %0 : vector<4992x512xi8> to vector<4992x512xbf16>
    %c0_1 = arith.constant 0 : index
    %c0_2 = arith.constant 0 : index
    %2 = vector.load %arg1[%c0_1, %c0_2] : memref<16x4992xbf16, #tpu.memory_space<vmem>>, vector<16x4992xbf16>
    %cst = arith.constant dense<0.000000e+00> : vector<16x512xf32>
    %3 = tpu.matmul %2, %1, %cst {dimension_numbers = #tpu.dot_dimension_numbers<[1], [0], [0], [1], [0, 0, 1, 1], [], []>} : vector<16x4992xbf16>, vector<4992x512xbf16>, vector<16x512xf32> -> vector<16x512xf32>
    %c0_3 = arith.constant 0 : index
    %c0_4 = arith.constant 0 : index
    %4 = vector.load %arg3[%c0_3, %c0_4] : memref<1x512xf32, #tpu.memory_space<vmem>>, vector<1x512xf32>
    %5 = vector.broadcast %4 : vector<1x512xf32> to vector<16x512xf32>
    %6 = arith.mulf %3, %5 : vector<16x512xf32>
    %c0_5 = arith.constant 0 : index
    %c0_6 = arith.constant 0 : index
    %7 = vector.load %arg4[%c0_5, %c0_6] : memref<1x512xf32, #tpu.memory_space<vmem>>, vector<1x512xf32>
    %8 = vector.broadcast %7 : vector<1x512xf32> to vector<16x512xf32>
    %9 = arith.addf %6, %8 : vector<16x512xf32>
    %cst_7 = arith.constant 0.000000e+00 : f32
    %10 = vector.broadcast %cst_7 : f32 to vector<16x512xf32>
    %11 = arith.maximumf %9, %10 : vector<16x512xf32>
    %c0_8 = arith.constant 0 : index
    %c0_9 = arith.constant 0 : index
    %12 = vector.load %arg5[%c0_8, %c0_9] : memref<512x6xf32, #tpu.memory_space<vmem>>, vector<512x6xf32>
    %cst_10 = arith.constant dense<0.000000e+00> : vector<16x6xf32>
    %13 = tpu.matmul %11, %12, %cst_10 {dimension_numbers = #tpu.dot_dimension_numbers<[1], [0], [0], [1], [0, 0, 1, 1], [], []>} : vector<16x512xf32>, vector<512x6xf32>, vector<16x6xf32> -> vector<16x6xf32>
    %c0_11 = arith.constant 0 : index
    %c0_12 = arith.constant 0 : index
    %14 = vector.load %arg6[%c0_11, %c0_12] : memref<16x6xf32, #tpu.memory_space<vmem>>, vector<16x6xf32>
    tpu.vector_store %arg6[%c0_11, %c0_12], %13 {strides = array<i32>} : memref<16x6xf32, #tpu.memory_space<vmem>>, vector<16x6xf32>,
    return
  }
  func.func @transform_0(%arg0: i32) -> (i32, i32) {
    %c0_i32 = arith.constant 0 : i32
    %c0_i32_0 = arith.constant 0 : i32
    %c0_i32_1 = arith.constant 0 : i32
    return %c0_i32, %c0_i32_0 : i32, i32
  }
  func.func @transform_1(%arg0: i32) -> (i32, i32) {
    %c0_i32 = arith.constant 0 : i32
    %c0_i32_0 = arith.constant 0 : i32
    return %c0_i32, %arg0 : i32, i32
  }
  func.func @transform_2(%arg0: i32) -> (i32, i32) {
    %c0_i32 = arith.constant 0 : i32
    %c0_i32_0 = arith.constant 0 : i32
    return %c0_i32, %arg0 : i32, i32
  }
  func.func @transform_3(%arg0: i32) -> (i32, i32) {
    %c0_i32 = arith.constant 0 : i32
    %c0_i32_0 = arith.constant 0 : i32
    return %c0_i32, %arg0 : i32, i32
  }
  func.func @transform_4(%arg0: i32) -> (i32, i32) {
    %c0_i32 = arith.constant 0 : i32
    %c0_i32_0 = arith.constant 0 : i32
    return %arg0, %c0_i32 : i32, i32
  }
  func.func @transform_5(%arg0: i32) -> (i32, i32) {
    %c0_i32 = arith.constant 0 : i32
    %c0_i32_0 = arith.constant 0 : i32
    return %arg0, %c0_i32 : i32, i32
  }
}

</mosaic_0001>

<llo_original>
// kernel: fcn1_forward.1
$region0: #{fcn1_forward.1}
  #allocation0 [shape = 'u32[]', space=smem, size = 0x4, offset = 0x4, fixed_abs, tag = 'smem constant byte address 0x4 - core index']
  #allocation1 [shape = 'u32[72,128]{1,0:T(1,128)}', space=vmem, size = 0x9000, scoped, tag = 'internal scratch']
  %s0 = inlined_call_operand.vmem [shape: bf16[16,4992], index: 0, kind: input, shape index: {}]
  %s1 = inlined_call_operand.hbm [shape: s8[4992,1024], index: 1, kind: input, shape index: {}]
  %s2 = inlined_call_operand.hbm [shape: f32[1,1024], index: 2, kind: input, shape index: {}]
  %s3 = inlined_call_operand.hbm [shape: f32[1,1024], index: 3, kind: input, shape index: {}]
  %s4 = inlined_call_operand.vmem [shape: f32[1024,6], index: 4, kind: input, shape index: {}]
  %s5 = inlined_call_operand.vmem [shape: f32[32,6], index: 5, kind: output, shape index: {}]
  %s6 = sld [smem:[#allocation0]]
  $region65: #{fcn1_forward.1} parent=0
    _
  %s8 = ssub.s32 1, %s6
  %s9 = scalar_select 0, %s8, %s6
  $region1: #{fcn1_forward.1} parent=0
    #allocation2 [shape = 'u8[5111808]{0}', space=vmem, size = 0x4e0000, scoped, tag = 'input window, operand 1']
    #allocation3 [shape = 's32[2]{0}', space=sflag, size = 0x8, scoped, tag = 'scoped memory for fcn1_forward.1']
    #allocation4 [shape = 'u8[4096]{0}', space=vmem, size = 0x1000, scoped, tag = 'input window, operand 2']
    #allocation5 [shape = 's32[2]{0}', space=sflag, size = 0x8, scoped, tag = 'scoped memory for fcn1_forward.1']
    #allocation6 [shape = 'u8[4096]{0}', space=vmem, size = 0x1000, scoped, tag = 'input window, operand 3']
    %10 = vsyncpa [#allocation3], 0
    %s11 = scalar_lea.sflag [#allocation3], 1
    %12 = vsyncpa %s11, 0
    %13 = vsyncpa [#allocation5], 0
    %s14 = scalar_lea.sflag [#allocation5], 1
    %15 = vsyncpa %s14, 0
    loop: start=0, step=1, limit=4
    $region2: #{fcn1_forward.1} parent=1 // loop_pre_header
      _
    $region3: #{fcn1_forward.1} parent=1 // loop_header
      %s17 = sphi 0, %s21
      %p18 = scmp.ge.s32.totalorder %s17, 4
      %s25 = sphi 0, %s25
      %s27 = sphi 0, %s25
      %s28 = sphi 0, %s27
      %s42 = sphi 0, %s28
      %s48 = sphi 0, %s50
      %s51 = sphi 0, %s48
      %s52 = sphi 0, %s51
      %s68 = sphi 0, %s52
      %s74 = sphi 0, %s76
      %s77 = sphi 0, %s74
      %s78 = sphi 0, %s77
      %s94 = sphi 0, %s78
      %s100 = sphi 0, %s102
      %s103 = sphi 0, %s100
      %s104 = sphi 0, %s103
      %s120 = sphi 0, %s104
      %s126 = sphi 0, %s128
      %s129 = sphi 0, %s126
      %s130 = sphi 0, %s129
      %s146 = sphi 0, %s130
      %s152 = sphi 0, %s154
      %s155 = sphi 0, %s152
      %s156 = sphi 0, %s155
      %s172 = sphi 0, %s156
    $region4: #{fcn1_forward.1} parent=1 // loop_header_branch
      %20 = sbr.rel (%p18) target = $region8
    $region5: #{fcn1_forward.1} parent=1 // loop_body
      %s22 = ssub.s32 %s17, 1
      %s23 = ssub.s32 %s17, 2
      %s24 = sadd.s32 %s17, 1
      %s26 = sadd.s32 %s25, 1
      %p29 = scmp.eq.s32.totalorder %s17, 1
      %p30 = scmp.ne.s32.totalorder %s25, %s27
      %p31 = scmp.eq.s32.totalorder %s17, 0
      %p32 = por %p30, %p31
      %p33 = scmp.ne.s32.totalorder %s25, %s27
      %p34 = scmp.eq.s32.totalorder %s22, 1
      %p35 = por %p33, %p34
      %p36 = scmp.ne.s32.totalorder %s27, %s28
      %p37 = scmp.eq.s32.totalorder %s22, 0
      %p38 = por %p36, %p37
      %p39 = scmp.ne.s32.totalorder %s27, %s28
      %p40 = scmp.eq.s32.totalorder %s23, 1
      %p41 = por %p39, %p40
      %p43 = scmp.ne.s32.totalorder %s28, %s42
      %p44 = scmp.eq.s32.totalorder %s23, 0
      %p45 = por %p43, %p44
      %s46 = ssub.s32 %s17, %s24
      %p47 = scmp.eq.s32.totalorder %s46, 0
      %s49 = sadd.s32 %s48, 1
      %s50 = scalar_select %p47, %s48, %s49
      %p53 = pneg %p47
      %p54 = scmp.eq.s32.totalorder %s17, 1
      %p55 = por %p53, %p54
      %p56 = scmp.ne.s32.totalorder %s48, %s51
      %p57 = scmp.eq.s32.totalorder %s17, 0
      %p58 = por %p56, %p57
      %p59 = scmp.ne.s32.totalorder %s48, %s51
      %p60 = scmp.eq.s32.totalorder %s22, 1
      %p61 = por %p59, %p60
      %p62 = scmp.ne.s32.totalorder %s51, %s52
      %p63 = scmp.eq.s32.totalorder %s22, 0
      %p64 = por %p62, %p63
      %p65 = scmp.ne.s32.totalorder %s51, %s52
      %p66 = scmp.eq.s32.totalorder %s23, 1
      %p67 = por %p65, %p66
      %p69 = scmp.ne.s32.totalorder %s52, %s68
      %p70 = scmp.eq.s32.totalorder %s23, 0
      %p71 = por %p69, %p70
      %s72 = ssub.s32 %s17, %s24
      %p73 = scmp.eq.s32.totalorder %s72, 0
      %s75 = sadd.s32 %s74, 1
      %s76 = scalar_select %p73, %s74, %s75
      %p79 = pneg %p73
      %p80 = scmp.eq.s32.totalorder %s17, 1
      %p81 = por %p79, %p80
      %p82 = scmp.ne.s32.totalorder %s74, %s77
      %p83 = scmp.eq.s32.totalorder %s17, 0
      %p84 = por %p82, %p83
      %p85 = scmp.ne.s32.totalorder %s74, %s77
      %p86 = scmp.eq.s32.totalorder %s22, 1
      %p87 = por %p85, %p86
      %p88 = scmp.ne.s32.totalorder %s77, %s78
      %p89 = scmp.eq.s32.totalorder %s22, 0
      %p90 = por %p88, %p89
      %p91 = scmp.ne.s32.totalorder %s77, %s78
      %p92 = scmp.eq.s32.totalorder %s23, 1
      %p93 = por %p91, %p92
      %p95 = scmp.ne.s32.totalorder %s78, %s94
      %p96 = scmp.eq.s32.totalorder %s23, 0
      %p97 = por %p95, %p96
      %s98 = ssub.s32 %s17, %s24
      %p99 = scmp.eq.s32.totalorder %s98, 0
      %s101 = sadd.s32 %s100, 1
      %s102 = scalar_select %p99, %s100, %s101
      %p105 = pneg %p99
      %p106 = scmp.eq.s32.totalorder %s17, 1
      %p107 = por %p105, %p106
      %p108 = scmp.ne.s32.totalorder %s100, %s103
      %p109 = scmp.eq.s32.totalorder %s17, 0
      %p110 = por %p108, %p109
      %p111 = scmp.ne.s32.totalorder %s100, %s103
      %p112 = scmp.eq.s32.totalorder %s22, 1
      %p113 = por %p111, %p112
      %p114 = scmp.ne.s32.totalorder %s103, %s104
      %p115 = scmp.eq.s32.totalorder %s22, 0
      %p116 = por %p114, %p115
      %p117 = scmp.ne.s32.totalorder %s103, %s104
      %p118 = scmp.eq.s32.totalorder %s23, 1
      %p119 = por %p117, %p118
      %p121 = scmp.ne.s32.totalorder %s104, %s120
      %p122 = scmp.eq.s32.totalorder %s23, 0
      %p123 = por %p121, %p122
      %s124 = ssub.s32 %s17, %s24
      %p125 = scmp.eq.s32.totalorder %s124, 0
      %s127 = sadd.s32 %s126, 1
      %s128 = scalar_select %p125, %s126, %s127
      %p131 = pneg %p125
      %p132 = scmp.eq.s32.totalorder %s17, 1
      %p133 = por %p131, %p132
      %p134 = scmp.ne.s32.totalorder %s126, %s129
      %p135 = scmp.eq.s32.totalorder %s17, 0
      %p136 = por %p134, %p135
      %p137 = scmp.ne.s32.totalorder %s126, %s129
      %p138 = scmp.eq.s32.totalorder %s22, 1
      %p139 = por %p137, %p138
      %p140 = scmp.ne.s32.totalorder %s129, %s130
      %p141 = scmp.eq.s32.totalorder %s22, 0
      %p142 = por %p140, %p141
      %p143 = scmp.ne.s32.totalorder %s129, %s130
      %p144 = scmp.eq.s32.totalorder %s23, 1
      %p145 = por %p143, %p144
      %p147 = scmp.ne.s32.totalorder %s130, %s146
      %p148 = scmp.eq.s32.totalorder %s23, 0
      %p149 = por %p147, %p148
      %s150 = ssub.s32 %s17, %s24
      %p151 = scmp.eq.s32.totalorder %s150, 0
      %s153 = sadd.s32 %s152, 1
      %s154 = scalar_select %p151, %s152, %s153
      %p157 = pneg %p151
      %p158 = scmp.eq.s32.totalorder %s17, 1
      %p159 = por %p157, %p158
      %p160 = scmp.ne.s32.totalorder %s152, %s155
      %p161 = scmp.eq.s32.totalorder %s17, 0
      %p162 = por %p160, %p161
      %p163 = scmp.ne.s32.totalorder %s152, %s155
      %p164 = scmp.eq.s32.totalorder %s22, 1
      %p165 = por %p163, %p164
      %p166 = scmp.ne.s32.totalorder %s155, %s156
      %p167 = scmp.eq.s32.totalorder %s22, 0
      %p168 = por %p166, %p167
      %p169 = scmp.ne.s32.totalorder %s155, %s156
      %p170 = scmp.eq.s32.totalorder %s23, 1
      %p171 = por %p169, %p170
      %p173 = scmp.ne.s32.totalorder %s156, %s172
      %p174 = scmp.eq.s32.totalorder %s23, 0
      %p175 = por %p173, %p174
      %p176 = scmp.le.s32.totalorder 1, %s17
      %p177 = scmp.lt.s32.totalorder %s17, 3
      %p178 = pnand %p176, %p177
      %p179 = pneg %p178
      // Predicated region
      $region9: #{fcn1_forward.1} parent=5 // pred_check
        _
      $region10: #{fcn1_forward.1} parent=5 // pred_check_branch
        %181 = sbr.rel (%p178) target = $region12
      $region11: #{fcn1_forward.1} parent=5 // pred_region
        %s182 = ssub.s32 %s17, 1
        // Predicated region
        $region13: #{fcn1_forward.1} parent=11 // pred_check
          %p183 = pneg %p38
        $region14: #{fcn1_forward.1} parent=11 // pred_check_branch
          %185 = sbr.rel (%p183) target = $region16
        $region15: #{fcn1_forward.1} parent=11 // pred_region
          _
        $region16: #{fcn1_forward.1} parent=11 // pred_fallthru
          _
      $region12: #{fcn1_forward.1} parent=5 // pred_fallthru
        _
      %p186 = scmp.lt.s32.totalorder %s17, 2
      // Predicated region
      $region17: #{fcn1_forward.1} parent=5 // pred_check
        %p187 = pneg %p186
      $region18: #{fcn1_forward.1} parent=5 // pred_check_branch
        %189 = sbr.rel (%p187) target = $region20
      $region19: #{fcn1_forward.1} parent=5 // pred_region
        // Predicated region
        $region21: #{fcn1_forward.1} parent=19 // pred_check
          %p190 = pneg %p58
        $region22: #{fcn1_forward.1} parent=19 // pred_check_branch
          %192 = sbr.rel (%p190) target = $region24
        $region23: #{fcn1_forward.1} parent=19 // pred_region
          %s193 = sand.u32 %s48, 1
          %s194 = scalar_lea.sflag [#allocation3], %s193
          %s195 = sand.u32 %s48, 1
          %s196 = smul.addr %s195, 4992
          %s197 = scalar_lea.vmem [#allocation2], %s196
          %s198 = smul.u32 4, %s17
          %200 = vsyncadd %s194, 0
          %s201 = smul.addr %s198, 8
          %s202 = scalar_lea.hbm %s1, %s201
          %s203 = sshll.u32 %s202, 4
          %s204 = int_to_ptr.hbm [resolvable:$true] %s203
          %s205 = sshll.u32 %s197, 4
          %s206 = int_to_ptr.vmem [resolvable:$true] %s205
          %211 = dma.hbm_to_vmem [thread:$0]  %s204, 79872, %s206, %s194, 1024, 512, 32
        $region24: #{fcn1_forward.1} parent=19 // pred_fallthru
          _
        // Predicated region
        $region25: #{fcn1_forward.1} parent=19 // pred_check
          %p212 = pneg %p84
        $region26: #{fcn1_forward.1} parent=19 // pred_check_branch
          %214 = sbr.rel (%p212) target = $region28
        $region27: #{fcn1_forward.1} parent=19 // pred_region
          %s215 = sand.u32 %s17, 1
          %s216 = scalar_lea.sflag [#allocation5], %s215
          %s217 = sand.u32 %s74, 1
          %s218 = smul.addr %s217, 4
          %s219 = scalar_lea.vmem [#allocation4], %s218
          %s220 = smul.u32 4, %s17
          %222 = vsyncadd %s216, 0
          %s223 = scalar_lea.hbm %s2, %s220
          %s225 = sshll.u32 %s223, 4
          %s226 = int_to_ptr.hbm [resolvable:$true] %s225
          %s227 = sshll.u32 %s219, 4
          %s228 = int_to_ptr.vmem [resolvable:$true] %s227
          %230 = dma.hbm_to_vmem [thread:$0]  %s226, 64, %s228, %s216
        $region28: #{fcn1_forward.1} parent=19 // pred_fallthru
          _
        // Predicated region
        $region29: #{fcn1_forward.1} parent=19 // pred_check
          %p231 = pneg %p110
        $region30: #{fcn1_forward.1} parent=19 // pred_check_branch
          %233 = sbr.rel (%p231) target = $region32
        $region31: #{fcn1_forward.1} parent=19 // pred_region
          %s234 = sand.u32 %s17, 1
          %s235 = scalar_lea.sflag [#allocation5], %s234
          %s236 = sand.u32 %s100, 1
          %s237 = smul.addr %s236, 4
          %s238 = scalar_lea.vmem [#allocation6], %s237
          %s239 = smul.u32 4, %s17
          %241 = vsyncadd %s235, 0
          %s242 = scalar_lea.hbm %s3, %s239
          %s244 = sshll.u32 %s242, 4
          %s245 = int_to_ptr.hbm [resolvable:$true] %s244
          %s246 = sshll.u32 %s238, 4
          %s247 = int_to_ptr.vmem [resolvable:$true] %s246
          %249 = dma.hbm_to_vmem [thread:$0]  %s245, 64, %s247, %s235
        $region32: #{fcn1_forward.1} parent=19 // pred_fallthru
          _
        // Predicated region
        $region33: #{fcn1_forward.1} parent=19 // pred_check
          %p250 = pneg %p136
        $region34: #{fcn1_forward.1} parent=19 // pred_check_branch
          %252 = sbr.rel (%p250) target = $region36
        $region35: #{fcn1_forward.1} parent=19 // pred_region
          %s253 = smul.u32 64, %s17
          %p254 = scmp.lt.s32.totalorder %s253, 127
          %s255 = scalar_select %p254, %s253, 127
          %s256 = smul.addr %s255, 8
          %s257 = scalar_lea.vmem %s4, %s256
          %s258 = smul.u32 64, %s17
        $region36: #{fcn1_forward.1} parent=19 // pred_fallthru
          _
      $region20: #{fcn1_forward.1} parent=5 // pred_fallthru
        _
      %p259 = scmp.le.s32.totalorder 1, %s17
      %p260 = scmp.lt.s32.totalorder %s17, 3
      %p261 = pnand %p259, %p260
      %p262 = pneg %p261
      // Predicated region
      $region37: #{fcn1_forward.1} parent=5 // pred_check
        _
      $region38: #{fcn1_forward.1} parent=5 // pred_check_branch
        %264 = sbr.rel (%p261) target = $region40
      $region39: #{fcn1_forward.1} parent=5 // pred_region
        %s265 = ssub.s32 %s17, 1
        %s266 = sand.u32 %s51, 1
        %s267 = scalar_lea.sflag [#allocation3], %s266
        %s268 = sand.u32 %s51, 1
        %s269 = smul.addr %s268, 4992
        %s270 = scalar_lea.vmem [#allocation2], %s269
        // Predicated region
        $region41: #{fcn1_forward.1} parent=39 // pred_check
          %p271 = pneg %p64
        $region42: #{fcn1_forward.1} parent=39 // pred_check_branch
          %273 = sbr.rel (%p271) target = $region44
        $region43: #{fcn1_forward.1} parent=39 // pred_region
          %275 = dma.done %s267, 79872
        $region44: #{fcn1_forward.1} parent=39 // pred_fallthru
          _
        %s276 = sand.u32 %s22, 1
        %s277 = scalar_lea.sflag [#allocation5], %s276
        %s278 = sand.u32 %s77, 1
        %s279 = smul.addr %s278, 4
        %s280 = scalar_lea.vmem [#allocation4], %s279
        // Predicated region
        $region45: #{fcn1_forward.1} parent=39 // pred_check
          %p281 = pneg %p90
        $region46: #{fcn1_forward.1} parent=39 // pred_check_branch
          %283 = sbr.rel (%p281) target = $region48
        $region47: #{fcn1_forward.1} parent=39 // pred_region
          %285 = dma.done %s277, 64
        $region48: #{fcn1_forward.1} parent=39 // pred_fallthru
          _
        %s286 = sand.u32 %s22, 1
        %s287 = scalar_lea.sflag [#allocation5], %s286
        %s288 = sand.u32 %s103, 1
        %s289 = smul.addr %s288, 4
        %s290 = scalar_lea.vmem [#allocation6], %s289
        // Predicated region
        $region49: #{fcn1_forward.1} parent=39 // pred_check
          %p291 = pneg %p116
        $region50: #{fcn1_forward.1} parent=39 // pred_check_branch
          %293 = sbr.rel (%p291) target = $region52
        $region51: #{fcn1_forward.1} parent=39 // pred_region
          %295 = dma.done %s287, 64
        $region52: #{fcn1_forward.1} parent=39 // pred_fallthru
          _
        %p296 = pneg %p38
        %p297 = pneg %p35
        %s298 = sand.u32 %s51, 1
        %s299 = scalar_lea.sflag [#allocation3], %s298
        %s300 = sand.u32 %s51, 1
        %s301 = smul.addr %s300, 4992
        %s302 = scalar_lea.vmem [#allocation2], %s301
        %p303 = pneg %p64
        %p304 = pneg %p61
        %s305 = sand.u32 %s22, 1
        %s306 = scalar_lea.sflag [#allocation5], %s305
        %s307 = sand.u32 %s77, 1
        %s308 = smul.addr %s307, 4
        %s309 = scalar_lea.vmem [#allocation4], %s308
        %p310 = pneg %p90
        %p311 = pneg %p87
        %s312 = sand.u32 %s22, 1
        %s313 = scalar_lea.sflag [#allocation5], %s312
        %s314 = sand.u32 %s103, 1
        %s315 = smul.addr %s314, 4
        %s316 = scalar_lea.vmem [#allocation6], %s315
        %p317 = pneg %p116
        %p318 = pneg %p113
        %s319 = smul.u32 64, %s22
        %p320 = scmp.lt.s32.totalorder %s319, 127
        %s321 = scalar_select %p320, %s319, 127
        %s322 = smul.addr %s321, 8
        %s323 = scalar_lea.vmem %s4, %s322
        %p324 = pneg %p142
        %p325 = pneg %p139
        %p326 = pneg %p168
        %p327 = pneg %p165
        %s328 = smul.u32 2, %s22
        %p329 = scmp.lt.s32.totalorder %s328, 3
        %s330 = scalar_select %p329, %s328, 3
        %s331 = smul.addr %s330, 8
        %s332 = scalar_lea.vmem %s5, %s331
        %s333 = smul.u32 4, %s22
        %s334 = smul.u32 4, %s22
        %s335 = smul.u32 4, %s22
        %s336 = smul.u32 64, %s22
        %p337 = scmp.lt.s32.totalorder %s336, 127
        %s338 = scalar_select %p337, %s336, 127
        %s339 = smul.addr %s338, 8
        %s340 = scalar_lea.vmem %s4, %s339
        %s341 = smul.u32 64, %s22
        %s342 = smul.u32 2, %s22
        %p343 = scmp.lt.s32.totalorder %s342, 3
        %s344 = scalar_select %p343, %s342, 3
        %s345 = smul.addr %s344, 8
        %s346 = scalar_lea.vmem %s5, %s345
        %s347 = smul.u32 2, %s22
        %v348 = vld [vmem:[%s270] sm:$0xff]
        %v349 = vld [vmem:[%s270 + $0x8] sm:$0xff]
        %v350 = vld [vmem:[%s270 + $0x10] sm:$0xff]
        %v351 = vld [vmem:[%s270 + $0x18] sm:$0xff]
        %v352 = vld [vmem:[%s270 + $0x20] sm:$0xff]
        %v353 = vld [vmem:[%s270 + $0x28] sm:$0xff]
        %v354 = vld [vmem:[%s270 + $0x30] sm:$0xff]
        %v355 = vld [vmem:[%s270 + $0x38] sm:$0xff]
        %v356 = vld [vmem:[%s270 + $0x40] sm:$0xff]
        %v357 = vld [vmem:[%s270 + $0x48] sm:$0xff]
        %v358 = vld [vmem:[%s270 + $0x50] sm:$0xff]
        %v359 = vld [vmem:[%s270 + $0x58] sm:$0xff]
        %v360 = vld [vmem:[%s270 + $0x60] sm:$0xff]
        %v361 = vld [vmem:[%s270 + $0x68] sm:$0xff]
        %v362 = vld [vmem:[%s270 + $0x70] sm:$0xff]
        %v363 = vld [vmem:[%s270 + $0x78] sm:$0xff]
        %v364 = vld [vmem:[%s270 + $0x80] sm:$0xff]
        %v365 = vld [vmem:[%s270 + $0x88] sm:$0xff]
        %v366 = vld [vmem:[%s270 + $0x90] sm:$0xff]
        %v367 = vld [vmem:[%s270 + $0x98] sm:$0xff]
        %v368 = vld [vmem:[%s270 + $0xa0] sm:$0xff]
        %v369 = vld [vmem:[%s270 + $0xa8] sm:$0xff]
        %v370 = vld [vmem:[%s270 + $0xb0] sm:$0xff]
        %v371 = vld [vmem:[%s270 + $0xb8] sm:$0xff]
        %v372 = vld [vmem:[%s270 + $0xc0] sm:$0xff]
        %v373 = vld [vmem:[%s270 + $0xc8] sm:$0xff]
        %v374 = vld [vmem:[%s270 + $0xd0] sm:$0xff]
        %v375 = vld [vmem:[%s270 + $0xd8] sm:$0xff]
        %v376 = vld [vmem:[%s270 + $0xe0] sm:$0xff]
        %v377 = vld [vmem:[%s270 + $0xe8] sm:$0xff]
        %v378 = vld [vmem:[%s270 + $0xf0] sm:$0xff]
        %v379 = vld [vmem:[%s270 + $0xf8] sm:$0xff]
        %v380 = vld [vmem:[%s270 + $0x100] sm:$0xff]
        %v381 = vld [vmem:[%s270 + $0x108] sm:$0xff]
        %v382 = vld [vmem:[%s270 + $0x110] sm:$0xff]
        %v383 = vld [vmem:[%s270 + $0x118] sm:$0xff]
        %v384 = vld [vmem:[%s270 + $0x120] sm:$0xff]
        %v385 = vld [vmem:[%s270 + $0x128] sm:$0xff]
        %v386 = vld [vmem:[%s270 + $0x130] sm:$0xff]
        %v387 = vld [vmem:[%s270 + $0x138] sm:$0xff]
        %v388 = vld [vmem:[%s270 + $0x140] sm:$0xff]
        %v389 = vld [vmem:[%s270 + $0x148] sm:$0xff]
        %v390 = vld [vmem:[%s270 + $0x150] sm:$0xff]
        %v391 = vld [vmem:[%s270 + $0x158] sm:$0xff]
        %v392 = vld [vmem:[%s270 + $0x160] sm:$0xff]
        %v393 = vld [vmem:[%s270 + $0x168] sm:$0xff]
        %v394 = vld [vmem:[%s270 + $0x170] sm:$0xff]
        %v395 = vld [vmem:[%s270 + $0x178] sm:$0xff]
        %v396 = vld [vmem:[%s270 + $0x180] sm:$0xff]
        %v397 = vld [vmem:[%s270 + $0x188] sm:$0xff]
        %v398 = vld [vmem:[%s270 + $0x190] sm:$0xff]
        %v399 = vld [vmem:[%s270 + $0x198] sm:$0xff]
        %v400 = vld [vmem:[%s270 + $0x1a0] sm:$0xff]
        %v401 = vld [vmem:[%s270 + $0x1a8] sm:$0xff]
        %v402 = vld [vmem:[%s270 + $0x1b0] sm:$0xff]
        %v403 = vld [vmem:[%s270 + $0x1b8] sm:$0xff]
        %v404 = vld [vmem:[%s270 + $0x1c0] sm:$0xff]
        %v405 = vld [vmem:[%s270 + $0x1c8] sm:$0xff]
        %v406 = vld [vmem:[%s270 + $0x1d0] sm:$0xff]
        %v407 = vld [vmem:[%s270 + $0x1d8] sm:$0xff]
        %v408 = vld [vmem:[%s270 + $0x1e0] sm:$0xff]
        %v409 = vld [vmem:[%s270 + $0x1e8] sm:$0xff]
        %v410 = vld [vmem:[%s270 + $0x1f0] sm:$0xff]
        %v411 = vld [vmem:[%s270 + $0x1f8] sm:$0xff]
        %v412 = vld [vmem:[%s270 + $0x200] sm:$0xff]
        %v413 = vld [vmem:[%s270 + $0x208] sm:$0xff]
        %v414 = vld [vmem:[%s270 + $0x210] sm:$0xff]
        %v415 = vld [vmem:[%s270 + $0x218] sm:$0xff]
        %v416 = vld [vmem:[%s270 + $0x220] sm:$0xff]
        %v417 = vld [vmem:[%s270 + $0x228] sm:$0xff]
        %v418 = vld [vmem:[%s270 + $0x230] sm:$0xff]
        %v419 = vld [vmem:[%s270 + $0x238] sm:$0xff]
        %v420 = vld [vmem:[%s270 + $0x240] sm:$0xff]
        %v421 = vld [vmem:[%s270 + $0x248] sm:$0xff]
        %v422 = vld [vmem:[%s270 + $0x250] sm:$0xff]
        %v423 = vld [vmem:[%s270 + $0x258] sm:$0xff]
        %v424 = vld [vmem:[%s270 + $0x260] sm:$0xff]
        %v425 = vld [vmem:[%s270 + $0x268] sm:$0xff]
        %v426 = vld [vmem:[%s270 + $0x270] sm:$0xff]
        %v427 = vld [vmem:[%s270 + $0x278] sm:$0xff]
        %v428 = vld [vmem:[%s270 + $0x280] sm:$0xff]
        %v429 = vld [vmem:[%s270 + $0x288] sm:$0xff]
        %v430 = vld [vmem:[%s270 + $0x290] sm:$0xff]
        %v431 = vld [vmem:[%s270 + $0x298] sm:$0xff]
        %v432 = vld [vmem:[%s270 + $0x2a0] sm:$0xff]
        %v433 = vld [vmem:[%s270 + $0x2a8] sm:$0xff]
        %v434 = vld [vmem:[%s270 + $0x2b0] sm:$0xff]
        %v435 = vld [vmem:[%s270 + $0x2b8] sm:$0xff]
        %v436 = vld [vmem:[%s270 + $0x2c0] sm:$0xff]
        %v437 = vld [vmem:[%s270 + $0x2c8] sm:$0xff]
        %v438 = vld [vmem:[%s270 + $0x2d0] sm:$0xff]
        %v439 = vld [vmem:[%s270 + $0x2d8] sm:$0xff]
        %v440 = vld [vmem:[%s270 + $0x2e0] sm:$0xff]
        %v441 = vld [vmem:[%s270 + $0x2e8] sm:$0xff]
        %v442 = vld [vmem:[%s270 + $0x2f0] sm:$0xff]
        %v443 = vld [vmem:[%s270 + $0x2f8] sm:$0xff]
        %v444 = vld [vmem:[%s270 + $0x300] sm:$0xff]
        %v445 = vld [vmem:[%s270 + $0x308] sm:$0xff]
        %v446 = vld [vmem:[%s270 + $0x310] sm:$0xff]
        %v447 = vld [vmem:[%s270 + $0x318] sm:$0xff]
        %v448 = vld [vmem:[%s270 + $0x320] sm:$0xff]
        %v449 = vld [vmem:[%s270 + $0x328] sm:$0xff]
        %v450 = vld [vmem:[%s270 + $0x330] sm:$0xff]
        %v451 = vld [vmem:[%s270 + $0x338] sm:$0xff]
        %v452 = vld [vmem:[%s270 + $0x340] sm:$0xff]
        %v453 = vld [vmem:[%s270 + $0x348] sm:$0xff]
        %v454 = vld [vmem:[%s270 + $0x350] sm:$0xff]
        %v455 = vld [vmem:[%s270 + $0x358] sm:$0xff]
        %v456 = vld [vmem:[%s270 + $0x360] sm:$0xff]
        %v457 = vld [vmem:[%s270 + $0x368] sm:$0xff]
        %v458 = vld [vmem:[%s270 + $0x370] sm:$0xff]
        %v459 = vld [vmem:[%s270 + $0x378] sm:$0xff]
        %v460 = vld [vmem:[%s270 + $0x380] sm:$0xff]
        %v461 = vld [vmem:[%s270 + $0x388] sm:$0xff]
        %v462 = vld [vmem:[%s270 + $0x390] sm:$0xff]
        %v463 = vld [vmem:[%s270 + $0x398] sm:$0xff]
        %v464 = vld [vmem:[%s270 + $0x3a0] sm:$0xff]
        %v465 = vld [vmem:[%s270 + $0x3a8] sm:$0xff]
        %v466 = vld [vmem:[%s270 + $0x3b0] sm:$0xff]
        %v467 = vld [vmem:[%s270 + $0x3b8] sm:$0xff]
        %v468 = vld [vmem:[%s270 + $0x3c0] sm:$0xff]
        %v469 = vld [vmem:[%s270 + $0x3c8] sm:$0xff]
        %v470 = vld [vmem:[%s270 + $0x3d0] sm:$0xff]
        %v471 = vld [vmem:[%s270 + $0x3d8] sm:$0xff]
        %v472 = vld [vmem:[%s270 + $0x3e0] sm:$0xff]
        %v473 = vld [vmem:[%s270 + $0x3e8] sm:$0xff]
        %v474 = vld [vmem:[%s270 + $0x3f0] sm:$0xff]
        %v475 = vld [vmem:[%s270 + $0x3f8] sm:$0xff]
        %v476 = vld [vmem:[%s270 + $0x400] sm:$0xff]
        %v477 = vld [vmem:[%s270 + $0x408] sm:$0xff]
        %v478 = vld [vmem:[%s270 + $0x410] sm:$0xff]
        %v479 = vld [vmem:[%s270 + $0x418] sm:$0xff]
        %v480 = vld [vmem:[%s270 + $0x420] sm:$0xff]
        %v481 = vld [vmem:[%s270 + $0x428] sm:$0xff]
        %v482 = vld [vmem:[%s270 + $0x430] sm:$0xff]
        %v483 = vld [vmem:[%s270 + $0x438] sm:$0xff]
        %v484 = vld [vmem:[%s270 + $0x440] sm:$0xff]
        %v485 = vld [vmem:[%s270 + $0x448] sm:$0xff]
        %v486 = vld [vmem:[%s270 + $0x450] sm:$0xff]
        %v487 = vld [vmem:[%s270 + $0x458] sm:$0xff]
        %v488 = vld [vmem:[%s270 + $0x460] sm:$0xff]
        %v489 = vld [vmem:[%s270 + $0x468] sm:$0xff]
        %v490 = vld [vmem:[%s270 + $0x470] sm:$0xff]
        %v491 = vld [vmem:[%s270 + $0x478] sm:$0xff]
        %v492 = vld [vmem:[%s270 + $0x480] sm:$0xff]
        %v493 = vld [vmem:[%s270 + $0x488] sm:$0xff]
        %v494 = vld [vmem:[%s270 + $0x490] sm:$0xff]
        %v495 = vld [vmem:[%s270 + $0x498] sm:$0xff]
        %v496 = vld [vmem:[%s270 + $0x4a0] sm:$0xff]
        %v497 = vld [vmem:[%s270 + $0x4a8] sm:$0xff]
        %v498 = vld [vmem:[%s270 + $0x4b0] sm:$0xff]
        %v499 = vld [vmem:[%s270 + $0x4b8] sm:$0xff]
        %v500 = vld [vmem:[%s270 + $0x4c0] sm:$0xff]
        %v501 = vld [vmem:[%s270 + $0x4c8] sm:$0xff]
        %v502 = vld [vmem:[%s270 + $0x4d0] sm:$0xff]
        %v503 = vld [vmem:[%s270 + $0x4d8] sm:$0xff]
        %v504 = vld [vmem:[%s270 + $0x4e0] sm:$0xff]
        %v505 = vld [vmem:[%s270 + $0x4e8] sm:$0xff]
        %v506 = vld [vmem:[%s270 + $0x4f0] sm:$0xff]
        %v507 = vld [vmem:[%s270 + $0x4f8] sm:$0xff]
        %v508 = vld [vmem:[%s270 + $0x500] sm:$0xff]
        %v509 = vld [vmem:[%s270 + $0x508] sm:$0xff]
        %v510 = vld [vmem:[%s270 + $0x510] sm:$0xff]
        %v511 = vld [vmem:[%s270 + $0x518] sm:$0xff]
        %v512 = vld [vmem:[%s270 + $0x520] sm:$0xff]
        %v513 = vld [vmem:[%s270 + $0x528] sm:$0xff]
        %v514 = vld [vmem:[%s270 + $0x530] sm:$0xff]
        %v515 = vld [vmem:[%s270 + $0x538] sm:$0xff]
        %v516 = vld [vmem:[%s270 + $0x540] sm:$0xff]
        %v517 = vld [vmem:[%s270 + $0x548] sm:$0xff]
        %v518 = vld [vmem:[%s270 + $0x550] sm:$0xff]
        %v519 = vld [vmem:[%s270 + $0x558] sm:$0xff]
        %v520 = vld [vmem:[%s270 + $0x560] sm:$0xff]
        %v521 = vld [vmem:[%s270 + $0x568] sm:$0xff]
        %v522 = vld [vmem:[%s270 + $0x570] sm:$0xff]
        %v523 = vld [vmem:[%s270 + $0x578] sm:$0xff]
        %v524 = vld [vmem:[%s270 + $0x580] sm:$0xff]
        %v525 = vld [vmem:[%s270 + $0x588] sm:$0xff]
        %v526 = vld [vmem:[%s270 + $0x590] sm:$0xff]
        %v527 = vld [vmem:[%s270 + $0x598] sm:$0xff]
        %v528 = vld [vmem:[%s270 + $0x5a0] sm:$0xff]
        %v529 = vld [vmem:[%s270 + $0x5a8] sm:$0xff]
        %v530 = vld [vmem:[%s270 + $0x5b0] sm:$0xff]
        %v531 = vld [vmem:[%s270 + $0x5b8] sm:$0xff]
        %v532 = vld [vmem:[%s270 + $0x5c0] sm:$0xff]
        %v533 = vld [vmem:[%s270 + $0x5c8] sm:$0xff]
        %v534 = vld [vmem:[%s270 + $0x5d0] sm:$0xff]
        %v535 = vld [vmem:[%s270 + $0x5d8] sm:$0xff]
        %v536 = vld [vmem:[%s270 + $0x5e0] sm:$0xff]
        %v537 = vld [vmem:[%s270 + $0x5e8] sm:$0xff]
        %v538 = vld [vmem:[%s270 + $0x5f0] sm:$0xff]
        %v539 = vld [vmem:[%s270 + $0x5f8] sm:$0xff]
        %v540 = vld [vmem:[%s270 + $0x600] sm:$0xff]
        %v541 = vld [vmem:[%s270 + $0x608] sm:$0xff]
        %v542 = vld [vmem:[%s270 + $0x610] sm:$0xff]
        %v543 = vld [vmem:[%s270 + $0x618] sm:$0xff]
        %v544 = vld [vmem:[%s270 + $0x620] sm:$0xff]
        %v545 = vld [vmem:[%s270 + $0x628] sm:$0xff]
        %v546 = vld [vmem:[%s270 + $0x630] sm:$0xff]
        %v547 = vld [vmem:[%s270 + $0x638] sm:$0xff]
        %v548 = vld [vmem:[%s270 + $0x640] sm:$0xff]
        %v549 = vld [vmem:[%s270 + $0x648] sm:$0xff]
        %v550 = vld [vmem:[%s270 + $0x650] sm:$0xff]
        %v551 = vld [vmem:[%s270 + $0x658] sm:$0xff]
        %v552 = vld [vmem:[%s270 + $0x660] sm:$0xff]
        %v553 = vld [vmem:[%s270 + $0x668] sm:$0xff]
        %v554 = vld [vmem:[%s270 + $0x670] sm:$0xff]
        %v555 = vld [vmem:[%s270 + $0x678] sm:$0xff]
        %v556 = vld [vmem:[%s270 + $0x680] sm:$0xff]
        %v557 = vld [vmem:[%s270 + $0x688] sm:$0xff]
        %v558 = vld [vmem:[%s270 + $0x690] sm:$0xff]
        %v559 = vld [vmem:[%s270 + $0x698] sm:$0xff]
        %v560 = vld [vmem:[%s270 + $0x6a0] sm:$0xff]
        %v561 = vld [vmem:[%s270 + $0x6a8] sm:$0xff]
        %v562 = vld [vmem:[%s270 + $0x6b0] sm:$0xff]
        %v563 = vld [vmem:[%s270 + $0x6b8] sm:$0xff]
        %v564 = vld [vmem:[%s270 + $0x6c0] sm:$0xff]
        %v565 = vld [vmem:[%s270 + $0x6c8] sm:$0xff]
        %v566 = vld [vmem:[%s270 + $0x6d0] sm:$0xff]
        %v567 = vld [vmem:[%s270 + $0x6d8] sm:$0xff]
        %v568 = vld [vmem:[%s270 + $0x6e0] sm:$0xff]
        %v569 = vld [vmem:[%s270 + $0x6e8] sm:$0xff]
        %v570 = vld [vmem:[%s270 + $0x6f0] sm:$0xff]
        %v571 = vld [vmem:[%s270 + $0x6f8] sm:$0xff]
        %v572 = vld [vmem:[%s270 + $0x700] sm:$0xff]
        %v573 = vld [vmem:[%s270 + $0x708] sm:$0xff]
        %v574 = vld [vmem:[%s270 + $0x710] sm:$0xff]
        %v575 = vld [vmem:[%s270 + $0x718] sm:$0xff]
        %v576 = vld [vmem:[%s270 + $0x720] sm:$0xff]
        %v577 = vld [vmem:[%s270 + $0x728] sm:$0xff]
        %v578 = vld [vmem:[%s270 + $0x730] sm:$0xff]
        %v579 = vld [vmem:[%s270 + $0x738] sm:$0xff]
        %v580 = vld [vmem:[%s270 + $0x740] sm:$0xff]
        %v581 = vld [vmem:[%s270 + $0x748] sm:$0xff]
        %v582 = vld [vmem:[%s270 + $0x750] sm:$0xff]
        %v583 = vld [vmem:[%s270 + $0x758] sm:$0xff]
        %v584 = vld [vmem:[%s270 + $0x760] sm:$0xff]
        %v585 = vld [vmem:[%s270 + $0x768] sm:$0xff]
        %v586 = vld [vmem:[%s270 + $0x770] sm:$0xff]
        %v587 = vld [vmem:[%s270 + $0x778] sm:$0xff]
        %v588 = vld [vmem:[%s270 + $0x780] sm:$0xff]
        %v589 = vld [vmem:[%s270 + $0x788] sm:$0xff]
        %v590 = vld [vmem:[%s270 + $0x790] sm:$0xff]
        %v591 = vld [vmem:[%s270 + $0x798] sm:$0xff]
        %v592 = vld [vmem:[%s270 + $0x7a0] sm:$0xff]
        %v593 = vld [vmem:[%s270 + $0x7a8] sm:$0xff]
        %v594 = vld [vmem:[%s270 + $0x7b0] sm:$0xff]
        %v595 = vld [vmem:[%s270 + $0x7b8] sm:$0xff]
        %v596 = vld [vmem:[%s270 + $0x7c0] sm:$0xff]
        %v597 = vld [vmem:[%s270 + $0x7c8] sm:$0xff]
        %v598 = vld [vmem:[%s270 + $0x7d0] sm:$0xff]
        %v599 = vld [vmem:[%s270 + $0x7d8] sm:$0xff]
        %v600 = vld [vmem:[%s270 + $0x7e0] sm:$0xff]
        %v601 = vld [vmem:[%s270 + $0x7e8] sm:$0xff]
        %v602 = vld [vmem:[%s270 + $0x7f0] sm:$0xff]
        %v603 = vld [vmem:[%s270 + $0x7f8] sm:$0xff]
        %v604 = vld [vmem:[%s270 + $0x800] sm:$0xff]
        %v605 = vld [vmem:[%s270 + $0x808] sm:$0xff]
        %v606 = vld [vmem:[%s270 + $0x810] sm:$0xff]
        %v607 = vld [vmem:[%s270 + $0x818] sm:$0xff]
        %v608 = vld [vmem:[%s270 + $0x820] sm:$0xff]
        %v609 = vld [vmem:[%s270 + $0x828] sm:$0xff]
        %v610 = vld [vmem:[%s270 + $0x830] sm:$0xff]
        %v611 = vld [vmem:[%s270 + $0x838] sm:$0xff]
        %v612 = vld [vmem:[%s270 + $0x840] sm:$0xff]
        %v613 = vld [vmem:[%s270 + $0x848] sm:$0xff]
        %v614 = vld [vmem:[%s270 + $0x850] sm:$0xff]
        %v615 = vld [vmem:[%s270 + $0x858] sm:$0xff]
        %v616 = vld [vmem:[%s270 + $0x860] sm:$0xff]
        %v617 = vld [vmem:[%s270 + $0x868] sm:$0xff]
        %v618 = vld [vmem:[%s270 + $0x870] sm:$0xff]
        %v619 = vld [vmem:[%s270 + $0x878] sm:$0xff]
        %v620 = vld [vmem:[%s270 + $0x880] sm:$0xff]
        %v621 = vld [vmem:[%s270 + $0x888] sm:$0xff]
        %v622 = vld [vmem:[%s270 + $0x890] sm:$0xff]
        %v623 = vld [vmem:[%s270 + $0x898] sm:$0xff]
        %v624 = vld [vmem:[%s270 + $0x8a0] sm:$0xff]
        %v625 = vld [vmem:[%s270 + $0x8a8] sm:$0xff]
        %v626 = vld [vmem:[%s270 + $0x8b0] sm:$0xff]
        %v627 = vld [vmem:[%s270 + $0x8b8] sm:$0xff]
        %v628 = vld [vmem:[%s270 + $0x8c0] sm:$0xff]
        %v629 = vld [vmem:[%s270 + $0x8c8] sm:$0xff]
        %v630 = vld [vmem:[%s270 + $0x8d0] sm:$0xff]
        %v631 = vld [vmem:[%s270 + $0x8d8] sm:$0xff]
        %v632 = vld [vmem:[%s270 + $0x8e0] sm:$0xff]
        %v633 = vld [vmem:[%s270 + $0x8e8] sm:$0xff]
        %v634 = vld [vmem:[%s270 + $0x8f0] sm:$0xff]
        %v635 = vld [vmem:[%s270 + $0x8f8] sm:$0xff]
        %v636 = vld [vmem:[%s270 + $0x900] sm:$0xff]
        %v637 = vld [vmem:[%s270 + $0x908] sm:$0xff]
        %v638 = vld [vmem:[%s270 + $0x910] sm:$0xff]
        %v639 = vld [vmem:[%s270 + $0x918] sm:$0xff]
        %v640 = vld [vmem:[%s270 + $0x920] sm:$0xff]
        %v641 = vld [vmem:[%s270 + $0x928] sm:$0xff]
        %v642 = vld [vmem:[%s270 + $0x930] sm:$0xff]
        %v643 = vld [vmem:[%s270 + $0x938] sm:$0xff]
        %v644 = vld [vmem:[%s270 + $0x940] sm:$0xff]
        %v645 = vld [vmem:[%s270 + $0x948] sm:$0xff]
        %v646 = vld [vmem:[%s270 + $0x950] sm:$0xff]
        %v647 = vld [vmem:[%s270 + $0x958] sm:$0xff]
        %v648 = vld [vmem:[%s270 + $0x960] sm:$0xff]
        %v649 = vld [vmem:[%s270 + $0x968] sm:$0xff]
        %v650 = vld [vmem:[%s270 + $0x970] sm:$0xff]
        %v651 = vld [vmem:[%s270 + $0x978] sm:$0xff]
        %v652 = vld [vmem:[%s270 + $0x980] sm:$0xff]
        %v653 = vld [vmem:[%s270 + $0x988] sm:$0xff]
        %v654 = vld [vmem:[%s270 + $0x990] sm:$0xff]
        %v655 = vld [vmem:[%s270 + $0x998] sm:$0xff]
        %v656 = vld [vmem:[%s270 + $0x9a0] sm:$0xff]
        %v657 = vld [vmem:[%s270 + $0x9a8] sm:$0xff]
        %v658 = vld [vmem:[%s270 + $0x9b0] sm:$0xff]
        %v659 = vld [vmem:[%s270 + $0x9b8] sm:$0xff]
        %v660 = vld [vmem:[%s270 + $0x9c0] sm:$0xff]
        %v661 = vld [vmem:[%s270 + $0x9c8] sm:$0xff]
        %v662 = vld [vmem:[%s270 + $0x9d0] sm:$0xff]
        %v663 = vld [vmem:[%s270 + $0x9d8] sm:$0xff]
        %v664 = vld [vmem:[%s270 + $0x9e0] sm:$0xff]
        %v665 = vld [vmem:[%s270 + $0x9e8] sm:$0xff]
        %v666 = vld [vmem:[%s270 + $0x9f0] sm:$0xff]
        %v667 = vld [vmem:[%s270 + $0x9f8] sm:$0xff]
        %v668 = vld [vmem:[%s270 + $0xa00] sm:$0xff]
        %v669 = vld [vmem:[%s270 + $0xa08] sm:$0xff]
        %v670 = vld [vmem:[%s270 + $0xa10] sm:$0xff]
        %v671 = vld [vmem:[%s270 + $0xa18] sm:$0xff]
        %v672 = vld [vmem:[%s270 + $0xa20] sm:$0xff]
        %v673 = vld [vmem:[%s270 + $0xa28] sm:$0xff]
        %v674 = vld [vmem:[%s270 + $0xa30] sm:$0xff]
        %v675 = vld [vmem:[%s270 + $0xa38] sm:$0xff]
        %v676 = vld [vmem:[%s270 + $0xa40] sm:$0xff]
        %v677 = vld [vmem:[%s270 + $0xa48] sm:$0xff]
        %v678 = vld [vmem:[%s270 + $0xa50] sm:$0xff]
        %v679 = vld [vmem:[%s270 + $0xa58] sm:$0xff]
        %v680 = vld [vmem:[%s270 + $0xa60] sm:$0xff]
        %v681 = vld [vmem:[%s270 + $0xa68] sm:$0xff]
        %v682 = vld [vmem:[%s270 + $0xa70] sm:$0xff]
        %v683 = vld [vmem:[%s270 + $0xa78] sm:$0xff]
        %v684 = vld [vmem:[%s270 + $0xa80] sm:$0xff]
        %v685 = vld [vmem:[%s270 + $0xa88] sm:$0xff]
        %v686 = vld [vmem:[%s270 + $0xa90] sm:$0xff]
        %v687 = vld [vmem:[%s270 + $0xa98] sm:$0xff]
        %v688 = vld [vmem:[%s270 + $0xaa0] sm:$0xff]
        %v689 = vld [vmem:[%s270 + $0xaa8] sm:$0xff]
        %v690 = vld [vmem:[%s270 + $0xab0] sm:$0xff]
        %v691 = vld [vmem:[%s270 + $0xab8] sm:$0xff]
        %v692 = vld [vmem:[%s270 + $0xac0] sm:$0xff]
        %v693 = vld [vmem:[%s270 + $0xac8] sm:$0xff]
        %v694 = vld [vmem:[%s270 + $0xad0] sm:$0xff]
        %v695 = vld [vmem:[%s270 + $0xad8] sm:$0xff]
        %v696 = vld [vmem:[%s270 + $0xae0] sm:$0xff]
        %v697 = vld [vmem:[%s270 + $0xae8] sm:$0xff]
        %v698 = vld [vmem:[%s270 + $0xaf0] sm:$0xff]
        %v699 = vld [vmem:[%s270 + $0xaf8] sm:$0xff]
        %v700 = vld [vmem:[%s270 + $0xb00] sm:$0xff]
        %v701 = vld [vmem:[%s270 + $0xb08] sm:$0xff]
        %v702 = vld [vmem:[%s270 + $0xb10] sm:$0xff]
        %v703 = vld [vmem:[%s270 + $0xb18] sm:$0xff]
        %v704 = vld [vmem:[%s270 + $0xb20] sm:$0xff]
        %v705 = vld [vmem:[%s270 + $0xb28] sm:$0xff]
        %v706 = vld [vmem:[%s270 + $0xb30] sm:$0xff]
        %v707 = vld [vmem:[%s270 + $0xb38] sm:$0xff]
        %v708 = vld [vmem:[%s270 + $0xb40] sm:$0xff]
        %v709 = vld [vmem:[%s270 + $0xb48] sm:$0xff]
        %v710 = vld [vmem:[%s270 + $0xb50] sm:$0xff]
        %v711 = vld [vmem:[%s270 + $0xb58] sm:$0xff]
        %v712 = vld [vmem:[%s270 + $0xb60] sm:$0xff]
        %v713 = vld [vmem:[%s270 + $0xb68] sm:$0xff]
        %v714 = vld [vmem:[%s270 + $0xb70] sm:$0xff]
        %v715 = vld [vmem:[%s270 + $0xb78] sm:$0xff]
        %v716 = vld [vmem:[%s270 + $0xb80] sm:$0xff]
        %v717 = vld [vmem:[%s270 + $0xb88] sm:$0xff]
        %v718 = vld [vmem:[%s270 + $0xb90] sm:$0xff]
        %v719 = vld [vmem:[%s270 + $0xb98] sm:$0xff]
        %v720 = vld [vmem:[%s270 + $0xba0] sm:$0xff]
        %v721 = vld [vmem:[%s270 + $0xba8] sm:$0xff]
        %v722 = vld [vmem:[%s270 + $0xbb0] sm:$0xff]
        %v723 = vld [vmem:[%s270 + $0xbb8] sm:$0xff]
        %v724 = vld [vmem:[%s270 + $0xbc0] sm:$0xff]
        %v725 = vld [vmem:[%s270 + $0xbc8] sm:$0xff]
        %v726 = vld [vmem:[%s270 + $0xbd0] sm:$0xff]
        %v727 = vld [vmem:[%s270 + $0xbd8] sm:$0xff]
        %v728 = vld [vmem:[%s270 + $0xbe0] sm:$0xff]
        %v729 = vld [vmem:[%s270 + $0xbe8] sm:$0xff]
        %v730 = vld [vmem:[%s270 + $0xbf0] sm:$0xff]
        %v731 = vld [vmem:[%s270 + $0xbf8] sm:$0xff]
        %v732 = vld [vmem:[%s270 + $0xc00] sm:$0xff]
        %v733 = vld [vmem:[%s270 + $0xc08] sm:$0xff]
        %v734 = vld [vmem:[%s270 + $0xc10] sm:$0xff]
        %v735 = vld [vmem:[%s270 + $0xc18] sm:$0xff]
        %v736 = vld [vmem:[%s270 + $0xc20] sm:$0xff]
        %v737 = vld [vmem:[%s270 + $0xc28] sm:$0xff]
        %v738 = vld [vmem:[%s270 + $0xc30] sm:$0xff]
        %v739 = vld [vmem:[%s270 + $0xc38] sm:$0xff]
        %v740 = vld [vmem:[%s270 + $0xc40] sm:$0xff]
        %v741 = vld [vmem:[%s270 + $0xc48] sm:$0xff]
        %v742 = vld [vmem:[%s270 + $0xc50] sm:$0xff]
        %v743 = vld [vmem:[%s270 + $0xc58] sm:$0xff]
        %v744 = vld [vmem:[%s270 + $0xc60] sm:$0xff]
        %v745 = vld [vmem:[%s270 + $0xc68] sm:$0xff]
        %v746 = vld [vmem:[%s270 + $0xc70] sm:$0xff]
        %v747 = vld [vmem:[%s270 + $0xc78] sm:$0xff]
        %v748 = vld [vmem:[%s270 + $0xc80] sm:$0xff]
        %v749 = vld [vmem:[%s270 + $0xc88] sm:$0xff]
        %v750 = vld [vmem:[%s270 + $0xc90] sm:$0xff]
        %v751 = vld [vmem:[%s270 + $0xc98] sm:$0xff]
        %v752 = vld [vmem:[%s270 + $0xca0] sm:$0xff]
        %v753 = vld [vmem:[%s270 + $0xca8] sm:$0xff]
        %v754 = vld [vmem:[%s270 + $0xcb0] sm:$0xff]
        %v755 = vld [vmem:[%s270 + $0xcb8] sm:$0xff]
        %v756 = vld [vmem:[%s270 + $0xcc0] sm:$0xff]
        %v757 = vld [vmem:[%s270 + $0xcc8] sm:$0xff]
        %v758 = vld [vmem:[%s270 + $0xcd0] sm:$0xff]
        %v759 = vld [vmem:[%s270 + $0xcd8] sm:$0xff]
        %v760 = vld [vmem:[%s270 + $0xce0] sm:$0xff]
        %v761 = vld [vmem:[%s270 + $0xce8] sm:$0xff]
        %v762 = vld [vmem:[%s270 + $0xcf0] sm:$0xff]
        %v763 = vld [vmem:[%s270 + $0xcf8] sm:$0xff]
        %v764 = vld [vmem:[%s270 + $0xd00] sm:$0xff]
        %v765 = vld [vmem:[%s270 + $0xd08] sm:$0xff]
        %v766 = vld [vmem:[%s270 + $0xd10] sm:$0xff]
        %v767 = vld [vmem:[%s270 + $0xd18] sm:$0xff]
        %v768 = vld [vmem:[%s270 + $0xd20] sm:$0xff]
        %v769 = vld [vmem:[%s270 + $0xd28] sm:$0xff]
        %v770 = vld [vmem:[%s270 + $0xd30] sm:$0xff]
        %v771 = vld [vmem:[%s270 + $0xd38] sm:$0xff]
        %v772 = vld [vmem:[%s270 + $0xd40] sm:$0xff]
        %v773 = vld [vmem:[%s270 + $0xd48] sm:$0xff]
        %v774 = vld [vmem:[%s270 + $0xd50] sm:$0xff]
        %v775 = vld [vmem:[%s270 + $0xd58] sm:$0xff]
        %v776 = vld [vmem:[%s270 + $0xd60] sm:$0xff]
        %v777 = vld [vmem:[%s270 + $0xd68] sm:$0xff]
        %v778 = vld [vmem:[%s270 + $0xd70] sm:$0xff]
        %v779 = vld [vmem:[%s270 + $0xd78] sm:$0xff]
        %v780 = vld [vmem:[%s270 + $0xd80] sm:$0xff]
        %v781 = vld [vmem:[%s270 + $0xd88] sm:$0xff]
        %v782 = vld [vmem:[%s270 + $0xd90] sm:$0xff]
        %v783 = vld [vmem:[%s270 + $0xd98] sm:$0xff]
        %v784 = vld [vmem:[%s270 + $0xda0] sm:$0xff]
        %v785 = vld [vmem:[%s270 + $0xda8] sm:$0xff]
        %v786 = vld [vmem:[%s270 + $0xdb0] sm:$0xff]
        %v787 = vld [vmem:[%s270 + $0xdb8] sm:$0xff]
        %v788 = vld [vmem:[%s270 + $0xdc0] sm:$0xff]
        %v789 = vld [vmem:[%s270 + $0xdc8] sm:$0xff]
        %v790 = vld [vmem:[%s270 + $0xdd0] sm:$0xff]
        %v791 = vld [vmem:[%s270 + $0xdd8] sm:$0xff]
        %v792 = vld [vmem:[%s270 + $0xde0] sm:$0xff]
        %v793 = vld [vmem:[%s270 + $0xde8] sm:$0xff]
        %v794 = vld [vmem:[%s270 + $0xdf0] sm:$0xff]
        %v795 = vld [vmem:[%s270 + $0xdf8] sm:$0xff]
        %v796 = vld [vmem:[%s270 + $0xe00] sm:$0xff]
        %v797 = vld [vmem:[%s270 + $0xe08] sm:$0xff]
        %v798 = vld [vmem:[%s270 + $0xe10] sm:$0xff]
        %v799 = vld [vmem:[%s270 + $0xe18] sm:$0xff]
        %v800 = vld [vmem:[%s270 + $0xe20] sm:$0xff]
        %v801 = vld [vmem:[%s270 + $0xe28] sm:$0xff]
        %v802 = vld [vmem:[%s270 + $0xe30] sm:$0xff]
        %v803 = vld [vmem:[%s270 + $0xe38] sm:$0xff]
        %v804 = vld [vmem:[%s270 + $0xe40] sm:$0xff]
        %v805 = vld [vmem:[%s270 + $0xe48] sm:$0xff]
        %v806 = vld [vmem:[%s270 + $0xe50] sm:$0xff]
        %v807 = vld [vmem:[%s270 + $0xe58] sm:$0xff]
        %v808 = vld [vmem:[%s270 + $0xe60] sm:$0xff]
        %v809 = vld [vmem:[%s270 + $0xe68] sm:$0xff]
        %v810 = vld [vmem:[%s270 + $0xe70] sm:$0xff]
        %v811 = vld [vmem:[%s270 + $0xe78] sm:$0xff]
        %v812 = vld [vmem:[%s270 + $0xe80] sm:$0xff]
        %v813 = vld [vmem:[%s270 + $0xe88] sm:$0xff]
        %v814 = vld [vmem:[%s270 + $0xe90] sm:$0xff]
        %v815 = vld [vmem:[%s270 + $0xe98] sm:$0xff]
        %v816 = vld [vmem:[%s270 + $0xea0] sm:$0xff]
        %v817 = vld [vmem:[%s270 + $0xea8] sm:$0xff]
        %v818 = vld [vmem:[%s270 + $0xeb0] sm:$0xff]
        %v819 = vld [vmem:[%s270 + $0xeb8] sm:$0xff]
        %v820 = vld [vmem:[%s270 + $0xec0] sm:$0xff]
        %v821 = vld [vmem:[%s270 + $0xec8] sm:$0xff]
        %v822 = vld [vmem:[%s270 + $0xed0] sm:$0xff]
        %v823 = vld [vmem:[%s270 + $0xed8] sm:$0xff]
        %v824 = vld [vmem:[%s270 + $0xee0] sm:$0xff]
        %v825 = vld [vmem:[%s270 + $0xee8] sm:$0xff]
        %v826 = vld [vmem:[%s270 + $0xef0] sm:$0xff]
        %v827 = vld [vmem:[%s270 + $0xef8] sm:$0xff]
        %v828 = vld [vmem:[%s270 + $0xf00] sm:$0xff]
        %v829 = vld [vmem:[%s270 + $0xf08] sm:$0xff]
        %v830 = vld [vmem:[%s270 + $0xf10] sm:$0xff]
        %v831 = vld [vmem:[%s270 + $0xf18] sm:$0xff]
        %v832 = vld [vmem:[%s270 + $0xf20] sm:$0xff]
        %v833 = vld [vmem:[%s270 + $0xf28] sm:$0xff]
        %v834 = vld [vmem:[%s270 + $0xf30] sm:$0xff]
        %v835 = vld [vmem:[%s270 + $0xf38] sm:$0xff]
        %v836 = vld [vmem:[%s270 + $0xf40] sm:$0xff]
        %v837 = vld [vmem:[%s270 + $0xf48] sm:$0xff]
        %v838 = vld [vmem:[%s270 + $0xf50] sm:$0xff]
        %v839 = vld [vmem:[%s270 + $0xf58] sm:$0xff]
        %v840 = vld [vmem:[%s270 + $0xf60] sm:$0xff]
        %v841 = vld [vmem:[%s270 + $0xf68] sm:$0xff]
        %v842 = vld [vmem:[%s270 + $0xf70] sm:$0xff]
        %v843 = vld [vmem:[%s270 + $0xf78] sm:$0xff]
        %v844 = vld [vmem:[%s270 + $0xf80] sm:$0xff]
        %v845 = vld [vmem:[%s270 + $0xf88] sm:$0xff]
        %v846 = vld [vmem:[%s270 + $0xf90] sm:$0xff]
        %v847 = vld [vmem:[%s270 + $0xf98] sm:$0xff]
        %v848 = vld [vmem:[%s270 + $0xfa0] sm:$0xff]
        %v849 = vld [vmem:[%s270 + $0xfa8] sm:$0xff]
        %v850 = vld [vmem:[%s270 + $0xfb0] sm:$0xff]
        %v851 = vld [vmem:[%s270 + $0xfb8] sm:$0xff]
        %v852 = vld [vmem:[%s270 + $0xfc0] sm:$0xff]
        %v853 = vld [vmem:[%s270 + $0xfc8] sm:$0xff]
        %v854 = vld [vmem:[%s270 + $0xfd0] sm:$0xff]
        %v855 = vld [vmem:[%s270 + $0xfd8] sm:$0xff]
        %v856 = vld [vmem:[%s270 + $0xfe0] sm:$0xff]
        %v857 = vld [vmem:[%s270 + $0xfe8] sm:$0xff]
        %v858 = vld [vmem:[%s270 + $0xff0] sm:$0xff]
        %v859 = vld [vmem:[%s270 + $0xff8] sm:$0xff]
        %v860 = vld [vmem:[%s270 + $0x1000] sm:$0xff]
        %v861 = vld [vmem:[%s270 + $0x1008] sm:$0xff]
        %v862 = vld [vmem:[%s270 + $0x1010] sm:$0xff]
        %v863 = vld [vmem:[%s270 + $0x1018] sm:$0xff]
        %v864 = vld [vmem:[%s270 + $0x1020] sm:$0xff]
        %v865 = vld [vmem:[%s270 + $0x1028] sm:$0xff]
        %v866 = vld [vmem:[%s270 + $0x1030] sm:$0xff]
        %v867 = vld [vmem:[%s270 + $0x1038] sm:$0xff]
        %v868 = vld [vmem:[%s270 + $0x1040] sm:$0xff]
        %v869 = vld [vmem:[%s270 + $0x1048] sm:$0xff]
        %v870 = vld [vmem:[%s270 + $0x1050] sm:$0xff]
        %v871 = vld [vmem:[%s270 + $0x1058] sm:$0xff]
        %v872 = vld [vmem:[%s270 + $0x1060] sm:$0xff]
        %v873 = vld [vmem:[%s270 + $0x1068] sm:$0xff]
        %v874 = vld [vmem:[%s270 + $0x1070] sm:$0xff]
        %v875 = vld [vmem:[%s270 + $0x1078] sm:$0xff]
        %v876 = vld [vmem:[%s270 + $0x1080] sm:$0xff]
        %v877 = vld [vmem:[%s270 + $0x1088] sm:$0xff]
        %v878 = vld [vmem:[%s270 + $0x1090] sm:$0xff]
        %v879 = vld [vmem:[%s270 + $0x1098] sm:$0xff]
        %v880 = vld [vmem:[%s270 + $0x10a0] sm:$0xff]
        %v881 = vld [vmem:[%s270 + $0x10a8] sm:$0xff]
        %v882 = vld [vmem:[%s270 + $0x10b0] sm:$0xff]
        %v883 = vld [vmem:[%s270 + $0x10b8] sm:$0xff]
        %v884 = vld [vmem:[%s270 + $0x10c0] sm:$0xff]
        %v885 = vld [vmem:[%s270 + $0x10c8] sm:$0xff]
        %v886 = vld [vmem:[%s270 + $0x10d0] sm:$0xff]
        %v887 = vld [vmem:[%s270 + $0x10d8] sm:$0xff]
        %v888 = vld [vmem:[%s270 + $0x10e0] sm:$0xff]
        %v889 = vld [vmem:[%s270 + $0x10e8] sm:$0xff]
        %v890 = vld [vmem:[%s270 + $0x10f0] sm:$0xff]
        %v891 = vld [vmem:[%s270 + $0x10f8] sm:$0xff]
        %v892 = vld [vmem:[%s270 + $0x1100] sm:$0xff]
        %v893 = vld [vmem:[%s270 + $0x1108] sm:$0xff]
        %v894 = vld [vmem:[%s270 + $0x1110] sm:$0xff]
        %v895 = vld [vmem:[%s270 + $0x1118] sm:$0xff]
        %v896 = vld [vmem:[%s270 + $0x1120] sm:$0xff]
        %v897 = vld [vmem:[%s270 + $0x1128] sm:$0xff]
        %v898 = vld [vmem:[%s270 + $0x1130] sm:$0xff]
        %v899 = vld [vmem:[%s270 + $0x1138] sm:$0xff]
        %v900 = vld [vmem:[%s270 + $0x1140] sm:$0xff]
        %v901 = vld [vmem:[%s270 + $0x1148] sm:$0xff]
        %v902 = vld [vmem:[%s270 + $0x1150] sm:$0xff]
        %v903 = vld [vmem:[%s270 + $0x1158] sm:$0xff]
        %v904 = vld [vmem:[%s270 + $0x1160] sm:$0xff]
        %v905 = vld [vmem:[%s270 + $0x1168] sm:$0xff]
        %v906 = vld [vmem:[%s270 + $0x1170] sm:$0xff]
        %v907 = vld [vmem:[%s270 + $0x1178] sm:$0xff]
        %v908 = vld [vmem:[%s270 + $0x1180] sm:$0xff]
        %v909 = vld [vmem:[%s270 + $0x1188] sm:$0xff]
        %v910 = vld [vmem:[%s270 + $0x1190] sm:$0xff]
        %v911 = vld [vmem:[%s270 + $0x1198] sm:$0xff]
        %v912 = vld [vmem:[%s270 + $0x11a0] sm:$0xff]
        %v913 = vld [vmem:[%s270 + $0x11a8] sm:$0xff]
        %v914 = vld [vmem:[%s270 + $0x11b0] sm:$0xff]
        %v915 = vld [vmem:[%s270 + $0x11b8] sm:$0xff]
        %v916 = vld [vmem:[%s270 + $0x11c0] sm:$0xff]
        %v917 = vld [vmem:[%s270 + $0x11c8] sm:$0xff]
        %v918 = vld [vmem:[%s270 + $0x11d0] sm:$0xff]
        %v919 = vld [vmem:[%s270 + $0x11d8] sm:$0xff]
        %v920 = vld [vmem:[%s270 + $0x11e0] sm:$0xff]
        %v921 = vld [vmem:[%s270 + $0x11e8] sm:$0xff]
        %v922 = vld [vmem:[%s270 + $0x11f0] sm:$0xff]
        %v923 = vld [vmem:[%s270 + $0x11f8] sm:$0xff]
        %v924 = vld [vmem:[%s270 + $0x1200] sm:$0xff]
        %v925 = vld [vmem:[%s270 + $0x1208] sm:$0xff]
        %v926 = vld [vmem:[%s270 + $0x1210] sm:$0xff]
        %v927 = vld [vmem:[%s270 + $0x1218] sm:$0xff]
        %v928 = vld [vmem:[%s270 + $0x1220] sm:$0xff]
        %v929 = vld [vmem:[%s270 + $0x1228] sm:$0xff]
        %v930 = vld [vmem:[%s270 + $0x1230] sm:$0xff]
        %v931 = vld [vmem:[%s270 + $0x1238] sm:$0xff]
        %v932 = vld [vmem:[%s270 + $0x1240] sm:$0xff]
        %v933 = vld [vmem:[%s270 + $0x1248] sm:$0xff]
        %v934 = vld [vmem:[%s270 + $0x1250] sm:$0xff]
        %v935 = vld [vmem:[%s270 + $0x1258] sm:$0xff]
        %v936 = vld [vmem:[%s270 + $0x1260] sm:$0xff]
        %v937 = vld [vmem:[%s270 + $0x1268] sm:$0xff]
        %v938 = vld [vmem:[%s270 + $0x1270] sm:$0xff]
        %v939 = vld [vmem:[%s270 + $0x1278] sm:$0xff]
        %v940 = vld [vmem:[%s270 + $0x1280] sm:$0xff]
        %v941 = vld [vmem:[%s270 + $0x1288] sm:$0xff]
        %v942 = vld [vmem:[%s270 + $0x1290] sm:$0xff]
        %v943 = vld [vmem:[%s270 + $0x1298] sm:$0xff]
        %v944 = vld [vmem:[%s270 + $0x12a0] sm:$0xff]
        %v945 = vld [vmem:[%s270 + $0x12a8] sm:$0xff]
        %v946 = vld [vmem:[%s270 + $0x12b0] sm:$0xff]
        %v947 = vld [vmem:[%s270 + $0x12b8] sm:$0xff]
        %v948 = vld [vmem:[%s270 + $0x12c0] sm:$0xff]
        %v949 = vld [vmem:[%s270 + $0x12c8] sm:$0xff]
        %v950 = vld [vmem:[%s270 + $0x12d0] sm:$0xff]
        %v951 = vld [vmem:[%s270 + $0x12d8] sm:$0xff]
        %v952 = vld [vmem:[%s270 + $0x12e0] sm:$0xff]
        %v953 = vld [vmem:[%s270 + $0x12e8] sm:$0xff]
        %v954 = vld [vmem:[%s270 + $0x12f0] sm:$0xff]
        %v955 = vld [vmem:[%s270 + $0x12f8] sm:$0xff]
        %v956 = vld [vmem:[%s270 + $0x1300] sm:$0xff]
        %v957 = vld [vmem:[%s270 + $0x1308] sm:$0xff]
        %v958 = vld [vmem:[%s270 + $0x1310] sm:$0xff]
        %v959 = vld [vmem:[%s270 + $0x1318] sm:$0xff]
        %v960 = vld [vmem:[%s270 + $0x1320] sm:$0xff]
        %v961 = vld [vmem:[%s270 + $0x1328] sm:$0xff]
        %v962 = vld [vmem:[%s270 + $0x1330] sm:$0xff]
        %v963 = vld [vmem:[%s270 + $0x1338] sm:$0xff]
        %v964 = vld [vmem:[%s270 + $0x1340] sm:$0xff]
        %v965 = vld [vmem:[%s270 + $0x1348] sm:$0xff]
        %v966 = vld [vmem:[%s270 + $0x1350] sm:$0xff]
        %v967 = vld [vmem:[%s270 + $0x1358] sm:$0xff]
        %v968 = vld [vmem:[%s270 + $0x1360] sm:$0xff]
        %v969 = vld [vmem:[%s270 + $0x1368] sm:$0xff]
        %v970 = vld [vmem:[%s270 + $0x1370] sm:$0xff]
        %v971 = vld [vmem:[%s270 + $0x1378] sm:$0xff]
        %v972 = vunpack.c.0.s8 %v348
        %v973 = vunpack.c.0.s8 %v349
        %v974 = vunpack.c.0.s8 %v350
        %v975 = vunpack.c.0.s8 %v351
        %v976 = vunpack.c.1.s8 %v348
        %v977 = vunpack.c.1.s8 %v349
        %v978 = vunpack.c.1.s8 %v350
        %v979 = vunpack.c.1.s8 %v351
        %v980 = vunpack.c.2.s8 %v348
        %v981 = vunpack.c.2.s8 %v349
        %v982 = vunpack.c.2.s8 %v350
        %v983 = vunpack.c.2.s8 %v351
        %v984 = vunpack.c.3.s8 %v348
        %v985 = vunpack.c.3.s8 %v349
        %v986 = vunpack.c.3.s8 %v350
        %v987 = vunpack.c.3.s8 %v351
        %v988 = vunpack.c.0.s8 %v352
        %v989 = vunpack.c.0.s8 %v353
        %v990 = vunpack.c.0.s8 %v354
        %v991 = vunpack.c.0.s8 %v355
        %v992 = vunpack.c.1.s8 %v352
        %v993 = vunpack.c.1.s8 %v353
        %v994 = vunpack.c.1.s8 %v354
        %v995 = vunpack.c.1.s8 %v355
        %v996 = vunpack.c.2.s8 %v352
        %v997 = vunpack.c.2.s8 %v353
        %v998 = vunpack.c.2.s8 %v354
        %v999 = vunpack.c.2.s8 %v355
        %v1000 = vunpack.c.3.s8 %v352
        %v1001 = vunpack.c.3.s8 %v353
        %v1002 = vunpack.c.3.s8 %v354
        %v1003 = vunpack.c.3.s8 %v355
        %v1004 = vunpack.c.0.s8 %v356
        %v1005 = vunpack.c.0.s8 %v357
        %v1006 = vunpack.c.0.s8 %v358
        %v1007 = vunpack.c.0.s8 %v359
        %v1008 = vunpack.c.1.s8 %v356
        %v1009 = vunpack.c.1.s8 %v357
        %v1010 = vunpack.c.1.s8 %v358
        %v1011 = vunpack.c.1.s8 %v359
        %v1012 = vunpack.c.2.s8 %v356
        %v1013 = vunpack.c.2.s8 %v357
        %v1014 = vunpack.c.2.s8 %v358
        %v1015 = vunpack.c.2.s8 %v359
        %v1016 = vunpack.c.3.s8 %v356
        %v1017 = vunpack.c.3.s8 %v357
        %v1018 = vunpack.c.3.s8 %v358
        %v1019 = vunpack.c.3.s8 %v359
        %v1020 = vunpack.c.0.s8 %v360
        %v1021 = vunpack.c.0.s8 %v361
        %v1022 = vunpack.c.0.s8 %v362
        %v1023 = vunpack.c.0.s8 %v363
        %v1024 = vunpack.c.1.s8 %v360
        %v1025 = vunpack.c.1.s8 %v361
        %v1026 = vunpack.c.1.s8 %v362
        %v1027 = vunpack.c.1.s8 %v363
        %v1028 = vunpack.c.2.s8 %v360
        %v1029 = vunpack.c.2.s8 %v361
        %v1030 = vunpack.c.2.s8 %v362
        %v1031 = vunpack.c.2.s8 %v363
        %v1032 = vunpack.c.3.s8 %v360
        %v1033 = vunpack.c.3.s8 %v361
        %v1034 = vunpack.c.3.s8 %v362
        %v1035 = vunpack.c.3.s8 %v363
        %v1036 = vunpack.c.0.s8 %v364
        %v1037 = vunpack.c.0.s8 %v365
        %v1038 = vunpack.c.0.s8 %v366
        %v1039 = vunpack.c.0.s8 %v367
        %v1040 = vunpack.c.1.s8 %v364
        %v1041 = vunpack.c.1.s8 %v365
        %v1042 = vunpack.c.1.s8 %v366
        %v1043 = vunpack.c.1.s8 %v367
        %v1044 = vunpack.c.2.s8 %v364
        %v1045 = vunpack.c.2.s8 %v365
        %v1046 = vunpack.c.2.s8 %v366
        %v1047 = vunpack.c.2.s8 %v367
        %v1048 = vunpack.c.3.s8 %v364
        %v1049 = vunpack.c.3.s8 %v365
        %v1050 = vunpack.c.3.s8 %v366
        %v1051 = vunpack.c.3.s8 %v367
        %v1052 = vunpack.c.0.s8 %v368
        %v1053 = vunpack.c.0.s8 %v369
        %v1054 = vunpack.c.0.s8 %v370
        %v1055 = vunpack.c.0.s8 %v371
        %v1056 = vunpack.c.1.s8 %v368
        %v1057 = vunpack.c.1.s8 %v369
        %v1058 = vunpack.c.1.s8 %v370
        %v1059 = vunpack.c.1.s8 %v371
        %v1060 = vunpack.c.2.s8 %v368
        %v1061 = vunpack.c.2.s8 %v369
        %v1062 = vunpack.c.2.s8 %v370
        %v1063 = vunpack.c.2.s8 %v371
        %v1064 = vunpack.c.3.s8 %v368
        %v1065 = vunpack.c.3.s8 %v369
        %v1066 = vunpack.c.3.s8 %v370
        %v1067 = vunpack.c.3.s8 %v371
        %v1068 = vunpack.c.0.s8 %v372
        %v1069 = vunpack.c.0.s8 %v373
        %v1070 = vunpack.c.0.s8 %v374
        %v1071 = vunpack.c.0.s8 %v375
        %v1072 = vunpack.c.1.s8 %v372
        %v1073 = vunpack.c.1.s8 %v373
        %v1074 = vunpack.c.1.s8 %v374
        %v1075 = vunpack.c.1.s8 %v375
        %v1076 = vunpack.c.2.s8 %v372
        %v1077 = vunpack.c.2.s8 %v373
        %v1078 = vunpack.c.2.s8 %v374
        %v1079 = vunpack.c.2.s8 %v375
        %v1080 = vunpack.c.3.s8 %v372
        %v1081 = vunpack.c.3.s8 %v373
        %v1082 = vunpack.c.3.s8 %v374
        %v1083 = vunpack.c.3.s8 %v375
        %v1084 = vunpack.c.0.s8 %v376
        %v1085 = vunpack.c.0.s8 %v377
        %v1086 = vunpack.c.0.s8 %v378
        %v1087 = vunpack.c.0.s8 %v379
        %v1088 = vunpack.c.1.s8 %v376
        %v1089 = vunpack.c.1.s8 %v377
        %v1090 = vunpack.c.1.s8 %v378
        %v1091 = vunpack.c.1.s8 %v379
        %v1092 = vunpack.c.2.s8 %v376
        %v1093 = vunpack.c.2.s8 %v377
        %v1094 = vunpack.c.2.s8 %v378
        %v1095 = vunpack.c.2.s8 %v379
        %v1096 = vunpack.c.3.s8 %v376
        %v1097 = vunpack.c.3.s8 %v377
        %v1098 = vunpack.c.3.s8 %v378
        %v1099 = vunpack.c.3.s8 %v379
        %v1100 = vunpack.c.0.s8 %v380
        %v1101 = vunpack.c.0.s8 %v381
        %v1102 = vunpack.c.0.s8 %v382
        %v1103 = vunpack.c.0.s8 %v383
        %v1104 = vunpack.c.1.s8 %v380
        %v1105 = vunpack.c.1.s8 %v381
        %v1106 = vunpack.c.1.s8 %v382
        %v1107 = vunpack.c.1.s8 %v383
        %v1108 = vunpack.c.2.s8 %v380
        %v1109 = vunpack.c.2.s8 %v381
        %v1110 = vunpack.c.2.s8 %v382
        %v1111 = vunpack.c.2.s8 %v383
        %v1112 = vunpack.c.3.s8 %v380
        %v1113 = vunpack.c.3.s8 %v381
        %v1114 = vunpack.c.3.s8 %v382
        %v1115 = vunpack.c.3.s8 %v383
        %v1116 = vunpack.c.0.s8 %v384
        %v1117 = vunpack.c.0.s8 %v385
        %v1118 = vunpack.c.0.s8 %v386
        %v1119 = vunpack.c.0.s8 %v387
        %v1120 = vunpack.c.1.s8 %v384
        %v1121 = vunpack.c.1.s8 %v385
        %v1122 = vunpack.c.1.s8 %v386
        %v1123 = vunpack.c.1.s8 %v387
        %v1124 = vunpack.c.2.s8 %v384
        %v1125 = vunpack.c.2.s8 %v385
        %v1126 = vunpack.c.2.s8 %v386
        %v1127 = vunpack.c.2.s8 %v387
        %v1128 = vunpack.c.3.s8 %v384
        %v1129 = vunpack.c.3.s8 %v385
        %v1130 = vunpack.c.3.s8 %v386
        %v1131 = vunpack.c.3.s8 %v387
        %v1132 = vunpack.c.0.s8 %v388
        %v1133 = vunpack.c.0.s8 %v389
        %v1134 = vunpack.c.0.s8 %v390
        %v1135 = vunpack.c.0.s8 %v391
        %v1136 = vunpack.c.1.s8 %v388
        %v1137 = vunpack.c.1.s8 %v389
        %v1138 = vunpack.c.1.s8 %v390
        %v1139 = vunpack.c.1.s8 %v391
        %v1140 = vunpack.c.2.s8 %v388
        %v1141 = vunpack.c.2.s8 %v389
        %v1142 = vunpack.c.2.s8 %v390
        %v1143 = vunpack.c.2.s8 %v391
        %v1144 = vunpack.c.3.s8 %v388
        %v1145 = vunpack.c.3.s8 %v389
        %v1146 = vunpack.c.3.s8 %v390
        %v1147 = vunpack.c.3.s8 %v391
        %v1148 = vunpack.c.0.s8 %v392
        %v1149 = vunpack.c.0.s8 %v393
        %v1150 = vunpack.c.0.s8 %v394
        %v1151 = vunpack.c.0.s8 %v395
        %v1152 = vunpack.c.1.s8 %v392
        %v1153 = vunpack.c.1.s8 %v393
        %v1154 = vunpack.c.1.s8 %v394
        %v1155 = vunpack.c.1.s8 %v395
        %v1156 = vunpack.c.2.s8 %v392
        %v1157 = vunpack.c.2.s8 %v393
        %v1158 = vunpack.c.2.s8 %v394
        %v1159 = vunpack.c.2.s8 %v395
        %v1160 = vunpack.c.3.s8 %v392
        %v1161 = vunpack.c.3.s8 %v393
        %v1162 = vunpack.c.3.s8 %v394
        %v1163 = vunpack.c.3.s8 %v395
        %v1164 = vunpack.c.0.s8 %v396
        %v1165 = vunpack.c.0.s8 %v397
        %v1166 = vunpack.c.0.s8 %v398
        %v1167 = vunpack.c.0.s8 %v399
        %v1168 = vunpack.c.1.s8 %v396
        %v1169 = vunpack.c.1.s8 %v397
        %v1170 = vunpack.c.1.s8 %v398
        %v1171 = vunpack.c.1.s8 %v399
        %v1172 = vunpack.c.2.s8 %v396
        %v1173 = vunpack.c.2.s8 %v397
        %v1174 = vunpack.c.2.s8 %v398
        %v1175 = vunpack.c.2.s8 %v399
        %v1176 = vunpack.c.3.s8 %v396
        %v1177 = vunpack.c.3.s8 %v397
        %v1178 = vunpack.c.3.s8 %v398
        %v1179 = vunpack.c.3.s8 %v399
        %v1180 = vunpack.c.0.s8 %v400
        %v1181 = vunpack.c.0.s8 %v401
        %v1182 = vunpack.c.0.s8 %v402
        %v1183 = vunpack.c.0.s8 %v403
        %v1184 = vunpack.c.1.s8 %v400
        %v1185 = vunpack.c.1.s8 %v401
        %v1186 = vunpack.c.1.s8 %v402
        %v1187 = vunpack.c.1.s8 %v403
        %v1188 = vunpack.c.2.s8 %v400
        %v1189 = vunpack.c.2.s8 %v401
        %v1190 = vunpack.c.2.s8 %v402
        %v1191 = vunpack.c.2.s8 %v403
        %v1192 = vunpack.c.3.s8 %v400
        %v1193 = vunpack.c.3.s8 %v401
        %v1194 = vunpack.c.3.s8 %v402
        %v1195 = vunpack.c.3.s8 %v403
        %v1196 = vunpack.c.0.s8 %v404
        %v1197 = vunpack.c.0.s8 %v405
        %v1198 = vunpack.c.0.s8 %v406
        %v1199 = vunpack.c.0.s8 %v407
        %v1200 = vunpack.c.1.s8 %v404
        %v1201 = vunpack.c.1.s8 %v405
        %v1202 = vunpack.c.1.s8 %v406
        %v1203 = vunpack.c.1.s8 %v407
        %v1204 = vunpack.c.2.s8 %v404
        %v1205 = vunpack.c.2.s8 %v405
        %v1206 = vunpack.c.2.s8 %v406
        %v1207 = vunpack.c.2.s8 %v407
        %v1208 = vunpack.c.3.s8 %v404
        %v1209 = vunpack.c.3.s8 %v405
        %v1210 = vunpack.c.3.s8 %v406
        %v1211 = vunpack.c.3.s8 %v407
        %v1212 = vunpack.c.0.s8 %v408
        %v1213 = vunpack.c.0.s8 %v409
        %v1214 = vunpack.c.0.s8 %v410
        %v1215 = vunpack.c.0.s8 %v411
        %v1216 = vunpack.c.1.s8 %v408
        %v1217 = vunpack.c.1.s8 %v409
        %v1218 = vunpack.c.1.s8 %v410
        %v1219 = vunpack.c.1.s8 %v411
        %v1220 = vunpack.c.2.s8 %v408
        %v1221 = vunpack.c.2.s8 %v409
        %v1222 = vunpack.c.2.s8 %v410
        %v1223 = vunpack.c.2.s8 %v411
        %v1224 = vunpack.c.3.s8 %v408
        %v1225 = vunpack.c.3.s8 %v409
        %v1226 = vunpack.c.3.s8 %v410
        %v1227 = vunpack.c.3.s8 %v411
        %v1228 = vunpack.c.0.s8 %v412
        %v1229 = vunpack.c.0.s8 %v413
        %v1230 = vunpack.c.0.s8 %v414
        %v1231 = vunpack.c.0.s8 %v415
        %v1232 = vunpack.c.1.s8 %v412
        %v1233 = vunpack.c.1.s8 %v413
        %v1234 = vunpack.c.1.s8 %v414
        %v1235 = vunpack.c.1.s8 %v415
        %v1236 = vunpack.c.2.s8 %v412
        %v1237 = vunpack.c.2.s8 %v413
        %v1238 = vunpack.c.2.s8 %v414
        %v1239 = vunpack.c.2.s8 %v415
        %v1240 = vunpack.c.3.s8 %v412
        %v1241 = vunpack.c.3.s8 %v413
        %v1242 = vunpack.c.3.s8 %v414
        %v1243 = vunpack.c.3.s8 %v415
        %v1244 = vunpack.c.0.s8 %v416
        %v1245 = vunpack.c.0.s8 %v417
        %v1246 = vunpack.c.0.s8 %v418
        %v1247 = vunpack.c.0.s8 %v419
        %v1248 = vunpack.c.1.s8 %v416
        %v1249 = vunpack.c.1.s8 %v417
        %v1250 = vunpack.c.1.s8 %v418
        %v1251 = vunpack.c.1.s8 %v419
        %v1252 = vunpack.c.2.s8 %v416
        %v1253 = vunpack.c.2.s8 %v417
        %v1254 = vunpack.c.2.s8 %v418
        %v1255 = vunpack.c.2.s8 %v419
        %v1256 = vunpack.c.3.s8 %v416
        %v1257 = vunpack.c.3.s8 %v417
        %v1258 = vunpack.c.3.s8 %v418
        %v1259 = vunpack.c.3.s8 %v419
        %v1260 = vunpack.c.0.s8 %v420
        %v1261 = vunpack.c.0.s8 %v421
        %v1262 = vunpack.c.0.s8 %v422
        %v1263 = vunpack.c.0.s8 %v423
        %v1264 = vunpack.c.1.s8 %v420
        %v1265 = vunpack.c.1.s8 %v421
        %v1266 = vunpack.c.1.s8 %v422
        %v1267 = vunpack.c.1.s8 %v423
        %v1268 = vunpack.c.2.s8 %v420
        %v1269 = vunpack.c.2.s8 %v421
        %v1270 = vunpack.c.2.s8 %v422
        %v1271 = vunpack.c.2.s8 %v423
        %v1272 = vunpack.c.3.s8 %v420
        %v1273 = vunpack.c.3.s8 %v421
        %v1274 = vunpack.c.3.s8 %v422
        %v1275 = vunpack.c.3.s8 %v423
        %v1276 = vunpack.c.0.s8 %v424
        %v1277 = vunpack.c.0.s8 %v425
        %v1278 = vunpack.c.0.s8 %v426
        %v1279 = vunpack.c.0.s8 %v427
        %v1280 = vunpack.c.1.s8 %v424
        %v1281 = vunpack.c.1.s8 %v425
        %v1282 = vunpack.c.1.s8 %v426
        %v1283 = vunpack.c.1.s8 %v427
        %v1284 = vunpack.c.2.s8 %v424
        %v1285 = vunpack.c.2.s8 %v425
        %v1286 = vunpack.c.2.s8 %v426
        %v1287 = vunpack.c.2.s8 %v427
        %v1288 = vunpack.c.3.s8 %v424
        %v1289 = vunpack.c.3.s8 %v425
        %v1290 = vunpack.c.3.s8 %v426
        %v1291 = vunpack.c.3.s8 %v427
        %v1292 = vunpack.c.0.s8 %v428
        %v1293 = vunpack.c.0.s8 %v429
        %v1294 = vunpack.c.0.s8 %v430
        %v1295 = vunpack.c.0.s8 %v431
        %v1296 = vunpack.c.1.s8 %v428
        %v1297 = vunpack.c.1.s8 %v429
        %v1298 = vunpack.c.1.s8 %v430
        %v1299 = vunpack.c.1.s8 %v431
        %v1300 = vunpack.c.2.s8 %v428
        %v1301 = vunpack.c.2.s8 %v429
        %v1302 = vunpack.c.2.s8 %v430
        %v1303 = vunpack.c.2.s8 %v431
        %v1304 = vunpack.c.3.s8 %v428
        %v1305 = vunpack.c.3.s8 %v429
        %v1306 = vunpack.c.3.s8 %v430
        %v1307 = vunpack.c.3.s8 %v431
        %v1308 = vunpack.c.0.s8 %v432
        %v1309 = vunpack.c.0.s8 %v433
        %v1310 = vunpack.c.0.s8 %v434
        %v1311 = vunpack.c.0.s8 %v435
        %v1312 = vunpack.c.1.s8 %v432
        %v1313 = vunpack.c.1.s8 %v433
        %v1314 = vunpack.c.1.s8 %v434
        %v1315 = vunpack.c.1.s8 %v435
        %v1316 = vunpack.c.2.s8 %v432
        %v1317 = vunpack.c.2.s8 %v433
        %v1318 = vunpack.c.2.s8 %v434
        %v1319 = vunpack.c.2.s8 %v435
        %v1320 = vunpack.c.3.s8 %v432
        %v1321 = vunpack.c.3.s8 %v433
        %v1322 = vunpack.c.3.s8 %v434
        %v1323 = vunpack.c.3.s8 %v435
        %v1324 = vunpack.c.0.s8 %v436
        %v1325 = vunpack.c.0.s8 %v437
        %v1326 = vunpack.c.0.s8 %v438
        %v1327 = vunpack.c.0.s8 %v439
        %v1328 = vunpack.c.1.s8 %v436
        %v1329 = vunpack.c.1.s8 %v437
        %v1330 = vunpack.c.1.s8 %v438
        %v1331 = vunpack.c.1.s8 %v439
        %v1332 = vunpack.c.2.s8 %v436
        %v1333 = vunpack.c.2.s8 %v437
        %v1334 = vunpack.c.2.s8 %v438
        %v1335 = vunpack.c.2.s8 %v439
        %v1336 = vunpack.c.3.s8 %v436
        %v1337 = vunpack.c.3.s8 %v437
        %v1338 = vunpack.c.3.s8 %v438
        %v1339 = vunpack.c.3.s8 %v439
        %v1340 = vunpack.c.0.s8 %v440
        %v1341 = vunpack.c.0.s8 %v441
        %v1342 = vunpack.c.0.s8 %v442
        %v1343 = vunpack.c.0.s8 %v443
        %v1344 = vunpack.c.1.s8 %v440
        %v1345 = vunpack.c.1.s8 %v441
        %v1346 = vunpack.c.1.s8 %v442
        %v1347 = vunpack.c.1.s8 %v443
        %v1348 = vunpack.c.2.s8 %v440
        %v1349 = vunpack.c.2.s8 %v441
        %v1350 = vunpack.c.2.s8 %v442
        %v1351 = vunpack.c.2.s8 %v443
        %v1352 = vunpack.c.3.s8 %v440
        %v1353 = vunpack.c.3.s8 %v441
        %v1354 = vunpack.c.3.s8 %v442
        %v1355 = vunpack.c.3.s8 %v443
        %v1356 = vunpack.c.0.s8 %v444
        %v1357 = vunpack.c.0.s8 %v445
        %v1358 = vunpack.c.0.s8 %v446
        %v1359 = vunpack.c.0.s8 %v447
        %v1360 = vunpack.c.1.s8 %v444
        %v1361 = vunpack.c.1.s8 %v445
        %v1362 = vunpack.c.1.s8 %v446
        %v1363 = vunpack.c.1.s8 %v447
        %v1364 = vunpack.c.2.s8 %v444
        %v1365 = vunpack.c.2.s8 %v445
        %v1366 = vunpack.c.2.s8 %v446
        %v1367 = vunpack.c.2.s8 %v447
        %v1368 = vunpack.c.3.s8 %v444
        %v1369 = vunpack.c.3.s8 %v445
        %v1370 = vunpack.c.3.s8 %v446
        %v1371 = vunpack.c.3.s8 %v447
        %v1372 = vunpack.c.0.s8 %v448
        %v1373 = vunpack.c.0.s8 %v449
        %v1374 = vunpack.c.0.s8 %v450
        %v1375 = vunpack.c.0.s8 %v451
        %v1376 = vunpack.c.1.s8 %v448
        %v1377 = vunpack.c.1.s8 %v449
        %v1378 = vunpack.c.1.s8 %v450
        %v1379 = vunpack.c.1.s8 %v451
        %v1380 = vunpack.c.2.s8 %v448
        %v1381 = vunpack.c.2.s8 %v449
        %v1382 = vunpack.c.2.s8 %v450
        %v1383 = vunpack.c.2.s8 %v451
        %v1384 = vunpack.c.3.s8 %v448
        %v1385 = vunpack.c.3.s8 %v449
        %v1386 = vunpack.c.3.s8 %v450
        %v1387 = vunpack.c.3.s8 %v451
        %v1388 = vunpack.c.0.s8 %v452
        %v1389 = vunpack.c.0.s8 %v453
        %v1390 = vunpack.c.0.s8 %v454
        %v1391 = vunpack.c.0.s8 %v455
        %v1392 = vunpack.c.1.s8 %v452
        %v1393 = vunpack.c.1.s8 %v453
        %v1394 = vunpack.c.1.s8 %v454
        %v1395 = vunpack.c.1.s8 %v455
        %v1396 = vunpack.c.2.s8 %v452
        %v1397 = vunpack.c.2.s8 %v453
        %v1398 = vunpack.c.2.s8 %v454
        %v1399 = vunpack.c.2.s8 %v455
        %v1400 = vunpack.c.3.s8 %v452
        %v1401 = vunpack.c.3.s8 %v453
        %v1402 = vunpack.c.3.s8 %v454
        %v1403 = vunpack.c.3.s8 %v455
        %v1404 = vunpack.c.0.s8 %v456
        %v1405 = vunpack.c.0.s8 %v457
        %v1406 = vunpack.c.0.s8 %v458
        %v1407 = vunpack.c.0.s8 %v459
        %v1408 = vunpack.c.1.s8 %v456
        %v1409 = vunpack.c.1.s8 %v457
        %v1410 = vunpack.c.1.s8 %v458
        %v1411 = vunpack.c.1.s8 %v459
        %v1412 = vunpack.c.2.s8 %v456
        %v1413 = vunpack.c.2.s8 %v457
        %v1414 = vunpack.c.2.s8 %v458
        %v1415 = vunpack.c.2.s8 %v459
        %v1416 = vunpack.c.3.s8 %v456
        %v1417 = vunpack.c.3.s8 %v457
        %v1418 = vunpack.c.3.s8 %v458
        %v1419 = vunpack.c.3.s8 %v459
        %v1420 = vunpack.c.0.s8 %v460
        %v1421 = vunpack.c.0.s8 %v461
        %v1422 = vunpack.c.0.s8 %v462
        %v1423 = vunpack.c.0.s8 %v463
        %v1424 = vunpack.c.1.s8 %v460
        %v1425 = vunpack.c.1.s8 %v461
        %v1426 = vunpack.c.1.s8 %v462
        %v1427 = vunpack.c.1.s8 %v463
        %v1428 = vunpack.c.2.s8 %v460
        %v1429 = vunpack.c.2.s8 %v461
        %v1430 = vunpack.c.2.s8 %v462
        %v1431 = vunpack.c.2.s8 %v463
        %v1432 = vunpack.c.3.s8 %v460
        %v1433 = vunpack.c.3.s8 %v461
        %v1434 = vunpack.c.3.s8 %v462
        %v1435 = vunpack.c.3.s8 %v463
        %v1436 = vunpack.c.0.s8 %v464
        %v1437 = vunpack.c.0.s8 %v465
        %v1438 = vunpack.c.0.s8 %v466
        %v1439 = vunpack.c.0.s8 %v467
        %v1440 = vunpack.c.1.s8 %v464
        %v1441 = vunpack.c.1.s8 %v465
        %v1442 = vunpack.c.1.s8 %v466
        %v1443 = vunpack.c.1.s8 %v467
        %v1444 = vunpack.c.2.s8 %v464
        %v1445 = vunpack.c.2.s8 %v465
        %v1446 = vunpack.c.2.s8 %v466
        %v1447 = vunpack.c.2.s8 %v467
        %v1448 = vunpack.c.3.s8 %v464
        %v1449 = vunpack.c.3.s8 %v465
        %v1450 = vunpack.c.3.s8 %v466
        %v1451 = vunpack.c.3.s8 %v467
        %v1452 = vunpack.c.0.s8 %v468
        %v1453 = vunpack.c.0.s8 %v469
        %v1454 = vunpack.c.0.s8 %v470
        %v1455 = vunpack.c.0.s8 %v471
        %v1456 = vunpack.c.1.s8 %v468
        %v1457 = vunpack.c.1.s8 %v469
        %v1458 = vunpack.c.1.s8 %v470
        %v1459 = vunpack.c.1.s8 %v471
        %v1460 = vunpack.c.2.s8 %v468
        %v1461 = vunpack.c.2.s8 %v469
        %v1462 = vunpack.c.2.s8 %v470
        %v1463 = vunpack.c.2.s8 %v471
        %v1464 = vunpack.c.3.s8 %v468
        %v1465 = vunpack.c.3.s8 %v469
        %v1466 = vunpack.c.3.s8 %v470
        %v1467 = vunpack.c.3.s8 %v471
        %v1468 = vunpack.c.0.s8 %v472
        %v1469 = vunpack.c.0.s8 %v473
        %v1470 = vunpack.c.0.s8 %v474
        %v1471 = vunpack.c.0.s8 %v475
        %v1472 = vunpack.c.1.s8 %v472
        %v1473 = vunpack.c.1.s8 %v473
        %v1474 = vunpack.c.1.s8 %v474
        %v1475 = vunpack.c.1.s8 %v475
        %v1476 = vunpack.c.2.s8 %v472
        %v1477 = vunpack.c.2.s8 %v473
        %v1478 = vunpack.c.2.s8 %v474
        %v1479 = vunpack.c.2.s8 %v475
        %v1480 = vunpack.c.3.s8 %v472
        %v1481 = vunpack.c.3.s8 %v473
        %v1482 = vunpack.c.3.s8 %v474
        %v1483 = vunpack.c.3.s8 %v475
        %v1484 = vunpack.c.0.s8 %v476
        %v1485 = vunpack.c.0.s8 %v477
        %v1486 = vunpack.c.0.s8 %v478
        %v1487 = vunpack.c.0.s8 %v479
        %v1488 = vunpack.c.1.s8 %v476
        %v1489 = vunpack.c.1.s8 %v477
        %v1490 = vunpack.c.1.s8 %v478
        %v1491 = vunpack.c.1.s8 %v479
        %v1492 = vunpack.c.2.s8 %v476
        %v1493 = vunpack.c.2.s8 %v477
        %v1494 = vunpack.c.2.s8 %v478
        %v1495 = vunpack.c.2.s8 %v479
        %v1496 = vunpack.c.3.s8 %v476
        %v1497 = vunpack.c.3.s8 %v477
        %v1498 = vunpack.c.3.s8 %v478
        %v1499 = vunpack.c.3.s8 %v479
        %v1500 = vunpack.c.0.s8 %v480
        %v1501 = vunpack.c.0.s8 %v481
        %v1502 = vunpack.c.0.s8 %v482
        %v1503 = vunpack.c.0.s8 %v483
        %v1504 = vunpack.c.1.s8 %v480
        %v1505 = vunpack.c.1.s8 %v481
        %v1506 = vunpack.c.1.s8 %v482
        %v1507 = vunpack.c.1.s8 %v483
        %v1508 = vunpack.c.2.s8 %v480
        %v1509 = vunpack.c.2.s8 %v481
        %v1510 = vunpack.c.2.s8 %v482
        %v1511 = vunpack.c.2.s8 %v483
        %v1512 = vunpack.c.3.s8 %v480
        %v1513 = vunpack.c.3.s8 %v481
        %v1514 = vunpack.c.3.s8 %v482
        %v1515 = vunpack.c.3.s8 %v483
        %v1516 = vunpack.c.0.s8 %v484
        %v1517 = vunpack.c.0.s8 %v485
        %v1518 = vunpack.c.0.s8 %v486
        %v1519 = vunpack.c.0.s8 %v487
        %v1520 = vunpack.c.1.s8 %v484
        %v1521 = vunpack.c.1.s8 %v485
        %v1522 = vunpack.c.1.s8 %v486
        %v1523 = vunpack.c.1.s8 %v487
        %v1524 = vunpack.c.2.s8 %v484
        %v1525 = vunpack.c.2.s8 %v485
        %v1526 = vunpack.c.2.s8 %v486
        %v1527 = vunpack.c.2.s8 %v487
        %v1528 = vunpack.c.3.s8 %v484
        %v1529 = vunpack.c.3.s8 %v485
        %v1530 = vunpack.c.3.s8 %v486
        %v1531 = vunpack.c.3.s8 %v487
        %v1532 = vunpack.c.0.s8 %v488
        %v1533 = vunpack.c.0.s8 %v489
        %v1534 = vunpack.c.0.s8 %v490
        %v1535 = vunpack.c.0.s8 %v491
        %v1536 = vunpack.c.1.s8 %v488
        %v1537 = vunpack.c.1.s8 %v489
        %v1538 = vunpack.c.1.s8 %v490
        %v1539 = vunpack.c.1.s8 %v491
        %v1540 = vunpack.c.2.s8 %v488
        %v1541 = vunpack.c.2.s8 %v489
        %v1542 = vunpack.c.2.s8 %v490
        %v1543 = vunpack.c.2.s8 %v491
        %v1544 = vunpack.c.3.s8 %v488
        %v1545 = vunpack.c.3.s8 %v489
        %v1546 = vunpack.c.3.s8 %v490
        %v1547 = vunpack.c.3.s8 %v491
        %v1548 = vunpack.c.0.s8 %v492
        %v1549 = vunpack.c.0.s8 %v493
        %v1550 = vunpack.c.0.s8 %v494
        %v1551 = vunpack.c.0.s8 %v495
        %v1552 = vunpack.c.1.s8 %v492
        %v1553 = vunpack.c.1.s8 %v493
        %v1554 = vunpack.c.1.s8 %v494
        %v1555 = vunpack.c.1.s8 %v495
        %v1556 = vunpack.c.2.s8 %v492
        %v1557 = vunpack.c.2.s8 %v493
        %v1558 = vunpack.c.2.s8 %v494
        %v1559 = vunpack.c.2.s8 %v495
        %v1560 = vunpack.c.3.s8 %v492
        %v1561 = vunpack.c.3.s8 %v493
        %v1562 = vunpack.c.3.s8 %v494
        %v1563 = vunpack.c.3.s8 %v495
        %v1564 = vunpack.c.0.s8 %v496
        %v1565 = vunpack.c.0.s8 %v497
        %v1566 = vunpack.c.0.s8 %v498
        %v1567 = vunpack.c.0.s8 %v499
        %v1568 = vunpack.c.1.s8 %v496
        %v1569 = vunpack.c.1.s8 %v497
        %v1570 = vunpack.c.1.s8 %v498
        %v1571 = vunpack.c.1.s8 %v499
        %v1572 = vunpack.c.2.s8 %v496
        %v1573 = vunpack.c.2.s8 %v497
        %v1574 = vunpack.c.2.s8 %v498
        %v1575 = vunpack.c.2.s8 %v499
        %v1576 = vunpack.c.3.s8 %v496
        %v1577 = vunpack.c.3.s8 %v497
        %v1578 = vunpack.c.3.s8 %v498
        %v1579 = vunpack.c.3.s8 %v499
        %v1580 = vunpack.c.0.s8 %v500
        %v1581 = vunpack.c.0.s8 %v501
        %v1582 = vunpack.c.0.s8 %v502
        %v1583 = vunpack.c.0.s8 %v503
        %v1584 = vunpack.c.1.s8 %v500
        %v1585 = vunpack.c.1.s8 %v501
        %v1586 = vunpack.c.1.s8 %v502
        %v1587 = vunpack.c.1.s8 %v503
        %v1588 = vunpack.c.2.s8 %v500
        %v1589 = vunpack.c.2.s8 %v501
        %v1590 = vunpack.c.2.s8 %v502
        %v1591 = vunpack.c.2.s8 %v503
        %v1592 = vunpack.c.3.s8 %v500
        %v1593 = vunpack.c.3.s8 %v501
        %v1594 = vunpack.c.3.s8 %v502
        %v1595 = vunpack.c.3.s8 %v503
        %v1596 = vunpack.c.0.s8 %v504
        %v1597 = vunpack.c.0.s8 %v505
        %v1598 = vunpack.c.0.s8 %v506
        %v1599 = vunpack.c.0.s8 %v507
        %v1600 = vunpack.c.1.s8 %v504
        %v1601 = vunpack.c.1.s8 %v505
        %v1602 = vunpack.c.1.s8 %v506
        %v1603 = vunpack.c.1.s8 %v507
        %v1604 = vunpack.c.2.s8 %v504
        %v1605 = vunpack.c.2.s8 %v505
        %v1606 = vunpack.c.2.s8 %v506
        %v1607 = vunpack.c.2.s8 %v507
        %v1608 = vunpack.c.3.s8 %v504
        %v1609 = vunpack.c.3.s8 %v505
        %v1610 = vunpack.c.3.s8 %v506
        %v1611 = vunpack.c.3.s8 %v507
        %v1612 = vunpack.c.0.s8 %v508
        %v1613 = vunpack.c.0.s8 %v509
        %v1614 = vunpack.c.0.s8 %v510
        %v1615 = vunpack.c.0.s8 %v511
        %v1616 = vunpack.c.1.s8 %v508
        %v1617 = vunpack.c.1.s8 %v509
        %v1618 = vunpack.c.1.s8 %v510
        %v1619 = vunpack.c.1.s8 %v511
        %v1620 = vunpack.c.2.s8 %v508
        %v1621 = vunpack.c.2.s8 %v509
        %v1622 = vunpack.c.2.s8 %v510
        %v1623 = vunpack.c.2.s8 %v511
        %v1624 = vunpack.c.3.s8 %v508
        %v1625 = vunpack.c.3.s8 %v509
        %v1626 = vunpack.c.3.s8 %v510
        %v1627 = vunpack.c.3.s8 %v511
        %v1628 = vunpack.c.0.s8 %v512
        %v1629 = vunpack.c.0.s8 %v513
        %v1630 = vunpack.c.0.s8 %v514
        %v1631 = vunpack.c.0.s8 %v515
        %v1632 = vunpack.c.1.s8 %v512
        %v1633 = vunpack.c.1.s8 %v513
        %v1634 = vunpack.c.1.s8 %v514
        %v1635 = vunpack.c.1.s8 %v515
        %v1636 = vunpack.c.2.s8 %v512
        %v1637 = vunpack.c.2.s8 %v513
        %v1638 = vunpack.c.2.s8 %v514
        %v1639 = vunpack.c.2.s8 %v515
        %v1640 = vunpack.c.3.s8 %v512
        %v1641 = vunpack.c.3.s8 %v513
        %v1642 = vunpack.c.3.s8 %v514
        %v1643 = vunpack.c.3.s8 %v515
        %v1644 = vunpack.c.0.s8 %v516
        %v1645 = vunpack.c.0.s8 %v517
        %v1646 = vunpack.c.0.s8 %v518
        %v1647 = vunpack.c.0.s8 %v519
        %v1648 = vunpack.c.1.s8 %v516
        %v1649 = vunpack.c.1.s8 %v517
        %v1650 = vunpack.c.1.s8 %v518
        %v1651 = vunpack.c.1.s8 %v519
        %v1652 = vunpack.c.2.s8 %v516
        %v1653 = vunpack.c.2.s8 %v517
        %v1654 = vunpack.c.2.s8 %v518
        %v1655 = vunpack.c.2.s8 %v519
        %v1656 = vunpack.c.3.s8 %v516
        %v1657 = vunpack.c.3.s8 %v517
        %v1658 = vunpack.c.3.s8 %v518
        %v1659 = vunpack.c.3.s8 %v519
        %v1660 = vunpack.c.0.s8 %v520
        %v1661 = vunpack.c.0.s8 %v521
        %v1662 = vunpack.c.0.s8 %v522
        %v1663 = vunpack.c.0.s8 %v523
        %v1664 = vunpack.c.1.s8 %v520
        %v1665 = vunpack.c.1.s8 %v521
        %v1666 = vunpack.c.1.s8 %v522
        %v1667 = vunpack.c.1.s8 %v523
        %v1668 = vunpack.c.2.s8 %v520
        %v1669 = vunpack.c.2.s8 %v521
        %v1670 = vunpack.c.2.s8 %v522
        %v1671 = vunpack.c.2.s8 %v523
        %v1672 = vunpack.c.3.s8 %v520
        %v1673 = vunpack.c.3.s8 %v521
        %v1674 = vunpack.c.3.s8 %v522
        %v1675 = vunpack.c.3.s8 %v523
        %v1676 = vunpack.c.0.s8 %v524
        %v1677 = vunpack.c.0.s8 %v525
        %v1678 = vunpack.c.0.s8 %v526
        %v1679 = vunpack.c.0.s8 %v527
        %v1680 = vunpack.c.1.s8 %v524
        %v1681 = vunpack.c.1.s8 %v525
        %v1682 = vunpack.c.1.s8 %v526
        %v1683 = vunpack.c.1.s8 %v527
        %v1684 = vunpack.c.2.s8 %v524
        %v1685 = vunpack.c.2.s8 %v525
        %v1686 = vunpack.c.2.s8 %v526
        %v1687 = vunpack.c.2.s8 %v527
        %v1688 = vunpack.c.3.s8 %v524
        %v1689 = vunpack.c.3.s8 %v525
        %v1690 = vunpack.c.3.s8 %v526
        %v1691 = vunpack.c.3.s8 %v527
        %v1692 = vunpack.c.0.s8 %v528
        %v1693 = vunpack.c.0.s8 %v529
        %v1694 = vunpack.c.0.s8 %v530
        %v1695 = vunpack.c.0.s8 %v531
        %v1696 = vunpack.c.1.s8 %v528
        %v1697 = vunpack.c.1.s8 %v529
        %v1698 = vunpack.c.1.s8 %v530
        %v1699 = vunpack.c.1.s8 %v531
        %v1700 = vunpack.c.2.s8 %v528
        %v1701 = vunpack.c.2.s8 %v529
        %v1702 = vunpack.c.2.s8 %v530
        %v1703 = vunpack.c.2.s8 %v531
        %v1704 = vunpack.c.3.s8 %v528
        %v1705 = vunpack.c.3.s8 %v529
        %v1706 = vunpack.c.3.s8 %v530
        %v1707 = vunpack.c.3.s8 %v531
        %v1708 = vunpack.c.0.s8 %v532
        %v1709 = vunpack.c.0.s8 %v533
        %v1710 = vunpack.c.0.s8 %v534
        %v1711 = vunpack.c.0.s8 %v535
        %v1712 = vunpack.c.1.s8 %v532
        %v1713 = vunpack.c.1.s8 %v533
        %v1714 = vunpack.c.1.s8 %v534
        %v1715 = vunpack.c.1.s8 %v535
        %v1716 = vunpack.c.2.s8 %v532
        %v1717 = vunpack.c.2.s8 %v533
        %v1718 = vunpack.c.2.s8 %v534
        %v1719 = vunpack.c.2.s8 %v535
        %v1720 = vunpack.c.3.s8 %v532
        %v1721 = vunpack.c.3.s8 %v533
        %v1722 = vunpack.c.3.s8 %v534
        %v1723 = vunpack.c.3.s8 %v535
        %v1724 = vunpack.c.0.s8 %v536
        %v1725 = vunpack.c.0.s8 %v537
        %v1726 = vunpack.c.0.s8 %v538
        %v1727 = vunpack.c.0.s8 %v539
        %v1728 = vunpack.c.1.s8 %v536
        %v1729 = vunpack.c.1.s8 %v537
        %v1730 = vunpack.c.1.s8 %v538
        %v1731 = vunpack.c.1.s8 %v539
        %v1732 = vunpack.c.2.s8 %v536
        %v1733 = vunpack.c.2.s8 %v537
        %v1734 = vunpack.c.2.s8 %v538
        %v1735 = vunpack.c.2.s8 %v539
        %v1736 = vunpack.c.3.s8 %v536
        %v1737 = vunpack.c.3.s8 %v537
        %v1738 = vunpack.c.3.s8 %v538
        %v1739 = vunpack.c.3.s8 %v539
        %v1740 = vunpack.c.0.s8 %v540
        %v1741 = vunpack.c.0.s8 %v541
        %v1742 = vunpack.c.0.s8 %v542
        %v1743 = vunpack.c.0.s8 %v543
        %v1744 = vunpack.c.1.s8 %v540
        %v1745 = vunpack.c.1.s8 %v541
        %v1746 = vunpack.c.1.s8 %v542
        %v1747 = vunpack.c.1.s8 %v543
        %v1748 = vunpack.c.2.s8 %v540
        %v1749 = vunpack.c.2.s8 %v541
        %v1750 = vunpack.c.2.s8 %v542
        %v1751 = vunpack.c.2.s8 %v543
        %v1752 = vunpack.c.3.s8 %v540
        %v1753 = vunpack.c.3.s8 %v541
        %v1754 = vunpack.c.3.s8 %v542
        %v1755 = vunpack.c.3.s8 %v543
        %v1756 = vunpack.c.0.s8 %v544
        %v1757 = vunpack.c.0.s8 %v545
        %v1758 = vunpack.c.0.s8 %v546
        %v1759 = vunpack.c.0.s8 %v547
        %v1760 = vunpack.c.1.s8 %v544
        %v1761 = vunpack.c.1.s8 %v545
        %v1762 = vunpack.c.1.s8 %v546
        %v1763 = vunpack.c.1.s8 %v547
        %v1764 = vunpack.c.2.s8 %v544
        %v1765 = vunpack.c.2.s8 %v545
        %v1766 = vunpack.c.2.s8 %v546
        %v1767 = vunpack.c.2.s8 %v547
        %v1768 = vunpack.c.3.s8 %v544
        %v1769 = vunpack.c.3.s8 %v545
        %v1770 = vunpack.c.3.s8 %v546
        %v1771 = vunpack.c.3.s8 %v547
        %v1772 = vunpack.c.0.s8 %v548
        %v1773 = vunpack.c.0.s8 %v549
        %v1774 = vunpack.c.0.s8 %v550
        %v1775 = vunpack.c.0.s8 %v551
        %v1776 = vunpack.c.1.s8 %v548
        %v1777 = vunpack.c.1.s8 %v549
        %v1778 = vunpack.c.1.s8 %v550
        %v1779 = vunpack.c.1.s8 %v551
        %v1780 = vunpack.c.2.s8 %v548
        %v1781 = vunpack.c.2.s8 %v549
        %v1782 = vunpack.c.2.s8 %v550
        %v1783 = vunpack.c.2.s8 %v551
        %v1784 = vunpack.c.3.s8 %v548
        %v1785 = vunpack.c.3.s8 %v549
        %v1786 = vunpack.c.3.s8 %v550
        %v1787 = vunpack.c.3.s8 %v551
        %v1788 = vunpack.c.0.s8 %v552
        %v1789 = vunpack.c.0.s8 %v553
        %v1790 = vunpack.c.0.s8 %v554
        %v1791 = vunpack.c.0.s8 %v555
        %v1792 = vunpack.c.1.s8 %v552
        %v1793 = vunpack.c.1.s8 %v553
        %v1794 = vunpack.c.1.s8 %v554
        %v1795 = vunpack.c.1.s8 %v555
        %v1796 = vunpack.c.2.s8 %v552
        %v1797 = vunpack.c.2.s8 %v553
        %v1798 = vunpack.c.2.s8 %v554
        %v1799 = vunpack.c.2.s8 %v555
        %v1800 = vunpack.c.3.s8 %v552
        %v1801 = vunpack.c.3.s8 %v553
        %v1802 = vunpack.c.3.s8 %v554
        %v1803 = vunpack.c.3.s8 %v555
        %v1804 = vunpack.c.0.s8 %v556
        %v1805 = vunpack.c.0.s8 %v557
        %v1806 = vunpack.c.0.s8 %v558
        %v1807 = vunpack.c.0.s8 %v559
        %v1808 = vunpack.c.1.s8 %v556
        %v1809 = vunpack.c.1.s8 %v557
        %v1810 = vunpack.c.1.s8 %v558
        %v1811 = vunpack.c.1.s8 %v559
        %v1812 = vunpack.c.2.s8 %v556
        %v1813 = vunpack.c.2.s8 %v557
        %v1814 = vunpack.c.2.s8 %v558
        %v1815 = vunpack.c.2.s8 %v559
        %v1816 = vunpack.c.3.s8 %v556
        %v1817 = vunpack.c.3.s8 %v557
        %v1818 = vunpack.c.3.s8 %v558
        %v1819 = vunpack.c.3.s8 %v559
        %v1820 = vunpack.c.0.s8 %v560
        %v1821 = vunpack.c.0.s8 %v561
        %v1822 = vunpack.c.0.s8 %v562
        %v1823 = vunpack.c.0.s8 %v563
        %v1824 = vunpack.c.1.s8 %v560
        %v1825 = vunpack.c.1.s8 %v561
        %v1826 = vunpack.c.1.s8 %v562
        %v1827 = vunpack.c.1.s8 %v563
        %v1828 = vunpack.c.2.s8 %v560
        %v1829 = vunpack.c.2.s8 %v561
        %v1830 = vunpack.c.2.s8 %v562
        %v1831 = vunpack.c.2.s8 %v563
        %v1832 = vunpack.c.3.s8 %v560
        %v1833 = vunpack.c.3.s8 %v561
        %v1834 = vunpack.c.3.s8 %v562
        %v1835 = vunpack.c.3.s8 %v563
        %v1836 = vunpack.c.0.s8 %v564
        %v1837 = vunpack.c.0.s8 %v565
        %v1838 = vunpack.c.0.s8 %v566
        %v1839 = vunpack.c.0.s8 %v567
        %v1840 = vunpack.c.1.s8 %v564
        %v1841 = vunpack.c.1.s8 %v565
        %v1842 = vunpack.c.1.s8 %v566
        %v1843 = vunpack.c.1.s8 %v567
        %v1844 = vunpack.c.2.s8 %v564
        %v1845 = vunpack.c.2.s8 %v565
        %v1846 = vunpack.c.2.s8 %v566
        %v1847 = vunpack.c.2.s8 %v567
        %v1848 = vunpack.c.3.s8 %v564
        %v1849 = vunpack.c.3.s8 %v565
        %v1850 = vunpack.c.3.s8 %v566
        %v1851 = vunpack.c.3.s8 %v567
        %v1852 = vunpack.c.0.s8 %v568
        %v1853 = vunpack.c.0.s8 %v569
        %v1854 = vunpack.c.0.s8 %v570
        %v1855 = vunpack.c.0.s8 %v571
        %v1856 = vunpack.c.1.s8 %v568
        %v1857 = vunpack.c.1.s8 %v569
        %v1858 = vunpack.c.1.s8 %v570
        %v1859 = vunpack.c.1.s8 %v571
        %v1860 = vunpack.c.2.s8 %v568
        %v1861 = vunpack.c.2.s8 %v569
        %v1862 = vunpack.c.2.s8 %v570
        %v1863 = vunpack.c.2.s8 %v571
        %v1864 = vunpack.c.3.s8 %v568
        %v1865 = vunpack.c.3.s8 %v569
        %v1866 = vunpack.c.3.s8 %v570
        %v1867 = vunpack.c.3.s8 %v571
        %v1868 = vunpack.c.0.s8 %v572
        %v1869 = vunpack.c.0.s8 %v573
        %v1870 = vunpack.c.0.s8 %v574
        %v1871 = vunpack.c.0.s8 %v575
        %v1872 = vunpack.c.1.s8 %v572
        %v1873 = vunpack.c.1.s8 %v573
        %v1874 = vunpack.c.1.s8 %v574
        %v1875 = vunpack.c.1.s8 %v575
        %v1876 = vunpack.c.2.s8 %v572
        %v1877 = vunpack.c.2.s8 %v573
        %v1878 = vunpack.c.2.s8 %v574
        %v1879 = vunpack.c.2.s8 %v575
        %v1880 = vunpack.c.3.s8 %v572
        %v1881 = vunpack.c.3.s8 %v573
        %v1882 = vunpack.c.3.s8 %v574
        %v1883 = vunpack.c.3.s8 %v575
        %v1884 = vunpack.c.0.s8 %v576
        %v1885 = vunpack.c.0.s8 %v577
        %v1886 = vunpack.c.0.s8 %v578
        %v1887 = vunpack.c.0.s8 %v579
        %v1888 = vunpack.c.1.s8 %v576
        %v1889 = vunpack.c.1.s8 %v577
        %v1890 = vunpack.c.1.s8 %v578
        %v1891 = vunpack.c.1.s8 %v579
        %v1892 = vunpack.c.2.s8 %v576
        %v1893 = vunpack.c.2.s8 %v577
        %v1894 = vunpack.c.2.s8 %v578
        %v1895 = vunpack.c.2.s8 %v579
        %v1896 = vunpack.c.3.s8 %v576
        %v1897 = vunpack.c.3.s8 %v577
        %v1898 = vunpack.c.3.s8 %v578
        %v1899 = vunpack.c.3.s8 %v579
        %v1900 = vunpack.c.0.s8 %v580
        %v1901 = vunpack.c.0.s8 %v581
        %v1902 = vunpack.c.0.s8 %v582
        %v1903 = vunpack.c.0.s8 %v583
        %v1904 = vunpack.c.1.s8 %v580
        %v1905 = vunpack.c.1.s8 %v581
        %v1906 = vunpack.c.1.s8 %v582
        %v1907 = vunpack.c.1.s8 %v583
        %v1908 = vunpack.c.2.s8 %v580
        %v1909 = vunpack.c.2.s8 %v581
        %v1910 = vunpack.c.2.s8 %v582
        %v1911 = vunpack.c.2.s8 %v583
        %v1912 = vunpack.c.3.s8 %v580
        %v1913 = vunpack.c.3.s8 %v581
        %v1914 = vunpack.c.3.s8 %v582
        %v1915 = vunpack.c.3.s8 %v583
        %v1916 = vunpack.c.0.s8 %v584
        %v1917 = vunpack.c.0.s8 %v585
        %v1918 = vunpack.c.0.s8 %v586
        %v1919 = vunpack.c.0.s8 %v587
        %v1920 = vunpack.c.1.s8 %v584
        %v1921 = vunpack.c.1.s8 %v585
        %v1922 = vunpack.c.1.s8 %v586
        %v1923 = vunpack.c.1.s8 %v587
        %v1924 = vunpack.c.2.s8 %v584
        %v1925 = vunpack.c.2.s8 %v585
        %v1926 = vunpack.c.2.s8 %v586
        %v1927 = vunpack.c.2.s8 %v587
        %v1928 = vunpack.c.3.s8 %v584
        %v1929 = vunpack.c.3.s8 %v585
        %v1930 = vunpack.c.3.s8 %v586
        %v1931 = vunpack.c.3.s8 %v587
        %v1932 = vunpack.c.0.s8 %v588
        %v1933 = vunpack.c.0.s8 %v589
        %v1934 = vunpack.c.0.s8 %v590
        %v1935 = vunpack.c.0.s8 %v591
        %v1936 = vunpack.c.1.s8 %v588
        %v1937 = vunpack.c.1.s8 %v589
        %v1938 = vunpack.c.1.s8 %v590
        %v1939 = vunpack.c.1.s8 %v591
        %v1940 = vunpack.c.2.s8 %v588
        %v1941 = vunpack.c.2.s8 %v589
        %v1942 = vunpack.c.2.s8 %v590
        %v1943 = vunpack.c.2.s8 %v591
        %v1944 = vunpack.c.3.s8 %v588
        %v1945 = vunpack.c.3.s8 %v589
        %v1946 = vunpack.c.3.s8 %v590
        %v1947 = vunpack.c.3.s8 %v591
        %v1948 = vunpack.c.0.s8 %v592
        %v1949 = vunpack.c.0.s8 %v593
        %v1950 = vunpack.c.0.s8 %v594
        %v1951 = vunpack.c.0.s8 %v595
        %v1952 = vunpack.c.1.s8 %v592
        %v1953 = vunpack.c.1.s8 %v593
        %v1954 = vunpack.c.1.s8 %v594
        %v1955 = vunpack.c.1.s8 %v595
        %v1956 = vunpack.c.2.s8 %v592
        %v1957 = vunpack.c.2.s8 %v593
        %v1958 = vunpack.c.2.s8 %v594
        %v1959 = vunpack.c.2.s8 %v595
        %v1960 = vunpack.c.3.s8 %v592
        %v1961 = vunpack.c.3.s8 %v593
        %v1962 = vunpack.c.3.s8 %v594
        %v1963 = vunpack.c.3.s8 %v595
        %v1964 = vunpack.c.0.s8 %v596
        %v1965 = vunpack.c.0.s8 %v597
        %v1966 = vunpack.c.0.s8 %v598
        %v1967 = vunpack.c.0.s8 %v599
        %v1968 = vunpack.c.1.s8 %v596
        %v1969 = vunpack.c.1.s8 %v597
        %v1970 = vunpack.c.1.s8 %v598
        %v1971 = vunpack.c.1.s8 %v599
        %v1972 = vunpack.c.2.s8 %v596
        %v1973 = vunpack.c.2.s8 %v597
        %v1974 = vunpack.c.2.s8 %v598
        %v1975 = vunpack.c.2.s8 %v599
        %v1976 = vunpack.c.3.s8 %v596
        %v1977 = vunpack.c.3.s8 %v597
        %v1978 = vunpack.c.3.s8 %v598
        %v1979 = vunpack.c.3.s8 %v599
        %v1980 = vunpack.c.0.s8 %v600
        %v1981 = vunpack.c.0.s8 %v601
        %v1982 = vunpack.c.0.s8 %v602
        %v1983 = vunpack.c.0.s8 %v603
        %v1984 = vunpack.c.1.s8 %v600
        %v1985 = vunpack.c.1.s8 %v601
        %v1986 = vunpack.c.1.s8 %v602
        %v1987 = vunpack.c.1.s8 %v603
        %v1988 = vunpack.c.2.s8 %v600
        %v1989 = vunpack.c.2.s8 %v601
        %v1990 = vunpack.c.2.s8 %v602
        %v1991 = vunpack.c.2.s8 %v603
        %v1992 = vunpack.c.3.s8 %v600
        %v1993 = vunpack.c.3.s8 %v601
        %v1994 = vunpack.c.3.s8 %v602
        %v1995 = vunpack.c.3.s8 %v603
        %v1996 = vunpack.c.0.s8 %v604
        %v1997 = vunpack.c.0.s8 %v605
        %v1998 = vunpack.c.0.s8 %v606
        %v1999 = vunpack.c.0.s8 %v607
        %v2000 = vunpack.c.1.s8 %v604
        %v2001 = vunpack.c.1.s8 %v605
        %v2002 = vunpack.c.1.s8 %v606
        %v2003 = vunpack.c.1.s8 %v607
        %v2004 = vunpack.c.2.s8 %v604
        %v2005 = vunpack.c.2.s8 %v605
        %v2006 = vunpack.c.2.s8 %v606
        %v2007 = vunpack.c.2.s8 %v607
        %v2008 = vunpack.c.3.s8 %v604
        %v2009 = vunpack.c.3.s8 %v605
        %v2010 = vunpack.c.3.s8 %v606
        %v2011 = vunpack.c.3.s8 %v607
        %v2012 = vunpack.c.0.s8 %v608
        %v2013 = vunpack.c.0.s8 %v609
        %v2014 = vunpack.c.0.s8 %v610
        %v2015 = vunpack.c.0.s8 %v611
        %v2016 = vunpack.c.1.s8 %v608
        %v2017 = vunpack.c.1.s8 %v609
        %v2018 = vunpack.c.1.s8 %v610
        %v2019 = vunpack.c.1.s8 %v611
        %v2020 = vunpack.c.2.s8 %v608
        %v2021 = vunpack.c.2.s8 %v609
        %v2022 = vunpack.c.2.s8 %v610
        %v2023 = vunpack.c.2.s8 %v611
        %v2024 = vunpack.c.3.s8 %v608
        %v2025 = vunpack.c.3.s8 %v609
        %v2026 = vunpack.c.3.s8 %v610
        %v2027 = vunpack.c.3.s8 %v611
        %v2028 = vunpack.c.0.s8 %v612
        %v2029 = vunpack.c.0.s8 %v613
        %v2030 = vunpack.c.0.s8 %v614
        %v2031 = vunpack.c.0.s8 %v615
        %v2032 = vunpack.c.1.s8 %v612
        %v2033 = vunpack.c.1.s8 %v613
        %v2034 = vunpack.c.1.s8 %v614
        %v2035 = vunpack.c.1.s8 %v615
        %v2036 = vunpack.c.2.s8 %v612
        %v2037 = vunpack.c.2.s8 %v613
        %v2038 = vunpack.c.2.s8 %v614
        %v2039 = vunpack.c.2.s8 %v615
        %v2040 = vunpack.c.3.s8 %v612
        %v2041 = vunpack.c.3.s8 %v613
        %v2042 = vunpack.c.3.s8 %v614
        %v2043 = vunpack.c.3.s8 %v615
        %v2044 = vunpack.c.0.s8 %v616
        %v2045 = vunpack.c.0.s8 %v617
        %v2046 = vunpack.c.0.s8 %v618
        %v2047 = vunpack.c.0.s8 %v619
        %v2048 = vunpack.c.1.s8 %v616
        %v2049 = vunpack.c.1.s8 %v617
        %v2050 = vunpack.c.1.s8 %v618
        %v2051 = vunpack.c.1.s8 %v619
        %v2052 = vunpack.c.2.s8 %v616
        %v2053 = vunpack.c.2.s8 %v617
        %v2054 = vunpack.c.2.s8 %v618
        %v2055 = vunpack.c.2.s8 %v619
        %v2056 = vunpack.c.3.s8 %v616
        %v2057 = vunpack.c.3.s8 %v617
        %v2058 = vunpack.c.3.s8 %v618
        %v2059 = vunpack.c.3.s8 %v619
        %v2060 = vunpack.c.0.s8 %v620
        %v2061 = vunpack.c.0.s8 %v621
        %v2062 = vunpack.c.0.s8 %v622
        %v2063 = vunpack.c.0.s8 %v623
        %v2064 = vunpack.c.1.s8 %v620
        %v2065 = vunpack.c.1.s8 %v621
        %v2066 = vunpack.c.1.s8 %v622
        %v2067 = vunpack.c.1.s8 %v623
        %v2068 = vunpack.c.2.s8 %v620
        %v2069 = vunpack.c.2.s8 %v621
        %v2070 = vunpack.c.2.s8 %v622
        %v2071 = vunpack.c.2.s8 %v623
        %v2072 = vunpack.c.3.s8 %v620
        %v2073 = vunpack.c.3.s8 %v621
        %v2074 = vunpack.c.3.s8 %v622
        %v2075 = vunpack.c.3.s8 %v623
        %v2076 = vunpack.c.0.s8 %v624
        %v2077 = vunpack.c.0.s8 %v625
        %v2078 = vunpack.c.0.s8 %v626
        %v2079 = vunpack.c.0.s8 %v627
        %v2080 = vunpack.c.1.s8 %v624
        %v2081 = vunpack.c.1.s8 %v625
        %v2082 = vunpack.c.1.s8 %v626
        %v2083 = vunpack.c.1.s8 %v627
        %v2084 = vunpack.c.2.s8 %v624
        %v2085 = vunpack.c.2.s8 %v625
        %v2086 = vunpack.c.2.s8 %v626
        %v2087 = vunpack.c.2.s8 %v627
        %v2088 = vunpack.c.3.s8 %v624
        %v2089 = vunpack.c.3.s8 %v625
        %v2090 = vunpack.c.3.s8 %v626
        %v2091 = vunpack.c.3.s8 %v627
        %v2092 = vunpack.c.0.s8 %v628
        %v2093 = vunpack.c.0.s8 %v629
        %v2094 = vunpack.c.0.s8 %v630
        %v2095 = vunpack.c.0.s8 %v631
        %v2096 = vunpack.c.1.s8 %v628
        %v2097 = vunpack.c.1.s8 %v629
        %v2098 = vunpack.c.1.s8 %v630
        %v2099 = vunpack.c.1.s8 %v631
        %v2100 = vunpack.c.2.s8 %v628
        %v2101 = vunpack.c.2.s8 %v629
        %v2102 = vunpack.c.2.s8 %v630
        %v2103 = vunpack.c.2.s8 %v631
        %v2104 = vunpack.c.3.s8 %v628
        %v2105 = vunpack.c.3.s8 %v629
        %v2106 = vunpack.c.3.s8 %v630
        %v2107 = vunpack.c.3.s8 %v631
        %v2108 = vunpack.c.0.s8 %v632
        %v2109 = vunpack.c.0.s8 %v633
        %v2110 = vunpack.c.0.s8 %v634
        %v2111 = vunpack.c.0.s8 %v635
        %v2112 = vunpack.c.1.s8 %v632
        %v2113 = vunpack.c.1.s8 %v633
        %v2114 = vunpack.c.1.s8 %v634
        %v2115 = vunpack.c.1.s8 %v635
        %v2116 = vunpack.c.2.s8 %v632
        %v2117 = vunpack.c.2.s8 %v633
        %v2118 = vunpack.c.2.s8 %v634
        %v2119 = vunpack.c.2.s8 %v635
        %v2120 = vunpack.c.3.s8 %v632
        %v2121 = vunpack.c.3.s8 %v633
        %v2122 = vunpack.c.3.s8 %v634
        %v2123 = vunpack.c.3.s8 %v635
        %v2124 = vunpack.c.0.s8 %v636
        %v2125 = vunpack.c.0.s8 %v637
        %v2126 = vunpack.c.0.s8 %v638
        %v2127 = vunpack.c.0.s8 %v639
        %v2128 = vunpack.c.1.s8 %v636
        %v2129 = vunpack.c.1.s8 %v637
        %v2130 = vunpack.c.1.s8 %v638
        %v2131 = vunpack.c.1.s8 %v639
        %v2132 = vunpack.c.2.s8 %v636
        %v2133 = vunpack.c.2.s8 %v637
        %v2134 = vunpack.c.2.s8 %v638
        %v2135 = vunpack.c.2.s8 %v639
        %v2136 = vunpack.c.3.s8 %v636
        %v2137 = vunpack.c.3.s8 %v637
        %v2138 = vunpack.c.3.s8 %v638
        %v2139 = vunpack.c.3.s8 %v639
        %v2140 = vunpack.c.0.s8 %v640
        %v2141 = vunpack.c.0.s8 %v641
        %v2142 = vunpack.c.0.s8 %v642
        %v2143 = vunpack.c.0.s8 %v643
        %v2144 = vunpack.c.1.s8 %v640
        %v2145 = vunpack.c.1.s8 %v641
        %v2146 = vunpack.c.1.s8 %v642
        %v2147 = vunpack.c.1.s8 %v643
        %v2148 = vunpack.c.2.s8 %v640
        %v2149 = vunpack.c.2.s8 %v641
        %v2150 = vunpack.c.2.s8 %v642
        %v2151 = vunpack.c.2.s8 %v643
        %v2152 = vunpack.c.3.s8 %v640
        %v2153 = vunpack.c.3.s8 %v641
        %v2154 = vunpack.c.3.s8 %v642
        %v2155 = vunpack.c.3.s8 %v643
        %v2156 = vunpack.c.0.s8 %v644
        %v2157 = vunpack.c.0.s8 %v645
        %v2158 = vunpack.c.0.s8 %v646
        %v2159 = vunpack.c.0.s8 %v647
        %v2160 = vunpack.c.1.s8 %v644
        %v2161 = vunpack.c.1.s8 %v645
        %v2162 = vunpack.c.1.s8 %v646
        %v2163 = vunpack.c.1.s8 %v647
        %v2164 = vunpack.c.2.s8 %v644
        %v2165 = vunpack.c.2.s8 %v645
        %v2166 = vunpack.c.2.s8 %v646
        %v2167 = vunpack.c.2.s8 %v647
        %v2168 = vunpack.c.3.s8 %v644
        %v2169 = vunpack.c.3.s8 %v645
        %v2170 = vunpack.c.3.s8 %v646
        %v2171 = vunpack.c.3.s8 %v647
        %v2172 = vunpack.c.0.s8 %v648
        %v2173 = vunpack.c.0.s8 %v649
        %v2174 = vunpack.c.0.s8 %v650
        %v2175 = vunpack.c.0.s8 %v651
        %v2176 = vunpack.c.1.s8 %v648
        %v2177 = vunpack.c.1.s8 %v649
        %v2178 = vunpack.c.1.s8 %v650
        %v2179 = vunpack.c.1.s8 %v651
        %v2180 = vunpack.c.2.s8 %v648
        %v2181 = vunpack.c.2.s8 %v649
        %v2182 = vunpack.c.2.s8 %v650
        %v2183 = vunpack.c.2.s8 %v651
        %v2184 = vunpack.c.3.s8 %v648
        %v2185 = vunpack.c.3.s8 %v649
        %v2186 = vunpack.c.3.s8 %v650
        %v2187 = vunpack.c.3.s8 %v651
        %v2188 = vunpack.c.0.s8 %v652
        %v2189 = vunpack.c.0.s8 %v653
        %v2190 = vunpack.c.0.s8 %v654
        %v2191 = vunpack.c.0.s8 %v655
        %v2192 = vunpack.c.1.s8 %v652
        %v2193 = vunpack.c.1.s8 %v653
        %v2194 = vunpack.c.1.s8 %v654
        %v2195 = vunpack.c.1.s8 %v655
        %v2196 = vunpack.c.2.s8 %v652
        %v2197 = vunpack.c.2.s8 %v653
        %v2198 = vunpack.c.2.s8 %v654
        %v2199 = vunpack.c.2.s8 %v655
        %v2200 = vunpack.c.3.s8 %v652
        %v2201 = vunpack.c.3.s8 %v653
        %v2202 = vunpack.c.3.s8 %v654
        %v2203 = vunpack.c.3.s8 %v655
        %v2204 = vunpack.c.0.s8 %v656
        %v2205 = vunpack.c.0.s8 %v657
        %v2206 = vunpack.c.0.s8 %v658
        %v2207 = vunpack.c.0.s8 %v659
        %v2208 = vunpack.c.1.s8 %v656
        %v2209 = vunpack.c.1.s8 %v657
        %v2210 = vunpack.c.1.s8 %v658
        %v2211 = vunpack.c.1.s8 %v659
        %v2212 = vunpack.c.2.s8 %v656
        %v2213 = vunpack.c.2.s8 %v657
        %v2214 = vunpack.c.2.s8 %v658
        %v2215 = vunpack.c.2.s8 %v659
        %v2216 = vunpack.c.3.s8 %v656
        %v2217 = vunpack.c.3.s8 %v657
        %v2218 = vunpack.c.3.s8 %v658
        %v2219 = vunpack.c.3.s8 %v659
        %v2220 = vunpack.c.0.s8 %v660
        %v2221 = vunpack.c.0.s8 %v661
        %v2222 = vunpack.c.0.s8 %v662
        %v2223 = vunpack.c.0.s8 %v663
        %v2224 = vunpack.c.1.s8 %v660
        %v2225 = vunpack.c.1.s8 %v661
        %v2226 = vunpack.c.1.s8 %v662
        %v2227 = vunpack.c.1.s8 %v663
        %v2228 = vunpack.c.2.s8 %v660
        %v2229 = vunpack.c.2.s8 %v661
        %v2230 = vunpack.c.2.s8 %v662
        %v2231 = vunpack.c.2.s8 %v663
        %v2232 = vunpack.c.3.s8 %v660
        %v2233 = vunpack.c.3.s8 %v661
        %v2234 = vunpack.c.3.s8 %v662
        %v2235 = vunpack.c.3.s8 %v663
        %v2236 = vunpack.c.0.s8 %v664
        %v2237 = vunpack.c.0.s8 %v665
        %v2238 = vunpack.c.0.s8 %v666
        %v2239 = vunpack.c.0.s8 %v667
        %v2240 = vunpack.c.1.s8 %v664
        %v2241 = vunpack.c.1.s8 %v665
        %v2242 = vunpack.c.1.s8 %v666
        %v2243 = vunpack.c.1.s8 %v667
        %v2244 = vunpack.c.2.s8 %v664
        %v2245 = vunpack.c.2.s8 %v665
        %v2246 = vunpack.c.2.s8 %v666
        %v2247 = vunpack.c.2.s8 %v667
        %v2248 = vunpack.c.3.s8 %v664
        %v2249 = vunpack.c.3.s8 %v665
        %v2250 = vunpack.c.3.s8 %v666
        %v2251 = vunpack.c.3.s8 %v667
        %v2252 = vunpack.c.0.s8 %v668
        %v2253 = vunpack.c.0.s8 %v669
        %v2254 = vunpack.c.0.s8 %v670
        %v2255 = vunpack.c.0.s8 %v671
        %v2256 = vunpack.c.1.s8 %v668
        %v2257 = vunpack.c.1.s8 %v669
        %v2258 = vunpack.c.1.s8 %v670
        %v2259 = vunpack.c.1.s8 %v671
        %v2260 = vunpack.c.2.s8 %v668
        %v2261 = vunpack.c.2.s8 %v669
        %v2262 = vunpack.c.2.s8 %v670
        %v2263 = vunpack.c.2.s8 %v671
        %v2264 = vunpack.c.3.s8 %v668
        %v2265 = vunpack.c.3.s8 %v669
        %v2266 = vunpack.c.3.s8 %v670
        %v2267 = vunpack.c.3.s8 %v671
        %v2268 = vunpack.c.0.s8 %v672
        %v2269 = vunpack.c.0.s8 %v673
        %v2270 = vunpack.c.0.s8 %v674
        %v2271 = vunpack.c.0.s8 %v675
        %v2272 = vunpack.c.1.s8 %v672
        %v2273 = vunpack.c.1.s8 %v673
        %v2274 = vunpack.c.1.s8 %v674
        %v2275 = vunpack.c.1.s8 %v675
        %v2276 = vunpack.c.2.s8 %v672
        %v2277 = vunpack.c.2.s8 %v673
        %v2278 = vunpack.c.2.s8 %v674
        %v2279 = vunpack.c.2.s8 %v675
        %v2280 = vunpack.c.3.s8 %v672
        %v2281 = vunpack.c.3.s8 %v673
        %v2282 = vunpack.c.3.s8 %v674
        %v2283 = vunpack.c.3.s8 %v675
        %v2284 = vunpack.c.0.s8 %v676
        %v2285 = vunpack.c.0.s8 %v677
        %v2286 = vunpack.c.0.s8 %v678
        %v2287 = vunpack.c.0.s8 %v679
        %v2288 = vunpack.c.1.s8 %v676
        %v2289 = vunpack.c.1.s8 %v677
        %v2290 = vunpack.c.1.s8 %v678
        %v2291 = vunpack.c.1.s8 %v679
        %v2292 = vunpack.c.2.s8 %v676
        %v2293 = vunpack.c.2.s8 %v677
        %v2294 = vunpack.c.2.s8 %v678
        %v2295 = vunpack.c.2.s8 %v679
        %v2296 = vunpack.c.3.s8 %v676
        %v2297 = vunpack.c.3.s8 %v677
        %v2298 = vunpack.c.3.s8 %v678
        %v2299 = vunpack.c.3.s8 %v679
        %v2300 = vunpack.c.0.s8 %v680
        %v2301 = vunpack.c.0.s8 %v681
        %v2302 = vunpack.c.0.s8 %v682
        %v2303 = vunpack.c.0.s8 %v683
        %v2304 = vunpack.c.1.s8 %v680
        %v2305 = vunpack.c.1.s8 %v681
        %v2306 = vunpack.c.1.s8 %v682
        %v2307 = vunpack.c.1.s8 %v683
        %v2308 = vunpack.c.2.s8 %v680
        %v2309 = vunpack.c.2.s8 %v681
        %v2310 = vunpack.c.2.s8 %v682
        %v2311 = vunpack.c.2.s8 %v683
        %v2312 = vunpack.c.3.s8 %v680
        %v2313 = vunpack.c.3.s8 %v681
        %v2314 = vunpack.c.3.s8 %v682
        %v2315 = vunpack.c.3.s8 %v683
        %v2316 = vunpack.c.0.s8 %v684
        %v2317 = vunpack.c.0.s8 %v685
        %v2318 = vunpack.c.0.s8 %v686
        %v2319 = vunpack.c.0.s8 %v687
        %v2320 = vunpack.c.1.s8 %v684
        %v2321 = vunpack.c.1.s8 %v685
        %v2322 = vunpack.c.1.s8 %v686
        %v2323 = vunpack.c.1.s8 %v687
        %v2324 = vunpack.c.2.s8 %v684
        %v2325 = vunpack.c.2.s8 %v685
        %v2326 = vunpack.c.2.s8 %v686
        %v2327 = vunpack.c.2.s8 %v687
        %v2328 = vunpack.c.3.s8 %v684
        %v2329 = vunpack.c.3.s8 %v685
        %v2330 = vunpack.c.3.s8 %v686
        %v2331 = vunpack.c.3.s8 %v687
        %v2332 = vunpack.c.0.s8 %v688
        %v2333 = vunpack.c.0.s8 %v689
        %v2334 = vunpack.c.0.s8 %v690
        %v2335 = vunpack.c.0.s8 %v691
        %v2336 = vunpack.c.1.s8 %v688
        %v2337 = vunpack.c.1.s8 %v689
        %v2338 = vunpack.c.1.s8 %v690
        %v2339 = vunpack.c.1.s8 %v691
        %v2340 = vunpack.c.2.s8 %v688
        %v2341 = vunpack.c.2.s8 %v689
        %v2342 = vunpack.c.2.s8 %v690
        %v2343 = vunpack.c.2.s8 %v691
        %v2344 = vunpack.c.3.s8 %v688
        %v2345 = vunpack.c.3.s8 %v689
        %v2346 = vunpack.c.3.s8 %v690
        %v2347 = vunpack.c.3.s8 %v691
        %v2348 = vunpack.c.0.s8 %v692
        %v2349 = vunpack.c.0.s8 %v693
        %v2350 = vunpack.c.0.s8 %v694
        %v2351 = vunpack.c.0.s8 %v695
        %v2352 = vunpack.c.1.s8 %v692
        %v2353 = vunpack.c.1.s8 %v693
        %v2354 = vunpack.c.1.s8 %v694
        %v2355 = vunpack.c.1.s8 %v695
        %v2356 = vunpack.c.2.s8 %v692
        %v2357 = vunpack.c.2.s8 %v693
        %v2358 = vunpack.c.2.s8 %v694
        %v2359 = vunpack.c.2.s8 %v695
        %v2360 = vunpack.c.3.s8 %v692
        %v2361 = vunpack.c.3.s8 %v693
        %v2362 = vunpack.c.3.s8 %v694
        %v2363 = vunpack.c.3.s8 %v695
        %v2364 = vunpack.c.0.s8 %v696
        %v2365 = vunpack.c.0.s8 %v697
        %v2366 = vunpack.c.0.s8 %v698
        %v2367 = vunpack.c.0.s8 %v699
        %v2368 = vunpack.c.1.s8 %v696
        %v2369 = vunpack.c.1.s8 %v697
        %v2370 = vunpack.c.1.s8 %v698
        %v2371 = vunpack.c.1.s8 %v699
        %v2372 = vunpack.c.2.s8 %v696
        %v2373 = vunpack.c.2.s8 %v697
        %v2374 = vunpack.c.2.s8 %v698
        %v2375 = vunpack.c.2.s8 %v699
        %v2376 = vunpack.c.3.s8 %v696
        %v2377 = vunpack.c.3.s8 %v697
        %v2378 = vunpack.c.3.s8 %v698
        %v2379 = vunpack.c.3.s8 %v699
        %v2380 = vunpack.c.0.s8 %v700
        %v2381 = vunpack.c.0.s8 %v701
        %v2382 = vunpack.c.0.s8 %v702
        %v2383 = vunpack.c.0.s8 %v703
        %v2384 = vunpack.c.1.s8 %v700
        %v2385 = vunpack.c.1.s8 %v701
        %v2386 = vunpack.c.1.s8 %v702
        %v2387 = vunpack.c.1.s8 %v703
        %v2388 = vunpack.c.2.s8 %v700
        %v2389 = vunpack.c.2.s8 %v701
        %v2390 = vunpack.c.2.s8 %v702
        %v2391 = vunpack.c.2.s8 %v703
        %v2392 = vunpack.c.3.s8 %v700
        %v2393 = vunpack.c.3.s8 %v701
        %v2394 = vunpack.c.3.s8 %v702
        %v2395 = vunpack.c.3.s8 %v703
        %v2396 = vunpack.c.0.s8 %v704
        %v2397 = vunpack.c.0.s8 %v705
        %v2398 = vunpack.c.0.s8 %v706
        %v2399 = vunpack.c.0.s8 %v707
        %v2400 = vunpack.c.1.s8 %v704
        %v2401 = vunpack.c.1.s8 %v705
        %v2402 = vunpack.c.1.s8 %v706
        %v2403 = vunpack.c.1.s8 %v707
        %v2404 = vunpack.c.2.s8 %v704
        %v2405 = vunpack.c.2.s8 %v705
        %v2406 = vunpack.c.2.s8 %v706
        %v2407 = vunpack.c.2.s8 %v707
        %v2408 = vunpack.c.3.s8 %v704
        %v2409 = vunpack.c.3.s8 %v705
        %v2410 = vunpack.c.3.s8 %v706
        %v2411 = vunpack.c.3.s8 %v707
        %v2412 = vunpack.c.0.s8 %v708
        %v2413 = vunpack.c.0.s8 %v709
        %v2414 = vunpack.c.0.s8 %v710
        %v2415 = vunpack.c.0.s8 %v711
        %v2416 = vunpack.c.1.s8 %v708
        %v2417 = vunpack.c.1.s8 %v709
        %v2418 = vunpack.c.1.s8 %v710
        %v2419 = vunpack.c.1.s8 %v711
        %v2420 = vunpack.c.2.s8 %v708
        %v2421 = vunpack.c.2.s8 %v709
        %v2422 = vunpack.c.2.s8 %v710
        %v2423 = vunpack.c.2.s8 %v711
        %v2424 = vunpack.c.3.s8 %v708
        %v2425 = vunpack.c.3.s8 %v709
        %v2426 = vunpack.c.3.s8 %v710
        %v2427 = vunpack.c.3.s8 %v711
        %v2428 = vunpack.c.0.s8 %v712
        %v2429 = vunpack.c.0.s8 %v713
        %v2430 = vunpack.c.0.s8 %v714
        %v2431 = vunpack.c.0.s8 %v715
        %v2432 = vunpack.c.1.s8 %v712
        %v2433 = vunpack.c.1.s8 %v713
        %v2434 = vunpack.c.1.s8 %v714
        %v2435 = vunpack.c.1.s8 %v715
        %v2436 = vunpack.c.2.s8 %v712
        %v2437 = vunpack.c.2.s8 %v713
        %v2438 = vunpack.c.2.s8 %v714
        %v2439 = vunpack.c.2.s8 %v715
        %v2440 = vunpack.c.3.s8 %v712
        %v2441 = vunpack.c.3.s8 %v713
        %v2442 = vunpack.c.3.s8 %v714
        %v2443 = vunpack.c.3.s8 %v715
        %v2444 = vunpack.c.0.s8 %v716
        %v2445 = vunpack.c.0.s8 %v717
        %v2446 = vunpack.c.0.s8 %v718
        %v2447 = vunpack.c.0.s8 %v719
        %v2448 = vunpack.c.1.s8 %v716
        %v2449 = vunpack.c.1.s8 %v717
        %v2450 = vunpack.c.1.s8 %v718
        %v2451 = vunpack.c.1.s8 %v719
        %v2452 = vunpack.c.2.s8 %v716
        %v2453 = vunpack.c.2.s8 %v717
        %v2454 = vunpack.c.2.s8 %v718
        %v2455 = vunpack.c.2.s8 %v719
        %v2456 = vunpack.c.3.s8 %v716
        %v2457 = vunpack.c.3.s8 %v717
        %v2458 = vunpack.c.3.s8 %v718
        %v2459 = vunpack.c.3.s8 %v719
        %v2460 = vunpack.c.0.s8 %v720
        %v2461 = vunpack.c.0.s8 %v721
        %v2462 = vunpack.c.0.s8 %v722
        %v2463 = vunpack.c.0.s8 %v723
        %v2464 = vunpack.c.1.s8 %v720
        %v2465 = vunpack.c.1.s8 %v721
        %v2466 = vunpack.c.1.s8 %v722
        %v2467 = vunpack.c.1.s8 %v723
        %v2468 = vunpack.c.2.s8 %v720
        %v2469 = vunpack.c.2.s8 %v721
        %v2470 = vunpack.c.2.s8 %v722
        %v2471 = vunpack.c.2.s8 %v723
        %v2472 = vunpack.c.3.s8 %v720
        %v2473 = vunpack.c.3.s8 %v721
        %v2474 = vunpack.c.3.s8 %v722
        %v2475 = vunpack.c.3.s8 %v723
        %v2476 = vunpack.c.0.s8 %v724
        %v2477 = vunpack.c.0.s8 %v725
        %v2478 = vunpack.c.0.s8 %v726
        %v2479 = vunpack.c.0.s8 %v727
        %v2480 = vunpack.c.1.s8 %v724
        %v2481 = vunpack.c.1.s8 %v725
        %v2482 = vunpack.c.1.s8 %v726
        %v2483 = vunpack.c.1.s8 %v727
        %v2484 = vunpack.c.2.s8 %v724
        %v2485 = vunpack.c.2.s8 %v725
        %v2486 = vunpack.c.2.s8 %v726
        %v2487 = vunpack.c.2.s8 %v727
        %v2488 = vunpack.c.3.s8 %v724
        %v2489 = vunpack.c.3.s8 %v725
        %v2490 = vunpack.c.3.s8 %v726
        %v2491 = vunpack.c.3.s8 %v727
        %v2492 = vunpack.c.0.s8 %v728
        %v2493 = vunpack.c.0.s8 %v729
        %v2494 = vunpack.c.0.s8 %v730
        %v2495 = vunpack.c.0.s8 %v731
        %v2496 = vunpack.c.1.s8 %v728
        %v2497 = vunpack.c.1.s8 %v729
        %v2498 = vunpack.c.1.s8 %v730
        %v2499 = vunpack.c.1.s8 %v731
        %v2500 = vunpack.c.2.s8 %v728
        %v2501 = vunpack.c.2.s8 %v729
        %v2502 = vunpack.c.2.s8 %v730
        %v2503 = vunpack.c.2.s8 %v731
        %v2504 = vunpack.c.3.s8 %v728
        %v2505 = vunpack.c.3.s8 %v729
        %v2506 = vunpack.c.3.s8 %v730
        %v2507 = vunpack.c.3.s8 %v731
        %v2508 = vunpack.c.0.s8 %v732
        %v2509 = vunpack.c.0.s8 %v733
        %v2510 = vunpack.c.0.s8 %v734
        %v2511 = vunpack.c.0.s8 %v735
        %v2512 = vunpack.c.1.s8 %v732
        %v2513 = vunpack.c.1.s8 %v733
        %v2514 = vunpack.c.1.s8 %v734
        %v2515 = vunpack.c.1.s8 %v735
        %v2516 = vunpack.c.2.s8 %v732
        %v2517 = vunpack.c.2.s8 %v733
        %v2518 = vunpack.c.2.s8 %v734
        %v2519 = vunpack.c.2.s8 %v735
        %v2520 = vunpack.c.3.s8 %v732
        %v2521 = vunpack.c.3.s8 %v733
        %v2522 = vunpack.c.3.s8 %v734
        %v2523 = vunpack.c.3.s8 %v735
        %v2524 = vunpack.c.0.s8 %v736
        %v2525 = vunpack.c.0.s8 %v737
        %v2526 = vunpack.c.0.s8 %v738
        %v2527 = vunpack.c.0.s8 %v739
        %v2528 = vunpack.c.1.s8 %v736
        %v2529 = vunpack.c.1.s8 %v737
        %v2530 = vunpack.c.1.s8 %v738
        %v2531 = vunpack.c.1.s8 %v739
        %v2532 = vunpack.c.2.s8 %v736
        %v2533 = vunpack.c.2.s8 %v737
        %v2534 = vunpack.c.2.s8 %v738
        %v2535 = vunpack.c.2.s8 %v739
        %v2536 = vunpack.c.3.s8 %v736
        %v2537 = vunpack.c.3.s8 %v737
        %v2538 = vunpack.c.3.s8 %v738
        %v2539 = vunpack.c.3.s8 %v739
        %v2540 = vunpack.c.0.s8 %v740
        %v2541 = vunpack.c.0.s8 %v741
        %v2542 = vunpack.c.0.s8 %v742
        %v2543 = vunpack.c.0.s8 %v743
        %v2544 = vunpack.c.1.s8 %v740
        %v2545 = vunpack.c.1.s8 %v741
        %v2546 = vunpack.c.1.s8 %v742
        %v2547 = vunpack.c.1.s8 %v743
        %v2548 = vunpack.c.2.s8 %v740
        %v2549 = vunpack.c.2.s8 %v741
        %v2550 = vunpack.c.2.s8 %v742
        %v2551 = vunpack.c.2.s8 %v743
        %v2552 = vunpack.c.3.s8 %v740
        %v2553 = vunpack.c.3.s8 %v741
        %v2554 = vunpack.c.3.s8 %v742
        %v2555 = vunpack.c.3.s8 %v743
        %v2556 = vunpack.c.0.s8 %v744
        %v2557 = vunpack.c.0.s8 %v745
        %v2558 = vunpack.c.0.s8 %v746
        %v2559 = vunpack.c.0.s8 %v747
        %v2560 = vunpack.c.1.s8 %v744
        %v2561 = vunpack.c.1.s8 %v745
        %v2562 = vunpack.c.1.s8 %v746
        %v2563 = vunpack.c.1.s8 %v747
        %v2564 = vunpack.c.2.s8 %v744
        %v2565 = vunpack.c.2.s8 %v745
        %v2566 = vunpack.c.2.s8 %v746
        %v2567 = vunpack.c.2.s8 %v747
        %v2568 = vunpack.c.3.s8 %v744
        %v2569 = vunpack.c.3.s8 %v745
        %v2570 = vunpack.c.3.s8 %v746
        %v2571 = vunpack.c.3.s8 %v747
        %v2572 = vunpack.c.0.s8 %v748
        %v2573 = vunpack.c.0.s8 %v749
        %v2574 = vunpack.c.0.s8 %v750
        %v2575 = vunpack.c.0.s8 %v751
        %v2576 = vunpack.c.1.s8 %v748
        %v2577 = vunpack.c.1.s8 %v749
        %v2578 = vunpack.c.1.s8 %v750
        %v2579 = vunpack.c.1.s8 %v751
        %v2580 = vunpack.c.2.s8 %v748
        %v2581 = vunpack.c.2.s8 %v749
        %v2582 = vunpack.c.2.s8 %v750
        %v2583 = vunpack.c.2.s8 %v751
        %v2584 = vunpack.c.3.s8 %v748
        %v2585 = vunpack.c.3.s8 %v749
        %v2586 = vunpack.c.3.s8 %v750
        %v2587 = vunpack.c.3.s8 %v751
        %v2588 = vunpack.c.0.s8 %v752
        %v2589 = vunpack.c.0.s8 %v753
        %v2590 = vunpack.c.0.s8 %v754
        %v2591 = vunpack.c.0.s8 %v755
        %v2592 = vunpack.c.1.s8 %v752
        %v2593 = vunpack.c.1.s8 %v753
        %v2594 = vunpack.c.1.s8 %v754
        %v2595 = vunpack.c.1.s8 %v755
        %v2596 = vunpack.c.2.s8 %v752
        %v2597 = vunpack.c.2.s8 %v753
        %v2598 = vunpack.c.2.s8 %v754
        %v2599 = vunpack.c.2.s8 %v755
        %v2600 = vunpack.c.3.s8 %v752
        %v2601 = vunpack.c.3.s8 %v753
        %v2602 = vunpack.c.3.s8 %v754
        %v2603 = vunpack.c.3.s8 %v755
        %v2604 = vunpack.c.0.s8 %v756
        %v2605 = vunpack.c.0.s8 %v757
        %v2606 = vunpack.c.0.s8 %v758
        %v2607 = vunpack.c.0.s8 %v759
        %v2608 = vunpack.c.1.s8 %v756
        %v2609 = vunpack.c.1.s8 %v757
        %v2610 = vunpack.c.1.s8 %v758
        %v2611 = vunpack.c.1.s8 %v759
        %v2612 = vunpack.c.2.s8 %v756
        %v2613 = vunpack.c.2.s8 %v757
        %v2614 = vunpack.c.2.s8 %v758
        %v2615 = vunpack.c.2.s8 %v759
        %v2616 = vunpack.c.3.s8 %v756
        %v2617 = vunpack.c.3.s8 %v757
        %v2618 = vunpack.c.3.s8 %v758
        %v2619 = vunpack.c.3.s8 %v759
        %v2620 = vunpack.c.0.s8 %v760
        %v2621 = vunpack.c.0.s8 %v761
        %v2622 = vunpack.c.0.s8 %v762
        %v2623 = vunpack.c.0.s8 %v763
        %v2624 = vunpack.c.1.s8 %v760
        %v2625 = vunpack.c.1.s8 %v761
        %v2626 = vunpack.c.1.s8 %v762
        %v2627 = vunpack.c.1.s8 %v763
        %v2628 = vunpack.c.2.s8 %v760
        %v2629 = vunpack.c.2.s8 %v761
        %v2630 = vunpack.c.2.s8 %v762
        %v2631 = vunpack.c.2.s8 %v763
        %v2632 = vunpack.c.3.s8 %v760
        %v2633 = vunpack.c.3.s8 %v761
        %v2634 = vunpack.c.3.s8 %v762
        %v2635 = vunpack.c.3.s8 %v763
        %v2636 = vunpack.c.0.s8 %v764
        %v2637 = vunpack.c.0.s8 %v765
        %v2638 = vunpack.c.0.s8 %v766
        %v2639 = vunpack.c.0.s8 %v767
        %v2640 = vunpack.c.1.s8 %v764
        %v2641 = vunpack.c.1.s8 %v765
        %v2642 = vunpack.c.1.s8 %v766
        %v2643 = vunpack.c.1.s8 %v767
        %v2644 = vunpack.c.2.s8 %v764
        %v2645 = vunpack.c.2.s8 %v765
        %v2646 = vunpack.c.2.s8 %v766
        %v2647 = vunpack.c.2.s8 %v767
        %v2648 = vunpack.c.3.s8 %v764
        %v2649 = vunpack.c.3.s8 %v765
        %v2650 = vunpack.c.3.s8 %v766
        %v2651 = vunpack.c.3.s8 %v767
        %v2652 = vunpack.c.0.s8 %v768
        %v2653 = vunpack.c.0.s8 %v769
        %v2654 = vunpack.c.0.s8 %v770
        %v2655 = vunpack.c.0.s8 %v771
        %v2656 = vunpack.c.1.s8 %v768
        %v2657 = vunpack.c.1.s8 %v769
        %v2658 = vunpack.c.1.s8 %v770
        %v2659 = vunpack.c.1.s8 %v771
        %v2660 = vunpack.c.2.s8 %v768
        %v2661 = vunpack.c.2.s8 %v769
        %v2662 = vunpack.c.2.s8 %v770
        %v2663 = vunpack.c.2.s8 %v771
        %v2664 = vunpack.c.3.s8 %v768
        %v2665 = vunpack.c.3.s8 %v769
        %v2666 = vunpack.c.3.s8 %v770
        %v2667 = vunpack.c.3.s8 %v771
        %v2668 = vunpack.c.0.s8 %v772
        %v2669 = vunpack.c.0.s8 %v773
        %v2670 = vunpack.c.0.s8 %v774
        %v2671 = vunpack.c.0.s8 %v775
        %v2672 = vunpack.c.1.s8 %v772
        %v2673 = vunpack.c.1.s8 %v773
        %v2674 = vunpack.c.1.s8 %v774
        %v2675 = vunpack.c.1.s8 %v775
        %v2676 = vunpack.c.2.s8 %v772
        %v2677 = vunpack.c.2.s8 %v773
        %v2678 = vunpack.c.2.s8 %v774
        %v2679 = vunpack.c.2.s8 %v775
        %v2680 = vunpack.c.3.s8 %v772
        %v2681 = vunpack.c.3.s8 %v773
        %v2682 = vunpack.c.3.s8 %v774
        %v2683 = vunpack.c.3.s8 %v775
        %v2684 = vunpack.c.0.s8 %v776
        %v2685 = vunpack.c.0.s8 %v777
        %v2686 = vunpack.c.0.s8 %v778
        %v2687 = vunpack.c.0.s8 %v779
        %v2688 = vunpack.c.1.s8 %v776
        %v2689 = vunpack.c.1.s8 %v777
        %v2690 = vunpack.c.1.s8 %v778
        %v2691 = vunpack.c.1.s8 %v779
        %v2692 = vunpack.c.2.s8 %v776
        %v2693 = vunpack.c.2.s8 %v777
        %v2694 = vunpack.c.2.s8 %v778
        %v2695 = vunpack.c.2.s8 %v779
        %v2696 = vunpack.c.3.s8 %v776
        %v2697 = vunpack.c.3.s8 %v777
        %v2698 = vunpack.c.3.s8 %v778
        %v2699 = vunpack.c.3.s8 %v779
        %v2700 = vunpack.c.0.s8 %v780
        %v2701 = vunpack.c.0.s8 %v781
        %v2702 = vunpack.c.0.s8 %v782
        %v2703 = vunpack.c.0.s8 %v783
        %v2704 = vunpack.c.1.s8 %v780
        %v2705 = vunpack.c.1.s8 %v781
        %v2706 = vunpack.c.1.s8 %v782
        %v2707 = vunpack.c.1.s8 %v783
        %v2708 = vunpack.c.2.s8 %v780
        %v2709 = vunpack.c.2.s8 %v781
        %v2710 = vunpack.c.2.s8 %v782
        %v2711 = vunpack.c.2.s8 %v783
        %v2712 = vunpack.c.3.s8 %v780
        %v2713 = vunpack.c.3.s8 %v781
        %v2714 = vunpack.c.3.s8 %v782
        %v2715 = vunpack.c.3.s8 %v783
        %v2716 = vunpack.c.0.s8 %v784
        %v2717 = vunpack.c.0.s8 %v785
        %v2718 = vunpack.c.0.s8 %v786
        %v2719 = vunpack.c.0.s8 %v787
        %v2720 = vunpack.c.1.s8 %v784
        %v2721 = vunpack.c.1.s8 %v785
        %v2722 = vunpack.c.1.s8 %v786
        %v2723 = vunpack.c.1.s8 %v787
        %v2724 = vunpack.c.2.s8 %v784
        %v2725 = vunpack.c.2.s8 %v785
        %v2726 = vunpack.c.2.s8 %v786
        %v2727 = vunpack.c.2.s8 %v787
        %v2728 = vunpack.c.3.s8 %v784
        %v2729 = vunpack.c.3.s8 %v785
        %v2730 = vunpack.c.3.s8 %v786
        %v2731 = vunpack.c.3.s8 %v787
        %v2732 = vunpack.c.0.s8 %v788
        %v2733 = vunpack.c.0.s8 %v789
        %v2734 = vunpack.c.0.s8 %v790
        %v2735 = vunpack.c.0.s8 %v791
        %v2736 = vunpack.c.1.s8 %v788
        %v2737 = vunpack.c.1.s8 %v789
        %v2738 = vunpack.c.1.s8 %v790
        %v2739 = vunpack.c.1.s8 %v791
        %v2740 = vunpack.c.2.s8 %v788
        %v2741 = vunpack.c.2.s8 %v789
        %v2742 = vunpack.c.2.s8 %v790
        %v2743 = vunpack.c.2.s8 %v791
        %v2744 = vunpack.c.3.s8 %v788
        %v2745 = vunpack.c.3.s8 %v789
        %v2746 = vunpack.c.3.s8 %v790
        %v2747 = vunpack.c.3.s8 %v791
        %v2748 = vunpack.c.0.s8 %v792
        %v2749 = vunpack.c.0.s8 %v793
        %v2750 = vunpack.c.0.s8 %v794
        %v2751 = vunpack.c.0.s8 %v795
        %v2752 = vunpack.c.1.s8 %v792
        %v2753 = vunpack.c.1.s8 %v793
        %v2754 = vunpack.c.1.s8 %v794
        %v2755 = vunpack.c.1.s8 %v795
        %v2756 = vunpack.c.2.s8 %v792
        %v2757 = vunpack.c.2.s8 %v793
        %v2758 = vunpack.c.2.s8 %v794
        %v2759 = vunpack.c.2.s8 %v795
        %v2760 = vunpack.c.3.s8 %v792
        %v2761 = vunpack.c.3.s8 %v793
        %v2762 = vunpack.c.3.s8 %v794
        %v2763 = vunpack.c.3.s8 %v795
        %v2764 = vunpack.c.0.s8 %v796
        %v2765 = vunpack.c.0.s8 %v797
        %v2766 = vunpack.c.0.s8 %v798
        %v2767 = vunpack.c.0.s8 %v799
        %v2768 = vunpack.c.1.s8 %v796
        %v2769 = vunpack.c.1.s8 %v797
        %v2770 = vunpack.c.1.s8 %v798
        %v2771 = vunpack.c.1.s8 %v799
        %v2772 = vunpack.c.2.s8 %v796
        %v2773 = vunpack.c.2.s8 %v797
        %v2774 = vunpack.c.2.s8 %v798
        %v2775 = vunpack.c.2.s8 %v799
        %v2776 = vunpack.c.3.s8 %v796
        %v2777 = vunpack.c.3.s8 %v797
        %v2778 = vunpack.c.3.s8 %v798
        %v2779 = vunpack.c.3.s8 %v799
        %v2780 = vunpack.c.0.s8 %v800
        %v2781 = vunpack.c.0.s8 %v801
        %v2782 = vunpack.c.0.s8 %v802
        %v2783 = vunpack.c.0.s8 %v803
        %v2784 = vunpack.c.1.s8 %v800
        %v2785 = vunpack.c.1.s8 %v801
        %v2786 = vunpack.c.1.s8 %v802
        %v2787 = vunpack.c.1.s8 %v803
        %v2788 = vunpack.c.2.s8 %v800
        %v2789 = vunpack.c.2.s8 %v801
        %v2790 = vunpack.c.2.s8 %v802
        %v2791 = vunpack.c.2.s8 %v803
        %v2792 = vunpack.c.3.s8 %v800
        %v2793 = vunpack.c.3.s8 %v801
        %v2794 = vunpack.c.3.s8 %v802
        %v2795 = vunpack.c.3.s8 %v803
        %v2796 = vunpack.c.0.s8 %v804
        %v2797 = vunpack.c.0.s8 %v805
        %v2798 = vunpack.c.0.s8 %v806
        %v2799 = vunpack.c.0.s8 %v807
        %v2800 = vunpack.c.1.s8 %v804
        %v2801 = vunpack.c.1.s8 %v805
        %v2802 = vunpack.c.1.s8 %v806
        %v2803 = vunpack.c.1.s8 %v807
        %v2804 = vunpack.c.2.s8 %v804
        %v2805 = vunpack.c.2.s8 %v805
        %v2806 = vunpack.c.2.s8 %v806
        %v2807 = vunpack.c.2.s8 %v807
        %v2808 = vunpack.c.3.s8 %v804
        %v2809 = vunpack.c.3.s8 %v805
        %v2810 = vunpack.c.3.s8 %v806
        %v2811 = vunpack.c.3.s8 %v807
        %v2812 = vunpack.c.0.s8 %v808
        %v2813 = vunpack.c.0.s8 %v809
        %v2814 = vunpack.c.0.s8 %v810
        %v2815 = vunpack.c.0.s8 %v811
        %v2816 = vunpack.c.1.s8 %v808
        %v2817 = vunpack.c.1.s8 %v809
        %v2818 = vunpack.c.1.s8 %v810
        %v2819 = vunpack.c.1.s8 %v811
        %v2820 = vunpack.c.2.s8 %v808
        %v2821 = vunpack.c.2.s8 %v809
        %v2822 = vunpack.c.2.s8 %v810
        %v2823 = vunpack.c.2.s8 %v811
        %v2824 = vunpack.c.3.s8 %v808
        %v2825 = vunpack.c.3.s8 %v809
        %v2826 = vunpack.c.3.s8 %v810
        %v2827 = vunpack.c.3.s8 %v811
        %v2828 = vunpack.c.0.s8 %v812
        %v2829 = vunpack.c.0.s8 %v813
        %v2830 = vunpack.c.0.s8 %v814
        %v2831 = vunpack.c.0.s8 %v815
        %v2832 = vunpack.c.1.s8 %v812
        %v2833 = vunpack.c.1.s8 %v813
        %v2834 = vunpack.c.1.s8 %v814
        %v2835 = vunpack.c.1.s8 %v815
        %v2836 = vunpack.c.2.s8 %v812
        %v2837 = vunpack.c.2.s8 %v813
        %v2838 = vunpack.c.2.s8 %v814
        %v2839 = vunpack.c.2.s8 %v815
        %v2840 = vunpack.c.3.s8 %v812
        %v2841 = vunpack.c.3.s8 %v813
        %v2842 = vunpack.c.3.s8 %v814
        %v2843 = vunpack.c.3.s8 %v815
        %v2844 = vunpack.c.0.s8 %v816
        %v2845 = vunpack.c.0.s8 %v817
        %v2846 = vunpack.c.0.s8 %v818
        %v2847 = vunpack.c.0.s8 %v819
        %v2848 = vunpack.c.1.s8 %v816
        %v2849 = vunpack.c.1.s8 %v817
        %v2850 = vunpack.c.1.s8 %v818
        %v2851 = vunpack.c.1.s8 %v819
        %v2852 = vunpack.c.2.s8 %v816
        %v2853 = vunpack.c.2.s8 %v817
        %v2854 = vunpack.c.2.s8 %v818
        %v2855 = vunpack.c.2.s8 %v819
        %v2856 = vunpack.c.3.s8 %v816
        %v2857 = vunpack.c.3.s8 %v817
        %v2858 = vunpack.c.3.s8 %v818
        %v2859 = vunpack.c.3.s8 %v819
        %v2860 = vunpack.c.0.s8 %v820
        %v2861 = vunpack.c.0.s8 %v821
        %v2862 = vunpack.c.0.s8 %v822
        %v2863 = vunpack.c.0.s8 %v823
        %v2864 = vunpack.c.1.s8 %v820
        %v2865 = vunpack.c.1.s8 %v821
        %v2866 = vunpack.c.1.s8 %v822
        %v2867 = vunpack.c.1.s8 %v823
        %v2868 = vunpack.c.2.s8 %v820
        %v2869 = vunpack.c.2.s8 %v821
        %v2870 = vunpack.c.2.s8 %v822
        %v2871 = vunpack.c.2.s8 %v823
        %v2872 = vunpack.c.3.s8 %v820
        %v2873 = vunpack.c.3.s8 %v821
        %v2874 = vunpack.c.3.s8 %v822
        %v2875 = vunpack.c.3.s8 %v823
        %v2876 = vunpack.c.0.s8 %v824
        %v2877 = vunpack.c.0.s8 %v825
        %v2878 = vunpack.c.0.s8 %v826
        %v2879 = vunpack.c.0.s8 %v827
        %v2880 = vunpack.c.1.s8 %v824
        %v2881 = vunpack.c.1.s8 %v825
        %v2882 = vunpack.c.1.s8 %v826
        %v2883 = vunpack.c.1.s8 %v827
        %v2884 = vunpack.c.2.s8 %v824
        %v2885 = vunpack.c.2.s8 %v825
        %v2886 = vunpack.c.2.s8 %v826
        %v2887 = vunpack.c.2.s8 %v827
        %v2888 = vunpack.c.3.s8 %v824
        %v2889 = vunpack.c.3.s8 %v825
        %v2890 = vunpack.c.3.s8 %v826
        %v2891 = vunpack.c.3.s8 %v827
        %v2892 = vunpack.c.0.s8 %v828
        %v2893 = vunpack.c.0.s8 %v829
        %v2894 = vunpack.c.0.s8 %v830
        %v2895 = vunpack.c.0.s8 %v831
        %v2896 = vunpack.c.1.s8 %v828
        %v2897 = vunpack.c.1.s8 %v829
        %v2898 = vunpack.c.1.s8 %v830
        %v2899 = vunpack.c.1.s8 %v831
        %v2900 = vunpack.c.2.s8 %v828
        %v2901 = vunpack.c.2.s8 %v829
        %v2902 = vunpack.c.2.s8 %v830
        %v2903 = vunpack.c.2.s8 %v831
        %v2904 = vunpack.c.3.s8 %v828
        %v2905 = vunpack.c.3.s8 %v829
        %v2906 = vunpack.c.3.s8 %v830
        %v2907 = vunpack.c.3.s8 %v831
        %v2908 = vunpack.c.0.s8 %v832
        %v2909 = vunpack.c.0.s8 %v833
        %v2910 = vunpack.c.0.s8 %v834
        %v2911 = vunpack.c.0.s8 %v835
        %v2912 = vunpack.c.1.s8 %v832
        %v2913 = vunpack.c.1.s8 %v833
        %v2914 = vunpack.c.1.s8 %v834
        %v2915 = vunpack.c.1.s8 %v835
        %v2916 = vunpack.c.2.s8 %v832
        %v2917 = vunpack.c.2.s8 %v833
        %v2918 = vunpack.c.2.s8 %v834
        %v2919 = vunpack.c.2.s8 %v835
        %v2920 = vunpack.c.3.s8 %v832
        %v2921 = vunpack.c.3.s8 %v833
        %v2922 = vunpack.c.3.s8 %v834
        %v2923 = vunpack.c.3.s8 %v835
        %v2924 = vunpack.c.0.s8 %v836
        %v2925 = vunpack.c.0.s8 %v837
        %v2926 = vunpack.c.0.s8 %v838
        %v2927 = vunpack.c.0.s8 %v839
        %v2928 = vunpack.c.1.s8 %v836
        %v2929 = vunpack.c.1.s8 %v837
        %v2930 = vunpack.c.1.s8 %v838
        %v2931 = vunpack.c.1.s8 %v839
        %v2932 = vunpack.c.2.s8 %v836
        %v2933 = vunpack.c.2.s8 %v837
        %v2934 = vunpack.c.2.s8 %v838
        %v2935 = vunpack.c.2.s8 %v839
        %v2936 = vunpack.c.3.s8 %v836
        %v2937 = vunpack.c.3.s8 %v837
        %v2938 = vunpack.c.3.s8 %v838
        %v2939 = vunpack.c.3.s8 %v839
        %v2940 = vunpack.c.0.s8 %v840
        %v2941 = vunpack.c.0.s8 %v841
        %v2942 = vunpack.c.0.s8 %v842
        %v2943 = vunpack.c.0.s8 %v843
        %v2944 = vunpack.c.1.s8 %v840
        %v2945 = vunpack.c.1.s8 %v841
        %v2946 = vunpack.c.1.s8 %v842
        %v2947 = vunpack.c.1.s8 %v843
        %v2948 = vunpack.c.2.s8 %v840
        %v2949 = vunpack.c.2.s8 %v841
        %v2950 = vunpack.c.2.s8 %v842
        %v2951 = vunpack.c.2.s8 %v843
        %v2952 = vunpack.c.3.s8 %v840
        %v2953 = vunpack.c.3.s8 %v841
        %v2954 = vunpack.c.3.s8 %v842
        %v2955 = vunpack.c.3.s8 %v843
        %v2956 = vunpack.c.0.s8 %v844
        %v2957 = vunpack.c.0.s8 %v845
        %v2958 = vunpack.c.0.s8 %v846
        %v2959 = vunpack.c.0.s8 %v847
        %v2960 = vunpack.c.1.s8 %v844
        %v2961 = vunpack.c.1.s8 %v845
        %v2962 = vunpack.c.1.s8 %v846
        %v2963 = vunpack.c.1.s8 %v847
        %v2964 = vunpack.c.2.s8 %v844
        %v2965 = vunpack.c.2.s8 %v845
        %v2966 = vunpack.c.2.s8 %v846
        %v2967 = vunpack.c.2.s8 %v847
        %v2968 = vunpack.c.3.s8 %v844
        %v2969 = vunpack.c.3.s8 %v845
        %v2970 = vunpack.c.3.s8 %v846
        %v2971 = vunpack.c.3.s8 %v847
        %v2972 = vunpack.c.0.s8 %v848
        %v2973 = vunpack.c.0.s8 %v849
        %v2974 = vunpack.c.0.s8 %v850
        %v2975 = vunpack.c.0.s8 %v851
        %v2976 = vunpack.c.1.s8 %v848
        %v2977 = vunpack.c.1.s8 %v849
        %v2978 = vunpack.c.1.s8 %v850
        %v2979 = vunpack.c.1.s8 %v851
        %v2980 = vunpack.c.2.s8 %v848
        %v2981 = vunpack.c.2.s8 %v849
        %v2982 = vunpack.c.2.s8 %v850
        %v2983 = vunpack.c.2.s8 %v851
        %v2984 = vunpack.c.3.s8 %v848
        %v2985 = vunpack.c.3.s8 %v849
        %v2986 = vunpack.c.3.s8 %v850
        %v2987 = vunpack.c.3.s8 %v851
        %v2988 = vunpack.c.0.s8 %v852
        %v2989 = vunpack.c.0.s8 %v853
        %v2990 = vunpack.c.0.s8 %v854
        %v2991 = vunpack.c.0.s8 %v855
        %v2992 = vunpack.c.1.s8 %v852
        %v2993 = vunpack.c.1.s8 %v853
        %v2994 = vunpack.c.1.s8 %v854
        %v2995 = vunpack.c.1.s8 %v855
        %v2996 = vunpack.c.2.s8 %v852
        %v2997 = vunpack.c.2.s8 %v853
        %v2998 = vunpack.c.2.s8 %v854
        %v2999 = vunpack.c.2.s8 %v855
        %v3000 = vunpack.c.3.s8 %v852
        %v3001 = vunpack.c.3.s8 %v853
        %v3002 = vunpack.c.3.s8 %v854
        %v3003 = vunpack.c.3.s8 %v855
        %v3004 = vunpack.c.0.s8 %v856
        %v3005 = vunpack.c.0.s8 %v857
        %v3006 = vunpack.c.0.s8 %v858
        %v3007 = vunpack.c.0.s8 %v859
        %v3008 = vunpack.c.1.s8 %v856
        %v3009 = vunpack.c.1.s8 %v857
        %v3010 = vunpack.c.1.s8 %v858
        %v3011 = vunpack.c.1.s8 %v859
        %v3012 = vunpack.c.2.s8 %v856
        %v3013 = vunpack.c.2.s8 %v857
        %v3014 = vunpack.c.2.s8 %v858
        %v3015 = vunpack.c.2.s8 %v859
        %v3016 = vunpack.c.3.s8 %v856
        %v3017 = vunpack.c.3.s8 %v857
        %v3018 = vunpack.c.3.s8 %v858
        %v3019 = vunpack.c.3.s8 %v859
        %v3020 = vunpack.c.0.s8 %v860
        %v3021 = vunpack.c.0.s8 %v861
        %v3022 = vunpack.c.0.s8 %v862
        %v3023 = vunpack.c.0.s8 %v863
        %v3024 = vunpack.c.1.s8 %v860
        %v3025 = vunpack.c.1.s8 %v861
        %v3026 = vunpack.c.1.s8 %v862
        %v3027 = vunpack.c.1.s8 %v863
        %v3028 = vunpack.c.2.s8 %v860
        %v3029 = vunpack.c.2.s8 %v861
        %v3030 = vunpack.c.2.s8 %v862
        %v3031 = vunpack.c.2.s8 %v863
        %v3032 = vunpack.c.3.s8 %v860
        %v3033 = vunpack.c.3.s8 %v861
        %v3034 = vunpack.c.3.s8 %v862
        %v3035 = vunpack.c.3.s8 %v863
        %v3036 = vunpack.c.0.s8 %v864
        %v3037 = vunpack.c.0.s8 %v865
        %v3038 = vunpack.c.0.s8 %v866
        %v3039 = vunpack.c.0.s8 %v867
        %v3040 = vunpack.c.1.s8 %v864
        %v3041 = vunpack.c.1.s8 %v865
        %v3042 = vunpack.c.1.s8 %v866
        %v3043 = vunpack.c.1.s8 %v867
        %v3044 = vunpack.c.2.s8 %v864
        %v3045 = vunpack.c.2.s8 %v865
        %v3046 = vunpack.c.2.s8 %v866
        %v3047 = vunpack.c.2.s8 %v867
        %v3048 = vunpack.c.3.s8 %v864
        %v3049 = vunpack.c.3.s8 %v865
        %v3050 = vunpack.c.3.s8 %v866
        %v3051 = vunpack.c.3.s8 %v867
        %v3052 = vunpack.c.0.s8 %v868
        %v3053 = vunpack.c.0.s8 %v869
        %v3054 = vunpack.c.0.s8 %v870
        %v3055 = vunpack.c.0.s8 %v871
        %v3056 = vunpack.c.1.s8 %v868
        %v3057 = vunpack.c.1.s8 %v869
        %v3058 = vunpack.c.1.s8 %v870
        %v3059 = vunpack.c.1.s8 %v871
        %v3060 = vunpack.c.2.s8 %v868
        %v3061 = vunpack.c.2.s8 %v869
        %v3062 = vunpack.c.2.s8 %v870
        %v3063 = vunpack.c.2.s8 %v871
        %v3064 = vunpack.c.3.s8 %v868
        %v3065 = vunpack.c.3.s8 %v869
        %v3066 = vunpack.c.3.s8 %v870
        %v3067 = vunpack.c.3.s8 %v871
        %v3068 = vunpack.c.0.s8 %v872
        %v3069 = vunpack.c.0.s8 %v873
        %v3070 = vunpack.c.0.s8 %v874
        %v3071 = vunpack.c.0.s8 %v875
        %v3072 = vunpack.c.1.s8 %v872
        %v3073 = vunpack.c.1.s8 %v873
        %v3074 = vunpack.c.1.s8 %v874
        %v3075 = vunpack.c.1.s8 %v875
        %v3076 = vunpack.c.2.s8 %v872
        %v3077 = vunpack.c.2.s8 %v873
        %v3078 = vunpack.c.2.s8 %v874
        %v3079 = vunpack.c.2.s8 %v875
        %v3080 = vunpack.c.3.s8 %v872
        %v3081 = vunpack.c.3.s8 %v873
        %v3082 = vunpack.c.3.s8 %v874
        %v3083 = vunpack.c.3.s8 %v875
        %v3084 = vunpack.c.0.s8 %v876
        %v3085 = vunpack.c.0.s8 %v877
        %v3086 = vunpack.c.0.s8 %v878
        %v3087 = vunpack.c.0.s8 %v879
        %v3088 = vunpack.c.1.s8 %v876
        %v3089 = vunpack.c.1.s8 %v877
        %v3090 = vunpack.c.1.s8 %v878
        %v3091 = vunpack.c.1.s8 %v879
        %v3092 = vunpack.c.2.s8 %v876
        %v3093 = vunpack.c.2.s8 %v877
        %v3094 = vunpack.c.2.s8 %v878
        %v3095 = vunpack.c.2.s8 %v879
        %v3096 = vunpack.c.3.s8 %v876
        %v3097 = vunpack.c.3.s8 %v877
        %v3098 = vunpack.c.3.s8 %v878
        %v3099 = vunpack.c.3.s8 %v879
        %v3100 = vunpack.c.0.s8 %v880
        %v3101 = vunpack.c.0.s8 %v881
        %v3102 = vunpack.c.0.s8 %v882
        %v3103 = vunpack.c.0.s8 %v883
        %v3104 = vunpack.c.1.s8 %v880
        %v3105 = vunpack.c.1.s8 %v881
        %v3106 = vunpack.c.1.s8 %v882
        %v3107 = vunpack.c.1.s8 %v883
        %v3108 = vunpack.c.2.s8 %v880
        %v3109 = vunpack.c.2.s8 %v881
        %v3110 = vunpack.c.2.s8 %v882
        %v3111 = vunpack.c.2.s8 %v883
        %v3112 = vunpack.c.3.s8 %v880
        %v3113 = vunpack.c.3.s8 %v881
        %v3114 = vunpack.c.3.s8 %v882
        %v3115 = vunpack.c.3.s8 %v883
        %v3116 = vunpack.c.0.s8 %v884
        %v3117 = vunpack.c.0.s8 %v885
        %v3118 = vunpack.c.0.s8 %v886
        %v3119 = vunpack.c.0.s8 %v887
        %v3120 = vunpack.c.1.s8 %v884
        %v3121 = vunpack.c.1.s8 %v885
        %v3122 = vunpack.c.1.s8 %v886
        %v3123 = vunpack.c.1.s8 %v887
        %v3124 = vunpack.c.2.s8 %v884
        %v3125 = vunpack.c.2.s8 %v885
        %v3126 = vunpack.c.2.s8 %v886
        %v3127 = vunpack.c.2.s8 %v887
        %v3128 = vunpack.c.3.s8 %v884
        %v3129 = vunpack.c.3.s8 %v885
        %v3130 = vunpack.c.3.s8 %v886
        %v3131 = vunpack.c.3.s8 %v887
        %v3132 = vunpack.c.0.s8 %v888
        %v3133 = vunpack.c.0.s8 %v889
        %v3134 = vunpack.c.0.s8 %v890
        %v3135 = vunpack.c.0.s8 %v891
        %v3136 = vunpack.c.1.s8 %v888
        %v3137 = vunpack.c.1.s8 %v889
        %v3138 = vunpack.c.1.s8 %v890
        %v3139 = vunpack.c.1.s8 %v891
        %v3140 = vunpack.c.2.s8 %v888
        %v3141 = vunpack.c.2.s8 %v889
        %v3142 = vunpack.c.2.s8 %v890
        %v3143 = vunpack.c.2.s8 %v891
        %v3144 = vunpack.c.3.s8 %v888
        %v3145 = vunpack.c.3.s8 %v889
        %v3146 = vunpack.c.3.s8 %v890
        %v3147 = vunpack.c.3.s8 %v891
        %v3148 = vunpack.c.0.s8 %v892
        %v3149 = vunpack.c.0.s8 %v893
        %v3150 = vunpack.c.0.s8 %v894
        %v3151 = vunpack.c.0.s8 %v895
        %v3152 = vunpack.c.1.s8 %v892
        %v3153 = vunpack.c.1.s8 %v893
        %v3154 = vunpack.c.1.s8 %v894
        %v3155 = vunpack.c.1.s8 %v895
        %v3156 = vunpack.c.2.s8 %v892
        %v3157 = vunpack.c.2.s8 %v893
        %v3158 = vunpack.c.2.s8 %v894
        %v3159 = vunpack.c.2.s8 %v895
        %v3160 = vunpack.c.3.s8 %v892
        %v3161 = vunpack.c.3.s8 %v893
        %v3162 = vunpack.c.3.s8 %v894
        %v3163 = vunpack.c.3.s8 %v895
        %v3164 = vunpack.c.0.s8 %v896
        %v3165 = vunpack.c.0.s8 %v897
        %v3166 = vunpack.c.0.s8 %v898
        %v3167 = vunpack.c.0.s8 %v899
        %v3168 = vunpack.c.1.s8 %v896
        %v3169 = vunpack.c.1.s8 %v897
        %v3170 = vunpack.c.1.s8 %v898
        %v3171 = vunpack.c.1.s8 %v899
        %v3172 = vunpack.c.2.s8 %v896
        %v3173 = vunpack.c.2.s8 %v897
        %v3174 = vunpack.c.2.s8 %v898
        %v3175 = vunpack.c.2.s8 %v899
        %v3176 = vunpack.c.3.s8 %v896
        %v3177 = vunpack.c.3.s8 %v897
        %v3178 = vunpack.c.3.s8 %v898
        %v3179 = vunpack.c.3.s8 %v899
        %v3180 = vunpack.c.0.s8 %v900
        %v3181 = vunpack.c.0.s8 %v901
        %v3182 = vunpack.c.0.s8 %v902
        %v3183 = vunpack.c.0.s8 %v903
        %v3184 = vunpack.c.1.s8 %v900
        %v3185 = vunpack.c.1.s8 %v901
        %v3186 = vunpack.c.1.s8 %v902
        %v3187 = vunpack.c.1.s8 %v903
        %v3188 = vunpack.c.2.s8 %v900
        %v3189 = vunpack.c.2.s8 %v901
        %v3190 = vunpack.c.2.s8 %v902
        %v3191 = vunpack.c.2.s8 %v903
        %v3192 = vunpack.c.3.s8 %v900
        %v3193 = vunpack.c.3.s8 %v901
        %v3194 = vunpack.c.3.s8 %v902
        %v3195 = vunpack.c.3.s8 %v903
        %v3196 = vunpack.c.0.s8 %v904
        %v3197 = vunpack.c.0.s8 %v905
        %v3198 = vunpack.c.0.s8 %v906
        %v3199 = vunpack.c.0.s8 %v907
        %v3200 = vunpack.c.1.s8 %v904
        %v3201 = vunpack.c.1.s8 %v905
        %v3202 = vunpack.c.1.s8 %v906
        %v3203 = vunpack.c.1.s8 %v907
        %v3204 = vunpack.c.2.s8 %v904
        %v3205 = vunpack.c.2.s8 %v905
        %v3206 = vunpack.c.2.s8 %v906
        %v3207 = vunpack.c.2.s8 %v907
        %v3208 = vunpack.c.3.s8 %v904
        %v3209 = vunpack.c.3.s8 %v905
        %v3210 = vunpack.c.3.s8 %v906
        %v3211 = vunpack.c.3.s8 %v907
        %v3212 = vunpack.c.0.s8 %v908
        %v3213 = vunpack.c.0.s8 %v909
        %v3214 = vunpack.c.0.s8 %v910
        %v3215 = vunpack.c.0.s8 %v911
        %v3216 = vunpack.c.1.s8 %v908
        %v3217 = vunpack.c.1.s8 %v909
        %v3218 = vunpack.c.1.s8 %v910
        %v3219 = vunpack.c.1.s8 %v911
        %v3220 = vunpack.c.2.s8 %v908
        %v3221 = vunpack.c.2.s8 %v909
        %v3222 = vunpack.c.2.s8 %v910
        %v3223 = vunpack.c.2.s8 %v911
        %v3224 = vunpack.c.3.s8 %v908
        %v3225 = vunpack.c.3.s8 %v909
        %v3226 = vunpack.c.3.s8 %v910
        %v3227 = vunpack.c.3.s8 %v911
        %v3228 = vunpack.c.0.s8 %v912
        %v3229 = vunpack.c.0.s8 %v913
        %v3230 = vunpack.c.0.s8 %v914
        %v3231 = vunpack.c.0.s8 %v915
        %v3232 = vunpack.c.1.s8 %v912
        %v3233 = vunpack.c.1.s8 %v913
        %v3234 = vunpack.c.1.s8 %v914
        %v3235 = vunpack.c.1.s8 %v915
        %v3236 = vunpack.c.2.s8 %v912
        %v3237 = vunpack.c.2.s8 %v913
        %v3238 = vunpack.c.2.s8 %v914
        %v3239 = vunpack.c.2.s8 %v915
        %v3240 = vunpack.c.3.s8 %v912
        %v3241 = vunpack.c.3.s8 %v913
        %v3242 = vunpack.c.3.s8 %v914
        %v3243 = vunpack.c.3.s8 %v915
        %v3244 = vunpack.c.0.s8 %v916
        %v3245 = vunpack.c.0.s8 %v917
        %v3246 = vunpack.c.0.s8 %v918
        %v3247 = vunpack.c.0.s8 %v919
        %v3248 = vunpack.c.1.s8 %v916
        %v3249 = vunpack.c.1.s8 %v917
        %v3250 = vunpack.c.1.s8 %v918
        %v3251 = vunpack.c.1.s8 %v919
        %v3252 = vunpack.c.2.s8 %v916
        %v3253 = vunpack.c.2.s8 %v917
        %v3254 = vunpack.c.2.s8 %v918
        %v3255 = vunpack.c.2.s8 %v919
        %v3256 = vunpack.c.3.s8 %v916
        %v3257 = vunpack.c.3.s8 %v917
        %v3258 = vunpack.c.3.s8 %v918
        %v3259 = vunpack.c.3.s8 %v919
        %v3260 = vunpack.c.0.s8 %v920
        %v3261 = vunpack.c.0.s8 %v921
        %v3262 = vunpack.c.0.s8 %v922
        %v3263 = vunpack.c.0.s8 %v923
        %v3264 = vunpack.c.1.s8 %v920
        %v3265 = vunpack.c.1.s8 %v921
        %v3266 = vunpack.c.1.s8 %v922
        %v3267 = vunpack.c.1.s8 %v923
        %v3268 = vunpack.c.2.s8 %v920
        %v3269 = vunpack.c.2.s8 %v921
        %v3270 = vunpack.c.2.s8 %v922
        %v3271 = vunpack.c.2.s8 %v923
        %v3272 = vunpack.c.3.s8 %v920
        %v3273 = vunpack.c.3.s8 %v921
        %v3274 = vunpack.c.3.s8 %v922
        %v3275 = vunpack.c.3.s8 %v923
        %v3276 = vunpack.c.0.s8 %v924
        %v3277 = vunpack.c.0.s8 %v925
        %v3278 = vunpack.c.0.s8 %v926
        %v3279 = vunpack.c.0.s8 %v927
        %v3280 = vunpack.c.1.s8 %v924
        %v3281 = vunpack.c.1.s8 %v925
        %v3282 = vunpack.c.1.s8 %v926
        %v3283 = vunpack.c.1.s8 %v927
        %v3284 = vunpack.c.2.s8 %v924
        %v3285 = vunpack.c.2.s8 %v925
        %v3286 = vunpack.c.2.s8 %v926
        %v3287 = vunpack.c.2.s8 %v927
        %v3288 = vunpack.c.3.s8 %v924
        %v3289 = vunpack.c.3.s8 %v925
        %v3290 = vunpack.c.3.s8 %v926
        %v3291 = vunpack.c.3.s8 %v927
        %v3292 = vunpack.c.0.s8 %v928
        %v3293 = vunpack.c.0.s8 %v929
        %v3294 = vunpack.c.0.s8 %v930
        %v3295 = vunpack.c.0.s8 %v931
        %v3296 = vunpack.c.1.s8 %v928
        %v3297 = vunpack.c.1.s8 %v929
        %v3298 = vunpack.c.1.s8 %v930
        %v3299 = vunpack.c.1.s8 %v931
        %v3300 = vunpack.c.2.s8 %v928
        %v3301 = vunpack.c.2.s8 %v929
        %v3302 = vunpack.c.2.s8 %v930
        %v3303 = vunpack.c.2.s8 %v931
        %v3304 = vunpack.c.3.s8 %v928
        %v3305 = vunpack.c.3.s8 %v929
        %v3306 = vunpack.c.3.s8 %v930
        %v3307 = vunpack.c.3.s8 %v931
        %v3308 = vunpack.c.0.s8 %v932
        %v3309 = vunpack.c.0.s8 %v933
        %v3310 = vunpack.c.0.s8 %v934
        %v3311 = vunpack.c.0.s8 %v935
        %v3312 = vunpack.c.1.s8 %v932
        %v3313 = vunpack.c.1.s8 %v933
        %v3314 = vunpack.c.1.s8 %v934
        %v3315 = vunpack.c.1.s8 %v935
        %v3316 = vunpack.c.2.s8 %v932
        %v3317 = vunpack.c.2.s8 %v933
        %v3318 = vunpack.c.2.s8 %v934
        %v3319 = vunpack.c.2.s8 %v935
        %v3320 = vunpack.c.3.s8 %v932
        %v3321 = vunpack.c.3.s8 %v933
        %v3322 = vunpack.c.3.s8 %v934
        %v3323 = vunpack.c.3.s8 %v935
        %v3324 = vunpack.c.0.s8 %v936
        %v3325 = vunpack.c.0.s8 %v937
        %v3326 = vunpack.c.0.s8 %v938
        %v3327 = vunpack.c.0.s8 %v939
        %v3328 = vunpack.c.1.s8 %v936
        %v3329 = vunpack.c.1.s8 %v937
        %v3330 = vunpack.c.1.s8 %v938
        %v3331 = vunpack.c.1.s8 %v939
        %v3332 = vunpack.c.2.s8 %v936
        %v3333 = vunpack.c.2.s8 %v937
        %v3334 = vunpack.c.2.s8 %v938
        %v3335 = vunpack.c.2.s8 %v939
        %v3336 = vunpack.c.3.s8 %v936
        %v3337 = vunpack.c.3.s8 %v937
        %v3338 = vunpack.c.3.s8 %v938
        %v3339 = vunpack.c.3.s8 %v939
        %v3340 = vunpack.c.0.s8 %v940
        %v3341 = vunpack.c.0.s8 %v941
        %v3342 = vunpack.c.0.s8 %v942
        %v3343 = vunpack.c.0.s8 %v943
        %v3344 = vunpack.c.1.s8 %v940
        %v3345 = vunpack.c.1.s8 %v941
        %v3346 = vunpack.c.1.s8 %v942
        %v3347 = vunpack.c.1.s8 %v943
        %v3348 = vunpack.c.2.s8 %v940
        %v3349 = vunpack.c.2.s8 %v941
        %v3350 = vunpack.c.2.s8 %v942
        %v3351 = vunpack.c.2.s8 %v943
        %v3352 = vunpack.c.3.s8 %v940
        %v3353 = vunpack.c.3.s8 %v941
        %v3354 = vunpack.c.3.s8 %v942
        %v3355 = vunpack.c.3.s8 %v943
        %v3356 = vunpack.c.0.s8 %v944
        %v3357 = vunpack.c.0.s8 %v945
        %v3358 = vunpack.c.0.s8 %v946
        %v3359 = vunpack.c.0.s8 %v947
        %v3360 = vunpack.c.1.s8 %v944
        %v3361 = vunpack.c.1.s8 %v945
        %v3362 = vunpack.c.1.s8 %v946
        %v3363 = vunpack.c.1.s8 %v947
        %v3364 = vunpack.c.2.s8 %v944
        %v3365 = vunpack.c.2.s8 %v945
        %v3366 = vunpack.c.2.s8 %v946
        %v3367 = vunpack.c.2.s8 %v947
        %v3368 = vunpack.c.3.s8 %v944
        %v3369 = vunpack.c.3.s8 %v945
        %v3370 = vunpack.c.3.s8 %v946
        %v3371 = vunpack.c.3.s8 %v947
        %v3372 = vunpack.c.0.s8 %v948
        %v3373 = vunpack.c.0.s8 %v949
        %v3374 = vunpack.c.0.s8 %v950
        %v3375 = vunpack.c.0.s8 %v951
        %v3376 = vunpack.c.1.s8 %v948
        %v3377 = vunpack.c.1.s8 %v949
        %v3378 = vunpack.c.1.s8 %v950
        %v3379 = vunpack.c.1.s8 %v951
        %v3380 = vunpack.c.2.s8 %v948
        %v3381 = vunpack.c.2.s8 %v949
        %v3382 = vunpack.c.2.s8 %v950
        %v3383 = vunpack.c.2.s8 %v951
        %v3384 = vunpack.c.3.s8 %v948
        %v3385 = vunpack.c.3.s8 %v949
        %v3386 = vunpack.c.3.s8 %v950
        %v3387 = vunpack.c.3.s8 %v951
        %v3388 = vunpack.c.0.s8 %v952
        %v3389 = vunpack.c.0.s8 %v953
        %v3390 = vunpack.c.0.s8 %v954
        %v3391 = vunpack.c.0.s8 %v955
        %v3392 = vunpack.c.1.s8 %v952
        %v3393 = vunpack.c.1.s8 %v953
        %v3394 = vunpack.c.1.s8 %v954
        %v3395 = vunpack.c.1.s8 %v955
        %v3396 = vunpack.c.2.s8 %v952
        %v3397 = vunpack.c.2.s8 %v953
        %v3398 = vunpack.c.2.s8 %v954
        %v3399 = vunpack.c.2.s8 %v955
        %v3400 = vunpack.c.3.s8 %v952
        %v3401 = vunpack.c.3.s8 %v953
        %v3402 = vunpack.c.3.s8 %v954
        %v3403 = vunpack.c.3.s8 %v955
        %v3404 = vunpack.c.0.s8 %v956
        %v3405 = vunpack.c.0.s8 %v957
        %v3406 = vunpack.c.0.s8 %v958
        %v3407 = vunpack.c.0.s8 %v959
        %v3408 = vunpack.c.1.s8 %v956
        %v3409 = vunpack.c.1.s8 %v957
        %v3410 = vunpack.c.1.s8 %v958
        %v3411 = vunpack.c.1.s8 %v959
        %v3412 = vunpack.c.2.s8 %v956
        %v3413 = vunpack.c.2.s8 %v957
        %v3414 = vunpack.c.2.s8 %v958
        %v3415 = vunpack.c.2.s8 %v959
        %v3416 = vunpack.c.3.s8 %v956
        %v3417 = vunpack.c.3.s8 %v957
        %v3418 = vunpack.c.3.s8 %v958
        %v3419 = vunpack.c.3.s8 %v959
        %v3420 = vunpack.c.0.s8 %v960
        %v3421 = vunpack.c.0.s8 %v961
        %v3422 = vunpack.c.0.s8 %v962
        %v3423 = vunpack.c.0.s8 %v963
        %v3424 = vunpack.c.1.s8 %v960
        %v3425 = vunpack.c.1.s8 %v961
        %v3426 = vunpack.c.1.s8 %v962
        %v3427 = vunpack.c.1.s8 %v963
        %v3428 = vunpack.c.2.s8 %v960
        %v3429 = vunpack.c.2.s8 %v961
        %v3430 = vunpack.c.2.s8 %v962
        %v3431 = vunpack.c.2.s8 %v963
        %v3432 = vunpack.c.3.s8 %v960
        %v3433 = vunpack.c.3.s8 %v961
        %v3434 = vunpack.c.3.s8 %v962
        %v3435 = vunpack.c.3.s8 %v963
        %v3436 = vunpack.c.0.s8 %v964
        %v3437 = vunpack.c.0.s8 %v965
        %v3438 = vunpack.c.0.s8 %v966
        %v3439 = vunpack.c.0.s8 %v967
        %v3440 = vunpack.c.1.s8 %v964
        %v3441 = vunpack.c.1.s8 %v965
        %v3442 = vunpack.c.1.s8 %v966
        %v3443 = vunpack.c.1.s8 %v967
        %v3444 = vunpack.c.2.s8 %v964
        %v3445 = vunpack.c.2.s8 %v965
        %v3446 = vunpack.c.2.s8 %v966
        %v3447 = vunpack.c.2.s8 %v967
        %v3448 = vunpack.c.3.s8 %v964
        %v3449 = vunpack.c.3.s8 %v965
        %v3450 = vunpack.c.3.s8 %v966
        %v3451 = vunpack.c.3.s8 %v967
        %v3452 = vunpack.c.0.s8 %v968
        %v3453 = vunpack.c.0.s8 %v969
        %v3454 = vunpack.c.0.s8 %v970
        %v3455 = vunpack.c.0.s8 %v971
        %v3456 = vunpack.c.1.s8 %v968
        %v3457 = vunpack.c.1.s8 %v969
        %v3458 = vunpack.c.1.s8 %v970
        %v3459 = vunpack.c.1.s8 %v971
        %v3460 = vunpack.c.2.s8 %v968
        %v3461 = vunpack.c.2.s8 %v969
        %v3462 = vunpack.c.2.s8 %v970
        %v3463 = vunpack.c.2.s8 %v971
        %v3464 = vunpack.c.3.s8 %v968
        %v3465 = vunpack.c.3.s8 %v969
        %v3466 = vunpack.c.3.s8 %v970
        %v3467 = vunpack.c.3.s8 %v971
        %v3468 = vcvt.s32.f32 %v972
        %v3469 = vcvt.s32.f32 %v973
        %v3470 = vcvt.s32.f32 %v974
        %v3471 = vcvt.s32.f32 %v975
        %v3472 = vcvt.s32.f32 %v976
        %v3473 = vcvt.s32.f32 %v977
        %v3474 = vcvt.s32.f32 %v978
        %v3475 = vcvt.s32.f32 %v979
        %v3476 = vcvt.s32.f32 %v980
        %v3477 = vcvt.s32.f32 %v981
        %v3478 = vcvt.s32.f32 %v982
        %v3479 = vcvt.s32.f32 %v983
        %v3480 = vcvt.s32.f32 %v984
        %v3481 = vcvt.s32.f32 %v985
        %v3482 = vcvt.s32.f32 %v986
        %v3483 = vcvt.s32.f32 %v987
        %v3484 = vcvt.s32.f32 %v988
        %v3485 = vcvt.s32.f32 %v989
        %v3486 = vcvt.s32.f32 %v990
        %v3487 = vcvt.s32.f32 %v991
        %v3488 = vcvt.s32.f32 %v992
        %v3489 = vcvt.s32.f32 %v993
        %v3490 = vcvt.s32.f32 %v994
        %v3491 = vcvt.s32.f32 %v995
        %v3492 = vcvt.s32.f32 %v996
        %v3493 = vcvt.s32.f32 %v997
        %v3494 = vcvt.s32.f32 %v998
        %v3495 = vcvt.s32.f32 %v999
        %v3496 = vcvt.s32.f32 %v1000
        %v3497 = vcvt.s32.f32 %v1001
        %v3498 = vcvt.s32.f32 %v1002
        %v3499 = vcvt.s32.f32 %v1003
        %v3500 = vcvt.s32.f32 %v1004
        %v3501 = vcvt.s32.f32 %v1005
        %v3502 = vcvt.s32.f32 %v1006
        %v3503 = vcvt.s32.f32 %v1007
        %v3504 = vcvt.s32.f32 %v1008
        %v3505 = vcvt.s32.f32 %v1009
        %v3506 = vcvt.s32.f32 %v1010
        %v3507 = vcvt.s32.f32 %v1011
        %v3508 = vcvt.s32.f32 %v1012
        %v3509 = vcvt.s32.f32 %v1013
        %v3510 = vcvt.s32.f32 %v1014
        %v3511 = vcvt.s32.f32 %v1015
        %v3512 = vcvt.s32.f32 %v1016
        %v3513 = vcvt.s32.f32 %v1017
        %v3514 = vcvt.s32.f32 %v1018
        %v3515 = vcvt.s32.f32 %v1019
        %v3516 = vcvt.s32.f32 %v1020
        %v3517 = vcvt.s32.f32 %v1021
        %v3518 = vcvt.s32.f32 %v1022
        %v3519 = vcvt.s32.f32 %v1023
        %v3520 = vcvt.s32.f32 %v1024
        %v3521 = vcvt.s32.f32 %v1025
        %v3522 = vcvt.s32.f32 %v1026
        %v3523 = vcvt.s32.f32 %v1027
        %v3524 = vcvt.s32.f32 %v1028
        %v3525 = vcvt.s32.f32 %v1029
        %v3526 = vcvt.s32.f32 %v1030
        %v3527 = vcvt.s32.f32 %v1031
        %v3528 = vcvt.s32.f32 %v1032
        %v3529 = vcvt.s32.f32 %v1033
        %v3530 = vcvt.s32.f32 %v1034
        %v3531 = vcvt.s32.f32 %v1035
        %v3532 = vcvt.s32.f32 %v1036
        %v3533 = vcvt.s32.f32 %v1037
        %v3534 = vcvt.s32.f32 %v1038
        %v3535 = vcvt.s32.f32 %v1039
        %v3536 = vcvt.s32.f32 %v1040
        %v3537 = vcvt.s32.f32 %v1041
        %v3538 = vcvt.s32.f32 %v1042
        %v3539 = vcvt.s32.f32 %v1043
        %v3540 = vcvt.s32.f32 %v1044
        %v3541 = vcvt.s32.f32 %v1045
        %v3542 = vcvt.s32.f32 %v1046
        %v3543 = vcvt.s32.f32 %v1047
        %v3544 = vcvt.s32.f32 %v1048
        %v3545 = vcvt.s32.f32 %v1049
        %v3546 = vcvt.s32.f32 %v1050
        %v3547 = vcvt.s32.f32 %v1051
        %v3548 = vcvt.s32.f32 %v1052
        %v3549 = vcvt.s32.f32 %v1053
        %v3550 = vcvt.s32.f32 %v1054
        %v3551 = vcvt.s32.f32 %v1055
        %v3552 = vcvt.s32.f32 %v1056
        %v3553 = vcvt.s32.f32 %v1057
        %v3554 = vcvt.s32.f32 %v1058
        %v3555 = vcvt.s32.f32 %v1059
        %v3556 = vcvt.s32.f32 %v1060
        %v3557 = vcvt.s32.f32 %v1061
        %v3558 = vcvt.s32.f32 %v1062
        %v3559 = vcvt.s32.f32 %v1063
        %v3560 = vcvt.s32.f32 %v1064
        %v3561 = vcvt.s32.f32 %v1065
        %v3562 = vcvt.s32.f32 %v1066
        %v3563 = vcvt.s32.f32 %v1067
        %v3564 = vcvt.s32.f32 %v1068
        %v3565 = vcvt.s32.f32 %v1069
        %v3566 = vcvt.s32.f32 %v1070
        %v3567 = vcvt.s32.f32 %v1071
        %v3568 = vcvt.s32.f32 %v1072
        %v3569 = vcvt.s32.f32 %v1073
        %v3570 = vcvt.s32.f32 %v1074
        %v3571 = vcvt.s32.f32 %v1075
        %v3572 = vcvt.s32.f32 %v1076
        %v3573 = vcvt.s32.f32 %v1077
        %v3574 = vcvt.s32.f32 %v1078
        %v3575 = vcvt.s32.f32 %v1079
        %v3576 = vcvt.s32.f32 %v1080
        %v3577 = vcvt.s32.f32 %v1081
        %v3578 = vcvt.s32.f32 %v1082
        %v3579 = vcvt.s32.f32 %v1083
        %v3580 = vcvt.s32.f32 %v1084
        %v3581 = vcvt.s32.f32 %v1085
        %v3582 = vcvt.s32.f32 %v1086
        %v3583 = vcvt.s32.f32 %v1087
        %v3584 = vcvt.s32.f32 %v1088
        %v3585 = vcvt.s32.f32 %v1089
        %v3586 = vcvt.s32.f32 %v1090
        %v3587 = vcvt.s32.f32 %v1091
        %v3588 = vcvt.s32.f32 %v1092
        %v3589 = vcvt.s32.f32 %v1093
        %v3590 = vcvt.s32.f32 %v1094
        %v3591 = vcvt.s32.f32 %v1095
        %v3592 = vcvt.s32.f32 %v1096
        %v3593 = vcvt.s32.f32 %v1097
        %v3594 = vcvt.s32.f32 %v1098
        %v3595 = vcvt.s32.f32 %v1099
        %v3596 = vcvt.s32.f32 %v1100
        %v3597 = vcvt.s32.f32 %v1101
        %v3598 = vcvt.s32.f32 %v1102
        %v3599 = vcvt.s32.f32 %v1103
        %v3600 = vcvt.s32.f32 %v1104
        %v3601 = vcvt.s32.f32 %v1105
        %v3602 = vcvt.s32.f32 %v1106
        %v3603 = vcvt.s32.f32 %v1107
        %v3604 = vcvt.s32.f32 %v1108
        %v3605 = vcvt.s32.f32 %v1109
        %v3606 = vcvt.s32.f32 %v1110
        %v3607 = vcvt.s32.f32 %v1111
        %v3608 = vcvt.s32.f32 %v1112
        %v3609 = vcvt.s32.f32 %v1113
        %v3610 = vcvt.s32.f32 %v1114
        %v3611 = vcvt.s32.f32 %v1115
        %v3612 = vcvt.s32.f32 %v1116
        %v3613 = vcvt.s32.f32 %v1117
        %v3614 = vcvt.s32.f32 %v1118
        %v3615 = vcvt.s32.f32 %v1119
        %v3616 = vcvt.s32.f32 %v1120
        %v3617 = vcvt.s32.f32 %v1121
        %v3618 = vcvt.s32.f32 %v1122
        %v3619 = vcvt.s32.f32 %v1123
        %v3620 = vcvt.s32.f32 %v1124
        %v3621 = vcvt.s32.f32 %v1125
        %v3622 = vcvt.s32.f32 %v1126
        %v3623 = vcvt.s32.f32 %v1127
        %v3624 = vcvt.s32.f32 %v1128
        %v3625 = vcvt.s32.f32 %v1129
        %v3626 = vcvt.s32.f32 %v1130
        %v3627 = vcvt.s32.f32 %v1131
        %v3628 = vcvt.s32.f32 %v1132
        %v3629 = vcvt.s32.f32 %v1133
        %v3630 = vcvt.s32.f32 %v1134
        %v3631 = vcvt.s32.f32 %v1135
        %v3632 = vcvt.s32.f32 %v1136
        %v3633 = vcvt.s32.f32 %v1137
        %v3634 = vcvt.s32.f32 %v1138
        %v3635 = vcvt.s32.f32 %v1139
        %v3636 = vcvt.s32.f32 %v1140
        %v3637 = vcvt.s32.f32 %v1141
        %v3638 = vcvt.s32.f32 %v1142
        %v3639 = vcvt.s32.f32 %v1143
        %v3640 = vcvt.s32.f32 %v1144
        %v3641 = vcvt.s32.f32 %v1145
        %v3642 = vcvt.s32.f32 %v1146
        %v3643 = vcvt.s32.f32 %v1147
        %v3644 = vcvt.s32.f32 %v1148
        %v3645 = vcvt.s32.f32 %v1149
        %v3646 = vcvt.s32.f32 %v1150
        %v3647 = vcvt.s32.f32 %v1151
        %v3648 = vcvt.s32.f32 %v1152
        %v3649 = vcvt.s32.f32 %v1153
        %v3650 = vcvt.s32.f32 %v1154
        %v3651 = vcvt.s32.f32 %v1155
        %v3652 = vcvt.s32.f32 %v1156
        %v3653 = vcvt.s32.f32 %v1157
        %v3654 = vcvt.s32.f32 %v1158
        %v3655 = vcvt.s32.f32 %v1159
        %v3656 = vcvt.s32.f32 %v1160
        %v3657 = vcvt.s32.f32 %v1161
        %v3658 = vcvt.s32.f32 %v1162
        %v3659 = vcvt.s32.f32 %v1163
        %v3660 = vcvt.s32.f32 %v1164
        %v3661 = vcvt.s32.f32 %v1165
        %v3662 = vcvt.s32.f32 %v1166
        %v3663 = vcvt.s32.f32 %v1167
        %v3664 = vcvt.s32.f32 %v1168
        %v3665 = vcvt.s32.f32 %v1169
        %v3666 = vcvt.s32.f32 %v1170
        %v3667 = vcvt.s32.f32 %v1171
        %v3668 = vcvt.s32.f32 %v1172
        %v3669 = vcvt.s32.f32 %v1173
        %v3670 = vcvt.s32.f32 %v1174
        %v3671 = vcvt.s32.f32 %v1175
        %v3672 = vcvt.s32.f32 %v1176
        %v3673 = vcvt.s32.f32 %v1177
        %v3674 = vcvt.s32.f32 %v1178
        %v3675 = vcvt.s32.f32 %v1179
        %v3676 = vcvt.s32.f32 %v1180
        %v3677 = vcvt.s32.f32 %v1181
        %v3678 = vcvt.s32.f32 %v1182
        %v3679 = vcvt.s32.f32 %v1183
        %v3680 = vcvt.s32.f32 %v1184
        %v3681 = vcvt.s32.f32 %v1185
        %v3682 = vcvt.s32.f32 %v1186
        %v3683 = vcvt.s32.f32 %v1187
        %v3684 = vcvt.s32.f32 %v1188
        %v3685 = vcvt.s32.f32 %v1189
        %v3686 = vcvt.s32.f32 %v1190
        %v3687 = vcvt.s32.f32 %v1191
        %v3688 = vcvt.s32.f32 %v1192
        %v3689 = vcvt.s32.f32 %v1193
        %v3690 = vcvt.s32.f32 %v1194
        %v3691 = vcvt.s32.f32 %v1195
        %v3692 = vcvt.s32.f32 %v1196
        %v3693 = vcvt.s32.f32 %v1197
        %v3694 = vcvt.s32.f32 %v1198
        %v3695 = vcvt.s32.f32 %v1199
        %v3696 = vcvt.s32.f32 %v1200
        %v3697 = vcvt.s32.f32 %v1201
        %v3698 = vcvt.s32.f32 %v1202
        %v3699 = vcvt.s32.f32 %v1203
        %v3700 = vcvt.s32.f32 %v1204
        %v3701 = vcvt.s32.f32 %v1205
        %v3702 = vcvt.s32.f32 %v1206
        %v3703 = vcvt.s32.f32 %v1207
        %v3704 = vcvt.s32.f32 %v1208
        %v3705 = vcvt.s32.f32 %v1209
        %v3706 = vcvt.s32.f32 %v1210
        %v3707 = vcvt.s32.f32 %v1211
        %v3708 = vcvt.s32.f32 %v1212
        %v3709 = vcvt.s32.f32 %v1213
        %v3710 = vcvt.s32.f32 %v1214
        %v3711 = vcvt.s32.f32 %v1215
        %v3712 = vcvt.s32.f32 %v1216
        %v3713 = vcvt.s32.f32 %v1217
        %v3714 = vcvt.s32.f32 %v1218
        %v3715 = vcvt.s32.f32 %v1219
        %v3716 = vcvt.s32.f32 %v1220
        %v3717 = vcvt.s32.f32 %v1221
        %v3718 = vcvt.s32.f32 %v1222
        %v3719 = vcvt.s32.f32 %v1223
        %v3720 = vcvt.s32.f32 %v1224
        %v3721 = vcvt.s32.f32 %v1225
        %v3722 = vcvt.s32.f32 %v1226
        %v3723 = vcvt.s32.f32 %v1227
        %v3724 = vcvt.s32.f32 %v1228
        %v3725 = vcvt.s32.f32 %v1229
        %v3726 = vcvt.s32.f32 %v1230
        %v3727 = vcvt.s32.f32 %v1231
        %v3728 = vcvt.s32.f32 %v1232
        %v3729 = vcvt.s32.f32 %v1233
        %v3730 = vcvt.s32.f32 %v1234
        %v3731 = vcvt.s32.f32 %v1235
        %v3732 = vcvt.s32.f32 %v1236
        %v3733 = vcvt.s32.f32 %v1237
        %v3734 = vcvt.s32.f32 %v1238
        %v3735 = vcvt.s32.f32 %v1239
        %v3736 = vcvt.s32.f32 %v1240
        %v3737 = vcvt.s32.f32 %v1241
        %v3738 = vcvt.s32.f32 %v1242
        %v3739 = vcvt.s32.f32 %v1243
        %v3740 = vcvt.s32.f32 %v1244
        %v3741 = vcvt.s32.f32 %v1245
        %v3742 = vcvt.s32.f32 %v1246
        %v3743 = vcvt.s32.f32 %v1247
        %v3744 = vcvt.s32.f32 %v1248
        %v3745 = vcvt.s32.f32 %v1249
        %v3746 = vcvt.s32.f32 %v1250
        %v3747 = vcvt.s32.f32 %v1251
        %v3748 = vcvt.s32.f32 %v1252
        %v3749 = vcvt.s32.f32 %v1253
        %v3750 = vcvt.s32.f32 %v1254
        %v3751 = vcvt.s32.f32 %v1255
        %v3752 = vcvt.s32.f32 %v1256
        %v3753 = vcvt.s32.f32 %v1257
        %v3754 = vcvt.s32.f32 %v1258
        %v3755 = vcvt.s32.f32 %v1259
        %v3756 = vcvt.s32.f32 %v1260
        %v3757 = vcvt.s32.f32 %v1261
        %v3758 = vcvt.s32.f32 %v1262
        %v3759 = vcvt.s32.f32 %v1263
        %v3760 = vcvt.s32.f32 %v1264
        %v3761 = vcvt.s32.f32 %v1265
        %v3762 = vcvt.s32.f32 %v1266
        %v3763 = vcvt.s32.f32 %v1267
        %v3764 = vcvt.s32.f32 %v1268
        %v3765 = vcvt.s32.f32 %v1269
        %v3766 = vcvt.s32.f32 %v1270
        %v3767 = vcvt.s32.f32 %v1271
        %v3768 = vcvt.s32.f32 %v1272
        %v3769 = vcvt.s32.f32 %v1273
        %v3770 = vcvt.s32.f32 %v1274
        %v3771 = vcvt.s32.f32 %v1275
        %v3772 = vcvt.s32.f32 %v1276
        %v3773 = vcvt.s32.f32 %v1277
        %v3774 = vcvt.s32.f32 %v1278
        %v3775 = vcvt.s32.f32 %v1279
        %v3776 = vcvt.s32.f32 %v1280
        %v3777 = vcvt.s32.f32 %v1281
        %v3778 = vcvt.s32.f32 %v1282
        %v3779 = vcvt.s32.f32 %v1283
        %v3780 = vcvt.s32.f32 %v1284
        %v3781 = vcvt.s32.f32 %v1285
        %v3782 = vcvt.s32.f32 %v1286
        %v3783 = vcvt.s32.f32 %v1287
        %v3784 = vcvt.s32.f32 %v1288
        %v3785 = vcvt.s32.f32 %v1289
        %v3786 = vcvt.s32.f32 %v1290
        %v3787 = vcvt.s32.f32 %v1291
        %v3788 = vcvt.s32.f32 %v1292
        %v3789 = vcvt.s32.f32 %v1293
        %v3790 = vcvt.s32.f32 %v1294
        %v3791 = vcvt.s32.f32 %v1295
        %v3792 = vcvt.s32.f32 %v1296
        %v3793 = vcvt.s32.f32 %v1297
        %v3794 = vcvt.s32.f32 %v1298
        %v3795 = vcvt.s32.f32 %v1299
        %v3796 = vcvt.s32.f32 %v1300
        %v3797 = vcvt.s32.f32 %v1301
        %v3798 = vcvt.s32.f32 %v1302
        %v3799 = vcvt.s32.f32 %v1303
        %v3800 = vcvt.s32.f32 %v1304
        %v3801 = vcvt.s32.f32 %v1305
        %v3802 = vcvt.s32.f32 %v1306
        %v3803 = vcvt.s32.f32 %v1307
        %v3804 = vcvt.s32.f32 %v1308
        %v3805 = vcvt.s32.f32 %v1309
        %v3806 = vcvt.s32.f32 %v1310
        %v3807 = vcvt.s32.f32 %v1311
        %v3808 = vcvt.s32.f32 %v1312
        %v3809 = vcvt.s32.f32 %v1313
        %v3810 = vcvt.s32.f32 %v1314
        %v3811 = vcvt.s32.f32 %v1315
        %v3812 = vcvt.s32.f32 %v1316
        %v3813 = vcvt.s32.f32 %v1317
        %v3814 = vcvt.s32.f32 %v1318
        %v3815 = vcvt.s32.f32 %v1319
        %v3816 = vcvt.s32.f32 %v1320
        %v3817 = vcvt.s32.f32 %v1321
        %v3818 = vcvt.s32.f32 %v1322
        %v3819 = vcvt.s32.f32 %v1323
        %v3820 = vcvt.s32.f32 %v1324
        %v3821 = vcvt.s32.f32 %v1325
        %v3822 = vcvt.s32.f32 %v1326
        %v3823 = vcvt.s32.f32 %v1327
        %v3824 = vcvt.s32.f32 %v1328
        %v3825 = vcvt.s32.f32 %v1329
        %v3826 = vcvt.s32.f32 %v1330
        %v3827 = vcvt.s32.f32 %v1331
        %v3828 = vcvt.s32.f32 %v1332
        %v3829 = vcvt.s32.f32 %v1333
        %v3830 = vcvt.s32.f32 %v1334
        %v3831 = vcvt.s32.f32 %v1335
        %v3832 = vcvt.s32.f32 %v1336
        %v3833 = vcvt.s32.f32 %v1337
        %v3834 = vcvt.s32.f32 %v1338
        %v3835 = vcvt.s32.f32 %v1339
        %v3836 = vcvt.s32.f32 %v1340
        %v3837 = vcvt.s32.f32 %v1341
        %v3838 = vcvt.s32.f32 %v1342
        %v3839 = vcvt.s32.f32 %v1343
        %v3840 = vcvt.s32.f32 %v1344
        %v3841 = vcvt.s32.f32 %v1345
        %v3842 = vcvt.s32.f32 %v1346
        %v3843 = vcvt.s32.f32 %v1347
        %v3844 = vcvt.s32.f32 %v1348
        %v3845 = vcvt.s32.f32 %v1349
        %v3846 = vcvt.s32.f32 %v1350
        %v3847 = vcvt.s32.f32 %v1351
        %v3848 = vcvt.s32.f32 %v1352
        %v3849 = vcvt.s32.f32 %v1353
        %v3850 = vcvt.s32.f32 %v1354
        %v3851 = vcvt.s32.f32 %v1355
        %v3852 = vcvt.s32.f32 %v1356
        %v3853 = vcvt.s32.f32 %v1357
        %v3854 = vcvt.s32.f32 %v1358
        %v3855 = vcvt.s32.f32 %v1359
        %v3856 = vcvt.s32.f32 %v1360
        %v3857 = vcvt.s32.f32 %v1361
        %v3858 = vcvt.s32.f32 %v1362
        %v3859 = vcvt.s32.f32 %v1363
        %v3860 = vcvt.s32.f32 %v1364
        %v3861 = vcvt.s32.f32 %v1365
        %v3862 = vcvt.s32.f32 %v1366
        %v3863 = vcvt.s32.f32 %v1367
        %v3864 = vcvt.s32.f32 %v1368
        %v3865 = vcvt.s32.f32 %v1369
        %v3866 = vcvt.s32.f32 %v1370
        %v3867 = vcvt.s32.f32 %v1371
        %v3868 = vcvt.s32.f32 %v1372
        %v3869 = vcvt.s32.f32 %v1373
        %v3870 = vcvt.s32.f32 %v1374
        %v3871 = vcvt.s32.f32 %v1375
        %v3872 = vcvt.s32.f32 %v1376
        %v3873 = vcvt.s32.f32 %v1377
        %v3874 = vcvt.s32.f32 %v1378
        %v3875 = vcvt.s32.f32 %v1379
        %v3876 = vcvt.s32.f32 %v1380
        %v3877 = vcvt.s32.f32 %v1381
        %v3878 = vcvt.s32.f32 %v1382
        %v3879 = vcvt.s32.f32 %v1383
        %v3880 = vcvt.s32.f32 %v1384
        %v3881 = vcvt.s32.f32 %v1385
        %v3882 = vcvt.s32.f32 %v1386
        %v3883 = vcvt.s32.f32 %v1387
        %v3884 = vcvt.s32.f32 %v1388
        %v3885 = vcvt.s32.f32 %v1389
        %v3886 = vcvt.s32.f32 %v1390
        %v3887 = vcvt.s32.f32 %v1391
        %v3888 = vcvt.s32.f32 %v1392
        %v3889 = vcvt.s32.f32 %v1393
        %v3890 = vcvt.s32.f32 %v1394
        %v3891 = vcvt.s32.f32 %v1395
        %v3892 = vcvt.s32.f32 %v1396
        %v3893 = vcvt.s32.f32 %v1397
        %v3894 = vcvt.s32.f32 %v1398
        %v3895 = vcvt.s32.f32 %v1399
        %v3896 = vcvt.s32.f32 %v1400
        %v3897 = vcvt.s32.f32 %v1401
        %v3898 = vcvt.s32.f32 %v1402
        %v3899 = vcvt.s32.f32 %v1403
        %v3900 = vcvt.s32.f32 %v1404
        %v3901 = vcvt.s32.f32 %v1405
        %v3902 = vcvt.s32.f32 %v1406
        %v3903 = vcvt.s32.f32 %v1407
        %v3904 = vcvt.s32.f32 %v1408
        %v3905 = vcvt.s32.f32 %v1409
        %v3906 = vcvt.s32.f32 %v1410
        %v3907 = vcvt.s32.f32 %v1411
        %v3908 = vcvt.s32.f32 %v1412
        %v3909 = vcvt.s32.f32 %v1413
        %v3910 = vcvt.s32.f32 %v1414
        %v3911 = vcvt.s32.f32 %v1415
        %v3912 = vcvt.s32.f32 %v1416
        %v3913 = vcvt.s32.f32 %v1417
        %v3914 = vcvt.s32.f32 %v1418
        %v3915 = vcvt.s32.f32 %v1419
        %v3916 = vcvt.s32.f32 %v1420
        %v3917 = vcvt.s32.f32 %v1421
        %v3918 = vcvt.s32.f32 %v1422
        %v3919 = vcvt.s32.f32 %v1423
        %v3920 = vcvt.s32.f32 %v1424
        %v3921 = vcvt.s32.f32 %v1425
        %v3922 = vcvt.s32.f32 %v1426
        %v3923 = vcvt.s32.f32 %v1427
        %v3924 = vcvt.s32.f32 %v1428
        %v3925 = vcvt.s32.f32 %v1429
        %v3926 = vcvt.s32.f32 %v1430
        %v3927 = vcvt.s32.f32 %v1431
        %v3928 = vcvt.s32.f32 %v1432
        %v3929 = vcvt.s32.f32 %v1433
        %v3930 = vcvt.s32.f32 %v1434
        %v3931 = vcvt.s32.f32 %v1435
        %v3932 = vcvt.s32.f32 %v1436
        %v3933 = vcvt.s32.f32 %v1437
        %v3934 = vcvt.s32.f32 %v1438
        %v3935 = vcvt.s32.f32 %v1439
        %v3936 = vcvt.s32.f32 %v1440
        %v3937 = vcvt.s32.f32 %v1441
        %v3938 = vcvt.s32.f32 %v1442
        %v3939 = vcvt.s32.f32 %v1443
        %v3940 = vcvt.s32.f32 %v1444
        %v3941 = vcvt.s32.f32 %v1445
        %v3942 = vcvt.s32.f32 %v1446
        %v3943 = vcvt.s32.f32 %v1447
        %v3944 = vcvt.s32.f32 %v1448
        %v3945 = vcvt.s32.f32 %v1449
        %v3946 = vcvt.s32.f32 %v1450
        %v3947 = vcvt.s32.f32 %v1451
        %v3948 = vcvt.s32.f32 %v1452
        %v3949 = vcvt.s32.f32 %v1453
        %v3950 = vcvt.s32.f32 %v1454
        %v3951 = vcvt.s32.f32 %v1455
        %v3952 = vcvt.s32.f32 %v1456
        %v3953 = vcvt.s32.f32 %v1457
        %v3954 = vcvt.s32.f32 %v1458
        %v3955 = vcvt.s32.f32 %v1459
        %v3956 = vcvt.s32.f32 %v1460
        %v3957 = vcvt.s32.f32 %v1461
        %v3958 = vcvt.s32.f32 %v1462
        %v3959 = vcvt.s32.f32 %v1463
        %v3960 = vcvt.s32.f32 %v1464
        %v3961 = vcvt.s32.f32 %v1465
        %v3962 = vcvt.s32.f32 %v1466
        %v3963 = vcvt.s32.f32 %v1467
        %v3964 = vcvt.s32.f32 %v1468
        %v3965 = vcvt.s32.f32 %v1469
        %v3966 = vcvt.s32.f32 %v1470
        %v3967 = vcvt.s32.f32 %v1471
        %v3968 = vcvt.s32.f32 %v1472
        %v3969 = vcvt.s32.f32 %v1473
        %v3970 = vcvt.s32.f32 %v1474
        %v3971 = vcvt.s32.f32 %v1475
        %v3972 = vcvt.s32.f32 %v1476
        %v3973 = vcvt.s32.f32 %v1477
        %v3974 = vcvt.s32.f32 %v1478
        %v3975 = vcvt.s32.f32 %v1479
        %v3976 = vcvt.s32.f32 %v1480
        %v3977 = vcvt.s32.f32 %v1481
        %v3978 = vcvt.s32.f32 %v1482
        %v3979 = vcvt.s32.f32 %v1483
        %v3980 = vcvt.s32.f32 %v1484
        %v3981 = vcvt.s32.f32 %v1485
        %v3982 = vcvt.s32.f32 %v1486
        %v3983 = vcvt.s32.f32 %v1487
        %v3984 = vcvt.s32.f32 %v1488
        %v3985 = vcvt.s32.f32 %v1489
        %v3986 = vcvt.s32.f32 %v1490
        %v3987 = vcvt.s32.f32 %v1491
        %v3988 = vcvt.s32.f32 %v1492
        %v3989 = vcvt.s32.f32 %v1493
        %v3990 = vcvt.s32.f32 %v1494
        %v3991 = vcvt.s32.f32 %v1495
        %v3992 = vcvt.s32.f32 %v1496
        %v3993 = vcvt.s32.f32 %v1497
        %v3994 = vcvt.s32.f32 %v1498
        %v3995 = vcvt.s32.f32 %v1499
        %v3996 = vcvt.s32.f32 %v1500
        %v3997 = vcvt.s32.f32 %v1501
        %v3998 = vcvt.s32.f32 %v1502
        %v3999 = vcvt.s32.f32 %v1503
        %v4000 = vcvt.s32.f32 %v1504
        %v4001 = vcvt.s32.f32 %v1505
        %v4002 = vcvt.s32.f32 %v1506
        %v4003 = vcvt.s32.f32 %v1507
        %v4004 = vcvt.s32.f32 %v1508
        %v4005 = vcvt.s32.f32 %v1509
        %v4006 = vcvt.s32.f32 %v1510
        %v4007 = vcvt.s32.f32 %v1511
        %v4008 = vcvt.s32.f32 %v1512
        %v4009 = vcvt.s32.f32 %v1513
        %v4010 = vcvt.s32.f32 %v1514
        %v4011 = vcvt.s32.f32 %v1515
        %v4012 = vcvt.s32.f32 %v1516
        %v4013 = vcvt.s32.f32 %v1517
        %v4014 = vcvt.s32.f32 %v1518
        %v4015 = vcvt.s32.f32 %v1519
        %v4016 = vcvt.s32.f32 %v1520
        %v4017 = vcvt.s32.f32 %v1521
        %v4018 = vcvt.s32.f32 %v1522
        %v4019 = vcvt.s32.f32 %v1523
        %v4020 = vcvt.s32.f32 %v1524
        %v4021 = vcvt.s32.f32 %v1525
        %v4022 = vcvt.s32.f32 %v1526
        %v4023 = vcvt.s32.f32 %v1527
        %v4024 = vcvt.s32.f32 %v1528
        %v4025 = vcvt.s32.f32 %v1529
        %v4026 = vcvt.s32.f32 %v1530
        %v4027 = vcvt.s32.f32 %v1531
        %v4028 = vcvt.s32.f32 %v1532
        %v4029 = vcvt.s32.f32 %v1533
        %v4030 = vcvt.s32.f32 %v1534
        %v4031 = vcvt.s32.f32 %v1535
        %v4032 = vcvt.s32.f32 %v1536
        %v4033 = vcvt.s32.f32 %v1537
        %v4034 = vcvt.s32.f32 %v1538
        %v4035 = vcvt.s32.f32 %v1539
        %v4036 = vcvt.s32.f32 %v1540
        %v4037 = vcvt.s32.f32 %v1541
        %v4038 = vcvt.s32.f32 %v1542
        %v4039 = vcvt.s32.f32 %v1543
        %v4040 = vcvt.s32.f32 %v1544
        %v4041 = vcvt.s32.f32 %v1545
        %v4042 = vcvt.s32.f32 %v1546
        %v4043 = vcvt.s32.f32 %v1547
        %v4044 = vcvt.s32.f32 %v1548
        %v4045 = vcvt.s32.f32 %v1549
        %v4046 = vcvt.s32.f32 %v1550
        %v4047 = vcvt.s32.f32 %v1551
        %v4048 = vcvt.s32.f32 %v1552
        %v4049 = vcvt.s32.f32 %v1553
        %v4050 = vcvt.s32.f32 %v1554
        %v4051 = vcvt.s32.f32 %v1555
        %v4052 = vcvt.s32.f32 %v1556
        %v4053 = vcvt.s32.f32 %v1557
        %v4054 = vcvt.s32.f32 %v1558
        %v4055 = vcvt.s32.f32 %v1559
        %v4056 = vcvt.s32.f32 %v1560
        %v4057 = vcvt.s32.f32 %v1561
        %v4058 = vcvt.s32.f32 %v1562
        %v4059 = vcvt.s32.f32 %v1563
        %v4060 = vcvt.s32.f32 %v1564
        %v4061 = vcvt.s32.f32 %v1565
        %v4062 = vcvt.s32.f32 %v1566
        %v4063 = vcvt.s32.f32 %v1567
        %v4064 = vcvt.s32.f32 %v1568
        %v4065 = vcvt.s32.f32 %v1569
        %v4066 = vcvt.s32.f32 %v1570
        %v4067 = vcvt.s32.f32 %v1571
        %v4068 = vcvt.s32.f32 %v1572
        %v4069 = vcvt.s32.f32 %v1573
        %v4070 = vcvt.s32.f32 %v1574
        %v4071 = vcvt.s32.f32 %v1575
        %v4072 = vcvt.s32.f32 %v1576
        %v4073 = vcvt.s32.f32 %v1577
        %v4074 = vcvt.s32.f32 %v1578
        %v4075 = vcvt.s32.f32 %v1579
        %v4076 = vcvt.s32.f32 %v1580
        %v4077 = vcvt.s32.f32 %v1581
        %v4078 = vcvt.s32.f32 %v1582
        %v4079 = vcvt.s32.f32 %v1583
        %v4080 = vcvt.s32.f32 %v1584
        %v4081 = vcvt.s32.f32 %v1585
        %v4082 = vcvt.s32.f32 %v1586
        %v4083 = vcvt.s32.f32 %v1587
        %v4084 = vcvt.s32.f32 %v1588
        %v4085 = vcvt.s32.f32 %v1589
        %v4086 = vcvt.s32.f32 %v1590
        %v4087 = vcvt.s32.f32 %v1591
        %v4088 = vcvt.s32.f32 %v1592
        %v4089 = vcvt.s32.f32 %v1593
        %v4090 = vcvt.s32.f32 %v1594
        %v4091 = vcvt.s32.f32 %v1595
        %v4092 = vcvt.s32.f32 %v1596
        %v4093 = vcvt.s32.f32 %v1597
        %v4094 = vcvt.s32.f32 %v1598
        %v4095 = vcvt.s32.f32 %v1599
        %v4096 = vcvt.s32.f32 %v1600
        %v4097 = vcvt.s32.f32 %v1601
        %v4098 = vcvt.s32.f32 %v1602
        %v4099 = vcvt.s32.f32 %v1603
        %v4100 = vcvt.s32.f32 %v1604
        %v4101 = vcvt.s32.f32 %v1605
        %v4102 = vcvt.s32.f32 %v1606
        %v4103 = vcvt.s32.f32 %v1607
        %v4104 = vcvt.s32.f32 %v1608
        %v4105 = vcvt.s32.f32 %v1609
        %v4106 = vcvt.s32.f32 %v1610
        %v4107 = vcvt.s32.f32 %v1611
        %v4108 = vcvt.s32.f32 %v1612
        %v4109 = vcvt.s32.f32 %v1613
        %v4110 = vcvt.s32.f32 %v1614
        %v4111 = vcvt.s32.f32 %v1615
        %v4112 = vcvt.s32.f32 %v1616
        %v4113 = vcvt.s32.f32 %v1617
        %v4114 = vcvt.s32.f32 %v1618
        %v4115 = vcvt.s32.f32 %v1619
        %v4116 = vcvt.s32.f32 %v1620
        %v4117 = vcvt.s32.f32 %v1621
        %v4118 = vcvt.s32.f32 %v1622
        %v4119 = vcvt.s32.f32 %v1623
        %v4120 = vcvt.s32.f32 %v1624
        %v4121 = vcvt.s32.f32 %v1625
        %v4122 = vcvt.s32.f32 %v1626
        %v4123 = vcvt.s32.f32 %v1627
        %v4124 = vcvt.s32.f32 %v1628
        %v4125 = vcvt.s32.f32 %v1629
        %v4126 = vcvt.s32.f32 %v1630
        %v4127 = vcvt.s32.f32 %v1631
        %v4128 = vcvt.s32.f32 %v1632
        %v4129 = vcvt.s32.f32 %v1633
        %v4130 = vcvt.s32.f32 %v1634
        %v4131 = vcvt.s32.f32 %v1635
        %v4132 = vcvt.s32.f32 %v1636
        %v4133 = vcvt.s32.f32 %v1637
        %v4134 = vcvt.s32.f32 %v1638
        %v4135 = vcvt.s32.f32 %v1639
        %v4136 = vcvt.s32.f32 %v1640
        %v4137 = vcvt.s32.f32 %v1641
        %v4138 = vcvt.s32.f32 %v1642
        %v4139 = vcvt.s32.f32 %v1643
        %v4140 = vcvt.s32.f32 %v1644
        %v4141 = vcvt.s32.f32 %v1645
        %v4142 = vcvt.s32.f32 %v1646
        %v4143 = vcvt.s32.f32 %v1647
        %v4144 = vcvt.s32.f32 %v1648
        %v4145 = vcvt.s32.f32 %v1649
        %v4146 = vcvt.s32.f32 %v1650
        %v4147 = vcvt.s32.f32 %v1651
        %v4148 = vcvt.s32.f32 %v1652
        %v4149 = vcvt.s32.f32 %v1653
        %v4150 = vcvt.s32.f32 %v1654
        %v4151 = vcvt.s32.f32 %v1655
        %v4152 = vcvt.s32.f32 %v1656
        %v4153 = vcvt.s32.f32 %v1657
        %v4154 = vcvt.s32.f32 %v1658
        %v4155 = vcvt.s32.f32 %v1659
        %v4156 = vcvt.s32.f32 %v1660
        %v4157 = vcvt.s32.f32 %v1661
        %v4158 = vcvt.s32.f32 %v1662
        %v4159 = vcvt.s32.f32 %v1663
        %v4160 = vcvt.s32.f32 %v1664
        %v4161 = vcvt.s32.f32 %v1665
        %v4162 = vcvt.s32.f32 %v1666
        %v4163 = vcvt.s32.f32 %v1667
        %v4164 = vcvt.s32.f32 %v1668
        %v4165 = vcvt.s32.f32 %v1669
        %v4166 = vcvt.s32.f32 %v1670
        %v4167 = vcvt.s32.f32 %v1671
        %v4168 = vcvt.s32.f32 %v1672
        %v4169 = vcvt.s32.f32 %v1673
        %v4170 = vcvt.s32.f32 %v1674
        %v4171 = vcvt.s32.f32 %v1675
        %v4172 = vcvt.s32.f32 %v1676
        %v4173 = vcvt.s32.f32 %v1677
        %v4174 = vcvt.s32.f32 %v1678
        %v4175 = vcvt.s32.f32 %v1679
        %v4176 = vcvt.s32.f32 %v1680
        %v4177 = vcvt.s32.f32 %v1681
        %v4178 = vcvt.s32.f32 %v1682
        %v4179 = vcvt.s32.f32 %v1683
        %v4180 = vcvt.s32.f32 %v1684
        %v4181 = vcvt.s32.f32 %v1685
        %v4182 = vcvt.s32.f32 %v1686
        %v4183 = vcvt.s32.f32 %v1687
        %v4184 = vcvt.s32.f32 %v1688
        %v4185 = vcvt.s32.f32 %v1689
        %v4186 = vcvt.s32.f32 %v1690
        %v4187 = vcvt.s32.f32 %v1691
        %v4188 = vcvt.s32.f32 %v1692
        %v4189 = vcvt.s32.f32 %v1693
        %v4190 = vcvt.s32.f32 %v1694
        %v4191 = vcvt.s32.f32 %v1695
        %v4192 = vcvt.s32.f32 %v1696
        %v4193 = vcvt.s32.f32 %v1697
        %v4194 = vcvt.s32.f32 %v1698
        %v4195 = vcvt.s32.f32 %v1699
        %v4196 = vcvt.s32.f32 %v1700
        %v4197 = vcvt.s32.f32 %v1701
        %v4198 = vcvt.s32.f32 %v1702
        %v4199 = vcvt.s32.f32 %v1703
        %v4200 = vcvt.s32.f32 %v1704
        %v4201 = vcvt.s32.f32 %v1705
        %v4202 = vcvt.s32.f32 %v1706
        %v4203 = vcvt.s32.f32 %v1707
        %v4204 = vcvt.s32.f32 %v1708
        %v4205 = vcvt.s32.f32 %v1709
        %v4206 = vcvt.s32.f32 %v1710
        %v4207 = vcvt.s32.f32 %v1711
        %v4208 = vcvt.s32.f32 %v1712
        %v4209 = vcvt.s32.f32 %v1713
        %v4210 = vcvt.s32.f32 %v1714
        %v4211 = vcvt.s32.f32 %v1715
        %v4212 = vcvt.s32.f32 %v1716
        %v4213 = vcvt.s32.f32 %v1717
        %v4214 = vcvt.s32.f32 %v1718
        %v4215 = vcvt.s32.f32 %v1719
        %v4216 = vcvt.s32.f32 %v1720
        %v4217 = vcvt.s32.f32 %v1721
        %v4218 = vcvt.s32.f32 %v1722
        %v4219 = vcvt.s32.f32 %v1723
        %v4220 = vcvt.s32.f32 %v1724
        %v4221 = vcvt.s32.f32 %v1725
        %v4222 = vcvt.s32.f32 %v1726
        %v4223 = vcvt.s32.f32 %v1727
        %v4224 = vcvt.s32.f32 %v1728
        %v4225 = vcvt.s32.f32 %v1729
        %v4226 = vcvt.s32.f32 %v1730
        %v4227 = vcvt.s32.f32 %v1731
        %v4228 = vcvt.s32.f32 %v1732
        %v4229 = vcvt.s32.f32 %v1733
        %v4230 = vcvt.s32.f32 %v1734
        %v4231 = vcvt.s32.f32 %v1735
        %v4232 = vcvt.s32.f32 %v1736
        %v4233 = vcvt.s32.f32 %v1737
        %v4234 = vcvt.s32.f32 %v1738
        %v4235 = vcvt.s32.f32 %v1739
        %v4236 = vcvt.s32.f32 %v1740
        %v4237 = vcvt.s32.f32 %v1741
        %v4238 = vcvt.s32.f32 %v1742
        %v4239 = vcvt.s32.f32 %v1743
        %v4240 = vcvt.s32.f32 %v1744
        %v4241 = vcvt.s32.f32 %v1745
        %v4242 = vcvt.s32.f32 %v1746
        %v4243 = vcvt.s32.f32 %v1747
        %v4244 = vcvt.s32.f32 %v1748
        %v4245 = vcvt.s32.f32 %v1749
        %v4246 = vcvt.s32.f32 %v1750
        %v4247 = vcvt.s32.f32 %v1751
        %v4248 = vcvt.s32.f32 %v1752
        %v4249 = vcvt.s32.f32 %v1753
        %v4250 = vcvt.s32.f32 %v1754
        %v4251 = vcvt.s32.f32 %v1755
        %v4252 = vcvt.s32.f32 %v1756
        %v4253 = vcvt.s32.f32 %v1757
        %v4254 = vcvt.s32.f32 %v1758
        %v4255 = vcvt.s32.f32 %v1759
        %v4256 = vcvt.s32.f32 %v1760
        %v4257 = vcvt.s32.f32 %v1761
        %v4258 = vcvt.s32.f32 %v1762
        %v4259 = vcvt.s32.f32 %v1763
        %v4260 = vcvt.s32.f32 %v1764
        %v4261 = vcvt.s32.f32 %v1765
        %v4262 = vcvt.s32.f32 %v1766
        %v4263 = vcvt.s32.f32 %v1767
        %v4264 = vcvt.s32.f32 %v1768
        %v4265 = vcvt.s32.f32 %v1769
        %v4266 = vcvt.s32.f32 %v1770
        %v4267 = vcvt.s32.f32 %v1771
        %v4268 = vcvt.s32.f32 %v1772
        %v4269 = vcvt.s32.f32 %v1773
        %v4270 = vcvt.s32.f32 %v1774
        %v4271 = vcvt.s32.f32 %v1775
        %v4272 = vcvt.s32.f32 %v1776
        %v4273 = vcvt.s32.f32 %v1777
        %v4274 = vcvt.s32.f32 %v1778
        %v4275 = vcvt.s32.f32 %v1779
        %v4276 = vcvt.s32.f32 %v1780
        %v4277 = vcvt.s32.f32 %v1781
        %v4278 = vcvt.s32.f32 %v1782
        %v4279 = vcvt.s32.f32 %v1783
        %v4280 = vcvt.s32.f32 %v1784
        %v4281 = vcvt.s32.f32 %v1785
        %v4282 = vcvt.s32.f32 %v1786
        %v4283 = vcvt.s32.f32 %v1787
        %v4284 = vcvt.s32.f32 %v1788
        %v4285 = vcvt.s32.f32 %v1789
        %v4286 = vcvt.s32.f32 %v1790
        %v4287 = vcvt.s32.f32 %v1791
        %v4288 = vcvt.s32.f32 %v1792
        %v4289 = vcvt.s32.f32 %v1793
        %v4290 = vcvt.s32.f32 %v1794
        %v4291 = vcvt.s32.f32 %v1795
        %v4292 = vcvt.s32.f32 %v1796
        %v4293 = vcvt.s32.f32 %v1797
        %v4294 = vcvt.s32.f32 %v1798
        %v4295 = vcvt.s32.f32 %v1799
        %v4296 = vcvt.s32.f32 %v1800
        %v4297 = vcvt.s32.f32 %v1801
        %v4298 = vcvt.s32.f32 %v1802
        %v4299 = vcvt.s32.f32 %v1803
        %v4300 = vcvt.s32.f32 %v1804
        %v4301 = vcvt.s32.f32 %v1805
        %v4302 = vcvt.s32.f32 %v1806
        %v4303 = vcvt.s32.f32 %v1807
        %v4304 = vcvt.s32.f32 %v1808
        %v4305 = vcvt.s32.f32 %v1809
        %v4306 = vcvt.s32.f32 %v1810
        %v4307 = vcvt.s32.f32 %v1811
        %v4308 = vcvt.s32.f32 %v1812
        %v4309 = vcvt.s32.f32 %v1813
        %v4310 = vcvt.s32.f32 %v1814
        %v4311 = vcvt.s32.f32 %v1815
        %v4312 = vcvt.s32.f32 %v1816
        %v4313 = vcvt.s32.f32 %v1817
        %v4314 = vcvt.s32.f32 %v1818
        %v4315 = vcvt.s32.f32 %v1819
        %v4316 = vcvt.s32.f32 %v1820
        %v4317 = vcvt.s32.f32 %v1821
        %v4318 = vcvt.s32.f32 %v1822
        %v4319 = vcvt.s32.f32 %v1823
        %v4320 = vcvt.s32.f32 %v1824
        %v4321 = vcvt.s32.f32 %v1825
        %v4322 = vcvt.s32.f32 %v1826
        %v4323 = vcvt.s32.f32 %v1827
        %v4324 = vcvt.s32.f32 %v1828
        %v4325 = vcvt.s32.f32 %v1829
        %v4326 = vcvt.s32.f32 %v1830
        %v4327 = vcvt.s32.f32 %v1831
        %v4328 = vcvt.s32.f32 %v1832
        %v4329 = vcvt.s32.f32 %v1833
        %v4330 = vcvt.s32.f32 %v1834
        %v4331 = vcvt.s32.f32 %v1835
        %v4332 = vcvt.s32.f32 %v1836
        %v4333 = vcvt.s32.f32 %v1837
        %v4334 = vcvt.s32.f32 %v1838
        %v4335 = vcvt.s32.f32 %v1839
        %v4336 = vcvt.s32.f32 %v1840
        %v4337 = vcvt.s32.f32 %v1841
        %v4338 = vcvt.s32.f32 %v1842
        %v4339 = vcvt.s32.f32 %v1843
        %v4340 = vcvt.s32.f32 %v1844
        %v4341 = vcvt.s32.f32 %v1845
        %v4342 = vcvt.s32.f32 %v1846
        %v4343 = vcvt.s32.f32 %v1847
        %v4344 = vcvt.s32.f32 %v1848
        %v4345 = vcvt.s32.f32 %v1849
        %v4346 = vcvt.s32.f32 %v1850
        %v4347 = vcvt.s32.f32 %v1851
        %v4348 = vcvt.s32.f32 %v1852
        %v4349 = vcvt.s32.f32 %v1853
        %v4350 = vcvt.s32.f32 %v1854
        %v4351 = vcvt.s32.f32 %v1855
        %v4352 = vcvt.s32.f32 %v1856
        %v4353 = vcvt.s32.f32 %v1857
        %v4354 = vcvt.s32.f32 %v1858
        %v4355 = vcvt.s32.f32 %v1859
        %v4356 = vcvt.s32.f32 %v1860
        %v4357 = vcvt.s32.f32 %v1861
        %v4358 = vcvt.s32.f32 %v1862
        %v4359 = vcvt.s32.f32 %v1863
        %v4360 = vcvt.s32.f32 %v1864
        %v4361 = vcvt.s32.f32 %v1865
        %v4362 = vcvt.s32.f32 %v1866
        %v4363 = vcvt.s32.f32 %v1867
        %v4364 = vcvt.s32.f32 %v1868
        %v4365 = vcvt.s32.f32 %v1869
        %v4366 = vcvt.s32.f32 %v1870
        %v4367 = vcvt.s32.f32 %v1871
        %v4368 = vcvt.s32.f32 %v1872
        %v4369 = vcvt.s32.f32 %v1873
        %v4370 = vcvt.s32.f32 %v1874
        %v4371 = vcvt.s32.f32 %v1875
        %v4372 = vcvt.s32.f32 %v1876
        %v4373 = vcvt.s32.f32 %v1877
        %v4374 = vcvt.s32.f32 %v1878
        %v4375 = vcvt.s32.f32 %v1879
        %v4376 = vcvt.s32.f32 %v1880
        %v4377 = vcvt.s32.f32 %v1881
        %v4378 = vcvt.s32.f32 %v1882
        %v4379 = vcvt.s32.f32 %v1883
        %v4380 = vcvt.s32.f32 %v1884
        %v4381 = vcvt.s32.f32 %v1885
        %v4382 = vcvt.s32.f32 %v1886
        %v4383 = vcvt.s32.f32 %v1887
        %v4384 = vcvt.s32.f32 %v1888
        %v4385 = vcvt.s32.f32 %v1889
        %v4386 = vcvt.s32.f32 %v1890
        %v4387 = vcvt.s32.f32 %v1891
        %v4388 = vcvt.s32.f32 %v1892
        %v4389 = vcvt.s32.f32 %v1893
        %v4390 = vcvt.s32.f32 %v1894
        %v4391 = vcvt.s32.f32 %v1895
        %v4392 = vcvt.s32.f32 %v1896
        %v4393 = vcvt.s32.f32 %v1897
        %v4394 = vcvt.s32.f32 %v1898
        %v4395 = vcvt.s32.f32 %v1899
        %v4396 = vcvt.s32.f32 %v1900
        %v4397 = vcvt.s32.f32 %v1901
        %v4398 = vcvt.s32.f32 %v1902
        %v4399 = vcvt.s32.f32 %v1903
        %v4400 = vcvt.s32.f32 %v1904
        %v4401 = vcvt.s32.f32 %v1905
        %v4402 = vcvt.s32.f32 %v1906
        %v4403 = vcvt.s32.f32 %v1907
        %v4404 = vcvt.s32.f32 %v1908
        %v4405 = vcvt.s32.f32 %v1909
        %v4406 = vcvt.s32.f32 %v1910
        %v4407 = vcvt.s32.f32 %v1911
        %v4408 = vcvt.s32.f32 %v1912
        %v4409 = vcvt.s32.f32 %v1913
        %v4410 = vcvt.s32.f32 %v1914
        %v4411 = vcvt.s32.f32 %v1915
        %v4412 = vcvt.s32.f32 %v1916
        %v4413 = vcvt.s32.f32 %v1917
        %v4414 = vcvt.s32.f32 %v1918
        %v4415 = vcvt.s32.f32 %v1919
        %v4416 = vcvt.s32.f32 %v1920
        %v4417 = vcvt.s32.f32 %v1921
        %v4418 = vcvt.s32.f32 %v1922
        %v4419 = vcvt.s32.f32 %v1923
        %v4420 = vcvt.s32.f32 %v1924
        %v4421 = vcvt.s32.f32 %v1925
        %v4422 = vcvt.s32.f32 %v1926
        %v4423 = vcvt.s32.f32 %v1927
        %v4424 = vcvt.s32.f32 %v1928
        %v4425 = vcvt.s32.f32 %v1929
        %v4426 = vcvt.s32.f32 %v1930
        %v4427 = vcvt.s32.f32 %v1931
        %v4428 = vcvt.s32.f32 %v1932
        %v4429 = vcvt.s32.f32 %v1933
        %v4430 = vcvt.s32.f32 %v1934
        %v4431 = vcvt.s32.f32 %v1935
        %v4432 = vcvt.s32.f32 %v1936
        %v4433 = vcvt.s32.f32 %v1937
        %v4434 = vcvt.s32.f32 %v1938
        %v4435 = vcvt.s32.f32 %v1939
        %v4436 = vcvt.s32.f32 %v1940
        %v4437 = vcvt.s32.f32 %v1941
        %v4438 = vcvt.s32.f32 %v1942
        %v4439 = vcvt.s32.f32 %v1943
        %v4440 = vcvt.s32.f32 %v1944
        %v4441 = vcvt.s32.f32 %v1945
        %v4442 = vcvt.s32.f32 %v1946
        %v4443 = vcvt.s32.f32 %v1947
        %v4444 = vcvt.s32.f32 %v1948
        %v4445 = vcvt.s32.f32 %v1949
        %v4446 = vcvt.s32.f32 %v1950
        %v4447 = vcvt.s32.f32 %v1951
        %v4448 = vcvt.s32.f32 %v1952
        %v4449 = vcvt.s32.f32 %v1953
        %v4450 = vcvt.s32.f32 %v1954
        %v4451 = vcvt.s32.f32 %v1955
        %v4452 = vcvt.s32.f32 %v1956
        %v4453 = vcvt.s32.f32 %v1957
        %v4454 = vcvt.s32.f32 %v1958
        %v4455 = vcvt.s32.f32 %v1959
        %v4456 = vcvt.s32.f32 %v1960
        %v4457 = vcvt.s32.f32 %v1961
        %v4458 = vcvt.s32.f32 %v1962
        %v4459 = vcvt.s32.f32 %v1963
        %v4460 = vcvt.s32.f32 %v1964
        %v4461 = vcvt.s32.f32 %v1965
        %v4462 = vcvt.s32.f32 %v1966
        %v4463 = vcvt.s32.f32 %v1967
        %v4464 = vcvt.s32.f32 %v1968
        %v4465 = vcvt.s32.f32 %v1969
        %v4466 = vcvt.s32.f32 %v1970
        %v4467 = vcvt.s32.f32 %v1971
        %v4468 = vcvt.s32.f32 %v1972
        %v4469 = vcvt.s32.f32 %v1973
        %v4470 = vcvt.s32.f32 %v1974
        %v4471 = vcvt.s32.f32 %v1975
        %v4472 = vcvt.s32.f32 %v1976
        %v4473 = vcvt.s32.f32 %v1977
        %v4474 = vcvt.s32.f32 %v1978
        %v4475 = vcvt.s32.f32 %v1979
        %v4476 = vcvt.s32.f32 %v1980
        %v4477 = vcvt.s32.f32 %v1981
        %v4478 = vcvt.s32.f32 %v1982
        %v4479 = vcvt.s32.f32 %v1983
        %v4480 = vcvt.s32.f32 %v1984
        %v4481 = vcvt.s32.f32 %v1985
        %v4482 = vcvt.s32.f32 %v1986
        %v4483 = vcvt.s32.f32 %v1987
        %v4484 = vcvt.s32.f32 %v1988
        %v4485 = vcvt.s32.f32 %v1989
        %v4486 = vcvt.s32.f32 %v1990
        %v4487 = vcvt.s32.f32 %v1991
        %v4488 = vcvt.s32.f32 %v1992
        %v4489 = vcvt.s32.f32 %v1993
        %v4490 = vcvt.s32.f32 %v1994
        %v4491 = vcvt.s32.f32 %v1995
        %v4492 = vcvt.s32.f32 %v1996
        %v4493 = vcvt.s32.f32 %v1997
        %v4494 = vcvt.s32.f32 %v1998
        %v4495 = vcvt.s32.f32 %v1999
        %v4496 = vcvt.s32.f32 %v2000
        %v4497 = vcvt.s32.f32 %v2001
        %v4498 = vcvt.s32.f32 %v2002
        %v4499 = vcvt.s32.f32 %v2003
        %v4500 = vcvt.s32.f32 %v2004
        %v4501 = vcvt.s32.f32 %v2005
        %v4502 = vcvt.s32.f32 %v2006
        %v4503 = vcvt.s32.f32 %v2007
        %v4504 = vcvt.s32.f32 %v2008
        %v4505 = vcvt.s32.f32 %v2009
        %v4506 = vcvt.s32.f32 %v2010
        %v4507 = vcvt.s32.f32 %v2011
        %v4508 = vcvt.s32.f32 %v2012
        %v4509 = vcvt.s32.f32 %v2013
        %v4510 = vcvt.s32.f32 %v2014
        %v4511 = vcvt.s32.f32 %v2015
        %v4512 = vcvt.s32.f32 %v2016
        %v4513 = vcvt.s32.f32 %v2017
        %v4514 = vcvt.s32.f32 %v2018
        %v4515 = vcvt.s32.f32 %v2019
        %v4516 = vcvt.s32.f32 %v2020
        %v4517 = vcvt.s32.f32 %v2021
        %v4518 = vcvt.s32.f32 %v2022
        %v4519 = vcvt.s32.f32 %v2023
        %v4520 = vcvt.s32.f32 %v2024
        %v4521 = vcvt.s32.f32 %v2025
        %v4522 = vcvt.s32.f32 %v2026
        %v4523 = vcvt.s32.f32 %v2027
        %v4524 = vcvt.s32.f32 %v2028
        %v4525 = vcvt.s32.f32 %v2029
        %v4526 = vcvt.s32.f32 %v2030
        %v4527 = vcvt.s32.f32 %v2031
        %v4528 = vcvt.s32.f32 %v2032
        %v4529 = vcvt.s32.f32 %v2033
        %v4530 = vcvt.s32.f32 %v2034
        %v4531 = vcvt.s32.f32 %v2035
        %v4532 = vcvt.s32.f32 %v2036
        %v4533 = vcvt.s32.f32 %v2037
        %v4534 = vcvt.s32.f32 %v2038
        %v4535 = vcvt.s32.f32 %v2039
        %v4536 = vcvt.s32.f32 %v2040
        %v4537 = vcvt.s32.f32 %v2041
        %v4538 = vcvt.s32.f32 %v2042
        %v4539 = vcvt.s32.f32 %v2043
        %v4540 = vcvt.s32.f32 %v2044
        %v4541 = vcvt.s32.f32 %v2045
        %v4542 = vcvt.s32.f32 %v2046
        %v4543 = vcvt.s32.f32 %v2047
        %v4544 = vcvt.s32.f32 %v2048
        %v4545 = vcvt.s32.f32 %v2049
        %v4546 = vcvt.s32.f32 %v2050
        %v4547 = vcvt.s32.f32 %v2051
        %v4548 = vcvt.s32.f32 %v2052
        %v4549 = vcvt.s32.f32 %v2053
        %v4550 = vcvt.s32.f32 %v2054
        %v4551 = vcvt.s32.f32 %v2055
        %v4552 = vcvt.s32.f32 %v2056
        %v4553 = vcvt.s32.f32 %v2057
        %v4554 = vcvt.s32.f32 %v2058
        %v4555 = vcvt.s32.f32 %v2059
        %v4556 = vcvt.s32.f32 %v2060
        %v4557 = vcvt.s32.f32 %v2061
        %v4558 = vcvt.s32.f32 %v2062
        %v4559 = vcvt.s32.f32 %v2063
        %v4560 = vcvt.s32.f32 %v2064
        %v4561 = vcvt.s32.f32 %v2065
        %v4562 = vcvt.s32.f32 %v2066
        %v4563 = vcvt.s32.f32 %v2067
        %v4564 = vcvt.s32.f32 %v2068
        %v4565 = vcvt.s32.f32 %v2069
        %v4566 = vcvt.s32.f32 %v2070
        %v4567 = vcvt.s32.f32 %v2071
        %v4568 = vcvt.s32.f32 %v2072
        %v4569 = vcvt.s32.f32 %v2073
        %v4570 = vcvt.s32.f32 %v2074
        %v4571 = vcvt.s32.f32 %v2075
        %v4572 = vcvt.s32.f32 %v2076
        %v4573 = vcvt.s32.f32 %v2077
        %v4574 = vcvt.s32.f32 %v2078
        %v4575 = vcvt.s32.f32 %v2079
        %v4576 = vcvt.s32.f32 %v2080
        %v4577 = vcvt.s32.f32 %v2081
        %v4578 = vcvt.s32.f32 %v2082
        %v4579 = vcvt.s32.f32 %v2083
        %v4580 = vcvt.s32.f32 %v2084
        %v4581 = vcvt.s32.f32 %v2085
        %v4582 = vcvt.s32.f32 %v2086
        %v4583 = vcvt.s32.f32 %v2087
        %v4584 = vcvt.s32.f32 %v2088
        %v4585 = vcvt.s32.f32 %v2089
        %v4586 = vcvt.s32.f32 %v2090
        %v4587 = vcvt.s32.f32 %v2091
        %v4588 = vcvt.s32.f32 %v2092
        %v4589 = vcvt.s32.f32 %v2093
        %v4590 = vcvt.s32.f32 %v2094
        %v4591 = vcvt.s32.f32 %v2095
        %v4592 = vcvt.s32.f32 %v2096
        %v4593 = vcvt.s32.f32 %v2097
        %v4594 = vcvt.s32.f32 %v2098
        %v4595 = vcvt.s32.f32 %v2099
        %v4596 = vcvt.s32.f32 %v2100
        %v4597 = vcvt.s32.f32 %v2101
        %v4598 = vcvt.s32.f32 %v2102
        %v4599 = vcvt.s32.f32 %v2103
        %v4600 = vcvt.s32.f32 %v2104
        %v4601 = vcvt.s32.f32 %v2105
        %v4602 = vcvt.s32.f32 %v2106
        %v4603 = vcvt.s32.f32 %v2107
        %v4604 = vcvt.s32.f32 %v2108
        %v4605 = vcvt.s32.f32 %v2109
        %v4606 = vcvt.s32.f32 %v2110
        %v4607 = vcvt.s32.f32 %v2111
        %v4608 = vcvt.s32.f32 %v2112
        %v4609 = vcvt.s32.f32 %v2113
        %v4610 = vcvt.s32.f32 %v2114
        %v4611 = vcvt.s32.f32 %v2115
        %v4612 = vcvt.s32.f32 %v2116
        %v4613 = vcvt.s32.f32 %v2117
        %v4614 = vcvt.s32.f32 %v2118
        %v4615 = vcvt.s32.f32 %v2119
        %v4616 = vcvt.s32.f32 %v2120
        %v4617 = vcvt.s32.f32 %v2121
        %v4618 = vcvt.s32.f32 %v2122
        %v4619 = vcvt.s32.f32 %v2123
        %v4620 = vcvt.s32.f32 %v2124
        %v4621 = vcvt.s32.f32 %v2125
        %v4622 = vcvt.s32.f32 %v2126
        %v4623 = vcvt.s32.f32 %v2127
        %v4624 = vcvt.s32.f32 %v2128
        %v4625 = vcvt.s32.f32 %v2129
        %v4626 = vcvt.s32.f32 %v2130
        %v4627 = vcvt.s32.f32 %v2131
        %v4628 = vcvt.s32.f32 %v2132
        %v4629 = vcvt.s32.f32 %v2133
        %v4630 = vcvt.s32.f32 %v2134
        %v4631 = vcvt.s32.f32 %v2135
        %v4632 = vcvt.s32.f32 %v2136
        %v4633 = vcvt.s32.f32 %v2137
        %v4634 = vcvt.s32.f32 %v2138
        %v4635 = vcvt.s32.f32 %v2139
        %v4636 = vcvt.s32.f32 %v2140
        %v4637 = vcvt.s32.f32 %v2141
        %v4638 = vcvt.s32.f32 %v2142
        %v4639 = vcvt.s32.f32 %v2143
        %v4640 = vcvt.s32.f32 %v2144
        %v4641 = vcvt.s32.f32 %v2145
        %v4642 = vcvt.s32.f32 %v2146
        %v4643 = vcvt.s32.f32 %v2147
        %v4644 = vcvt.s32.f32 %v2148
        %v4645 = vcvt.s32.f32 %v2149
        %v4646 = vcvt.s32.f32 %v2150
        %v4647 = vcvt.s32.f32 %v2151
        %v4648 = vcvt.s32.f32 %v2152
        %v4649 = vcvt.s32.f32 %v2153
        %v4650 = vcvt.s32.f32 %v2154
        %v4651 = vcvt.s32.f32 %v2155
        %v4652 = vcvt.s32.f32 %v2156
        %v4653 = vcvt.s32.f32 %v2157
        %v4654 = vcvt.s32.f32 %v2158
        %v4655 = vcvt.s32.f32 %v2159
        %v4656 = vcvt.s32.f32 %v2160
        %v4657 = vcvt.s32.f32 %v2161
        %v4658 = vcvt.s32.f32 %v2162
        %v4659 = vcvt.s32.f32 %v2163
        %v4660 = vcvt.s32.f32 %v2164
        %v4661 = vcvt.s32.f32 %v2165
        %v4662 = vcvt.s32.f32 %v2166
        %v4663 = vcvt.s32.f32 %v2167
        %v4664 = vcvt.s32.f32 %v2168
        %v4665 = vcvt.s32.f32 %v2169
        %v4666 = vcvt.s32.f32 %v2170
        %v4667 = vcvt.s32.f32 %v2171
        %v4668 = vcvt.s32.f32 %v2172
        %v4669 = vcvt.s32.f32 %v2173
        %v4670 = vcvt.s32.f32 %v2174
        %v4671 = vcvt.s32.f32 %v2175
        %v4672 = vcvt.s32.f32 %v2176
        %v4673 = vcvt.s32.f32 %v2177
        %v4674 = vcvt.s32.f32 %v2178
        %v4675 = vcvt.s32.f32 %v2179
        %v4676 = vcvt.s32.f32 %v2180
        %v4677 = vcvt.s32.f32 %v2181
        %v4678 = vcvt.s32.f32 %v2182
        %v4679 = vcvt.s32.f32 %v2183
        %v4680 = vcvt.s32.f32 %v2184
        %v4681 = vcvt.s32.f32 %v2185
        %v4682 = vcvt.s32.f32 %v2186
        %v4683 = vcvt.s32.f32 %v2187
        %v4684 = vcvt.s32.f32 %v2188
        %v4685 = vcvt.s32.f32 %v2189
        %v4686 = vcvt.s32.f32 %v2190
        %v4687 = vcvt.s32.f32 %v2191
        %v4688 = vcvt.s32.f32 %v2192
        %v4689 = vcvt.s32.f32 %v2193
        %v4690 = vcvt.s32.f32 %v2194
        %v4691 = vcvt.s32.f32 %v2195
        %v4692 = vcvt.s32.f32 %v2196
        %v4693 = vcvt.s32.f32 %v2197
        %v4694 = vcvt.s32.f32 %v2198
        %v4695 = vcvt.s32.f32 %v2199
        %v4696 = vcvt.s32.f32 %v2200
        %v4697 = vcvt.s32.f32 %v2201
        %v4698 = vcvt.s32.f32 %v2202
        %v4699 = vcvt.s32.f32 %v2203
        %v4700 = vcvt.s32.f32 %v2204
        %v4701 = vcvt.s32.f32 %v2205
        %v4702 = vcvt.s32.f32 %v2206
        %v4703 = vcvt.s32.f32 %v2207
        %v4704 = vcvt.s32.f32 %v2208
        %v4705 = vcvt.s32.f32 %v2209
        %v4706 = vcvt.s32.f32 %v2210
        %v4707 = vcvt.s32.f32 %v2211
        %v4708 = vcvt.s32.f32 %v2212
        %v4709 = vcvt.s32.f32 %v2213
        %v4710 = vcvt.s32.f32 %v2214
        %v4711 = vcvt.s32.f32 %v2215
        %v4712 = vcvt.s32.f32 %v2216
        %v4713 = vcvt.s32.f32 %v2217
        %v4714 = vcvt.s32.f32 %v2218
        %v4715 = vcvt.s32.f32 %v2219
        %v4716 = vcvt.s32.f32 %v2220
        %v4717 = vcvt.s32.f32 %v2221
        %v4718 = vcvt.s32.f32 %v2222
        %v4719 = vcvt.s32.f32 %v2223
        %v4720 = vcvt.s32.f32 %v2224
        %v4721 = vcvt.s32.f32 %v2225
        %v4722 = vcvt.s32.f32 %v2226
        %v4723 = vcvt.s32.f32 %v2227
        %v4724 = vcvt.s32.f32 %v2228
        %v4725 = vcvt.s32.f32 %v2229
        %v4726 = vcvt.s32.f32 %v2230
        %v4727 = vcvt.s32.f32 %v2231
        %v4728 = vcvt.s32.f32 %v2232
        %v4729 = vcvt.s32.f32 %v2233
        %v4730 = vcvt.s32.f32 %v2234
        %v4731 = vcvt.s32.f32 %v2235
        %v4732 = vcvt.s32.f32 %v2236
        %v4733 = vcvt.s32.f32 %v2237
        %v4734 = vcvt.s32.f32 %v2238
        %v4735 = vcvt.s32.f32 %v2239
        %v4736 = vcvt.s32.f32 %v2240
        %v4737 = vcvt.s32.f32 %v2241
        %v4738 = vcvt.s32.f32 %v2242
        %v4739 = vcvt.s32.f32 %v2243
        %v4740 = vcvt.s32.f32 %v2244
        %v4741 = vcvt.s32.f32 %v2245
        %v4742 = vcvt.s32.f32 %v2246
        %v4743 = vcvt.s32.f32 %v2247
        %v4744 = vcvt.s32.f32 %v2248
        %v4745 = vcvt.s32.f32 %v2249
        %v4746 = vcvt.s32.f32 %v2250
        %v4747 = vcvt.s32.f32 %v2251
        %v4748 = vcvt.s32.f32 %v2252
        %v4749 = vcvt.s32.f32 %v2253
        %v4750 = vcvt.s32.f32 %v2254
        %v4751 = vcvt.s32.f32 %v2255
        %v4752 = vcvt.s32.f32 %v2256
        %v4753 = vcvt.s32.f32 %v2257
        %v4754 = vcvt.s32.f32 %v2258
        %v4755 = vcvt.s32.f32 %v2259
        %v4756 = vcvt.s32.f32 %v2260
        %v4757 = vcvt.s32.f32 %v2261
        %v4758 = vcvt.s32.f32 %v2262
        %v4759 = vcvt.s32.f32 %v2263
        %v4760 = vcvt.s32.f32 %v2264
        %v4761 = vcvt.s32.f32 %v2265
        %v4762 = vcvt.s32.f32 %v2266
        %v4763 = vcvt.s32.f32 %v2267
        %v4764 = vcvt.s32.f32 %v2268
        %v4765 = vcvt.s32.f32 %v2269
        %v4766 = vcvt.s32.f32 %v2270
        %v4767 = vcvt.s32.f32 %v2271
        %v4768 = vcvt.s32.f32 %v2272
        %v4769 = vcvt.s32.f32 %v2273
        %v4770 = vcvt.s32.f32 %v2274
        %v4771 = vcvt.s32.f32 %v2275
        %v4772 = vcvt.s32.f32 %v2276
        %v4773 = vcvt.s32.f32 %v2277
        %v4774 = vcvt.s32.f32 %v2278
        %v4775 = vcvt.s32.f32 %v2279
        %v4776 = vcvt.s32.f32 %v2280
        %v4777 = vcvt.s32.f32 %v2281
        %v4778 = vcvt.s32.f32 %v2282
        %v4779 = vcvt.s32.f32 %v2283
        %v4780 = vcvt.s32.f32 %v2284
        %v4781 = vcvt.s32.f32 %v2285
        %v4782 = vcvt.s32.f32 %v2286
        %v4783 = vcvt.s32.f32 %v2287
        %v4784 = vcvt.s32.f32 %v2288
        %v4785 = vcvt.s32.f32 %v2289
        %v4786 = vcvt.s32.f32 %v2290
        %v4787 = vcvt.s32.f32 %v2291
        %v4788 = vcvt.s32.f32 %v2292
        %v4789 = vcvt.s32.f32 %v2293
        %v4790 = vcvt.s32.f32 %v2294
        %v4791 = vcvt.s32.f32 %v2295
        %v4792 = vcvt.s32.f32 %v2296
        %v4793 = vcvt.s32.f32 %v2297
        %v4794 = vcvt.s32.f32 %v2298
        %v4795 = vcvt.s32.f32 %v2299
        %v4796 = vcvt.s32.f32 %v2300
        %v4797 = vcvt.s32.f32 %v2301
        %v4798 = vcvt.s32.f32 %v2302
        %v4799 = vcvt.s32.f32 %v2303
        %v4800 = vcvt.s32.f32 %v2304
        %v4801 = vcvt.s32.f32 %v2305
        %v4802 = vcvt.s32.f32 %v2306
        %v4803 = vcvt.s32.f32 %v2307
        %v4804 = vcvt.s32.f32 %v2308
        %v4805 = vcvt.s32.f32 %v2309
        %v4806 = vcvt.s32.f32 %v2310
        %v4807 = vcvt.s32.f32 %v2311
        %v4808 = vcvt.s32.f32 %v2312
        %v4809 = vcvt.s32.f32 %v2313
        %v4810 = vcvt.s32.f32 %v2314
        %v4811 = vcvt.s32.f32 %v2315
        %v4812 = vcvt.s32.f32 %v2316
        %v4813 = vcvt.s32.f32 %v2317
        %v4814 = vcvt.s32.f32 %v2318
        %v4815 = vcvt.s32.f32 %v2319
        %v4816 = vcvt.s32.f32 %v2320
        %v4817 = vcvt.s32.f32 %v2321
        %v4818 = vcvt.s32.f32 %v2322
        %v4819 = vcvt.s32.f32 %v2323
        %v4820 = vcvt.s32.f32 %v2324
        %v4821 = vcvt.s32.f32 %v2325
        %v4822 = vcvt.s32.f32 %v2326
        %v4823 = vcvt.s32.f32 %v2327
        %v4824 = vcvt.s32.f32 %v2328
        %v4825 = vcvt.s32.f32 %v2329
        %v4826 = vcvt.s32.f32 %v2330
        %v4827 = vcvt.s32.f32 %v2331
        %v4828 = vcvt.s32.f32 %v2332
        %v4829 = vcvt.s32.f32 %v2333
        %v4830 = vcvt.s32.f32 %v2334
        %v4831 = vcvt.s32.f32 %v2335
        %v4832 = vcvt.s32.f32 %v2336
        %v4833 = vcvt.s32.f32 %v2337
        %v4834 = vcvt.s32.f32 %v2338
        %v4835 = vcvt.s32.f32 %v2339
        %v4836 = vcvt.s32.f32 %v2340
        %v4837 = vcvt.s32.f32 %v2341
        %v4838 = vcvt.s32.f32 %v2342
        %v4839 = vcvt.s32.f32 %v2343
        %v4840 = vcvt.s32.f32 %v2344
        %v4841 = vcvt.s32.f32 %v2345
        %v4842 = vcvt.s32.f32 %v2346
        %v4843 = vcvt.s32.f32 %v2347
        %v4844 = vcvt.s32.f32 %v2348
        %v4845 = vcvt.s32.f32 %v2349
        %v4846 = vcvt.s32.f32 %v2350
        %v4847 = vcvt.s32.f32 %v2351
        %v4848 = vcvt.s32.f32 %v2352
        %v4849 = vcvt.s32.f32 %v2353
        %v4850 = vcvt.s32.f32 %v2354
        %v4851 = vcvt.s32.f32 %v2355
        %v4852 = vcvt.s32.f32 %v2356
        %v4853 = vcvt.s32.f32 %v2357
        %v4854 = vcvt.s32.f32 %v2358
        %v4855 = vcvt.s32.f32 %v2359
        %v4856 = vcvt.s32.f32 %v2360
        %v4857 = vcvt.s32.f32 %v2361
        %v4858 = vcvt.s32.f32 %v2362
        %v4859 = vcvt.s32.f32 %v2363
        %v4860 = vcvt.s32.f32 %v2364
        %v4861 = vcvt.s32.f32 %v2365
        %v4862 = vcvt.s32.f32 %v2366
        %v4863 = vcvt.s32.f32 %v2367
        %v4864 = vcvt.s32.f32 %v2368
        %v4865 = vcvt.s32.f32 %v2369
        %v4866 = vcvt.s32.f32 %v2370
        %v4867 = vcvt.s32.f32 %v2371
        %v4868 = vcvt.s32.f32 %v2372
        %v4869 = vcvt.s32.f32 %v2373
        %v4870 = vcvt.s32.f32 %v2374
        %v4871 = vcvt.s32.f32 %v2375
        %v4872 = vcvt.s32.f32 %v2376
        %v4873 = vcvt.s32.f32 %v2377
        %v4874 = vcvt.s32.f32 %v2378
        %v4875 = vcvt.s32.f32 %v2379
        %v4876 = vcvt.s32.f32 %v2380
        %v4877 = vcvt.s32.f32 %v2381
        %v4878 = vcvt.s32.f32 %v2382
        %v4879 = vcvt.s32.f32 %v2383
        %v4880 = vcvt.s32.f32 %v2384
        %v4881 = vcvt.s32.f32 %v2385
        %v4882 = vcvt.s32.f32 %v2386
        %v4883 = vcvt.s32.f32 %v2387
        %v4884 = vcvt.s32.f32 %v2388
        %v4885 = vcvt.s32.f32 %v2389
        %v4886 = vcvt.s32.f32 %v2390
        %v4887 = vcvt.s32.f32 %v2391
        %v4888 = vcvt.s32.f32 %v2392
        %v4889 = vcvt.s32.f32 %v2393
        %v4890 = vcvt.s32.f32 %v2394
        %v4891 = vcvt.s32.f32 %v2395
        %v4892 = vcvt.s32.f32 %v2396
        %v4893 = vcvt.s32.f32 %v2397
        %v4894 = vcvt.s32.f32 %v2398
        %v4895 = vcvt.s32.f32 %v2399
        %v4896 = vcvt.s32.f32 %v2400
        %v4897 = vcvt.s32.f32 %v2401
        %v4898 = vcvt.s32.f32 %v2402
        %v4899 = vcvt.s32.f32 %v2403
        %v4900 = vcvt.s32.f32 %v2404
        %v4901 = vcvt.s32.f32 %v2405
        %v4902 = vcvt.s32.f32 %v2406
        %v4903 = vcvt.s32.f32 %v2407
        %v4904 = vcvt.s32.f32 %v2408
        %v4905 = vcvt.s32.f32 %v2409
        %v4906 = vcvt.s32.f32 %v2410
        %v4907 = vcvt.s32.f32 %v2411
        %v4908 = vcvt.s32.f32 %v2412
        %v4909 = vcvt.s32.f32 %v2413
        %v4910 = vcvt.s32.f32 %v2414
        %v4911 = vcvt.s32.f32 %v2415
        %v4912 = vcvt.s32.f32 %v2416
        %v4913 = vcvt.s32.f32 %v2417
        %v4914 = vcvt.s32.f32 %v2418
        %v4915 = vcvt.s32.f32 %v2419
        %v4916 = vcvt.s32.f32 %v2420
        %v4917 = vcvt.s32.f32 %v2421
        %v4918 = vcvt.s32.f32 %v2422
        %v4919 = vcvt.s32.f32 %v2423
        %v4920 = vcvt.s32.f32 %v2424
        %v4921 = vcvt.s32.f32 %v2425
        %v4922 = vcvt.s32.f32 %v2426
        %v4923 = vcvt.s32.f32 %v2427
        %v4924 = vcvt.s32.f32 %v2428
        %v4925 = vcvt.s32.f32 %v2429
        %v4926 = vcvt.s32.f32 %v2430
        %v4927 = vcvt.s32.f32 %v2431
        %v4928 = vcvt.s32.f32 %v2432
        %v4929 = vcvt.s32.f32 %v2433
        %v4930 = vcvt.s32.f32 %v2434
        %v4931 = vcvt.s32.f32 %v2435
        %v4932 = vcvt.s32.f32 %v2436
        %v4933 = vcvt.s32.f32 %v2437
        %v4934 = vcvt.s32.f32 %v2438
        %v4935 = vcvt.s32.f32 %v2439
        %v4936 = vcvt.s32.f32 %v2440
        %v4937 = vcvt.s32.f32 %v2441
        %v4938 = vcvt.s32.f32 %v2442
        %v4939 = vcvt.s32.f32 %v2443
        %v4940 = vcvt.s32.f32 %v2444
        %v4941 = vcvt.s32.f32 %v2445
        %v4942 = vcvt.s32.f32 %v2446
        %v4943 = vcvt.s32.f32 %v2447
        %v4944 = vcvt.s32.f32 %v2448
        %v4945 = vcvt.s32.f32 %v2449
        %v4946 = vcvt.s32.f32 %v2450
        %v4947 = vcvt.s32.f32 %v2451
        %v4948 = vcvt.s32.f32 %v2452
        %v4949 = vcvt.s32.f32 %v2453
        %v4950 = vcvt.s32.f32 %v2454
        %v4951 = vcvt.s32.f32 %v2455
        %v4952 = vcvt.s32.f32 %v2456
        %v4953 = vcvt.s32.f32 %v2457
        %v4954 = vcvt.s32.f32 %v2458
        %v4955 = vcvt.s32.f32 %v2459
        %v4956 = vcvt.s32.f32 %v2460
        %v4957 = vcvt.s32.f32 %v2461
        %v4958 = vcvt.s32.f32 %v2462
        %v4959 = vcvt.s32.f32 %v2463
        %v4960 = vcvt.s32.f32 %v2464
        %v4961 = vcvt.s32.f32 %v2465
        %v4962 = vcvt.s32.f32 %v2466
        %v4963 = vcvt.s32.f32 %v2467
        %v4964 = vcvt.s32.f32 %v2468
        %v4965 = vcvt.s32.f32 %v2469
        %v4966 = vcvt.s32.f32 %v2470
        %v4967 = vcvt.s32.f32 %v2471
        %v4968 = vcvt.s32.f32 %v2472
        %v4969 = vcvt.s32.f32 %v2473
        %v4970 = vcvt.s32.f32 %v2474
        %v4971 = vcvt.s32.f32 %v2475
        %v4972 = vcvt.s32.f32 %v2476
        %v4973 = vcvt.s32.f32 %v2477
        %v4974 = vcvt.s32.f32 %v2478
        %v4975 = vcvt.s32.f32 %v2479
        %v4976 = vcvt.s32.f32 %v2480
        %v4977 = vcvt.s32.f32 %v2481
        %v4978 = vcvt.s32.f32 %v2482
        %v4979 = vcvt.s32.f32 %v2483
        %v4980 = vcvt.s32.f32 %v2484
        %v4981 = vcvt.s32.f32 %v2485
        %v4982 = vcvt.s32.f32 %v2486
        %v4983 = vcvt.s32.f32 %v2487
        %v4984 = vcvt.s32.f32 %v2488
        %v4985 = vcvt.s32.f32 %v2489
        %v4986 = vcvt.s32.f32 %v2490
        %v4987 = vcvt.s32.f32 %v2491
        %v4988 = vcvt.s32.f32 %v2492
        %v4989 = vcvt.s32.f32 %v2493
        %v4990 = vcvt.s32.f32 %v2494
        %v4991 = vcvt.s32.f32 %v2495
        %v4992 = vcvt.s32.f32 %v2496
        %v4993 = vcvt.s32.f32 %v2497
        %v4994 = vcvt.s32.f32 %v2498
        %v4995 = vcvt.s32.f32 %v2499
        %v4996 = vcvt.s32.f32 %v2500
        %v4997 = vcvt.s32.f32 %v2501
        %v4998 = vcvt.s32.f32 %v2502
        %v4999 = vcvt.s32.f32 %v2503
        %v5000 = vcvt.s32.f32 %v2504
        %v5001 = vcvt.s32.f32 %v2505
        %v5002 = vcvt.s32.f32 %v2506
        %v5003 = vcvt.s32.f32 %v2507
        %v5004 = vcvt.s32.f32 %v2508
        %v5005 = vcvt.s32.f32 %v2509
        %v5006 = vcvt.s32.f32 %v2510
        %v5007 = vcvt.s32.f32 %v2511
        %v5008 = vcvt.s32.f32 %v2512
        %v5009 = vcvt.s32.f32 %v2513
        %v5010 = vcvt.s32.f32 %v2514
        %v5011 = vcvt.s32.f32 %v2515
        %v5012 = vcvt.s32.f32 %v2516
        %v5013 = vcvt.s32.f32 %v2517
        %v5014 = vcvt.s32.f32 %v2518
        %v5015 = vcvt.s32.f32 %v2519
        %v5016 = vcvt.s32.f32 %v2520
        %v5017 = vcvt.s32.f32 %v2521
        %v5018 = vcvt.s32.f32 %v2522
        %v5019 = vcvt.s32.f32 %v2523
        %v5020 = vcvt.s32.f32 %v2524
        %v5021 = vcvt.s32.f32 %v2525
        %v5022 = vcvt.s32.f32 %v2526
        %v5023 = vcvt.s32.f32 %v2527
        %v5024 = vcvt.s32.f32 %v2528
        %v5025 = vcvt.s32.f32 %v2529
        %v5026 = vcvt.s32.f32 %v2530
        %v5027 = vcvt.s32.f32 %v2531
        %v5028 = vcvt.s32.f32 %v2532
        %v5029 = vcvt.s32.f32 %v2533
        %v5030 = vcvt.s32.f32 %v2534
        %v5031 = vcvt.s32.f32 %v2535
        %v5032 = vcvt.s32.f32 %v2536
        %v5033 = vcvt.s32.f32 %v2537
        %v5034 = vcvt.s32.f32 %v2538
        %v5035 = vcvt.s32.f32 %v2539
        %v5036 = vcvt.s32.f32 %v2540
        %v5037 = vcvt.s32.f32 %v2541
        %v5038 = vcvt.s32.f32 %v2542
        %v5039 = vcvt.s32.f32 %v2543
        %v5040 = vcvt.s32.f32 %v2544
        %v5041 = vcvt.s32.f32 %v2545
        %v5042 = vcvt.s32.f32 %v2546
        %v5043 = vcvt.s32.f32 %v2547
        %v5044 = vcvt.s32.f32 %v2548
        %v5045 = vcvt.s32.f32 %v2549
        %v5046 = vcvt.s32.f32 %v2550
        %v5047 = vcvt.s32.f32 %v2551
        %v5048 = vcvt.s32.f32 %v2552
        %v5049 = vcvt.s32.f32 %v2553
        %v5050 = vcvt.s32.f32 %v2554
        %v5051 = vcvt.s32.f32 %v2555
        %v5052 = vcvt.s32.f32 %v2556
        %v5053 = vcvt.s32.f32 %v2557
        %v5054 = vcvt.s32.f32 %v2558
        %v5055 = vcvt.s32.f32 %v2559
        %v5056 = vcvt.s32.f32 %v2560
        %v5057 = vcvt.s32.f32 %v2561
        %v5058 = vcvt.s32.f32 %v2562
        %v5059 = vcvt.s32.f32 %v2563
        %v5060 = vcvt.s32.f32 %v2564
        %v5061 = vcvt.s32.f32 %v2565
        %v5062 = vcvt.s32.f32 %v2566
        %v5063 = vcvt.s32.f32 %v2567
        %v5064 = vcvt.s32.f32 %v2568
        %v5065 = vcvt.s32.f32 %v2569
        %v5066 = vcvt.s32.f32 %v2570
        %v5067 = vcvt.s32.f32 %v2571
        %v5068 = vcvt.s32.f32 %v2572
        %v5069 = vcvt.s32.f32 %v2573
        %v5070 = vcvt.s32.f32 %v2574
        %v5071 = vcvt.s32.f32 %v2575
        %v5072 = vcvt.s32.f32 %v2576
        %v5073 = vcvt.s32.f32 %v2577
        %v5074 = vcvt.s32.f32 %v2578
        %v5075 = vcvt.s32.f32 %v2579
        %v5076 = vcvt.s32.f32 %v2580
        %v5077 = vcvt.s32.f32 %v2581
        %v5078 = vcvt.s32.f32 %v2582
        %v5079 = vcvt.s32.f32 %v2583
        %v5080 = vcvt.s32.f32 %v2584
        %v5081 = vcvt.s32.f32 %v2585
        %v5082 = vcvt.s32.f32 %v2586
        %v5083 = vcvt.s32.f32 %v2587
        %v5084 = vcvt.s32.f32 %v2588
        %v5085 = vcvt.s32.f32 %v2589
        %v5086 = vcvt.s32.f32 %v2590
        %v5087 = vcvt.s32.f32 %v2591
        %v5088 = vcvt.s32.f32 %v2592
        %v5089 = vcvt.s32.f32 %v2593
        %v5090 = vcvt.s32.f32 %v2594
        %v5091 = vcvt.s32.f32 %v2595
        %v5092 = vcvt.s32.f32 %v2596
        %v5093 = vcvt.s32.f32 %v2597
        %v5094 = vcvt.s32.f32 %v2598
        %v5095 = vcvt.s32.f32 %v2599
        %v5096 = vcvt.s32.f32 %v2600
        %v5097 = vcvt.s32.f32 %v2601
        %v5098 = vcvt.s32.f32 %v2602
        %v5099 = vcvt.s32.f32 %v2603
        %v5100 = vcvt.s32.f32 %v2604
        %v5101 = vcvt.s32.f32 %v2605
        %v5102 = vcvt.s32.f32 %v2606
        %v5103 = vcvt.s32.f32 %v2607
        %v5104 = vcvt.s32.f32 %v2608
        %v5105 = vcvt.s32.f32 %v2609
        %v5106 = vcvt.s32.f32 %v2610
        %v5107 = vcvt.s32.f32 %v2611
        %v5108 = vcvt.s32.f32 %v2612
        %v5109 = vcvt.s32.f32 %v2613
        %v5110 = vcvt.s32.f32 %v2614
        %v5111 = vcvt.s32.f32 %v2615
        %v5112 = vcvt.s32.f32 %v2616
        %v5113 = vcvt.s32.f32 %v2617
        %v5114 = vcvt.s32.f32 %v2618
        %v5115 = vcvt.s32.f32 %v2619
        %v5116 = vcvt.s32.f32 %v2620
        %v5117 = vcvt.s32.f32 %v2621
        %v5118 = vcvt.s32.f32 %v2622
        %v5119 = vcvt.s32.f32 %v2623
        %v5120 = vcvt.s32.f32 %v2624
        %v5121 = vcvt.s32.f32 %v2625
        %v5122 = vcvt.s32.f32 %v2626
        %v5123 = vcvt.s32.f32 %v2627
        %v5124 = vcvt.s32.f32 %v2628
        %v5125 = vcvt.s32.f32 %v2629
        %v5126 = vcvt.s32.f32 %v2630
        %v5127 = vcvt.s32.f32 %v2631
        %v5128 = vcvt.s32.f32 %v2632
        %v5129 = vcvt.s32.f32 %v2633
        %v5130 = vcvt.s32.f32 %v2634
        %v5131 = vcvt.s32.f32 %v2635
        %v5132 = vcvt.s32.f32 %v2636
        %v5133 = vcvt.s32.f32 %v2637
        %v5134 = vcvt.s32.f32 %v2638
        %v5135 = vcvt.s32.f32 %v2639
        %v5136 = vcvt.s32.f32 %v2640
        %v5137 = vcvt.s32.f32 %v2641
        %v5138 = vcvt.s32.f32 %v2642
        %v5139 = vcvt.s32.f32 %v2643
        %v5140 = vcvt.s32.f32 %v2644
        %v5141 = vcvt.s32.f32 %v2645
        %v5142 = vcvt.s32.f32 %v2646
        %v5143 = vcvt.s32.f32 %v2647
        %v5144 = vcvt.s32.f32 %v2648
        %v5145 = vcvt.s32.f32 %v2649
        %v5146 = vcvt.s32.f32 %v2650
        %v5147 = vcvt.s32.f32 %v2651
        %v5148 = vcvt.s32.f32 %v2652
        %v5149 = vcvt.s32.f32 %v2653
        %v5150 = vcvt.s32.f32 %v2654
        %v5151 = vcvt.s32.f32 %v2655
        %v5152 = vcvt.s32.f32 %v2656
        %v5153 = vcvt.s32.f32 %v2657
        %v5154 = vcvt.s32.f32 %v2658
        %v5155 = vcvt.s32.f32 %v2659
        %v5156 = vcvt.s32.f32 %v2660
        %v5157 = vcvt.s32.f32 %v2661
        %v5158 = vcvt.s32.f32 %v2662
        %v5159 = vcvt.s32.f32 %v2663
        %v5160 = vcvt.s32.f32 %v2664
        %v5161 = vcvt.s32.f32 %v2665
        %v5162 = vcvt.s32.f32 %v2666
        %v5163 = vcvt.s32.f32 %v2667
        %v5164 = vcvt.s32.f32 %v2668
        %v5165 = vcvt.s32.f32 %v2669
        %v5166 = vcvt.s32.f32 %v2670
        %v5167 = vcvt.s32.f32 %v2671
        %v5168 = vcvt.s32.f32 %v2672
        %v5169 = vcvt.s32.f32 %v2673
        %v5170 = vcvt.s32.f32 %v2674
        %v5171 = vcvt.s32.f32 %v2675
        %v5172 = vcvt.s32.f32 %v2676
        %v5173 = vcvt.s32.f32 %v2677
        %v5174 = vcvt.s32.f32 %v2678
        %v5175 = vcvt.s32.f32 %v2679
        %v5176 = vcvt.s32.f32 %v2680
        %v5177 = vcvt.s32.f32 %v2681
        %v5178 = vcvt.s32.f32 %v2682
        %v5179 = vcvt.s32.f32 %v2683
        %v5180 = vcvt.s32.f32 %v2684
        %v5181 = vcvt.s32.f32 %v2685
        %v5182 = vcvt.s32.f32 %v2686
        %v5183 = vcvt.s32.f32 %v2687
        %v5184 = vcvt.s32.f32 %v2688
        %v5185 = vcvt.s32.f32 %v2689
        %v5186 = vcvt.s32.f32 %v2690
        %v5187 = vcvt.s32.f32 %v2691
        %v5188 = vcvt.s32.f32 %v2692
        %v5189 = vcvt.s32.f32 %v2693
        %v5190 = vcvt.s32.f32 %v2694
        %v5191 = vcvt.s32.f32 %v2695
        %v5192 = vcvt.s32.f32 %v2696
        %v5193 = vcvt.s32.f32 %v2697
        %v5194 = vcvt.s32.f32 %v2698
        %v5195 = vcvt.s32.f32 %v2699
        %v5196 = vcvt.s32.f32 %v2700
        %v5197 = vcvt.s32.f32 %v2701
        %v5198 = vcvt.s32.f32 %v2702
        %v5199 = vcvt.s32.f32 %v2703
        %v5200 = vcvt.s32.f32 %v2704
        %v5201 = vcvt.s32.f32 %v2705
        %v5202 = vcvt.s32.f32 %v2706
        %v5203 = vcvt.s32.f32 %v2707
        %v5204 = vcvt.s32.f32 %v2708
        %v5205 = vcvt.s32.f32 %v2709
        %v5206 = vcvt.s32.f32 %v2710
        %v5207 = vcvt.s32.f32 %v2711
        %v5208 = vcvt.s32.f32 %v2712
        %v5209 = vcvt.s32.f32 %v2713
        %v5210 = vcvt.s32.f32 %v2714
        %v5211 = vcvt.s32.f32 %v2715
        %v5212 = vcvt.s32.f32 %v2716
        %v5213 = vcvt.s32.f32 %v2717
        %v5214 = vcvt.s32.f32 %v2718
        %v5215 = vcvt.s32.f32 %v2719
        %v5216 = vcvt.s32.f32 %v2720
        %v5217 = vcvt.s32.f32 %v2721
        %v5218 = vcvt.s32.f32 %v2722
        %v5219 = vcvt.s32.f32 %v2723
        %v5220 = vcvt.s32.f32 %v2724
        %v5221 = vcvt.s32.f32 %v2725
        %v5222 = vcvt.s32.f32 %v2726
        %v5223 = vcvt.s32.f32 %v2727
        %v5224 = vcvt.s32.f32 %v2728
        %v5225 = vcvt.s32.f32 %v2729
        %v5226 = vcvt.s32.f32 %v2730
        %v5227 = vcvt.s32.f32 %v2731
        %v5228 = vcvt.s32.f32 %v2732
        %v5229 = vcvt.s32.f32 %v2733
        %v5230 = vcvt.s32.f32 %v2734
        %v5231 = vcvt.s32.f32 %v2735
        %v5232 = vcvt.s32.f32 %v2736
        %v5233 = vcvt.s32.f32 %v2737
        %v5234 = vcvt.s32.f32 %v2738
        %v5235 = vcvt.s32.f32 %v2739
        %v5236 = vcvt.s32.f32 %v2740
        %v5237 = vcvt.s32.f32 %v2741
        %v5238 = vcvt.s32.f32 %v2742
        %v5239 = vcvt.s32.f32 %v2743
        %v5240 = vcvt.s32.f32 %v2744
        %v5241 = vcvt.s32.f32 %v2745
        %v5242 = vcvt.s32.f32 %v2746
        %v5243 = vcvt.s32.f32 %v2747
        %v5244 = vcvt.s32.f32 %v2748
        %v5245 = vcvt.s32.f32 %v2749
        %v5246 = vcvt.s32.f32 %v2750
        %v5247 = vcvt.s32.f32 %v2751
        %v5248 = vcvt.s32.f32 %v2752
        %v5249 = vcvt.s32.f32 %v2753
        %v5250 = vcvt.s32.f32 %v2754
        %v5251 = vcvt.s32.f32 %v2755
        %v5252 = vcvt.s32.f32 %v2756
        %v5253 = vcvt.s32.f32 %v2757
        %v5254 = vcvt.s32.f32 %v2758
        %v5255 = vcvt.s32.f32 %v2759
        %v5256 = vcvt.s32.f32 %v2760
        %v5257 = vcvt.s32.f32 %v2761
        %v5258 = vcvt.s32.f32 %v2762
        %v5259 = vcvt.s32.f32 %v2763
        %v5260 = vcvt.s32.f32 %v2764
        %v5261 = vcvt.s32.f32 %v2765
        %v5262 = vcvt.s32.f32 %v2766
        %v5263 = vcvt.s32.f32 %v2767
        %v5264 = vcvt.s32.f32 %v2768
        %v5265 = vcvt.s32.f32 %v2769
        %v5266 = vcvt.s32.f32 %v2770
        %v5267 = vcvt.s32.f32 %v2771
        %v5268 = vcvt.s32.f32 %v2772
        %v5269 = vcvt.s32.f32 %v2773
        %v5270 = vcvt.s32.f32 %v2774
        %v5271 = vcvt.s32.f32 %v2775
        %v5272 = vcvt.s32.f32 %v2776
        %v5273 = vcvt.s32.f32 %v2777
        %v5274 = vcvt.s32.f32 %v2778
        %v5275 = vcvt.s32.f32 %v2779
        %v5276 = vcvt.s32.f32 %v2780
        %v5277 = vcvt.s32.f32 %v2781
        %v5278 = vcvt.s32.f32 %v2782
        %v5279 = vcvt.s32.f32 %v2783
        %v5280 = vcvt.s32.f32 %v2784
        %v5281 = vcvt.s32.f32 %v2785
        %v5282 = vcvt.s32.f32 %v2786
        %v5283 = vcvt.s32.f32 %v2787
        %v5284 = vcvt.s32.f32 %v2788
        %v5285 = vcvt.s32.f32 %v2789
        %v5286 = vcvt.s32.f32 %v2790
        %v5287 = vcvt.s32.f32 %v2791
        %v5288 = vcvt.s32.f32 %v2792
        %v5289 = vcvt.s32.f32 %v2793
        %v5290 = vcvt.s32.f32 %v2794
        %v5291 = vcvt.s32.f32 %v2795
        %v5292 = vcvt.s32.f32 %v2796
        %v5293 = vcvt.s32.f32 %v2797
        %v5294 = vcvt.s32.f32 %v2798
        %v5295 = vcvt.s32.f32 %v2799
        %v5296 = vcvt.s32.f32 %v2800
        %v5297 = vcvt.s32.f32 %v2801
        %v5298 = vcvt.s32.f32 %v2802
        %v5299 = vcvt.s32.f32 %v2803
        %v5300 = vcvt.s32.f32 %v2804
        %v5301 = vcvt.s32.f32 %v2805
        %v5302 = vcvt.s32.f32 %v2806
        %v5303 = vcvt.s32.f32 %v2807
        %v5304 = vcvt.s32.f32 %v2808
        %v5305 = vcvt.s32.f32 %v2809
        %v5306 = vcvt.s32.f32 %v2810
        %v5307 = vcvt.s32.f32 %v2811
        %v5308 = vcvt.s32.f32 %v2812
        %v5309 = vcvt.s32.f32 %v2813
        %v5310 = vcvt.s32.f32 %v2814
        %v5311 = vcvt.s32.f32 %v2815
        %v5312 = vcvt.s32.f32 %v2816
        %v5313 = vcvt.s32.f32 %v2817
        %v5314 = vcvt.s32.f32 %v2818
        %v5315 = vcvt.s32.f32 %v2819
        %v5316 = vcvt.s32.f32 %v2820
        %v5317 = vcvt.s32.f32 %v2821
        %v5318 = vcvt.s32.f32 %v2822
        %v5319 = vcvt.s32.f32 %v2823
        %v5320 = vcvt.s32.f32 %v2824
        %v5321 = vcvt.s32.f32 %v2825
        %v5322 = vcvt.s32.f32 %v2826
        %v5323 = vcvt.s32.f32 %v2827
        %v5324 = vcvt.s32.f32 %v2828
        %v5325 = vcvt.s32.f32 %v2829
        %v5326 = vcvt.s32.f32 %v2830
        %v5327 = vcvt.s32.f32 %v2831
        %v5328 = vcvt.s32.f32 %v2832
        %v5329 = vcvt.s32.f32 %v2833
        %v5330 = vcvt.s32.f32 %v2834
        %v5331 = vcvt.s32.f32 %v2835
        %v5332 = vcvt.s32.f32 %v2836
        %v5333 = vcvt.s32.f32 %v2837
        %v5334 = vcvt.s32.f32 %v2838
        %v5335 = vcvt.s32.f32 %v2839
        %v5336 = vcvt.s32.f32 %v2840
        %v5337 = vcvt.s32.f32 %v2841
        %v5338 = vcvt.s32.f32 %v2842
        %v5339 = vcvt.s32.f32 %v2843
        %v5340 = vcvt.s32.f32 %v2844
        %v5341 = vcvt.s32.f32 %v2845
        %v5342 = vcvt.s32.f32 %v2846
        %v5343 = vcvt.s32.f32 %v2847
        %v5344 = vcvt.s32.f32 %v2848
        %v5345 = vcvt.s32.f32 %v2849
        %v5346 = vcvt.s32.f32 %v2850
        %v5347 = vcvt.s32.f32 %v2851
        %v5348 = vcvt.s32.f32 %v2852
        %v5349 = vcvt.s32.f32 %v2853
        %v5350 = vcvt.s32.f32 %v2854
        %v5351 = vcvt.s32.f32 %v2855
        %v5352 = vcvt.s32.f32 %v2856
        %v5353 = vcvt.s32.f32 %v2857
        %v5354 = vcvt.s32.f32 %v2858
        %v5355 = vcvt.s32.f32 %v2859
        %v5356 = vcvt.s32.f32 %v2860
        %v5357 = vcvt.s32.f32 %v2861
        %v5358 = vcvt.s32.f32 %v2862
        %v5359 = vcvt.s32.f32 %v2863
        %v5360 = vcvt.s32.f32 %v2864
        %v5361 = vcvt.s32.f32 %v2865
        %v5362 = vcvt.s32.f32 %v2866
        %v5363 = vcvt.s32.f32 %v2867
        %v5364 = vcvt.s32.f32 %v2868
        %v5365 = vcvt.s32.f32 %v2869
        %v5366 = vcvt.s32.f32 %v2870
        %v5367 = vcvt.s32.f32 %v2871
        %v5368 = vcvt.s32.f32 %v2872
        %v5369 = vcvt.s32.f32 %v2873
        %v5370 = vcvt.s32.f32 %v2874
        %v5371 = vcvt.s32.f32 %v2875
        %v5372 = vcvt.s32.f32 %v2876
        %v5373 = vcvt.s32.f32 %v2877
        %v5374 = vcvt.s32.f32 %v2878
        %v5375 = vcvt.s32.f32 %v2879
        %v5376 = vcvt.s32.f32 %v2880
        %v5377 = vcvt.s32.f32 %v2881
        %v5378 = vcvt.s32.f32 %v2882
        %v5379 = vcvt.s32.f32 %v2883
        %v5380 = vcvt.s32.f32 %v2884
        %v5381 = vcvt.s32.f32 %v2885
        %v5382 = vcvt.s32.f32 %v2886
        %v5383 = vcvt.s32.f32 %v2887
        %v5384 = vcvt.s32.f32 %v2888
        %v5385 = vcvt.s32.f32 %v2889
        %v5386 = vcvt.s32.f32 %v2890
        %v5387 = vcvt.s32.f32 %v2891
        %v5388 = vcvt.s32.f32 %v2892
        %v5389 = vcvt.s32.f32 %v2893
        %v5390 = vcvt.s32.f32 %v2894
        %v5391 = vcvt.s32.f32 %v2895
        %v5392 = vcvt.s32.f32 %v2896
        %v5393 = vcvt.s32.f32 %v2897
        %v5394 = vcvt.s32.f32 %v2898
        %v5395 = vcvt.s32.f32 %v2899
        %v5396 = vcvt.s32.f32 %v2900
        %v5397 = vcvt.s32.f32 %v2901
        %v5398 = vcvt.s32.f32 %v2902
        %v5399 = vcvt.s32.f32 %v2903
        %v5400 = vcvt.s32.f32 %v2904
        %v5401 = vcvt.s32.f32 %v2905
        %v5402 = vcvt.s32.f32 %v2906
        %v5403 = vcvt.s32.f32 %v2907
        %v5404 = vcvt.s32.f32 %v2908
        %v5405 = vcvt.s32.f32 %v2909
        %v5406 = vcvt.s32.f32 %v2910
        %v5407 = vcvt.s32.f32 %v2911
        %v5408 = vcvt.s32.f32 %v2912
        %v5409 = vcvt.s32.f32 %v2913
        %v5410 = vcvt.s32.f32 %v2914
        %v5411 = vcvt.s32.f32 %v2915
        %v5412 = vcvt.s32.f32 %v2916
        %v5413 = vcvt.s32.f32 %v2917
        %v5414 = vcvt.s32.f32 %v2918
        %v5415 = vcvt.s32.f32 %v2919
        %v5416 = vcvt.s32.f32 %v2920
        %v5417 = vcvt.s32.f32 %v2921
        %v5418 = vcvt.s32.f32 %v2922
        %v5419 = vcvt.s32.f32 %v2923
        %v5420 = vcvt.s32.f32 %v2924
        %v5421 = vcvt.s32.f32 %v2925
        %v5422 = vcvt.s32.f32 %v2926
        %v5423 = vcvt.s32.f32 %v2927
        %v5424 = vcvt.s32.f32 %v2928
        %v5425 = vcvt.s32.f32 %v2929
        %v5426 = vcvt.s32.f32 %v2930
        %v5427 = vcvt.s32.f32 %v2931
        %v5428 = vcvt.s32.f32 %v2932
        %v5429 = vcvt.s32.f32 %v2933
        %v5430 = vcvt.s32.f32 %v2934
        %v5431 = vcvt.s32.f32 %v2935
        %v5432 = vcvt.s32.f32 %v2936
        %v5433 = vcvt.s32.f32 %v2937
        %v5434 = vcvt.s32.f32 %v2938
        %v5435 = vcvt.s32.f32 %v2939
        %v5436 = vcvt.s32.f32 %v2940
        %v5437 = vcvt.s32.f32 %v2941
        %v5438 = vcvt.s32.f32 %v2942
        %v5439 = vcvt.s32.f32 %v2943
        %v5440 = vcvt.s32.f32 %v2944
        %v5441 = vcvt.s32.f32 %v2945
        %v5442 = vcvt.s32.f32 %v2946
        %v5443 = vcvt.s32.f32 %v2947
        %v5444 = vcvt.s32.f32 %v2948
        %v5445 = vcvt.s32.f32 %v2949
        %v5446 = vcvt.s32.f32 %v2950
        %v5447 = vcvt.s32.f32 %v2951
        %v5448 = vcvt.s32.f32 %v2952
        %v5449 = vcvt.s32.f32 %v2953
        %v5450 = vcvt.s32.f32 %v2954
        %v5451 = vcvt.s32.f32 %v2955
        %v5452 = vcvt.s32.f32 %v2956
        %v5453 = vcvt.s32.f32 %v2957
        %v5454 = vcvt.s32.f32 %v2958
        %v5455 = vcvt.s32.f32 %v2959
        %v5456 = vcvt.s32.f32 %v2960
        %v5457 = vcvt.s32.f32 %v2961
        %v5458 = vcvt.s32.f32 %v2962
        %v5459 = vcvt.s32.f32 %v2963
        %v5460 = vcvt.s32.f32 %v2964
        %v5461 = vcvt.s32.f32 %v2965
        %v5462 = vcvt.s32.f32 %v2966
        %v5463 = vcvt.s32.f32 %v2967
        %v5464 = vcvt.s32.f32 %v2968
        %v5465 = vcvt.s32.f32 %v2969
        %v5466 = vcvt.s32.f32 %v2970
        %v5467 = vcvt.s32.f32 %v2971
        %v5468 = vcvt.s32.f32 %v2972
        %v5469 = vcvt.s32.f32 %v2973
        %v5470 = vcvt.s32.f32 %v2974
        %v5471 = vcvt.s32.f32 %v2975
        %v5472 = vcvt.s32.f32 %v2976
        %v5473 = vcvt.s32.f32 %v2977
        %v5474 = vcvt.s32.f32 %v2978
        %v5475 = vcvt.s32.f32 %v2979
        %v5476 = vcvt.s32.f32 %v2980
        %v5477 = vcvt.s32.f32 %v2981
        %v5478 = vcvt.s32.f32 %v2982
        %v5479 = vcvt.s32.f32 %v2983
        %v5480 = vcvt.s32.f32 %v2984
        %v5481 = vcvt.s32.f32 %v2985
        %v5482 = vcvt.s32.f32 %v2986
        %v5483 = vcvt.s32.f32 %v2987
        %v5484 = vcvt.s32.f32 %v2988
        %v5485 = vcvt.s32.f32 %v2989
        %v5486 = vcvt.s32.f32 %v2990
        %v5487 = vcvt.s32.f32 %v2991
        %v5488 = vcvt.s32.f32 %v2992
        %v5489 = vcvt.s32.f32 %v2993
        %v5490 = vcvt.s32.f32 %v2994
        %v5491 = vcvt.s32.f32 %v2995
        %v5492 = vcvt.s32.f32 %v2996
        %v5493 = vcvt.s32.f32 %v2997
        %v5494 = vcvt.s32.f32 %v2998
        %v5495 = vcvt.s32.f32 %v2999
        %v5496 = vcvt.s32.f32 %v3000
        %v5497 = vcvt.s32.f32 %v3001
        %v5498 = vcvt.s32.f32 %v3002
        %v5499 = vcvt.s32.f32 %v3003
        %v5500 = vcvt.s32.f32 %v3004
        %v5501 = vcvt.s32.f32 %v3005
        %v5502 = vcvt.s32.f32 %v3006
        %v5503 = vcvt.s32.f32 %v3007
        %v5504 = vcvt.s32.f32 %v3008
        %v5505 = vcvt.s32.f32 %v3009
        %v5506 = vcvt.s32.f32 %v3010
        %v5507 = vcvt.s32.f32 %v3011
        %v5508 = vcvt.s32.f32 %v3012
        %v5509 = vcvt.s32.f32 %v3013
        %v5510 = vcvt.s32.f32 %v3014
        %v5511 = vcvt.s32.f32 %v3015
        %v5512 = vcvt.s32.f32 %v3016
        %v5513 = vcvt.s32.f32 %v3017
        %v5514 = vcvt.s32.f32 %v3018
        %v5515 = vcvt.s32.f32 %v3019
        %v5516 = vcvt.s32.f32 %v3020
        %v5517 = vcvt.s32.f32 %v3021
        %v5518 = vcvt.s32.f32 %v3022
        %v5519 = vcvt.s32.f32 %v3023
        %v5520 = vcvt.s32.f32 %v3024
        %v5521 = vcvt.s32.f32 %v3025
        %v5522 = vcvt.s32.f32 %v3026
        %v5523 = vcvt.s32.f32 %v3027
        %v5524 = vcvt.s32.f32 %v3028
        %v5525 = vcvt.s32.f32 %v3029
        %v5526 = vcvt.s32.f32 %v3030
        %v5527 = vcvt.s32.f32 %v3031
        %v5528 = vcvt.s32.f32 %v3032
        %v5529 = vcvt.s32.f32 %v3033
        %v5530 = vcvt.s32.f32 %v3034
        %v5531 = vcvt.s32.f32 %v3035
        %v5532 = vcvt.s32.f32 %v3036
        %v5533 = vcvt.s32.f32 %v3037
        %v5534 = vcvt.s32.f32 %v3038
        %v5535 = vcvt.s32.f32 %v3039
        %v5536 = vcvt.s32.f32 %v3040
        %v5537 = vcvt.s32.f32 %v3041
        %v5538 = vcvt.s32.f32 %v3042
        %v5539 = vcvt.s32.f32 %v3043
        %v5540 = vcvt.s32.f32 %v3044
        %v5541 = vcvt.s32.f32 %v3045
        %v5542 = vcvt.s32.f32 %v3046
        %v5543 = vcvt.s32.f32 %v3047
        %v5544 = vcvt.s32.f32 %v3048
        %v5545 = vcvt.s32.f32 %v3049
        %v5546 = vcvt.s32.f32 %v3050
        %v5547 = vcvt.s32.f32 %v3051
        %v5548 = vcvt.s32.f32 %v3052
        %v5549 = vcvt.s32.f32 %v3053
        %v5550 = vcvt.s32.f32 %v3054
        %v5551 = vcvt.s32.f32 %v3055
        %v5552 = vcvt.s32.f32 %v3056
        %v5553 = vcvt.s32.f32 %v3057
        %v5554 = vcvt.s32.f32 %v3058
        %v5555 = vcvt.s32.f32 %v3059
        %v5556 = vcvt.s32.f32 %v3060
        %v5557 = vcvt.s32.f32 %v3061
        %v5558 = vcvt.s32.f32 %v3062
        %v5559 = vcvt.s32.f32 %v3063
        %v5560 = vcvt.s32.f32 %v3064
        %v5561 = vcvt.s32.f32 %v3065
        %v5562 = vcvt.s32.f32 %v3066
        %v5563 = vcvt.s32.f32 %v3067
        %v5564 = vcvt.s32.f32 %v3068
        %v5565 = vcvt.s32.f32 %v3069
        %v5566 = vcvt.s32.f32 %v3070
        %v5567 = vcvt.s32.f32 %v3071
        %v5568 = vcvt.s32.f32 %v3072
        %v5569 = vcvt.s32.f32 %v3073
        %v5570 = vcvt.s32.f32 %v3074
        %v5571 = vcvt.s32.f32 %v3075
        %v5572 = vcvt.s32.f32 %v3076
        %v5573 = vcvt.s32.f32 %v3077
        %v5574 = vcvt.s32.f32 %v3078
        %v5575 = vcvt.s32.f32 %v3079
        %v5576 = vcvt.s32.f32 %v3080
        %v5577 = vcvt.s32.f32 %v3081
        %v5578 = vcvt.s32.f32 %v3082
        %v5579 = vcvt.s32.f32 %v3083
        %v5580 = vcvt.s32.f32 %v3084
        %v5581 = vcvt.s32.f32 %v3085
        %v5582 = vcvt.s32.f32 %v3086
        %v5583 = vcvt.s32.f32 %v3087
        %v5584 = vcvt.s32.f32 %v3088
        %v5585 = vcvt.s32.f32 %v3089
        %v5586 = vcvt.s32.f32 %v3090
        %v5587 = vcvt.s32.f32 %v3091
        %v5588 = vcvt.s32.f32 %v3092
        %v5589 = vcvt.s32.f32 %v3093
        %v5590 = vcvt.s32.f32 %v3094
        %v5591 = vcvt.s32.f32 %v3095
        %v5592 = vcvt.s32.f32 %v3096
        %v5593 = vcvt.s32.f32 %v3097
        %v5594 = vcvt.s32.f32 %v3098
        %v5595 = vcvt.s32.f32 %v3099
        %v5596 = vcvt.s32.f32 %v3100
        %v5597 = vcvt.s32.f32 %v3101
        %v5598 = vcvt.s32.f32 %v3102
        %v5599 = vcvt.s32.f32 %v3103
        %v5600 = vcvt.s32.f32 %v3104
        %v5601 = vcvt.s32.f32 %v3105
        %v5602 = vcvt.s32.f32 %v3106
        %v5603 = vcvt.s32.f32 %v3107
        %v5604 = vcvt.s32.f32 %v3108
        %v5605 = vcvt.s32.f32 %v3109
        %v5606 = vcvt.s32.f32 %v3110
        %v5607 = vcvt.s32.f32 %v3111
        %v5608 = vcvt.s32.f32 %v3112
        %v5609 = vcvt.s32.f32 %v3113
        %v5610 = vcvt.s32.f32 %v3114
        %v5611 = vcvt.s32.f32 %v3115
        %v5612 = vcvt.s32.f32 %v3116
        %v5613 = vcvt.s32.f32 %v3117
        %v5614 = vcvt.s32.f32 %v3118
        %v5615 = vcvt.s32.f32 %v3119
        %v5616 = vcvt.s32.f32 %v3120
        %v5617 = vcvt.s32.f32 %v3121
        %v5618 = vcvt.s32.f32 %v3122
        %v5619 = vcvt.s32.f32 %v3123
        %v5620 = vcvt.s32.f32 %v3124
        %v5621 = vcvt.s32.f32 %v3125
        %v5622 = vcvt.s32.f32 %v3126
        %v5623 = vcvt.s32.f32 %v3127
        %v5624 = vcvt.s32.f32 %v3128
        %v5625 = vcvt.s32.f32 %v3129
        %v5626 = vcvt.s32.f32 %v3130
        %v5627 = vcvt.s32.f32 %v3131
        %v5628 = vcvt.s32.f32 %v3132
        %v5629 = vcvt.s32.f32 %v3133
        %v5630 = vcvt.s32.f32 %v3134
        %v5631 = vcvt.s32.f32 %v3135
        %v5632 = vcvt.s32.f32 %v3136
        %v5633 = vcvt.s32.f32 %v3137
        %v5634 = vcvt.s32.f32 %v3138
        %v5635 = vcvt.s32.f32 %v3139
        %v5636 = vcvt.s32.f32 %v3140
        %v5637 = vcvt.s32.f32 %v3141
        %v5638 = vcvt.s32.f32 %v3142
        %v5639 = vcvt.s32.f32 %v3143
        %v5640 = vcvt.s32.f32 %v3144
        %v5641 = vcvt.s32.f32 %v3145
        %v5642 = vcvt.s32.f32 %v3146
        %v5643 = vcvt.s32.f32 %v3147
        %v5644 = vcvt.s32.f32 %v3148
        %v5645 = vcvt.s32.f32 %v3149
        %v5646 = vcvt.s32.f32 %v3150
        %v5647 = vcvt.s32.f32 %v3151
        %v5648 = vcvt.s32.f32 %v3152
        %v5649 = vcvt.s32.f32 %v3153
        %v5650 = vcvt.s32.f32 %v3154
        %v5651 = vcvt.s32.f32 %v3155
        %v5652 = vcvt.s32.f32 %v3156
        %v5653 = vcvt.s32.f32 %v3157
        %v5654 = vcvt.s32.f32 %v3158
        %v5655 = vcvt.s32.f32 %v3159
        %v5656 = vcvt.s32.f32 %v3160
        %v5657 = vcvt.s32.f32 %v3161
        %v5658 = vcvt.s32.f32 %v3162
        %v5659 = vcvt.s32.f32 %v3163
        %v5660 = vcvt.s32.f32 %v3164
        %v5661 = vcvt.s32.f32 %v3165
        %v5662 = vcvt.s32.f32 %v3166
        %v5663 = vcvt.s32.f32 %v3167
        %v5664 = vcvt.s32.f32 %v3168
        %v5665 = vcvt.s32.f32 %v3169
        %v5666 = vcvt.s32.f32 %v3170
        %v5667 = vcvt.s32.f32 %v3171
        %v5668 = vcvt.s32.f32 %v3172
        %v5669 = vcvt.s32.f32 %v3173
        %v5670 = vcvt.s32.f32 %v3174
        %v5671 = vcvt.s32.f32 %v3175
        %v5672 = vcvt.s32.f32 %v3176
        %v5673 = vcvt.s32.f32 %v3177
        %v5674 = vcvt.s32.f32 %v3178
        %v5675 = vcvt.s32.f32 %v3179
        %v5676 = vcvt.s32.f32 %v3180
        %v5677 = vcvt.s32.f32 %v3181
        %v5678 = vcvt.s32.f32 %v3182
        %v5679 = vcvt.s32.f32 %v3183
        %v5680 = vcvt.s32.f32 %v3184
        %v5681 = vcvt.s32.f32 %v3185
        %v5682 = vcvt.s32.f32 %v3186
        %v5683 = vcvt.s32.f32 %v3187
        %v5684 = vcvt.s32.f32 %v3188
        %v5685 = vcvt.s32.f32 %v3189
        %v5686 = vcvt.s32.f32 %v3190
        %v5687 = vcvt.s32.f32 %v3191
        %v5688 = vcvt.s32.f32 %v3192
        %v5689 = vcvt.s32.f32 %v3193
        %v5690 = vcvt.s32.f32 %v3194
        %v5691 = vcvt.s32.f32 %v3195
        %v5692 = vcvt.s32.f32 %v3196
        %v5693 = vcvt.s32.f32 %v3197
        %v5694 = vcvt.s32.f32 %v3198
        %v5695 = vcvt.s32.f32 %v3199
        %v5696 = vcvt.s32.f32 %v3200
        %v5697 = vcvt.s32.f32 %v3201
        %v5698 = vcvt.s32.f32 %v3202
        %v5699 = vcvt.s32.f32 %v3203
        %v5700 = vcvt.s32.f32 %v3204
        %v5701 = vcvt.s32.f32 %v3205
        %v5702 = vcvt.s32.f32 %v3206
        %v5703 = vcvt.s32.f32 %v3207
        %v5704 = vcvt.s32.f32 %v3208
        %v5705 = vcvt.s32.f32 %v3209
        %v5706 = vcvt.s32.f32 %v3210
        %v5707 = vcvt.s32.f32 %v3211
        %v5708 = vcvt.s32.f32 %v3212
        %v5709 = vcvt.s32.f32 %v3213
        %v5710 = vcvt.s32.f32 %v3214
        %v5711 = vcvt.s32.f32 %v3215
        %v5712 = vcvt.s32.f32 %v3216
        %v5713 = vcvt.s32.f32 %v3217
        %v5714 = vcvt.s32.f32 %v3218
        %v5715 = vcvt.s32.f32 %v3219
        %v5716 = vcvt.s32.f32 %v3220
        %v5717 = vcvt.s32.f32 %v3221
        %v5718 = vcvt.s32.f32 %v3222
        %v5719 = vcvt.s32.f32 %v3223
        %v5720 = vcvt.s32.f32 %v3224
        %v5721 = vcvt.s32.f32 %v3225
        %v5722 = vcvt.s32.f32 %v3226
        %v5723 = vcvt.s32.f32 %v3227
        %v5724 = vcvt.s32.f32 %v3228
        %v5725 = vcvt.s32.f32 %v3229
        %v5726 = vcvt.s32.f32 %v3230
        %v5727 = vcvt.s32.f32 %v3231
        %v5728 = vcvt.s32.f32 %v3232
        %v5729 = vcvt.s32.f32 %v3233
        %v5730 = vcvt.s32.f32 %v3234
        %v5731 = vcvt.s32.f32 %v3235
        %v5732 = vcvt.s32.f32 %v3236
        %v5733 = vcvt.s32.f32 %v3237
        %v5734 = vcvt.s32.f32 %v3238
        %v5735 = vcvt.s32.f32 %v3239
        %v5736 = vcvt.s32.f32 %v3240
        %v5737 = vcvt.s32.f32 %v3241
        %v5738 = vcvt.s32.f32 %v3242
        %v5739 = vcvt.s32.f32 %v3243
        %v5740 = vcvt.s32.f32 %v3244
        %v5741 = vcvt.s32.f32 %v3245
        %v5742 = vcvt.s32.f32 %v3246
        %v5743 = vcvt.s32.f32 %v3247
        %v5744 = vcvt.s32.f32 %v3248
        %v5745 = vcvt.s32.f32 %v3249
        %v5746 = vcvt.s32.f32 %v3250
        %v5747 = vcvt.s32.f32 %v3251
        %v5748 = vcvt.s32.f32 %v3252
        %v5749 = vcvt.s32.f32 %v3253
        %v5750 = vcvt.s32.f32 %v3254
        %v5751 = vcvt.s32.f32 %v3255
        %v5752 = vcvt.s32.f32 %v3256
        %v5753 = vcvt.s32.f32 %v3257
        %v5754 = vcvt.s32.f32 %v3258
        %v5755 = vcvt.s32.f32 %v3259
        %v5756 = vcvt.s32.f32 %v3260
        %v5757 = vcvt.s32.f32 %v3261
        %v5758 = vcvt.s32.f32 %v3262
        %v5759 = vcvt.s32.f32 %v3263
        %v5760 = vcvt.s32.f32 %v3264
        %v5761 = vcvt.s32.f32 %v3265
        %v5762 = vcvt.s32.f32 %v3266
        %v5763 = vcvt.s32.f32 %v3267
        %v5764 = vcvt.s32.f32 %v3268
        %v5765 = vcvt.s32.f32 %v3269
        %v5766 = vcvt.s32.f32 %v3270
        %v5767 = vcvt.s32.f32 %v3271
        %v5768 = vcvt.s32.f32 %v3272
        %v5769 = vcvt.s32.f32 %v3273
        %v5770 = vcvt.s32.f32 %v3274
        %v5771 = vcvt.s32.f32 %v3275
        %v5772 = vcvt.s32.f32 %v3276
        %v5773 = vcvt.s32.f32 %v3277
        %v5774 = vcvt.s32.f32 %v3278
        %v5775 = vcvt.s32.f32 %v3279
        %v5776 = vcvt.s32.f32 %v3280
        %v5777 = vcvt.s32.f32 %v3281
        %v5778 = vcvt.s32.f32 %v3282
        %v5779 = vcvt.s32.f32 %v3283
        %v5780 = vcvt.s32.f32 %v3284
        %v5781 = vcvt.s32.f32 %v3285
        %v5782 = vcvt.s32.f32 %v3286
        %v5783 = vcvt.s32.f32 %v3287
        %v5784 = vcvt.s32.f32 %v3288
        %v5785 = vcvt.s32.f32 %v3289
        %v5786 = vcvt.s32.f32 %v3290
        %v5787 = vcvt.s32.f32 %v3291
        %v5788 = vcvt.s32.f32 %v3292
        %v5789 = vcvt.s32.f32 %v3293
        %v5790 = vcvt.s32.f32 %v3294
        %v5791 = vcvt.s32.f32 %v3295
        %v5792 = vcvt.s32.f32 %v3296
        %v5793 = vcvt.s32.f32 %v3297
        %v5794 = vcvt.s32.f32 %v3298
        %v5795 = vcvt.s32.f32 %v3299
        %v5796 = vcvt.s32.f32 %v3300
        %v5797 = vcvt.s32.f32 %v3301
        %v5798 = vcvt.s32.f32 %v3302
        %v5799 = vcvt.s32.f32 %v3303
        %v5800 = vcvt.s32.f32 %v3304
        %v5801 = vcvt.s32.f32 %v3305
        %v5802 = vcvt.s32.f32 %v3306
        %v5803 = vcvt.s32.f32 %v3307
        %v5804 = vcvt.s32.f32 %v3308
        %v5805 = vcvt.s32.f32 %v3309
        %v5806 = vcvt.s32.f32 %v3310
        %v5807 = vcvt.s32.f32 %v3311
        %v5808 = vcvt.s32.f32 %v3312
        %v5809 = vcvt.s32.f32 %v3313
        %v5810 = vcvt.s32.f32 %v3314
        %v5811 = vcvt.s32.f32 %v3315
        %v5812 = vcvt.s32.f32 %v3316
        %v5813 = vcvt.s32.f32 %v3317
        %v5814 = vcvt.s32.f32 %v3318
        %v5815 = vcvt.s32.f32 %v3319
        %v5816 = vcvt.s32.f32 %v3320
        %v5817 = vcvt.s32.f32 %v3321
        %v5818 = vcvt.s32.f32 %v3322
        %v5819 = vcvt.s32.f32 %v3323
        %v5820 = vcvt.s32.f32 %v3324
        %v5821 = vcvt.s32.f32 %v3325
        %v5822 = vcvt.s32.f32 %v3326
        %v5823 = vcvt.s32.f32 %v3327
        %v5824 = vcvt.s32.f32 %v3328
        %v5825 = vcvt.s32.f32 %v3329
        %v5826 = vcvt.s32.f32 %v3330
        %v5827 = vcvt.s32.f32 %v3331
        %v5828 = vcvt.s32.f32 %v3332
        %v5829 = vcvt.s32.f32 %v3333
        %v5830 = vcvt.s32.f32 %v3334
        %v5831 = vcvt.s32.f32 %v3335
        %v5832 = vcvt.s32.f32 %v3336
        %v5833 = vcvt.s32.f32 %v3337
        %v5834 = vcvt.s32.f32 %v3338
        %v5835 = vcvt.s32.f32 %v3339
        %v5836 = vcvt.s32.f32 %v3340
        %v5837 = vcvt.s32.f32 %v3341
        %v5838 = vcvt.s32.f32 %v3342
        %v5839 = vcvt.s32.f32 %v3343
        %v5840 = vcvt.s32.f32 %v3344
        %v5841 = vcvt.s32.f32 %v3345
        %v5842 = vcvt.s32.f32 %v3346
        %v5843 = vcvt.s32.f32 %v3347
        %v5844 = vcvt.s32.f32 %v3348
        %v5845 = vcvt.s32.f32 %v3349
        %v5846 = vcvt.s32.f32 %v3350
        %v5847 = vcvt.s32.f32 %v3351
        %v5848 = vcvt.s32.f32 %v3352
        %v5849 = vcvt.s32.f32 %v3353
        %v5850 = vcvt.s32.f32 %v3354
        %v5851 = vcvt.s32.f32 %v3355
        %v5852 = vcvt.s32.f32 %v3356
        %v5853 = vcvt.s32.f32 %v3357
        %v5854 = vcvt.s32.f32 %v3358
        %v5855 = vcvt.s32.f32 %v3359
        %v5856 = vcvt.s32.f32 %v3360
        %v5857 = vcvt.s32.f32 %v3361
        %v5858 = vcvt.s32.f32 %v3362
        %v5859 = vcvt.s32.f32 %v3363
        %v5860 = vcvt.s32.f32 %v3364
        %v5861 = vcvt.s32.f32 %v3365
        %v5862 = vcvt.s32.f32 %v3366
        %v5863 = vcvt.s32.f32 %v3367
        %v5864 = vcvt.s32.f32 %v3368
        %v5865 = vcvt.s32.f32 %v3369
        %v5866 = vcvt.s32.f32 %v3370
        %v5867 = vcvt.s32.f32 %v3371
        %v5868 = vcvt.s32.f32 %v3372
        %v5869 = vcvt.s32.f32 %v3373
        %v5870 = vcvt.s32.f32 %v3374
        %v5871 = vcvt.s32.f32 %v3375
        %v5872 = vcvt.s32.f32 %v3376
        %v5873 = vcvt.s32.f32 %v3377
        %v5874 = vcvt.s32.f32 %v3378
        %v5875 = vcvt.s32.f32 %v3379
        %v5876 = vcvt.s32.f32 %v3380
        %v5877 = vcvt.s32.f32 %v3381
        %v5878 = vcvt.s32.f32 %v3382
        %v5879 = vcvt.s32.f32 %v3383
        %v5880 = vcvt.s32.f32 %v3384
        %v5881 = vcvt.s32.f32 %v3385
        %v5882 = vcvt.s32.f32 %v3386
        %v5883 = vcvt.s32.f32 %v3387
        %v5884 = vcvt.s32.f32 %v3388
        %v5885 = vcvt.s32.f32 %v3389
        %v5886 = vcvt.s32.f32 %v3390
        %v5887 = vcvt.s32.f32 %v3391
        %v5888 = vcvt.s32.f32 %v3392
        %v5889 = vcvt.s32.f32 %v3393
        %v5890 = vcvt.s32.f32 %v3394
        %v5891 = vcvt.s32.f32 %v3395
        %v5892 = vcvt.s32.f32 %v3396
        %v5893 = vcvt.s32.f32 %v3397
        %v5894 = vcvt.s32.f32 %v3398
        %v5895 = vcvt.s32.f32 %v3399
        %v5896 = vcvt.s32.f32 %v3400
        %v5897 = vcvt.s32.f32 %v3401
        %v5898 = vcvt.s32.f32 %v3402
        %v5899 = vcvt.s32.f32 %v3403
        %v5900 = vcvt.s32.f32 %v3404
        %v5901 = vcvt.s32.f32 %v3405
        %v5902 = vcvt.s32.f32 %v3406
        %v5903 = vcvt.s32.f32 %v3407
        %v5904 = vcvt.s32.f32 %v3408
        %v5905 = vcvt.s32.f32 %v3409
        %v5906 = vcvt.s32.f32 %v3410
        %v5907 = vcvt.s32.f32 %v3411
        %v5908 = vcvt.s32.f32 %v3412
        %v5909 = vcvt.s32.f32 %v3413
        %v5910 = vcvt.s32.f32 %v3414
        %v5911 = vcvt.s32.f32 %v3415
        %v5912 = vcvt.s32.f32 %v3416
        %v5913 = vcvt.s32.f32 %v3417
        %v5914 = vcvt.s32.f32 %v3418
        %v5915 = vcvt.s32.f32 %v3419
        %v5916 = vcvt.s32.f32 %v3420
        %v5917 = vcvt.s32.f32 %v3421
        %v5918 = vcvt.s32.f32 %v3422
        %v5919 = vcvt.s32.f32 %v3423
        %v5920 = vcvt.s32.f32 %v3424
        %v5921 = vcvt.s32.f32 %v3425
        %v5922 = vcvt.s32.f32 %v3426
        %v5923 = vcvt.s32.f32 %v3427
        %v5924 = vcvt.s32.f32 %v3428
        %v5925 = vcvt.s32.f32 %v3429
        %v5926 = vcvt.s32.f32 %v3430
        %v5927 = vcvt.s32.f32 %v3431
        %v5928 = vcvt.s32.f32 %v3432
        %v5929 = vcvt.s32.f32 %v3433
        %v5930 = vcvt.s32.f32 %v3434
        %v5931 = vcvt.s32.f32 %v3435
        %v5932 = vcvt.s32.f32 %v3436
        %v5933 = vcvt.s32.f32 %v3437
        %v5934 = vcvt.s32.f32 %v3438
        %v5935 = vcvt.s32.f32 %v3439
        %v5936 = vcvt.s32.f32 %v3440
        %v5937 = vcvt.s32.f32 %v3441
        %v5938 = vcvt.s32.f32 %v3442
        %v5939 = vcvt.s32.f32 %v3443
        %v5940 = vcvt.s32.f32 %v3444
        %v5941 = vcvt.s32.f32 %v3445
        %v5942 = vcvt.s32.f32 %v3446
        %v5943 = vcvt.s32.f32 %v3447
        %v5944 = vcvt.s32.f32 %v3448
        %v5945 = vcvt.s32.f32 %v3449
        %v5946 = vcvt.s32.f32 %v3450
        %v5947 = vcvt.s32.f32 %v3451
        %v5948 = vcvt.s32.f32 %v3452
        %v5949 = vcvt.s32.f32 %v3453
        %v5950 = vcvt.s32.f32 %v3454
        %v5951 = vcvt.s32.f32 %v3455
        %v5952 = vcvt.s32.f32 %v3456
        %v5953 = vcvt.s32.f32 %v3457
        %v5954 = vcvt.s32.f32 %v3458
        %v5955 = vcvt.s32.f32 %v3459
        %v5956 = vcvt.s32.f32 %v3460
        %v5957 = vcvt.s32.f32 %v3461
        %v5958 = vcvt.s32.f32 %v3462
        %v5959 = vcvt.s32.f32 %v3463
        %v5960 = vcvt.s32.f32 %v3464
        %v5961 = vcvt.s32.f32 %v3465
        %v5962 = vcvt.s32.f32 %v3466
        %v5963 = vcvt.s32.f32 %v3467
        %v5964 = vpack.c.bf16 %v3472, %v3468
        %v5965 = vpack.c.bf16 %v3473, %v3469
        %v5966 = vpack.c.bf16 %v3474, %v3470
        %v5967 = vpack.c.bf16 %v3475, %v3471
        %v5968 = vpack.c.bf16 %v3480, %v3476
        %v5969 = vpack.c.bf16 %v3481, %v3477
        %v5970 = vpack.c.bf16 %v3482, %v3478
        %v5971 = vpack.c.bf16 %v3483, %v3479
        %v5972 = vpack.c.bf16 %v3488, %v3484
        %v5973 = vpack.c.bf16 %v3489, %v3485
        %v5974 = vpack.c.bf16 %v3490, %v3486
        %v5975 = vpack.c.bf16 %v3491, %v3487
        %v5976 = vpack.c.bf16 %v3496, %v3492
        %v5977 = vpack.c.bf16 %v3497, %v3493
        %v5978 = vpack.c.bf16 %v3498, %v3494
        %v5979 = vpack.c.bf16 %v3499, %v3495
        %v5980 = vpack.c.bf16 %v3504, %v3500
        %v5981 = vpack.c.bf16 %v3505, %v3501
        %v5982 = vpack.c.bf16 %v3506, %v3502
        %v5983 = vpack.c.bf16 %v3507, %v3503
        %v5984 = vpack.c.bf16 %v3512, %v3508
        %v5985 = vpack.c.bf16 %v3513, %v3509
        %v5986 = vpack.c.bf16 %v3514, %v3510
        %v5987 = vpack.c.bf16 %v3515, %v3511
        %v5988 = vpack.c.bf16 %v3520, %v3516
        %v5989 = vpack.c.bf16 %v3521, %v3517
        %v5990 = vpack.c.bf16 %v3522, %v3518
        %v5991 = vpack.c.bf16 %v3523, %v3519
        %v5992 = vpack.c.bf16 %v3528, %v3524
        %v5993 = vpack.c.bf16 %v3529, %v3525
        %v5994 = vpack.c.bf16 %v3530, %v3526
        %v5995 = vpack.c.bf16 %v3531, %v3527
        %v5996 = vpack.c.bf16 %v3536, %v3532
        %v5997 = vpack.c.bf16 %v3537, %v3533
        %v5998 = vpack.c.bf16 %v3538, %v3534
        %v5999 = vpack.c.bf16 %v3539, %v3535
        %v6000 = vpack.c.bf16 %v3544, %v3540
        %v6001 = vpack.c.bf16 %v3545, %v3541
        %v6002 = vpack.c.bf16 %v3546, %v3542
        %v6003 = vpack.c.bf16 %v3547, %v3543
        %v6004 = vpack.c.bf16 %v3552, %v3548
        %v6005 = vpack.c.bf16 %v3553, %v3549
        %v6006 = vpack.c.bf16 %v3554, %v3550
        %v6007 = vpack.c.bf16 %v3555, %v3551
        %v6008 = vpack.c.bf16 %v3560, %v3556
        %v6009 = vpack.c.bf16 %v3561, %v3557
        %v6010 = vpack.c.bf16 %v3562, %v3558
        %v6011 = vpack.c.bf16 %v3563, %v3559
        %v6012 = vpack.c.bf16 %v3568, %v3564
        %v6013 = vpack.c.bf16 %v3569, %v3565
        %v6014 = vpack.c.bf16 %v3570, %v3566
        %v6015 = vpack.c.bf16 %v3571, %v3567
        %v6016 = vpack.c.bf16 %v3576, %v3572
        %v6017 = vpack.c.bf16 %v3577, %v3573
        %v6018 = vpack.c.bf16 %v3578, %v3574
        %v6019 = vpack.c.bf16 %v3579, %v3575
        %v6020 = vpack.c.bf16 %v3584, %v3580
        %v6021 = vpack.c.bf16 %v3585, %v3581
        %v6022 = vpack.c.bf16 %v3586, %v3582
        %v6023 = vpack.c.bf16 %v3587, %v3583
        %v6024 = vpack.c.bf16 %v3592, %v3588
        %v6025 = vpack.c.bf16 %v3593, %v3589
        %v6026 = vpack.c.bf16 %v3594, %v3590
        %v6027 = vpack.c.bf16 %v3595, %v3591
        %v6028 = vpack.c.bf16 %v3600, %v3596
        %v6029 = vpack.c.bf16 %v3601, %v3597
        %v6030 = vpack.c.bf16 %v3602, %v3598
        %v6031 = vpack.c.bf16 %v3603, %v3599
        %v6032 = vpack.c.bf16 %v3608, %v3604
        %v6033 = vpack.c.bf16 %v3609, %v3605
        %v6034 = vpack.c.bf16 %v3610, %v3606
        %v6035 = vpack.c.bf16 %v3611, %v3607
        %v6036 = vpack.c.bf16 %v3616, %v3612
        %v6037 = vpack.c.bf16 %v3617, %v3613
        %v6038 = vpack.c.bf16 %v3618, %v3614
        %v6039 = vpack.c.bf16 %v3619, %v3615
        %v6040 = vpack.c.bf16 %v3624, %v3620
        %v6041 = vpack.c.bf16 %v3625, %v3621
        %v6042 = vpack.c.bf16 %v3626, %v3622
        %v6043 = vpack.c.bf16 %v3627, %v3623
        %v6044 = vpack.c.bf16 %v3632, %v3628
        %v6045 = vpack.c.bf16 %v3633, %v3629
        %v6046 = vpack.c.bf16 %v3634, %v3630
        %v6047 = vpack.c.bf16 %v3635, %v3631
        %v6048 = vpack.c.bf16 %v3640, %v3636
        %v6049 = vpack.c.bf16 %v3641, %v3637
        %v6050 = vpack.c.bf16 %v3642, %v3638
        %v6051 = vpack.c.bf16 %v3643, %v3639
        %v6052 = vpack.c.bf16 %v3648, %v3644
        %v6053 = vpack.c.bf16 %v3649, %v3645
        %v6054 = vpack.c.bf16 %v3650, %v3646
        %v6055 = vpack.c.bf16 %v3651, %v3647
        %v6056 = vpack.c.bf16 %v3656, %v3652
        %v6057 = vpack.c.bf16 %v3657, %v3653
        %v6058 = vpack.c.bf16 %v3658, %v3654
        %v6059 = vpack.c.bf16 %v3659, %v3655
        %v6060 = vpack.c.bf16 %v3664, %v3660
        %v6061 = vpack.c.bf16 %v3665, %v3661
        %v6062 = vpack.c.bf16 %v3666, %v3662
        %v6063 = vpack.c.bf16 %v3667, %v3663
        %v6064 = vpack.c.bf16 %v3672, %v3668
        %v6065 = vpack.c.bf16 %v3673, %v3669
        %v6066 = vpack.c.bf16 %v3674, %v3670
        %v6067 = vpack.c.bf16 %v3675, %v3671
        %v6068 = vpack.c.bf16 %v3680, %v3676
        %v6069 = vpack.c.bf16 %v3681, %v3677
        %v6070 = vpack.c.bf16 %v3682, %v3678
        %v6071 = vpack.c.bf16 %v3683, %v3679
        %v6072 = vpack.c.bf16 %v3688, %v3684
        %v6073 = vpack.c.bf16 %v3689, %v3685
        %v6074 = vpack.c.bf16 %v3690, %v3686
        %v6075 = vpack.c.bf16 %v3691, %v3687
        %v6076 = vpack.c.bf16 %v3696, %v3692
        %v6077 = vpack.c.bf16 %v3697, %v3693
        %v6078 = vpack.c.bf16 %v3698, %v3694
        %v6079 = vpack.c.bf16 %v3699, %v3695
        %v6080 = vpack.c.bf16 %v3704, %v3700
        %v6081 = vpack.c.bf16 %v3705, %v3701
        %v6082 = vpack.c.bf16 %v3706, %v3702
        %v6083 = vpack.c.bf16 %v3707, %v3703
        %v6084 = vpack.c.bf16 %v3712, %v3708
        %v6085 = vpack.c.bf16 %v3713, %v3709
        %v6086 = vpack.c.bf16 %v3714, %v3710
        %v6087 = vpack.c.bf16 %v3715, %v3711
        %v6088 = vpack.c.bf16 %v3720, %v3716
        %v6089 = vpack.c.bf16 %v3721, %v3717
        %v6090 = vpack.c.bf16 %v3722, %v3718
        %v6091 = vpack.c.bf16 %v3723, %v3719
        %v6092 = vpack.c.bf16 %v3728, %v3724
        %v6093 = vpack.c.bf16 %v3729, %v3725
        %v6094 = vpack.c.bf16 %v3730, %v3726
        %v6095 = vpack.c.bf16 %v3731, %v3727
        %v6096 = vpack.c.bf16 %v3736, %v3732
        %v6097 = vpack.c.bf16 %v3737, %v3733
        %v6098 = vpack.c.bf16 %v3738, %v3734
        %v6099 = vpack.c.bf16 %v3739, %v3735
        %v6100 = vpack.c.bf16 %v3744, %v3740
        %v6101 = vpack.c.bf16 %v3745, %v3741
        %v6102 = vpack.c.bf16 %v3746, %v3742
        %v6103 = vpack.c.bf16 %v3747, %v3743
        %v6104 = vpack.c.bf16 %v3752, %v3748
        %v6105 = vpack.c.bf16 %v3753, %v3749
        %v6106 = vpack.c.bf16 %v3754, %v3750
        %v6107 = vpack.c.bf16 %v3755, %v3751
        %v6108 = vpack.c.bf16 %v3760, %v3756
        %v6109 = vpack.c.bf16 %v3761, %v3757
        %v6110 = vpack.c.bf16 %v3762, %v3758
        %v6111 = vpack.c.bf16 %v3763, %v3759
        %v6112 = vpack.c.bf16 %v3768, %v3764
        %v6113 = vpack.c.bf16 %v3769, %v3765
        %v6114 = vpack.c.bf16 %v3770, %v3766
        %v6115 = vpack.c.bf16 %v3771, %v3767
        %v6116 = vpack.c.bf16 %v3776, %v3772
        %v6117 = vpack.c.bf16 %v3777, %v3773
        %v6118 = vpack.c.bf16 %v3778, %v3774
        %v6119 = vpack.c.bf16 %v3779, %v3775
        %v6120 = vpack.c.bf16 %v3784, %v3780
        %v6121 = vpack.c.bf16 %v3785, %v3781
        %v6122 = vpack.c.bf16 %v3786, %v3782
        %v6123 = vpack.c.bf16 %v3787, %v3783
        %v6124 = vpack.c.bf16 %v3792, %v3788
        %v6125 = vpack.c.bf16 %v3793, %v3789
        %v6126 = vpack.c.bf16 %v3794, %v3790
        %v6127 = vpack.c.bf16 %v3795, %v3791
        %v6128 = vpack.c.bf16 %v3800, %v3796
        %v6129 = vpack.c.bf16 %v3801, %v3797
        %v6130 = vpack.c.bf16 %v3802, %v3798
        %v6131 = vpack.c.bf16 %v3803, %v3799
        %v6132 = vpack.c.bf16 %v3808, %v3804
        %v6133 = vpack.c.bf16 %v3809, %v3805
        %v6134 = vpack.c.bf16 %v3810, %v3806
        %v6135 = vpack.c.bf16 %v3811, %v3807
        %v6136 = vpack.c.bf16 %v3816, %v3812
        %v6137 = vpack.c.bf16 %v3817, %v3813
        %v6138 = vpack.c.bf16 %v3818, %v3814
        %v6139 = vpack.c.bf16 %v3819, %v3815
        %v6140 = vpack.c.bf16 %v3824, %v3820
        %v6141 = vpack.c.bf16 %v3825, %v3821
        %v6142 = vpack.c.bf16 %v3826, %v3822
        %v6143 = vpack.c.bf16 %v3827, %v3823
        %v6144 = vpack.c.bf16 %v3832, %v3828
        %v6145 = vpack.c.bf16 %v3833, %v3829
        %v6146 = vpack.c.bf16 %v3834, %v3830
        %v6147 = vpack.c.bf16 %v3835, %v3831
        %v6148 = vpack.c.bf16 %v3840, %v3836
        %v6149 = vpack.c.bf16 %v3841, %v3837
        %v6150 = vpack.c.bf16 %v3842, %v3838
        %v6151 = vpack.c.bf16 %v3843, %v3839
        %v6152 = vpack.c.bf16 %v3848, %v3844
        %v6153 = vpack.c.bf16 %v3849, %v3845
        %v6154 = vpack.c.bf16 %v3850, %v3846
        %v6155 = vpack.c.bf16 %v3851, %v3847
        %v6156 = vpack.c.bf16 %v3856, %v3852
        %v6157 = vpack.c.bf16 %v3857, %v3853
        %v6158 = vpack.c.bf16 %v3858, %v3854
        %v6159 = vpack.c.bf16 %v3859, %v3855
        %v6160 = vpack.c.bf16 %v3864, %v3860
        %v6161 = vpack.c.bf16 %v3865, %v3861
        %v6162 = vpack.c.bf16 %v3866, %v3862
        %v6163 = vpack.c.bf16 %v3867, %v3863
        %v6164 = vpack.c.bf16 %v3872, %v3868
        %v6165 = vpack.c.bf16 %v3873, %v3869
        %v6166 = vpack.c.bf16 %v3874, %v3870
        %v6167 = vpack.c.bf16 %v3875, %v3871
        %v6168 = vpack.c.bf16 %v3880, %v3876
        %v6169 = vpack.c.bf16 %v3881, %v3877
        %v6170 = vpack.c.bf16 %v3882, %v3878
        %v6171 = vpack.c.bf16 %v3883, %v3879
        %v6172 = vpack.c.bf16 %v3888, %v3884
        %v6173 = vpack.c.bf16 %v3889, %v3885
        %v6174 = vpack.c.bf16 %v3890, %v3886
        %v6175 = vpack.c.bf16 %v3891, %v3887
        %v6176 = vpack.c.bf16 %v3896, %v3892
        %v6177 = vpack.c.bf16 %v3897, %v3893
        %v6178 = vpack.c.bf16 %v3898, %v3894
        %v6179 = vpack.c.bf16 %v3899, %v3895
        %v6180 = vpack.c.bf16 %v3904, %v3900
        %v6181 = vpack.c.bf16 %v3905, %v3901
        %v6182 = vpack.c.bf16 %v3906, %v3902
        %v6183 = vpack.c.bf16 %v3907, %v3903
        %v6184 = vpack.c.bf16 %v3912, %v3908
        %v6185 = vpack.c.bf16 %v3913, %v3909
        %v6186 = vpack.c.bf16 %v3914, %v3910
        %v6187 = vpack.c.bf16 %v3915, %v3911
        %v6188 = vpack.c.bf16 %v3920, %v3916
        %v6189 = vpack.c.bf16 %v3921, %v3917
        %v6190 = vpack.c.bf16 %v3922, %v3918
        %v6191 = vpack.c.bf16 %v3923, %v3919
        %v6192 = vpack.c.bf16 %v3928, %v3924
        %v6193 = vpack.c.bf16 %v3929, %v3925
        %v6194 = vpack.c.bf16 %v3930, %v3926
        %v6195 = vpack.c.bf16 %v3931, %v3927
        %v6196 = vpack.c.bf16 %v3936, %v3932
        %v6197 = vpack.c.bf16 %v3937, %v3933
        %v6198 = vpack.c.bf16 %v3938, %v3934
        %v6199 = vpack.c.bf16 %v3939, %v3935
        %v6200 = vpack.c.bf16 %v3944, %v3940
        %v6201 = vpack.c.bf16 %v3945, %v3941
        %v6202 = vpack.c.bf16 %v3946, %v3942
        %v6203 = vpack.c.bf16 %v3947, %v3943
        %v6204 = vpack.c.bf16 %v3952, %v3948
        %v6205 = vpack.c.bf16 %v3953, %v3949
        %v6206 = vpack.c.bf16 %v3954, %v3950
        %v6207 = vpack.c.bf16 %v3955, %v3951
        %v6208 = vpack.c.bf16 %v3960, %v3956
        %v6209 = vpack.c.bf16 %v3961, %v3957
        %v6210 = vpack.c.bf16 %v3962, %v3958
        %v6211 = vpack.c.bf16 %v3963, %v3959
        %v6212 = vpack.c.bf16 %v3968, %v3964
        %v6213 = vpack.c.bf16 %v3969, %v3965
        %v6214 = vpack.c.bf16 %v3970, %v3966
        %v6215 = vpack.c.bf16 %v3971, %v3967
        %v6216 = vpack.c.bf16 %v3976, %v3972
        %v6217 = vpack.c.bf16 %v3977, %v3973
        %v6218 = vpack.c.bf16 %v3978, %v3974
        %v6219 = vpack.c.bf16 %v3979, %v3975
        %v6220 = vpack.c.bf16 %v3984, %v3980
        %v6221 = vpack.c.bf16 %v3985, %v3981
        %v6222 = vpack.c.bf16 %v3986, %v3982
        %v6223 = vpack.c.bf16 %v3987, %v3983
        %v6224 = vpack.c.bf16 %v3992, %v3988
        %v6225 = vpack.c.bf16 %v3993, %v3989
        %v6226 = vpack.c.bf16 %v3994, %v3990
        %v6227 = vpack.c.bf16 %v3995, %v3991
        %v6228 = vpack.c.bf16 %v4000, %v3996
        %v6229 = vpack.c.bf16 %v4001, %v3997
        %v6230 = vpack.c.bf16 %v4002, %v3998
        %v6231 = vpack.c.bf16 %v4003, %v3999
        %v6232 = vpack.c.bf16 %v4008, %v4004
        %v6233 = vpack.c.bf16 %v4009, %v4005
        %v6234 = vpack.c.bf16 %v4010, %v4006
        %v6235 = vpack.c.bf16 %v4011, %v4007
        %v6236 = vpack.c.bf16 %v4016, %v4012
        %v6237 = vpack.c.bf16 %v4017, %v4013
        %v6238 = vpack.c.bf16 %v4018, %v4014
        %v6239 = vpack.c.bf16 %v4019, %v4015
        %v6240 = vpack.c.bf16 %v4024, %v4020
        %v6241 = vpack.c.bf16 %v4025, %v4021
        %v6242 = vpack.c.bf16 %v4026, %v4022
        %v6243 = vpack.c.bf16 %v4027, %v4023
        %v6244 = vpack.c.bf16 %v4032, %v4028
        %v6245 = vpack.c.bf16 %v4033, %v4029
        %v6246 = vpack.c.bf16 %v4034, %v4030
        %v6247 = vpack.c.bf16 %v4035, %v4031
        %v6248 = vpack.c.bf16 %v4040, %v4036
        %v6249 = vpack.c.bf16 %v4041, %v4037
        %v6250 = vpack.c.bf16 %v4042, %v4038
        %v6251 = vpack.c.bf16 %v4043, %v4039
        %v6252 = vpack.c.bf16 %v4048, %v4044
        %v6253 = vpack.c.bf16 %v4049, %v4045
        %v6254 = vpack.c.bf16 %v4050, %v4046
        %v6255 = vpack.c.bf16 %v4051, %v4047
        %v6256 = vpack.c.bf16 %v4056, %v4052
        %v6257 = vpack.c.bf16 %v4057, %v4053
        %v6258 = vpack.c.bf16 %v4058, %v4054
        %v6259 = vpack.c.bf16 %v4059, %v4055
        %v6260 = vpack.c.bf16 %v4064, %v4060
        %v6261 = vpack.c.bf16 %v4065, %v4061
        %v6262 = vpack.c.bf16 %v4066, %v4062
        %v6263 = vpack.c.bf16 %v4067, %v4063
        %v6264 = vpack.c.bf16 %v4072, %v4068
        %v6265 = vpack.c.bf16 %v4073, %v4069
        %v6266 = vpack.c.bf16 %v4074, %v4070
        %v6267 = vpack.c.bf16 %v4075, %v4071
        %v6268 = vpack.c.bf16 %v4080, %v4076
        %v6269 = vpack.c.bf16 %v4081, %v4077
        %v6270 = vpack.c.bf16 %v4082, %v4078
        %v6271 = vpack.c.bf16 %v4083, %v4079
        %v6272 = vpack.c.bf16 %v4088, %v4084
        %v6273 = vpack.c.bf16 %v4089, %v4085
        %v6274 = vpack.c.bf16 %v4090, %v4086
        %v6275 = vpack.c.bf16 %v4091, %v4087
        %v6276 = vpack.c.bf16 %v4096, %v4092
        %v6277 = vpack.c.bf16 %v4097, %v4093
        %v6278 = vpack.c.bf16 %v4098, %v4094
        %v6279 = vpack.c.bf16 %v4099, %v4095
        %v6280 = vpack.c.bf16 %v4104, %v4100
        %v6281 = vpack.c.bf16 %v4105, %v4101
        %v6282 = vpack.c.bf16 %v4106, %v4102
        %v6283 = vpack.c.bf16 %v4107, %v4103
        %v6284 = vpack.c.bf16 %v4112, %v4108
        %v6285 = vpack.c.bf16 %v4113, %v4109
        %v6286 = vpack.c.bf16 %v4114, %v4110
        %v6287 = vpack.c.bf16 %v4115, %v4111
        %v6288 = vpack.c.bf16 %v4120, %v4116
        %v6289 = vpack.c.bf16 %v4121, %v4117
        %v6290 = vpack.c.bf16 %v4122, %v4118
        %v6291 = vpack.c.bf16 %v4123, %v4119
        %v6292 = vpack.c.bf16 %v4128, %v4124
        %v6293 = vpack.c.bf16 %v4129, %v4125
        %v6294 = vpack.c.bf16 %v4130, %v4126
        %v6295 = vpack.c.bf16 %v4131, %v4127
        %v6296 = vpack.c.bf16 %v4136, %v4132
        %v6297 = vpack.c.bf16 %v4137, %v4133
        %v6298 = vpack.c.bf16 %v4138, %v4134
        %v6299 = vpack.c.bf16 %v4139, %v4135
        %v6300 = vpack.c.bf16 %v4144, %v4140
        %v6301 = vpack.c.bf16 %v4145, %v4141
        %v6302 = vpack.c.bf16 %v4146, %v4142
        %v6303 = vpack.c.bf16 %v4147, %v4143
        %v6304 = vpack.c.bf16 %v4152, %v4148
        %v6305 = vpack.c.bf16 %v4153, %v4149
        %v6306 = vpack.c.bf16 %v4154, %v4150
        %v6307 = vpack.c.bf16 %v4155, %v4151
        %v6308 = vpack.c.bf16 %v4160, %v4156
        %v6309 = vpack.c.bf16 %v4161, %v4157
        %v6310 = vpack.c.bf16 %v4162, %v4158
        %v6311 = vpack.c.bf16 %v4163, %v4159
        %v6312 = vpack.c.bf16 %v4168, %v4164
        %v6313 = vpack.c.bf16 %v4169, %v4165
        %v6314 = vpack.c.bf16 %v4170, %v4166
        %v6315 = vpack.c.bf16 %v4171, %v4167
        %v6316 = vpack.c.bf16 %v4176, %v4172
        %v6317 = vpack.c.bf16 %v4177, %v4173
        %v6318 = vpack.c.bf16 %v4178, %v4174
        %v6319 = vpack.c.bf16 %v4179, %v4175
        %v6320 = vpack.c.bf16 %v4184, %v4180
        %v6321 = vpack.c.bf16 %v4185, %v4181
        %v6322 = vpack.c.bf16 %v4186, %v4182
        %v6323 = vpack.c.bf16 %v4187, %v4183
        %v6324 = vpack.c.bf16 %v4192, %v4188
        %v6325 = vpack.c.bf16 %v4193, %v4189
        %v6326 = vpack.c.bf16 %v4194, %v4190
        %v6327 = vpack.c.bf16 %v4195, %v4191
        %v6328 = vpack.c.bf16 %v4200, %v4196
        %v6329 = vpack.c.bf16 %v4201, %v4197
        %v6330 = vpack.c.bf16 %v4202, %v4198
        %v6331 = vpack.c.bf16 %v4203, %v4199
        %v6332 = vpack.c.bf16 %v4208, %v4204
        %v6333 = vpack.c.bf16 %v4209, %v4205
        %v6334 = vpack.c.bf16 %v4210, %v4206
        %v6335 = vpack.c.bf16 %v4211, %v4207
        %v6336 = vpack.c.bf16 %v4216, %v4212
        %v6337 = vpack.c.bf16 %v4217, %v4213
        %v6338 = vpack.c.bf16 %v4218, %v4214
        %v6339 = vpack.c.bf16 %v4219, %v4215
        %v6340 = vpack.c.bf16 %v4224, %v4220
        %v6341 = vpack.c.bf16 %v4225, %v4221
        %v6342 = vpack.c.bf16 %v4226, %v4222
        %v6343 = vpack.c.bf16 %v4227, %v4223
        %v6344 = vpack.c.bf16 %v4232, %v4228
        %v6345 = vpack.c.bf16 %v4233, %v4229
        %v6346 = vpack.c.bf16 %v4234, %v4230
        %v6347 = vpack.c.bf16 %v4235, %v4231
        %v6348 = vpack.c.bf16 %v4240, %v4236
        %v6349 = vpack.c.bf16 %v4241, %v4237
        %v6350 = vpack.c.bf16 %v4242, %v4238
        %v6351 = vpack.c.bf16 %v4243, %v4239
        %v6352 = vpack.c.bf16 %v4248, %v4244
        %v6353 = vpack.c.bf16 %v4249, %v4245
        %v6354 = vpack.c.bf16 %v4250, %v4246
        %v6355 = vpack.c.bf16 %v4251, %v4247
        %v6356 = vpack.c.bf16 %v4256, %v4252
        %v6357 = vpack.c.bf16 %v4257, %v4253
        %v6358 = vpack.c.bf16 %v4258, %v4254
        %v6359 = vpack.c.bf16 %v4259, %v4255
        %v6360 = vpack.c.bf16 %v4264, %v4260
        %v6361 = vpack.c.bf16 %v4265, %v4261
        %v6362 = vpack.c.bf16 %v4266, %v4262
        %v6363 = vpack.c.bf16 %v4267, %v4263
        %v6364 = vpack.c.bf16 %v4272, %v4268
        %v6365 = vpack.c.bf16 %v4273, %v4269
        %v6366 = vpack.c.bf16 %v4274, %v4270
        %v6367 = vpack.c.bf16 %v4275, %v4271
        %v6368 = vpack.c.bf16 %v4280, %v4276
        %v6369 = vpack.c.bf16 %v4281, %v4277
        %v6370 = vpack.c.bf16 %v4282, %v4278
        %v6371 = vpack.c.bf16 %v4283, %v4279
        %v6372 = vpack.c.bf16 %v4288, %v4284
        %v6373 = vpack.c.bf16 %v4289, %v4285
        %v6374 = vpack.c.bf16 %v4290, %v4286
        %v6375 = vpack.c.bf16 %v4291, %v4287
        %v6376 = vpack.c.bf16 %v4296, %v4292
        %v6377 = vpack.c.bf16 %v4297, %v4293
        %v6378 = vpack.c.bf16 %v4298, %v4294
        %v6379 = vpack.c.bf16 %v4299, %v4295
        %v6380 = vpack.c.bf16 %v4304, %v4300
        %v6381 = vpack.c.bf16 %v4305, %v4301
        %v6382 = vpack.c.bf16 %v4306, %v4302
        %v6383 = vpack.c.bf16 %v4307, %v4303
        %v6384 = vpack.c.bf16 %v4312, %v4308
        %v6385 = vpack.c.bf16 %v4313, %v4309
        %v6386 = vpack.c.bf16 %v4314, %v4310
        %v6387 = vpack.c.bf16 %v4315, %v4311
        %v6388 = vpack.c.bf16 %v4320, %v4316
        %v6389 = vpack.c.bf16 %v4321, %v4317
        %v6390 = vpack.c.bf16 %v4322, %v4318
        %v6391 = vpack.c.bf16 %v4323, %v4319
        %v6392 = vpack.c.bf16 %v4328, %v4324
        %v6393 = vpack.c.bf16 %v4329, %v4325
        %v6394 = vpack.c.bf16 %v4330, %v4326
        %v6395 = vpack.c.bf16 %v4331, %v4327
        %v6396 = vpack.c.bf16 %v4336, %v4332
        %v6397 = vpack.c.bf16 %v4337, %v4333
        %v6398 = vpack.c.bf16 %v4338, %v4334
        %v6399 = vpack.c.bf16 %v4339, %v4335
        %v6400 = vpack.c.bf16 %v4344, %v4340
        %v6401 = vpack.c.bf16 %v4345, %v4341
        %v6402 = vpack.c.bf16 %v4346, %v4342
        %v6403 = vpack.c.bf16 %v4347, %v4343
        %v6404 = vpack.c.bf16 %v4352, %v4348
        %v6405 = vpack.c.bf16 %v4353, %v4349
        %v6406 = vpack.c.bf16 %v4354, %v4350
        %v6407 = vpack.c.bf16 %v4355, %v4351
        %v6408 = vpack.c.bf16 %v4360, %v4356
        %v6409 = vpack.c.bf16 %v4361, %v4357
        %v6410 = vpack.c.bf16 %v4362, %v4358
        %v6411 = vpack.c.bf16 %v4363, %v4359
        %v6412 = vpack.c.bf16 %v4368, %v4364
        %v6413 = vpack.c.bf16 %v4369, %v4365
        %v6414 = vpack.c.bf16 %v4370, %v4366
        %v6415 = vpack.c.bf16 %v4371, %v4367
        %v6416 = vpack.c.bf16 %v4376, %v4372
        %v6417 = vpack.c.bf16 %v4377, %v4373
        %v6418 = vpack.c.bf16 %v4378, %v4374
        %v6419 = vpack.c.bf16 %v4379, %v4375
        %v6420 = vpack.c.bf16 %v4384, %v4380
        %v6421 = vpack.c.bf16 %v4385, %v4381
        %v6422 = vpack.c.bf16 %v4386, %v4382
        %v6423 = vpack.c.bf16 %v4387, %v4383
        %v6424 = vpack.c.bf16 %v4392, %v4388
        %v6425 = vpack.c.bf16 %v4393, %v4389
        %v6426 = vpack.c.bf16 %v4394, %v4390
        %v6427 = vpack.c.bf16 %v4395, %v4391
        %v6428 = vpack.c.bf16 %v4400, %v4396
        %v6429 = vpack.c.bf16 %v4401, %v4397
        %v6430 = vpack.c.bf16 %v4402, %v4398
        %v6431 = vpack.c.bf16 %v4403, %v4399
        %v6432 = vpack.c.bf16 %v4408, %v4404
        %v6433 = vpack.c.bf16 %v4409, %v4405
        %v6434 = vpack.c.bf16 %v4410, %v4406
        %v6435 = vpack.c.bf16 %v4411, %v4407
        %v6436 = vpack.c.bf16 %v4416, %v4412
        %v6437 = vpack.c.bf16 %v4417, %v4413
        %v6438 = vpack.c.bf16 %v4418, %v4414
        %v6439 = vpack.c.bf16 %v4419, %v4415
        %v6440 = vpack.c.bf16 %v4424, %v4420
        %v6441 = vpack.c.bf16 %v4425, %v4421
        %v6442 = vpack.c.bf16 %v4426, %v4422
        %v6443 = vpack.c.bf16 %v4427, %v4423
        %v6444 = vpack.c.bf16 %v4432, %v4428
        %v6445 = vpack.c.bf16 %v4433, %v4429
        %v6446 = vpack.c.bf16 %v4434, %v4430
        %v6447 = vpack.c.bf16 %v4435, %v4431
        %v6448 = vpack.c.bf16 %v4440, %v4436
        %v6449 = vpack.c.bf16 %v4441, %v4437
        %v6450 = vpack.c.bf16 %v4442, %v4438
        %v6451 = vpack.c.bf16 %v4443, %v4439
        %v6452 = vpack.c.bf16 %v4448, %v4444
        %v6453 = vpack.c.bf16 %v4449, %v4445
        %v6454 = vpack.c.bf16 %v4450, %v4446
        %v6455 = vpack.c.bf16 %v4451, %v4447
        %v6456 = vpack.c.bf16 %v4456, %v4452
        %v6457 = vpack.c.bf16 %v4457, %v4453
        %v6458 = vpack.c.bf16 %v4458, %v4454
        %v6459 = vpack.c.bf16 %v4459, %v4455
        %v6460 = vpack.c.bf16 %v4464, %v4460
        %v6461 = vpack.c.bf16 %v4465, %v4461
        %v6462 = vpack.c.bf16 %v4466, %v4462
        %v6463 = vpack.c.bf16 %v4467, %v4463
        %v6464 = vpack.c.bf16 %v4472, %v4468
        %v6465 = vpack.c.bf16 %v4473, %v4469
        %v6466 = vpack.c.bf16 %v4474, %v4470
        %v6467 = vpack.c.bf16 %v4475, %v4471
        %v6468 = vpack.c.bf16 %v4480, %v4476
        %v6469 = vpack.c.bf16 %v4481, %v4477
        %v6470 = vpack.c.bf16 %v4482, %v4478
        %v6471 = vpack.c.bf16 %v4483, %v4479
        %v6472 = vpack.c.bf16 %v4488, %v4484
        %v6473 = vpack.c.bf16 %v4489, %v4485
        %v6474 = vpack.c.bf16 %v4490, %v4486
        %v6475 = vpack.c.bf16 %v4491, %v4487
        %v6476 = vpack.c.bf16 %v4496, %v4492
        %v6477 = vpack.c.bf16 %v4497, %v4493
        %v6478 = vpack.c.bf16 %v4498, %v4494
        %v6479 = vpack.c.bf16 %v4499, %v4495
        %v6480 = vpack.c.bf16 %v4504, %v4500
        %v6481 = vpack.c.bf16 %v4505, %v4501
        %v6482 = vpack.c.bf16 %v4506, %v4502
        %v6483 = vpack.c.bf16 %v4507, %v4503
        %v6484 = vpack.c.bf16 %v4512, %v4508
        %v6485 = vpack.c.bf16 %v4513, %v4509
        %v6486 = vpack.c.bf16 %v4514, %v4510
        %v6487 = vpack.c.bf16 %v4515, %v4511
        %v6488 = vpack.c.bf16 %v4520, %v4516
        %v6489 = vpack.c.bf16 %v4521, %v4517
        %v6490 = vpack.c.bf16 %v4522, %v4518
        %v6491 = vpack.c.bf16 %v4523, %v4519
        %v6492 = vpack.c.bf16 %v4528, %v4524
        %v6493 = vpack.c.bf16 %v4529, %v4525
        %v6494 = vpack.c.bf16 %v4530, %v4526
        %v6495 = vpack.c.bf16 %v4531, %v4527
        %v6496 = vpack.c.bf16 %v4536, %v4532
        %v6497 = vpack.c.bf16 %v4537, %v4533
        %v6498 = vpack.c.bf16 %v4538, %v4534
        %v6499 = vpack.c.bf16 %v4539, %v4535
        %v6500 = vpack.c.bf16 %v4544, %v4540
        %v6501 = vpack.c.bf16 %v4545, %v4541
        %v6502 = vpack.c.bf16 %v4546, %v4542
        %v6503 = vpack.c.bf16 %v4547, %v4543
        %v6504 = vpack.c.bf16 %v4552, %v4548
        %v6505 = vpack.c.bf16 %v4553, %v4549
        %v6506 = vpack.c.bf16 %v4554, %v4550
        %v6507 = vpack.c.bf16 %v4555, %v4551
        %v6508 = vpack.c.bf16 %v4560, %v4556
        %v6509 = vpack.c.bf16 %v4561, %v4557
        %v6510 = vpack.c.bf16 %v4562, %v4558
        %v6511 = vpack.c.bf16 %v4563, %v4559
        %v6512 = vpack.c.bf16 %v4568, %v4564
        %v6513 = vpack.c.bf16 %v4569, %v4565
        %v6514 = vpack.c.bf16 %v4570, %v4566
        %v6515 = vpack.c.bf16 %v4571, %v4567
        %v6516 = vpack.c.bf16 %v4576, %v4572
        %v6517 = vpack.c.bf16 %v4577, %v4573
        %v6518 = vpack.c.bf16 %v4578, %v4574
        %v6519 = vpack.c.bf16 %v4579, %v4575
        %v6520 = vpack.c.bf16 %v4584, %v4580
        %v6521 = vpack.c.bf16 %v4585, %v4581
        %v6522 = vpack.c.bf16 %v4586, %v4582
        %v6523 = vpack.c.bf16 %v4587, %v4583
        %v6524 = vpack.c.bf16 %v4592, %v4588
        %v6525 = vpack.c.bf16 %v4593, %v4589
        %v6526 = vpack.c.bf16 %v4594, %v4590
        %v6527 = vpack.c.bf16 %v4595, %v4591
        %v6528 = vpack.c.bf16 %v4600, %v4596
        %v6529 = vpack.c.bf16 %v4601, %v4597
        %v6530 = vpack.c.bf16 %v4602, %v4598
        %v6531 = vpack.c.bf16 %v4603, %v4599
        %v6532 = vpack.c.bf16 %v4608, %v4604
        %v6533 = vpack.c.bf16 %v4609, %v4605
        %v6534 = vpack.c.bf16 %v4610, %v4606
        %v6535 = vpack.c.bf16 %v4611, %v4607
        %v6536 = vpack.c.bf16 %v4616, %v4612
        %v6537 = vpack.c.bf16 %v4617, %v4613
        %v6538 = vpack.c.bf16 %v4618, %v4614
        %v6539 = vpack.c.bf16 %v4619, %v4615
        %v6540 = vpack.c.bf16 %v4624, %v4620
        %v6541 = vpack.c.bf16 %v4625, %v4621
        %v6542 = vpack.c.bf16 %v4626, %v4622
        %v6543 = vpack.c.bf16 %v4627, %v4623
        %v6544 = vpack.c.bf16 %v4632, %v4628
        %v6545 = vpack.c.bf16 %v4633, %v4629
        %v6546 = vpack.c.bf16 %v4634, %v4630
        %v6547 = vpack.c.bf16 %v4635, %v4631
        %v6548 = vpack.c.bf16 %v4640, %v4636
        %v6549 = vpack.c.bf16 %v4641, %v4637
        %v6550 = vpack.c.bf16 %v4642, %v4638
        %v6551 = vpack.c.bf16 %v4643, %v4639
        %v6552 = vpack.c.bf16 %v4648, %v4644
        %v6553 = vpack.c.bf16 %v4649, %v4645
        %v6554 = vpack.c.bf16 %v4650, %v4646
        %v6555 = vpack.c.bf16 %v4651, %v4647
        %v6556 = vpack.c.bf16 %v4656, %v4652
        %v6557 = vpack.c.bf16 %v4657, %v4653
        %v6558 = vpack.c.bf16 %v4658, %v4654
        %v6559 = vpack.c.bf16 %v4659, %v4655
        %v6560 = vpack.c.bf16 %v4664, %v4660
        %v6561 = vpack.c.bf16 %v4665, %v4661
        %v6562 = vpack.c.bf16 %v4666, %v4662
        %v6563 = vpack.c.bf16 %v4667, %v4663
        %v6564 = vpack.c.bf16 %v4672, %v4668
        %v6565 = vpack.c.bf16 %v4673, %v4669
        %v6566 = vpack.c.bf16 %v4674, %v4670
        %v6567 = vpack.c.bf16 %v4675, %v4671
        %v6568 = vpack.c.bf16 %v4680, %v4676
        %v6569 = vpack.c.bf16 %v4681, %v4677
        %v6570 = vpack.c.bf16 %v4682, %v4678
        %v6571 = vpack.c.bf16 %v4683, %v4679
        %v6572 = vpack.c.bf16 %v4688, %v4684
        %v6573 = vpack.c.bf16 %v4689, %v4685
        %v6574 = vpack.c.bf16 %v4690, %v4686
        %v6575 = vpack.c.bf16 %v4691, %v4687
        %v6576 = vpack.c.bf16 %v4696, %v4692
        %v6577 = vpack.c.bf16 %v4697, %v4693
        %v6578 = vpack.c.bf16 %v4698, %v4694
        %v6579 = vpack.c.bf16 %v4699, %v4695
        %v6580 = vpack.c.bf16 %v4704, %v4700
        %v6581 = vpack.c.bf16 %v4705, %v4701
        %v6582 = vpack.c.bf16 %v4706, %v4702
        %v6583 = vpack.c.bf16 %v4707, %v4703
        %v6584 = vpack.c.bf16 %v4712, %v4708
        %v6585 = vpack.c.bf16 %v4713, %v4709
        %v6586 = vpack.c.bf16 %v4714, %v4710
        %v6587 = vpack.c.bf16 %v4715, %v4711
        %v6588 = vpack.c.bf16 %v4720, %v4716
        %v6589 = vpack.c.bf16 %v4721, %v4717
        %v6590 = vpack.c.bf16 %v4722, %v4718
        %v6591 = vpack.c.bf16 %v4723, %v4719
        %v6592 = vpack.c.bf16 %v4728, %v4724
        %v6593 = vpack.c.bf16 %v4729, %v4725
        %v6594 = vpack.c.bf16 %v4730, %v4726
        %v6595 = vpack.c.bf16 %v4731, %v4727
        %v6596 = vpack.c.bf16 %v4736, %v4732
        %v6597 = vpack.c.bf16 %v4737, %v4733
        %v6598 = vpack.c.bf16 %v4738, %v4734
        %v6599 = vpack.c.bf16 %v4739, %v4735
        %v6600 = vpack.c.bf16 %v4744, %v4740
        %v6601 = vpack.c.bf16 %v4745, %v4741
        %v6602 = vpack.c.bf16 %v4746, %v4742
        %v6603 = vpack.c.bf16 %v4747, %v4743
        %v6604 = vpack.c.bf16 %v4752, %v4748
        %v6605 = vpack.c.bf16 %v4753, %v4749
        %v6606 = vpack.c.bf16 %v4754, %v4750
        %v6607 = vpack.c.bf16 %v4755, %v4751
        %v6608 = vpack.c.bf16 %v4760, %v4756
        %v6609 = vpack.c.bf16 %v4761, %v4757
        %v6610 = vpack.c.bf16 %v4762, %v4758
        %v6611 = vpack.c.bf16 %v4763, %v4759
        %v6612 = vpack.c.bf16 %v4768, %v4764
        %v6613 = vpack.c.bf16 %v4769, %v4765
        %v6614 = vpack.c.bf16 %v4770, %v4766
        %v6615 = vpack.c.bf16 %v4771, %v4767
        %v6616 = vpack.c.bf16 %v4776, %v4772
        %v6617 = vpack.c.bf16 %v4777, %v4773
        %v6618 = vpack.c.bf16 %v4778, %v4774
        %v6619 = vpack.c.bf16 %v4779, %v4775
        %v6620 = vpack.c.bf16 %v4784, %v4780
        %v6621 = vpack.c.bf16 %v4785, %v4781
        %v6622 = vpack.c.bf16 %v4786, %v4782
        %v6623 = vpack.c.bf16 %v4787, %v4783
        %v6624 = vpack.c.bf16 %v4792, %v4788
        %v6625 = vpack.c.bf16 %v4793, %v4789
        %v6626 = vpack.c.bf16 %v4794, %v4790
        %v6627 = vpack.c.bf16 %v4795, %v4791
        %v6628 = vpack.c.bf16 %v4800, %v4796
        %v6629 = vpack.c.bf16 %v4801, %v4797
        %v6630 = vpack.c.bf16 %v4802, %v4798
        %v6631 = vpack.c.bf16 %v4803, %v4799
        %v6632 = vpack.c.bf16 %v4808, %v4804
        %v6633 = vpack.c.bf16 %v4809, %v4805
        %v6634 = vpack.c.bf16 %v4810, %v4806
        %v6635 = vpack.c.bf16 %v4811, %v4807
        %v6636 = vpack.c.bf16 %v4816, %v4812
        %v6637 = vpack.c.bf16 %v4817, %v4813
        %v6638 = vpack.c.bf16 %v4818, %v4814
        %v6639 = vpack.c.bf16 %v4819, %v4815
        %v6640 = vpack.c.bf16 %v4824, %v4820
        %v6641 = vpack.c.bf16 %v4825, %v4821
        %v6642 = vpack.c.bf16 %v4826, %v4822
        %v6643 = vpack.c.bf16 %v4827, %v4823
        %v6644 = vpack.c.bf16 %v4832, %v4828
        %v6645 = vpack.c.bf16 %v4833, %v4829
        %v6646 = vpack.c.bf16 %v4834, %v4830
        %v6647 = vpack.c.bf16 %v4835, %v4831
        %v6648 = vpack.c.bf16 %v4840, %v4836
        %v6649 = vpack.c.bf16 %v4841, %v4837
        %v6650 = vpack.c.bf16 %v4842, %v4838
        %v6651 = vpack.c.bf16 %v4843, %v4839
        %v6652 = vpack.c.bf16 %v4848, %v4844
        %v6653 = vpack.c.bf16 %v4849, %v4845
        %v6654 = vpack.c.bf16 %v4850, %v4846
        %v6655 = vpack.c.bf16 %v4851, %v4847
        %v6656 = vpack.c.bf16 %v4856, %v4852
        %v6657 = vpack.c.bf16 %v4857, %v4853
        %v6658 = vpack.c.bf16 %v4858, %v4854
        %v6659 = vpack.c.bf16 %v4859, %v4855
        %v6660 = vpack.c.bf16 %v4864, %v4860
        %v6661 = vpack.c.bf16 %v4865, %v4861
        %v6662 = vpack.c.bf16 %v4866, %v4862
        %v6663 = vpack.c.bf16 %v4867, %v4863
        %v6664 = vpack.c.bf16 %v4872, %v4868
        %v6665 = vpack.c.bf16 %v4873, %v4869
        %v6666 = vpack.c.bf16 %v4874, %v4870
        %v6667 = vpack.c.bf16 %v4875, %v4871
        %v6668 = vpack.c.bf16 %v4880, %v4876
        %v6669 = vpack.c.bf16 %v4881, %v4877
        %v6670 = vpack.c.bf16 %v4882, %v4878
        %v6671 = vpack.c.bf16 %v4883, %v4879
        %v6672 = vpack.c.bf16 %v4888, %v4884
        %v6673 = vpack.c.bf16 %v4889, %v4885
        %v6674 = vpack.c.bf16 %v4890, %v4886
        %v6675 = vpack.c.bf16 %v4891, %v4887
        %v6676 = vpack.c.bf16 %v4896, %v4892
        %v6677 = vpack.c.bf16 %v4897, %v4893
        %v6678 = vpack.c.bf16 %v4898, %v4894
        %v6679 = vpack.c.bf16 %v4899, %v4895
        %v6680 = vpack.c.bf16 %v4904, %v4900
        %v6681 = vpack.c.bf16 %v4905, %v4901
        %v6682 = vpack.c.bf16 %v4906, %v4902
        %v6683 = vpack.c.bf16 %v4907, %v4903
        %v6684 = vpack.c.bf16 %v4912, %v4908
        %v6685 = vpack.c.bf16 %v4913, %v4909
        %v6686 = vpack.c.bf16 %v4914, %v4910
        %v6687 = vpack.c.bf16 %v4915, %v4911
        %v6688 = vpack.c.bf16 %v4920, %v4916
        %v6689 = vpack.c.bf16 %v4921, %v4917
        %v6690 = vpack.c.bf16 %v4922, %v4918
        %v6691 = vpack.c.bf16 %v4923, %v4919
        %v6692 = vpack.c.bf16 %v4928, %v4924
        %v6693 = vpack.c.bf16 %v4929, %v4925
        %v6694 = vpack.c.bf16 %v4930, %v4926
        %v6695 = vpack.c.bf16 %v4931, %v4927
        %v6696 = vpack.c.bf16 %v4936, %v4932
        %v6697 = vpack.c.bf16 %v4937, %v4933
        %v6698 = vpack.c.bf16 %v4938, %v4934
        %v6699 = vpack.c.bf16 %v4939, %v4935
        %v6700 = vpack.c.bf16 %v4944, %v4940
        %v6701 = vpack.c.bf16 %v4945, %v4941
        %v6702 = vpack.c.bf16 %v4946, %v4942
        %v6703 = vpack.c.bf16 %v4947, %v4943
        %v6704 = vpack.c.bf16 %v4952, %v4948
        %v6705 = vpack.c.bf16 %v4953, %v4949
        %v6706 = vpack.c.bf16 %v4954, %v4950
        %v6707 = vpack.c.bf16 %v4955, %v4951
        %v6708 = vpack.c.bf16 %v4960, %v4956
        %v6709 = vpack.c.bf16 %v4961, %v4957
        %v6710 = vpack.c.bf16 %v4962, %v4958
        %v6711 = vpack.c.bf16 %v4963, %v4959
        %v6712 = vpack.c.bf16 %v4968, %v4964
        %v6713 = vpack.c.bf16 %v4969, %v4965
        %v6714 = vpack.c.bf16 %v4970, %v4966
        %v6715 = vpack.c.bf16 %v4971, %v4967
        %v6716 = vpack.c.bf16 %v4976, %v4972
        %v6717 = vpack.c.bf16 %v4977, %v4973
        %v6718 = vpack.c.bf16 %v4978, %v4974
        %v6719 = vpack.c.bf16 %v4979, %v4975
        %v6720 = vpack.c.bf16 %v4984, %v4980
        %v6721 = vpack.c.bf16 %v4985, %v4981
        %v6722 = vpack.c.bf16 %v4986, %v4982
        %v6723 = vpack.c.bf16 %v4987, %v4983
        %v6724 = vpack.c.bf16 %v4992, %v4988
        %v6725 = vpack.c.bf16 %v4993, %v4989
        %v6726 = vpack.c.bf16 %v4994, %v4990
        %v6727 = vpack.c.bf16 %v4995, %v4991
        %v6728 = vpack.c.bf16 %v5000, %v4996
        %v6729 = vpack.c.bf16 %v5001, %v4997
        %v6730 = vpack.c.bf16 %v5002, %v4998
        %v6731 = vpack.c.bf16 %v5003, %v4999
        %v6732 = vpack.c.bf16 %v5008, %v5004
        %v6733 = vpack.c.bf16 %v5009, %v5005
        %v6734 = vpack.c.bf16 %v5010, %v5006
        %v6735 = vpack.c.bf16 %v5011, %v5007
        %v6736 = vpack.c.bf16 %v5016, %v5012
        %v6737 = vpack.c.bf16 %v5017, %v5013
        %v6738 = vpack.c.bf16 %v5018, %v5014
        %v6739 = vpack.c.bf16 %v5019, %v5015
        %v6740 = vpack.c.bf16 %v5024, %v5020
        %v6741 = vpack.c.bf16 %v5025, %v5021
        %v6742 = vpack.c.bf16 %v5026, %v5022
        %v6743 = vpack.c.bf16 %v5027, %v5023
        %v6744 = vpack.c.bf16 %v5032, %v5028
        %v6745 = vpack.c.bf16 %v5033, %v5029
        %v6746 = vpack.c.bf16 %v5034, %v5030
        %v6747 = vpack.c.bf16 %v5035, %v5031
        %v6748 = vpack.c.bf16 %v5040, %v5036
        %v6749 = vpack.c.bf16 %v5041, %v5037
        %v6750 = vpack.c.bf16 %v5042, %v5038
        %v6751 = vpack.c.bf16 %v5043, %v5039
        %v6752 = vpack.c.bf16 %v5048, %v5044
        %v6753 = vpack.c.bf16 %v5049, %v5045
        %v6754 = vpack.c.bf16 %v5050, %v5046
        %v6755 = vpack.c.bf16 %v5051, %v5047
        %v6756 = vpack.c.bf16 %v5056, %v5052
        %v6757 = vpack.c.bf16 %v5057, %v5053
        %v6758 = vpack.c.bf16 %v5058, %v5054
        %v6759 = vpack.c.bf16 %v5059, %v5055
        %v6760 = vpack.c.bf16 %v5064, %v5060
        %v6761 = vpack.c.bf16 %v5065, %v5061
        %v6762 = vpack.c.bf16 %v5066, %v5062
        %v6763 = vpack.c.bf16 %v5067, %v5063
        %v6764 = vpack.c.bf16 %v5072, %v5068
        %v6765 = vpack.c.bf16 %v5073, %v5069
        %v6766 = vpack.c.bf16 %v5074, %v5070
        %v6767 = vpack.c.bf16 %v5075, %v5071
        %v6768 = vpack.c.bf16 %v5080, %v5076
        %v6769 = vpack.c.bf16 %v5081, %v5077
        %v6770 = vpack.c.bf16 %v5082, %v5078
        %v6771 = vpack.c.bf16 %v5083, %v5079
        %v6772 = vpack.c.bf16 %v5088, %v5084
        %v6773 = vpack.c.bf16 %v5089, %v5085
        %v6774 = vpack.c.bf16 %v5090, %v5086
        %v6775 = vpack.c.bf16 %v5091, %v5087
        %v6776 = vpack.c.bf16 %v5096, %v5092
        %v6777 = vpack.c.bf16 %v5097, %v5093
        %v6778 = vpack.c.bf16 %v5098, %v5094
        %v6779 = vpack.c.bf16 %v5099, %v5095
        %v6780 = vpack.c.bf16 %v5104, %v5100
        %v6781 = vpack.c.bf16 %v5105, %v5101
        %v6782 = vpack.c.bf16 %v5106, %v5102
        %v6783 = vpack.c.bf16 %v5107, %v5103
        %v6784 = vpack.c.bf16 %v5112, %v5108
        %v6785 = vpack.c.bf16 %v5113, %v5109
        %v6786 = vpack.c.bf16 %v5114, %v5110
        %v6787 = vpack.c.bf16 %v5115, %v5111
        %v6788 = vpack.c.bf16 %v5120, %v5116
        %v6789 = vpack.c.bf16 %v5121, %v5117
        %v6790 = vpack.c.bf16 %v5122, %v5118
        %v6791 = vpack.c.bf16 %v5123, %v5119
        %v6792 = vpack.c.bf16 %v5128, %v5124
        %v6793 = vpack.c.bf16 %v5129, %v5125
        %v6794 = vpack.c.bf16 %v5130, %v5126
        %v6795 = vpack.c.bf16 %v5131, %v5127
        %v6796 = vpack.c.bf16 %v5136, %v5132
        %v6797 = vpack.c.bf16 %v5137, %v5133
        %v6798 = vpack.c.bf16 %v5138, %v5134
        %v6799 = vpack.c.bf16 %v5139, %v5135
        %v6800 = vpack.c.bf16 %v5144, %v5140
        %v6801 = vpack.c.bf16 %v5145, %v5141
        %v6802 = vpack.c.bf16 %v5146, %v5142
        %v6803 = vpack.c.bf16 %v5147, %v5143
        %v6804 = vpack.c.bf16 %v5152, %v5148
        %v6805 = vpack.c.bf16 %v5153, %v5149
        %v6806 = vpack.c.bf16 %v5154, %v5150
        %v6807 = vpack.c.bf16 %v5155, %v5151
        %v6808 = vpack.c.bf16 %v5160, %v5156
        %v6809 = vpack.c.bf16 %v5161, %v5157
        %v6810 = vpack.c.bf16 %v5162, %v5158
        %v6811 = vpack.c.bf16 %v5163, %v5159
        %v6812 = vpack.c.bf16 %v5168, %v5164
        %v6813 = vpack.c.bf16 %v5169, %v5165
        %v6814 = vpack.c.bf16 %v5170, %v5166
        %v6815 = vpack.c.bf16 %v5171, %v5167
        %v6816 = vpack.c.bf16 %v5176, %v5172
        %v6817 = vpack.c.bf16 %v5177, %v5173
        %v6818 = vpack.c.bf16 %v5178, %v5174
        %v6819 = vpack.c.bf16 %v5179, %v5175
        %v6820 = vpack.c.bf16 %v5184, %v5180
        %v6821 = vpack.c.bf16 %v5185, %v5181
        %v6822 = vpack.c.bf16 %v5186, %v5182
        %v6823 = vpack.c.bf16 %v5187, %v5183
        %v6824 = vpack.c.bf16 %v5192, %v5188
        %v6825 = vpack.c.bf16 %v5193, %v5189
        %v6826 = vpack.c.bf16 %v5194, %v5190
        %v6827 = vpack.c.bf16 %v5195, %v5191
        %v6828 = vpack.c.bf16 %v5200, %v5196
        %v6829 = vpack.c.bf16 %v5201, %v5197
        %v6830 = vpack.c.bf16 %v5202, %v5198
        %v6831 = vpack.c.bf16 %v5203, %v5199
        %v6832 = vpack.c.bf16 %v5208, %v5204
        %v6833 = vpack.c.bf16 %v5209, %v5205
        %v6834 = vpack.c.bf16 %v5210, %v5206
        %v6835 = vpack.c.bf16 %v5211, %v5207
        %v6836 = vpack.c.bf16 %v5216, %v5212
        %v6837 = vpack.c.bf16 %v5217, %v5213
        %v6838 = vpack.c.bf16 %v5218, %v5214
        %v6839 = vpack.c.bf16 %v5219, %v5215
        %v6840 = vpack.c.bf16 %v5224, %v5220
        %v6841 = vpack.c.bf16 %v5225, %v5221
        %v6842 = vpack.c.bf16 %v5226, %v5222
        %v6843 = vpack.c.bf16 %v5227, %v5223
        %v6844 = vpack.c.bf16 %v5232, %v5228
        %v6845 = vpack.c.bf16 %v5233, %v5229
        %v6846 = vpack.c.bf16 %v5234, %v5230
        %v6847 = vpack.c.bf16 %v5235, %v5231
        %v6848 = vpack.c.bf16 %v5240, %v5236
        %v6849 = vpack.c.bf16 %v5241, %v5237
        %v6850 = vpack.c.bf16 %v5242, %v5238
        %v6851 = vpack.c.bf16 %v5243, %v5239
        %v6852 = vpack.c.bf16 %v5248, %v5244
        %v6853 = vpack.c.bf16 %v5249, %v5245
        %v6854 = vpack.c.bf16 %v5250, %v5246
        %v6855 = vpack.c.bf16 %v5251, %v5247
        %v6856 = vpack.c.bf16 %v5256, %v5252
        %v6857 = vpack.c.bf16 %v5257, %v5253
        %v6858 = vpack.c.bf16 %v5258, %v5254
        %v6859 = vpack.c.bf16 %v5259, %v5255
        %v6860 = vpack.c.bf16 %v5264, %v5260
        %v6861 = vpack.c.bf16 %v5265, %v5261
        %v6862 = vpack.c.bf16 %v5266, %v5262
        %v6863 = vpack.c.bf16 %v5267, %v5263
        %v6864 = vpack.c.bf16 %v5272, %v5268
        %v6865 = vpack.c.bf16 %v5273, %v5269
        %v6866 = vpack.c.bf16 %v5274, %v5270
        %v6867 = vpack.c.bf16 %v5275, %v5271
        %v6868 = vpack.c.bf16 %v5280, %v5276
        %v6869 = vpack.c.bf16 %v5281, %v5277
        %v6870 = vpack.c.bf16 %v5282, %v5278
        %v6871 = vpack.c.bf16 %v5283, %v5279
        %v6872 = vpack.c.bf16 %v5288, %v5284
        %v6873 = vpack.c.bf16 %v5289, %v5285
        %v6874 = vpack.c.bf16 %v5290, %v5286
        %v6875 = vpack.c.bf16 %v5291, %v5287
        %v6876 = vpack.c.bf16 %v5296, %v5292
        %v6877 = vpack.c.bf16 %v5297, %v5293
        %v6878 = vpack.c.bf16 %v5298, %v5294
        %v6879 = vpack.c.bf16 %v5299, %v5295
        %v6880 = vpack.c.bf16 %v5304, %v5300
        %v6881 = vpack.c.bf16 %v5305, %v5301
        %v6882 = vpack.c.bf16 %v5306, %v5302
        %v6883 = vpack.c.bf16 %v5307, %v5303
        %v6884 = vpack.c.bf16 %v5312, %v5308
        %v6885 = vpack.c.bf16 %v5313, %v5309
        %v6886 = vpack.c.bf16 %v5314, %v5310
        %v6887 = vpack.c.bf16 %v5315, %v5311
        %v6888 = vpack.c.bf16 %v5320, %v5316
        %v6889 = vpack.c.bf16 %v5321, %v5317
        %v6890 = vpack.c.bf16 %v5322, %v5318
        %v6891 = vpack.c.bf16 %v5323, %v5319
        %v6892 = vpack.c.bf16 %v5328, %v5324
        %v6893 = vpack.c.bf16 %v5329, %v5325
        %v6894 = vpack.c.bf16 %v5330, %v5326
        %v6895 = vpack.c.bf16 %v5331, %v5327
        %v6896 = vpack.c.bf16 %v5336, %v5332
        %v6897 = vpack.c.bf16 %v5337, %v5333
        %v6898 = vpack.c.bf16 %v5338, %v5334
        %v6899 = vpack.c.bf16 %v5339, %v5335
        %v6900 = vpack.c.bf16 %v5344, %v5340
        %v6901 = vpack.c.bf16 %v5345, %v5341
        %v6902 = vpack.c.bf16 %v5346, %v5342
        %v6903 = vpack.c.bf16 %v5347, %v5343
        %v6904 = vpack.c.bf16 %v5352, %v5348
        %v6905 = vpack.c.bf16 %v5353, %v5349
        %v6906 = vpack.c.bf16 %v5354, %v5350
        %v6907 = vpack.c.bf16 %v5355, %v5351
        %v6908 = vpack.c.bf16 %v5360, %v5356
        %v6909 = vpack.c.bf16 %v5361, %v5357
        %v6910 = vpack.c.bf16 %v5362, %v5358
        %v6911 = vpack.c.bf16 %v5363, %v5359
        %v6912 = vpack.c.bf16 %v5368, %v5364
        %v6913 = vpack.c.bf16 %v5369, %v5365
        %v6914 = vpack.c.bf16 %v5370, %v5366
        %v6915 = vpack.c.bf16 %v5371, %v5367
        %v6916 = vpack.c.bf16 %v5376, %v5372
        %v6917 = vpack.c.bf16 %v5377, %v5373
        %v6918 = vpack.c.bf16 %v5378, %v5374
        %v6919 = vpack.c.bf16 %v5379, %v5375
        %v6920 = vpack.c.bf16 %v5384, %v5380
        %v6921 = vpack.c.bf16 %v5385, %v5381
        %v6922 = vpack.c.bf16 %v5386, %v5382
        %v6923 = vpack.c.bf16 %v5387, %v5383
        %v6924 = vpack.c.bf16 %v5392, %v5388
        %v6925 = vpack.c.bf16 %v5393, %v5389
        %v6926 = vpack.c.bf16 %v5394, %v5390
        %v6927 = vpack.c.bf16 %v5395, %v5391
        %v6928 = vpack.c.bf16 %v5400, %v5396
        %v6929 = vpack.c.bf16 %v5401, %v5397
        %v6930 = vpack.c.bf16 %v5402, %v5398
        %v6931 = vpack.c.bf16 %v5403, %v5399
        %v6932 = vpack.c.bf16 %v5408, %v5404
        %v6933 = vpack.c.bf16 %v5409, %v5405
        %v6934 = vpack.c.bf16 %v5410, %v5406
        %v6935 = vpack.c.bf16 %v5411, %v5407
        %v6936 = vpack.c.bf16 %v5416, %v5412
        %v6937 = vpack.c.bf16 %v5417, %v5413
        %v6938 = vpack.c.bf16 %v5418, %v5414
        %v6939 = vpack.c.bf16 %v5419, %v5415
        %v6940 = vpack.c.bf16 %v5424, %v5420
        %v6941 = vpack.c.bf16 %v5425, %v5421
        %v6942 = vpack.c.bf16 %v5426, %v5422
        %v6943 = vpack.c.bf16 %v5427, %v5423
        %v6944 = vpack.c.bf16 %v5432, %v5428
        %v6945 = vpack.c.bf16 %v5433, %v5429
        %v6946 = vpack.c.bf16 %v5434, %v5430
        %v6947 = vpack.c.bf16 %v5435, %v5431
        %v6948 = vpack.c.bf16 %v5440, %v5436
        %v6949 = vpack.c.bf16 %v5441, %v5437
        %v6950 = vpack.c.bf16 %v5442, %v5438
        %v6951 = vpack.c.bf16 %v5443, %v5439
        %v6952 = vpack.c.bf16 %v5448, %v5444
        %v6953 = vpack.c.bf16 %v5449, %v5445
        %v6954 = vpack.c.bf16 %v5450, %v5446
        %v6955 = vpack.c.bf16 %v5451, %v5447
        %v6956 = vpack.c.bf16 %v5456, %v5452
        %v6957 = vpack.c.bf16 %v5457, %v5453
        %v6958 = vpack.c.bf16 %v5458, %v5454
        %v6959 = vpack.c.bf16 %v5459, %v5455
        %v6960 = vpack.c.bf16 %v5464, %v5460
        %v6961 = vpack.c.bf16 %v5465, %v5461
        %v6962 = vpack.c.bf16 %v5466, %v5462
        %v6963 = vpack.c.bf16 %v5467, %v5463
        %v6964 = vpack.c.bf16 %v5472, %v5468
        %v6965 = vpack.c.bf16 %v5473, %v5469
        %v6966 = vpack.c.bf16 %v5474, %v5470
        %v6967 = vpack.c.bf16 %v5475, %v5471
        %v6968 = vpack.c.bf16 %v5480, %v5476
        %v6969 = vpack.c.bf16 %v5481, %v5477
        %v6970 = vpack.c.bf16 %v5482, %v5478
        %v6971 = vpack.c.bf16 %v5483, %v5479
        %v6972 = vpack.c.bf16 %v5488, %v5484
        %v6973 = vpack.c.bf16 %v5489, %v5485
        %v6974 = vpack.c.bf16 %v5490, %v5486
        %v6975 = vpack.c.bf16 %v5491, %v5487
        %v6976 = vpack.c.bf16 %v5496, %v5492
        %v6977 = vpack.c.bf16 %v5497, %v5493
        %v6978 = vpack.c.bf16 %v5498, %v5494
        %v6979 = vpack.c.bf16 %v5499, %v5495
        %v6980 = vpack.c.bf16 %v5504, %v5500
        %v6981 = vpack.c.bf16 %v5505, %v5501
        %v6982 = vpack.c.bf16 %v5506, %v5502
        %v6983 = vpack.c.bf16 %v5507, %v5503
        %v6984 = vpack.c.bf16 %v5512, %v5508
        %v6985 = vpack.c.bf16 %v5513, %v5509
        %v6986 = vpack.c.bf16 %v5514, %v5510
        %v6987 = vpack.c.bf16 %v5515, %v5511
        %v6988 = vpack.c.bf16 %v5520, %v5516
        %v6989 = vpack.c.bf16 %v5521, %v5517
        %v6990 = vpack.c.bf16 %v5522, %v5518
        %v6991 = vpack.c.bf16 %v5523, %v5519
        %v6992 = vpack.c.bf16 %v5528, %v5524
        %v6993 = vpack.c.bf16 %v5529, %v5525
        %v6994 = vpack.c.bf16 %v5530, %v5526
        %v6995 = vpack.c.bf16 %v5531, %v5527
        %v6996 = vpack.c.bf16 %v5536, %v5532
        %v6997 = vpack.c.bf16 %v5537, %v5533
        %v6998 = vpack.c.bf16 %v5538, %v5534
        %v6999 = vpack.c.bf16 %v5539, %v5535
        %v7000 = vpack.c.bf16 %v5544, %v5540
        %v7001 = vpack.c.bf16 %v5545, %v5541
        %v7002 = vpack.c.bf16 %v5546, %v5542
        %v7003 = vpack.c.bf16 %v5547, %v5543
        %v7004 = vpack.c.bf16 %v5552, %v5548
        %v7005 = vpack.c.bf16 %v5553, %v5549
        %v7006 = vpack.c.bf16 %v5554, %v5550
        %v7007 = vpack.c.bf16 %v5555, %v5551
        %v7008 = vpack.c.bf16 %v5560, %v5556
        %v7009 = vpack.c.bf16 %v5561, %v5557
        %v7010 = vpack.c.bf16 %v5562, %v5558
        %v7011 = vpack.c.bf16 %v5563, %v5559
        %v7012 = vpack.c.bf16 %v5568, %v5564
        %v7013 = vpack.c.bf16 %v5569, %v5565
        %v7014 = vpack.c.bf16 %v5570, %v5566
        %v7015 = vpack.c.bf16 %v5571, %v5567
        %v7016 = vpack.c.bf16 %v5576, %v5572
        %v7017 = vpack.c.bf16 %v5577, %v5573
        %v7018 = vpack.c.bf16 %v5578, %v5574
        %v7019 = vpack.c.bf16 %v5579, %v5575
        %v7020 = vpack.c.bf16 %v5584, %v5580
        %v7021 = vpack.c.bf16 %v5585, %v5581
        %v7022 = vpack.c.bf16 %v5586, %v5582
        %v7023 = vpack.c.bf16 %v5587, %v5583
        %v7024 = vpack.c.bf16 %v5592, %v5588
        %v7025 = vpack.c.bf16 %v5593, %v5589
        %v7026 = vpack.c.bf16 %v5594, %v5590
        %v7027 = vpack.c.bf16 %v5595, %v5591
        %v7028 = vpack.c.bf16 %v5600, %v5596
        %v7029 = vpack.c.bf16 %v5601, %v5597
        %v7030 = vpack.c.bf16 %v5602, %v5598
        %v7031 = vpack.c.bf16 %v5603, %v5599
        %v7032 = vpack.c.bf16 %v5608, %v5604
        %v7033 = vpack.c.bf16 %v5609, %v5605
        %v7034 = vpack.c.bf16 %v5610, %v5606
        %v7035 = vpack.c.bf16 %v5611, %v5607
        %v7036 = vpack.c.bf16 %v5616, %v5612
        %v7037 = vpack.c.bf16 %v5617, %v5613
        %v7038 = vpack.c.bf16 %v5618, %v5614
        %v7039 = vpack.c.bf16 %v5619, %v5615
        %v7040 = vpack.c.bf16 %v5624, %v5620
        %v7041 = vpack.c.bf16 %v5625, %v5621
        %v7042 = vpack.c.bf16 %v5626, %v5622
        %v7043 = vpack.c.bf16 %v5627, %v5623
        %v7044 = vpack.c.bf16 %v5632, %v5628
        %v7045 = vpack.c.bf16 %v5633, %v5629
        %v7046 = vpack.c.bf16 %v5634, %v5630
        %v7047 = vpack.c.bf16 %v5635, %v5631
        %v7048 = vpack.c.bf16 %v5640, %v5636
        %v7049 = vpack.c.bf16 %v5641, %v5637
        %v7050 = vpack.c.bf16 %v5642, %v5638
        %v7051 = vpack.c.bf16 %v5643, %v5639
        %v7052 = vpack.c.bf16 %v5648, %v5644
        %v7053 = vpack.c.bf16 %v5649, %v5645
        %v7054 = vpack.c.bf16 %v5650, %v5646
        %v7055 = vpack.c.bf16 %v5651, %v5647
        %v7056 = vpack.c.bf16 %v5656, %v5652
        %v7057 = vpack.c.bf16 %v5657, %v5653
        %v7058 = vpack.c.bf16 %v5658, %v5654
        %v7059 = vpack.c.bf16 %v5659, %v5655
        %v7060 = vpack.c.bf16 %v5664, %v5660
        %v7061 = vpack.c.bf16 %v5665, %v5661
        %v7062 = vpack.c.bf16 %v5666, %v5662
        %v7063 = vpack.c.bf16 %v5667, %v5663
        %v7064 = vpack.c.bf16 %v5672, %v5668
        %v7065 = vpack.c.bf16 %v5673, %v5669
        %v7066 = vpack.c.bf16 %v5674, %v5670
        %v7067 = vpack.c.bf16 %v5675, %v5671
        %v7068 = vpack.c.bf16 %v5680, %v5676
        %v7069 = vpack.c.bf16 %v5681, %v5677
        %v7070 = vpack.c.bf16 %v5682, %v5678
        %v7071 = vpack.c.bf16 %v5683, %v5679
        %v7072 = vpack.c.bf16 %v5688, %v5684
        %v7073 = vpack.c.bf16 %v5689, %v5685
        %v7074 = vpack.c.bf16 %v5690, %v5686
        %v7075 = vpack.c.bf16 %v5691, %v5687
        %v7076 = vpack.c.bf16 %v5696, %v5692
        %v7077 = vpack.c.bf16 %v5697, %v5693
        %v7078 = vpack.c.bf16 %v5698, %v5694
        %v7079 = vpack.c.bf16 %v5699, %v5695
        %v7080 = vpack.c.bf16 %v5704, %v5700
        %v7081 = vpack.c.bf16 %v5705, %v5701
        %v7082 = vpack.c.bf16 %v5706, %v5702
        %v7083 = vpack.c.bf16 %v5707, %v5703
        %v7084 = vpack.c.bf16 %v5712, %v5708
        %v7085 = vpack.c.bf16 %v5713, %v5709
        %v7086 = vpack.c.bf16 %v5714, %v5710
        %v7087 = vpack.c.bf16 %v5715, %v5711
        %v7088 = vpack.c.bf16 %v5720, %v5716
        %v7089 = vpack.c.bf16 %v5721, %v5717
        %v7090 = vpack.c.bf16 %v5722, %v5718
        %v7091 = vpack.c.bf16 %v5723, %v5719
        %v7092 = vpack.c.bf16 %v5728, %v5724
        %v7093 = vpack.c.bf16 %v5729, %v5725
        %v7094 = vpack.c.bf16 %v5730, %v5726
        %v7095 = vpack.c.bf16 %v5731, %v5727
        %v7096 = vpack.c.bf16 %v5736, %v5732
        %v7097 = vpack.c.bf16 %v5737, %v5733
        %v7098 = vpack.c.bf16 %v5738, %v5734
        %v7099 = vpack.c.bf16 %v5739, %v5735
        %v7100 = vpack.c.bf16 %v5744, %v5740
        %v7101 = vpack.c.bf16 %v5745, %v5741
        %v7102 = vpack.c.bf16 %v5746, %v5742
        %v7103 = vpack.c.bf16 %v5747, %v5743
        %v7104 = vpack.c.bf16 %v5752, %v5748
        %v7105 = vpack.c.bf16 %v5753, %v5749
        %v7106 = vpack.c.bf16 %v5754, %v5750
        %v7107 = vpack.c.bf16 %v5755, %v5751
        %v7108 = vpack.c.bf16 %v5760, %v5756
        %v7109 = vpack.c.bf16 %v5761, %v5757
        %v7110 = vpack.c.bf16 %v5762, %v5758
        %v7111 = vpack.c.bf16 %v5763, %v5759
        %v7112 = vpack.c.bf16 %v5768, %v5764
        %v7113 = vpack.c.bf16 %v5769, %v5765
        %v7114 = vpack.c.bf16 %v5770, %v5766
        %v7115 = vpack.c.bf16 %v5771, %v5767
        %v7116 = vpack.c.bf16 %v5776, %v5772
        %v7117 = vpack.c.bf16 %v5777, %v5773
        %v7118 = vpack.c.bf16 %v5778, %v5774
        %v7119 = vpack.c.bf16 %v5779, %v5775
        %v7120 = vpack.c.bf16 %v5784, %v5780
        %v7121 = vpack.c.bf16 %v5785, %v5781
        %v7122 = vpack.c.bf16 %v5786, %v5782
        %v7123 = vpack.c.bf16 %v5787, %v5783
        %v7124 = vpack.c.bf16 %v5792, %v5788
        %v7125 = vpack.c.bf16 %v5793, %v5789
        %v7126 = vpack.c.bf16 %v5794, %v5790
        %v7127 = vpack.c.bf16 %v5795, %v5791
        %v7128 = vpack.c.bf16 %v5800, %v5796
        %v7129 = vpack.c.bf16 %v5801, %v5797
        %v7130 = vpack.c.bf16 %v5802, %v5798
        %v7131 = vpack.c.bf16 %v5803, %v5799
        %v7132 = vpack.c.bf16 %v5808, %v5804
        %v7133 = vpack.c.bf16 %v5809, %v5805
        %v7134 = vpack.c.bf16 %v5810, %v5806
        %v7135 = vpack.c.bf16 %v5811, %v5807
        %v7136 = vpack.c.bf16 %v5816, %v5812
        %v7137 = vpack.c.bf16 %v5817, %v5813
        %v7138 = vpack.c.bf16 %v5818, %v5814
        %v7139 = vpack.c.bf16 %v5819, %v5815
        %v7140 = vpack.c.bf16 %v5824, %v5820
        %v7141 = vpack.c.bf16 %v5825, %v5821
        %v7142 = vpack.c.bf16 %v5826, %v5822
        %v7143 = vpack.c.bf16 %v5827, %v5823
        %v7144 = vpack.c.bf16 %v5832, %v5828
        %v7145 = vpack.c.bf16 %v5833, %v5829
        %v7146 = vpack.c.bf16 %v5834, %v5830
        %v7147 = vpack.c.bf16 %v5835, %v5831
        %v7148 = vpack.c.bf16 %v5840, %v5836
        %v7149 = vpack.c.bf16 %v5841, %v5837
        %v7150 = vpack.c.bf16 %v5842, %v5838
        %v7151 = vpack.c.bf16 %v5843, %v5839
        %v7152 = vpack.c.bf16 %v5848, %v5844
        %v7153 = vpack.c.bf16 %v5849, %v5845
        %v7154 = vpack.c.bf16 %v5850, %v5846
        %v7155 = vpack.c.bf16 %v5851, %v5847
        %v7156 = vpack.c.bf16 %v5856, %v5852
        %v7157 = vpack.c.bf16 %v5857, %v5853
        %v7158 = vpack.c.bf16 %v5858, %v5854
        %v7159 = vpack.c.bf16 %v5859, %v5855
        %v7160 = vpack.c.bf16 %v5864, %v5860
        %v7161 = vpack.c.bf16 %v5865, %v5861
        %v7162 = vpack.c.bf16 %v5866, %v5862
        %v7163 = vpack.c.bf16 %v5867, %v5863
        %v7164 = vpack.c.bf16 %v5872, %v5868
        %v7165 = vpack.c.bf16 %v5873, %v5869
        %v7166 = vpack.c.bf16 %v5874, %v5870
        %v7167 = vpack.c.bf16 %v5875, %v5871
        %v7168 = vpack.c.bf16 %v5880, %v5876
        %v7169 = vpack.c.bf16 %v5881, %v5877
        %v7170 = vpack.c.bf16 %v5882, %v5878
        %v7171 = vpack.c.bf16 %v5883, %v5879
        %v7172 = vpack.c.bf16 %v5888, %v5884
        %v7173 = vpack.c.bf16 %v5889, %v5885
        %v7174 = vpack.c.bf16 %v5890, %v5886
        %v7175 = vpack.c.bf16 %v5891, %v5887
        %v7176 = vpack.c.bf16 %v5896, %v5892
        %v7177 = vpack.c.bf16 %v5897, %v5893
        %v7178 = vpack.c.bf16 %v5898, %v5894
        %v7179 = vpack.c.bf16 %v5899, %v5895
        %v7180 = vpack.c.bf16 %v5904, %v5900
        %v7181 = vpack.c.bf16 %v5905, %v5901
        %v7182 = vpack.c.bf16 %v5906, %v5902
        %v7183 = vpack.c.bf16 %v5907, %v5903
        %v7184 = vpack.c.bf16 %v5912, %v5908
        %v7185 = vpack.c.bf16 %v5913, %v5909
        %v7186 = vpack.c.bf16 %v5914, %v5910
        %v7187 = vpack.c.bf16 %v5915, %v5911
        %v7188 = vpack.c.bf16 %v5920, %v5916
        %v7189 = vpack.c.bf16 %v5921, %v5917
        %v7190 = vpack.c.bf16 %v5922, %v5918
        %v7191 = vpack.c.bf16 %v5923, %v5919
        %v7192 = vpack.c.bf16 %v5928, %v5924
        %v7193 = vpack.c.bf16 %v5929, %v5925
        %v7194 = vpack.c.bf16 %v5930, %v5926
        %v7195 = vpack.c.bf16 %v5931, %v5927
        %v7196 = vpack.c.bf16 %v5936, %v5932
        %v7197 = vpack.c.bf16 %v5937, %v5933
        %v7198 = vpack.c.bf16 %v5938, %v5934
        %v7199 = vpack.c.bf16 %v5939, %v5935
        %v7200 = vpack.c.bf16 %v5944, %v5940
        %v7201 = vpack.c.bf16 %v5945, %v5941
        %v7202 = vpack.c.bf16 %v5946, %v5942
        %v7203 = vpack.c.bf16 %v5947, %v5943
        %v7204 = vpack.c.bf16 %v5952, %v5948
        %v7205 = vpack.c.bf16 %v5953, %v5949
        %v7206 = vpack.c.bf16 %v5954, %v5950
        %v7207 = vpack.c.bf16 %v5955, %v5951
        %v7208 = vpack.c.bf16 %v5960, %v5956
        %v7209 = vpack.c.bf16 %v5961, %v5957
        %v7210 = vpack.c.bf16 %v5962, %v5958
        %v7211 = vpack.c.bf16 %v5963, %v5959
        %v7212 = vld [vmem:[%s0] sm:$0xff]
        %v7213 = vld [vmem:[%s0 + $0x8] sm:$0xff]
        %v7214 = vld [vmem:[%s0 + $0x10] sm:$0xff]
        %v7215 = vld [vmem:[%s0 + $0x18] sm:$0xff]
        %v7216 = vld [vmem:[%s0 + $0x20] sm:$0xff]
        %v7217 = vld [vmem:[%s0 + $0x28] sm:$0xff]
        %v7218 = vld [vmem:[%s0 + $0x30] sm:$0xff]
        %v7219 = vld [vmem:[%s0 + $0x38] sm:$0xff]
        %v7220 = vld [vmem:[%s0 + $0x40] sm:$0xff]
        %v7221 = vld [vmem:[%s0 + $0x48] sm:$0xff]
        %v7222 = vld [vmem:[%s0 + $0x50] sm:$0xff]
        %v7223 = vld [vmem:[%s0 + $0x58] sm:$0xff]
        %v7224 = vld [vmem:[%s0 + $0x60] sm:$0xff]
        %v7225 = vld [vmem:[%s0 + $0x68] sm:$0xff]
        %v7226 = vld [vmem:[%s0 + $0x70] sm:$0xff]
        %v7227 = vld [vmem:[%s0 + $0x78] sm:$0xff]
        %v7228 = vld [vmem:[%s0 + $0x80] sm:$0xff]
        %v7229 = vld [vmem:[%s0 + $0x88] sm:$0xff]
        %v7230 = vld [vmem:[%s0 + $0x90] sm:$0xff]
        %v7231 = vld [vmem:[%s0 + $0x98] sm:$0xf]
        %v7232 = vld [vmem:[%s0 + $0x9c] sm:$0xff]
        %v7233 = vld [vmem:[%s0 + $0xa4] sm:$0xff]
        %v7234 = vld [vmem:[%s0 + $0xac] sm:$0xff]
        %v7235 = vld [vmem:[%s0 + $0xb4] sm:$0xff]
        %v7236 = vld [vmem:[%s0 + $0xbc] sm:$0xff]
        %v7237 = vld [vmem:[%s0 + $0xc4] sm:$0xff]
        %v7238 = vld [vmem:[%s0 + $0xcc] sm:$0xff]
        %v7239 = vld [vmem:[%s0 + $0xd4] sm:$0xff]
        %v7240 = vld [vmem:[%s0 + $0xdc] sm:$0xff]
        %v7241 = vld [vmem:[%s0 + $0xe4] sm:$0xff]
        %v7242 = vld [vmem:[%s0 + $0xec] sm:$0xff]
        %v7243 = vld [vmem:[%s0 + $0xf4] sm:$0xff]
        %v7244 = vld [vmem:[%s0 + $0xfc] sm:$0xff]
        %v7245 = vld [vmem:[%s0 + $0x104] sm:$0xff]
        %v7246 = vld [vmem:[%s0 + $0x10c] sm:$0xff]
        %v7247 = vld [vmem:[%s0 + $0x114] sm:$0xff]
        %v7248 = vld [vmem:[%s0 + $0x11c] sm:$0xff]
        %v7249 = vld [vmem:[%s0 + $0x124] sm:$0xff]
        %v7250 = vld [vmem:[%s0 + $0x12c] sm:$0xff]
        %v7251 = vld [vmem:[%s0 + $0x134] sm:$0xf]
        %v7292 = vunpack.c.l.b16 %v7212
        %v7293 = vunpack.c.h.b16 %v7212
        %v7294 = vunpack.c.l.b16 %v7213
        %v7295 = vunpack.c.h.b16 %v7213
        %v7296 = vunpack.c.l.b16 %v7214
        %v7297 = vunpack.c.h.b16 %v7214
        %v7298 = vunpack.c.l.b16 %v7215
        %v7299 = vunpack.c.h.b16 %v7215
        %v7300 = vunpack.c.l.b16 %v7216
        %v7301 = vunpack.c.h.b16 %v7216
        %v7302 = vunpack.c.l.b16 %v7217
        %v7303 = vunpack.c.h.b16 %v7217
        %v7304 = vunpack.c.l.b16 %v7218
        %v7305 = vunpack.c.h.b16 %v7218
        %v7306 = vunpack.c.l.b16 %v7219
        %v7307 = vunpack.c.h.b16 %v7219
        %v7308 = vunpack.c.l.b16 %v7220
        %v7309 = vunpack.c.h.b16 %v7220
        %v7310 = vunpack.c.l.b16 %v7221
        %v7311 = vunpack.c.h.b16 %v7221
        %v7312 = vunpack.c.l.b16 %v7222
        %v7313 = vunpack.c.h.b16 %v7222
        %v7314 = vunpack.c.l.b16 %v7223
        %v7315 = vunpack.c.h.b16 %v7223
        %v7316 = vunpack.c.l.b16 %v7224
        %v7317 = vunpack.c.h.b16 %v7224
        %v7318 = vunpack.c.l.b16 %v7225
        %v7319 = vunpack.c.h.b16 %v7225
        %v7320 = vunpack.c.l.b16 %v7226
        %v7321 = vunpack.c.h.b16 %v7226
        %v7322 = vunpack.c.l.b16 %v7227
        %v7323 = vunpack.c.h.b16 %v7227
        %v7324 = vunpack.c.l.b16 %v7228
        %v7325 = vunpack.c.h.b16 %v7228
        %v7326 = vunpack.c.l.b16 %v7229
        %v7327 = vunpack.c.h.b16 %v7229
        %v7328 = vunpack.c.l.b16 %v7230
        %v7329 = vunpack.c.h.b16 %v7230
        %v7330 = vunpack.c.l.b16 %v7231
        %v7331 = vunpack.c.l.b16 %v7232
        %v7332 = vunpack.c.h.b16 %v7232
        %v7333 = vunpack.c.l.b16 %v7233
        %v7334 = vunpack.c.h.b16 %v7233
        %v7335 = vunpack.c.l.b16 %v7234
        %v7336 = vunpack.c.h.b16 %v7234
        %v7337 = vunpack.c.l.b16 %v7235
        %v7338 = vunpack.c.h.b16 %v7235
        %v7339 = vunpack.c.l.b16 %v7236
        %v7340 = vunpack.c.h.b16 %v7236
        %v7341 = vunpack.c.l.b16 %v7237
        %v7342 = vunpack.c.h.b16 %v7237
        %v7343 = vunpack.c.l.b16 %v7238
        %v7344 = vunpack.c.h.b16 %v7238
        %v7345 = vunpack.c.l.b16 %v7239
        %v7346 = vunpack.c.h.b16 %v7239
        %v7347 = vunpack.c.l.b16 %v7240
        %v7348 = vunpack.c.h.b16 %v7240
        %v7349 = vunpack.c.l.b16 %v7241
        %v7350 = vunpack.c.h.b16 %v7241
        %v7351 = vunpack.c.l.b16 %v7242
        %v7352 = vunpack.c.h.b16 %v7242
        %v7353 = vunpack.c.l.b16 %v7243
        %v7354 = vunpack.c.h.b16 %v7243
        %v7355 = vunpack.c.l.b16 %v7244
        %v7356 = vunpack.c.h.b16 %v7244
        %v7357 = vunpack.c.l.b16 %v7245
        %v7358 = vunpack.c.h.b16 %v7245
        %v7359 = vunpack.c.l.b16 %v7246
        %v7360 = vunpack.c.h.b16 %v7246
        %v7361 = vunpack.c.l.b16 %v7247
        %v7362 = vunpack.c.h.b16 %v7247
        %v7363 = vunpack.c.l.b16 %v7248
        %v7364 = vunpack.c.h.b16 %v7248
        %v7365 = vunpack.c.l.b16 %v7249
        %v7366 = vunpack.c.h.b16 %v7249
        %v7367 = vunpack.c.l.b16 %v7250
        %v7368 = vunpack.c.h.b16 %v7250
        %v7369 = vunpack.c.l.b16 %v7251
        %v7370 = vpack.c.b16 %v7331, %v7292
        %v7371 = vpack.c.b16 %v7332, %v7293
        %v7372 = vpack.c.b16 %v7333, %v7294
        %v7373 = vpack.c.b16 %v7334, %v7295
        %v7374 = vpack.c.b16 %v7335, %v7296
        %v7375 = vpack.c.b16 %v7336, %v7297
        %v7376 = vpack.c.b16 %v7337, %v7298
        %v7377 = vpack.c.b16 %v7338, %v7299
        %v7378 = vpack.c.b16 %v7339, %v7300
        %v7379 = vpack.c.b16 %v7340, %v7301
        %v7380 = vpack.c.b16 %v7341, %v7302
        %v7381 = vpack.c.b16 %v7342, %v7303
        %v7382 = vpack.c.b16 %v7343, %v7304
        %v7383 = vpack.c.b16 %v7344, %v7305
        %v7384 = vpack.c.b16 %v7345, %v7306
        %v7385 = vpack.c.b16 %v7346, %v7307
        %v7386 = vpack.c.b16 %v7347, %v7308
        %v7387 = vpack.c.b16 %v7348, %v7309
        %v7388 = vpack.c.b16 %v7349, %v7310
        %v7389 = vpack.c.b16 %v7350, %v7311
        %v7390 = vpack.c.b16 %v7351, %v7312
        %v7391 = vpack.c.b16 %v7352, %v7313
        %v7392 = vpack.c.b16 %v7353, %v7314
        %v7393 = vpack.c.b16 %v7354, %v7315
        %v7394 = vpack.c.b16 %v7355, %v7316
        %v7395 = vpack.c.b16 %v7356, %v7317
        %v7396 = vpack.c.b16 %v7357, %v7318
        %v7397 = vpack.c.b16 %v7358, %v7319
        %v7398 = vpack.c.b16 %v7359, %v7320
        %v7399 = vpack.c.b16 %v7360, %v7321
        %v7400 = vpack.c.b16 %v7361, %v7322
        %v7401 = vpack.c.b16 %v7362, %v7323
        %v7402 = vpack.c.b16 %v7363, %v7324
        %v7403 = vpack.c.b16 %v7364, %v7325
        %v7404 = vpack.c.b16 %v7365, %v7326
        %v7405 = vpack.c.b16 %v7366, %v7327
        %v7406 = vpack.c.b16 %v7367, %v7328
        %v7407 = vpack.c.b16 %v7368, %v7329
        %v7408 = vpack.c.b16 %v7369, %v7330
        %7448 = vmatpush.bf16.msra.mxu0 %v5992
        %7449 = vmatpush.bf16.msra.mxu0 %v5988
        %7450 = vmatpush.bf16.msra.mxu0 %v5984
        %7451 = vmatpush.bf16.msra.mxu0 %v5980
        %7452 = vmatpush.bf16.msra.mxu0 %v5976
        %7453 = vmatpush.bf16.msra.mxu0 %v5972
        %7454 = vmatpush.bf16.msra.mxu0 %v5968
        %7455 = vmatpush.bf16.msra.mxu0 %v5964
        %7456 = vmatmul.bf16.gmra.mxu0 %v7370
        %v7457 = vpop.f32.mrf.mxu0
        %v7458 = vadd.f32 0.0, %v7457
        %v7459 = vpop.f32.mrf.mxu0
        %v7460 = vadd.f32 0.0, %v7459
        %7461 = vdwg.mxu0
        %7462 = vmatpush.bf16.msra.mxu0 %v6024
        %7463 = vmatpush.bf16.msra.mxu0 %v6020
        %7464 = vmatpush.bf16.msra.mxu0 %v6016
        %7465 = vmatpush.bf16.msra.mxu0 %v6012
        %7466 = vmatpush.bf16.msra.mxu0 %v6008
        %7467 = vmatpush.bf16.msra.mxu0 %v6004
        %7468 = vmatpush.bf16.msra.mxu0 %v6000
        %7469 = vmatpush.bf16.msra.mxu0 %v5996
        %7470 = vmatmul.bf16.gmra.mxu0 %v7371
        %v7471 = vpop.f32.mrf.mxu0
        %v7472 = vadd.f32 %v7458, %v7471
        %v7473 = vpop.f32.mrf.mxu0
        %v7474 = vadd.f32 %v7460, %v7473
        %7475 = vdwg.mxu0
        %7476 = vmatpush.bf16.msra.mxu0 %v6056
        %7477 = vmatpush.bf16.msra.mxu0 %v6052
        %7478 = vmatpush.bf16.msra.mxu0 %v6048
        %7479 = vmatpush.bf16.msra.mxu0 %v6044
        %7480 = vmatpush.bf16.msra.mxu0 %v6040
        %7481 = vmatpush.bf16.msra.mxu0 %v6036
        %7482 = vmatpush.bf16.msra.mxu0 %v6032
        %7483 = vmatpush.bf16.msra.mxu0 %v6028
        %7484 = vmatmul.bf16.gmra.mxu0 %v7372
        %v7485 = vpop.f32.mrf.mxu0
        %v7486 = vadd.f32 %v7472, %v7485
        %v7487 = vpop.f32.mrf.mxu0
        %v7488 = vadd.f32 %v7474, %v7487
        %7489 = vdwg.mxu0
        %7490 = vmatpush.bf16.msra.mxu0 %v6088
        %7491 = vmatpush.bf16.msra.mxu0 %v6084
        %7492 = vmatpush.bf16.msra.mxu0 %v6080
        %7493 = vmatpush.bf16.msra.mxu0 %v6076
        %7494 = vmatpush.bf16.msra.mxu0 %v6072
        %7495 = vmatpush.bf16.msra.mxu0 %v6068
        %7496 = vmatpush.bf16.msra.mxu0 %v6064
        %7497 = vmatpush.bf16.msra.mxu0 %v6060
        %7498 = vmatmul.bf16.gmra.mxu0 %v7373
        %v7499 = vpop.f32.mrf.mxu0
        %v7500 = vadd.f32 %v7486, %v7499
        %v7501 = vpop.f32.mrf.mxu0
        %v7502 = vadd.f32 %v7488, %v7501
        %7503 = vdwg.mxu0
        %7504 = vmatpush.bf16.msra.mxu0 %v6120
        %7505 = vmatpush.bf16.msra.mxu0 %v6116
        %7506 = vmatpush.bf16.msra.mxu0 %v6112
        %7507 = vmatpush.bf16.msra.mxu0 %v6108
        %7508 = vmatpush.bf16.msra.mxu0 %v6104
        %7509 = vmatpush.bf16.msra.mxu0 %v6100
        %7510 = vmatpush.bf16.msra.mxu0 %v6096
        %7511 = vmatpush.bf16.msra.mxu0 %v6092
        %7512 = vmatmul.bf16.gmra.mxu0 %v7374
        %v7513 = vpop.f32.mrf.mxu0
        %v7514 = vadd.f32 %v7500, %v7513
        %v7515 = vpop.f32.mrf.mxu0
        %v7516 = vadd.f32 %v7502, %v7515
        %7517 = vdwg.mxu0
        %7518 = vmatpush.bf16.msra.mxu0 %v6152
        %7519 = vmatpush.bf16.msra.mxu0 %v6148
        %7520 = vmatpush.bf16.msra.mxu0 %v6144
        %7521 = vmatpush.bf16.msra.mxu0 %v6140
        %7522 = vmatpush.bf16.msra.mxu0 %v6136
        %7523 = vmatpush.bf16.msra.mxu0 %v6132
        %7524 = vmatpush.bf16.msra.mxu0 %v6128
        %7525 = vmatpush.bf16.msra.mxu0 %v6124
        %7526 = vmatmul.bf16.gmra.mxu0 %v7375
        %v7527 = vpop.f32.mrf.mxu0
        %v7528 = vadd.f32 %v7514, %v7527
        %v7529 = vpop.f32.mrf.mxu0
        %v7530 = vadd.f32 %v7516, %v7529
        %7531 = vdwg.mxu0
        %7532 = vmatpush.bf16.msra.mxu0 %v6184
        %7533 = vmatpush.bf16.msra.mxu0 %v6180
        %7534 = vmatpush.bf16.msra.mxu0 %v6176
        %7535 = vmatpush.bf16.msra.mxu0 %v6172
        %7536 = vmatpush.bf16.msra.mxu0 %v6168
        %7537 = vmatpush.bf16.msra.mxu0 %v6164
        %7538 = vmatpush.bf16.msra.mxu0 %v6160
        %7539 = vmatpush.bf16.msra.mxu0 %v6156
        %7540 = vmatmul.bf16.gmra.mxu0 %v7376
        %v7541 = vpop.f32.mrf.mxu0
        %v7542 = vadd.f32 %v7528, %v7541
        %v7543 = vpop.f32.mrf.mxu0
        %v7544 = vadd.f32 %v7530, %v7543
        %7545 = vdwg.mxu0
        %7546 = vmatpush.bf16.msra.mxu0 %v6216
        %7547 = vmatpush.bf16.msra.mxu0 %v6212
        %7548 = vmatpush.bf16.msra.mxu0 %v6208
        %7549 = vmatpush.bf16.msra.mxu0 %v6204
        %7550 = vmatpush.bf16.msra.mxu0 %v6200
        %7551 = vmatpush.bf16.msra.mxu0 %v6196
        %7552 = vmatpush.bf16.msra.mxu0 %v6192
        %7553 = vmatpush.bf16.msra.mxu0 %v6188
        %7554 = vmatmul.bf16.gmra.mxu0 %v7377
        %v7555 = vpop.f32.mrf.mxu0
        %v7556 = vadd.f32 %v7542, %v7555
        %v7557 = vpop.f32.mrf.mxu0
        %v7558 = vadd.f32 %v7544, %v7557
        %7559 = vdwg.mxu0
        %7560 = vmatpush.bf16.msra.mxu0 %v6248
        %7561 = vmatpush.bf16.msra.mxu0 %v6244
        %7562 = vmatpush.bf16.msra.mxu0 %v6240
        %7563 = vmatpush.bf16.msra.mxu0 %v6236
        %7564 = vmatpush.bf16.msra.mxu0 %v6232
        %7565 = vmatpush.bf16.msra.mxu0 %v6228
        %7566 = vmatpush.bf16.msra.mxu0 %v6224
        %7567 = vmatpush.bf16.msra.mxu0 %v6220
        %7568 = vmatmul.bf16.gmra.mxu0 %v7378
        %v7569 = vpop.f32.mrf.mxu0
        %v7570 = vadd.f32 %v7556, %v7569
        %v7571 = vpop.f32.mrf.mxu0
        %v7572 = vadd.f32 %v7558, %v7571
        %7573 = vdwg.mxu0
        %7574 = vmatpush.bf16.msra.mxu0 %v6280
        %7575 = vmatpush.bf16.msra.mxu0 %v6276
        %7576 = vmatpush.bf16.msra.mxu0 %v6272
        %7577 = vmatpush.bf16.msra.mxu0 %v6268
        %7578 = vmatpush.bf16.msra.mxu0 %v6264
        %7579 = vmatpush.bf16.msra.mxu0 %v6260
        %7580 = vmatpush.bf16.msra.mxu0 %v6256
        %7581 = vmatpush.bf16.msra.mxu0 %v6252
        %7582 = vmatmul.bf16.gmra.mxu0 %v7379
        %v7583 = vpop.f32.mrf.mxu0
        %v7584 = vadd.f32 %v7570, %v7583
        %v7585 = vpop.f32.mrf.mxu0
        %v7586 = vadd.f32 %v7572, %v7585
        %7587 = vdwg.mxu0
        %7588 = vmatpush.bf16.msra.mxu0 %v6312
        %7589 = vmatpush.bf16.msra.mxu0 %v6308
        %7590 = vmatpush.bf16.msra.mxu0 %v6304
        %7591 = vmatpush.bf16.msra.mxu0 %v6300
        %7592 = vmatpush.bf16.msra.mxu0 %v6296
        %7593 = vmatpush.bf16.msra.mxu0 %v6292
        %7594 = vmatpush.bf16.msra.mxu0 %v6288
        %7595 = vmatpush.bf16.msra.mxu0 %v6284
        %7596 = vmatmul.bf16.gmra.mxu0 %v7380
        %v7597 = vpop.f32.mrf.mxu0
        %v7598 = vadd.f32 %v7584, %v7597
        %v7599 = vpop.f32.mrf.mxu0
        %v7600 = vadd.f32 %v7586, %v7599
        %7601 = vdwg.mxu0
        %7602 = vmatpush.bf16.msra.mxu0 %v6344
        %7603 = vmatpush.bf16.msra.mxu0 %v6340
        %7604 = vmatpush.bf16.msra.mxu0 %v6336
        %7605 = vmatpush.bf16.msra.mxu0 %v6332
        %7606 = vmatpush.bf16.msra.mxu0 %v6328
        %7607 = vmatpush.bf16.msra.mxu0 %v6324
        %7608 = vmatpush.bf16.msra.mxu0 %v6320
        %7609 = vmatpush.bf16.msra.mxu0 %v6316
        %7610 = vmatmul.bf16.gmra.mxu0 %v7381
        %v7611 = vpop.f32.mrf.mxu0
        %v7612 = vadd.f32 %v7598, %v7611
        %v7613 = vpop.f32.mrf.mxu0
        %v7614 = vadd.f32 %v7600, %v7613
        %7615 = vdwg.mxu0
        %7616 = vmatpush.bf16.msra.mxu0 %v6376
        %7617 = vmatpush.bf16.msra.mxu0 %v6372
        %7618 = vmatpush.bf16.msra.mxu0 %v6368
        %7619 = vmatpush.bf16.msra.mxu0 %v6364
        %7620 = vmatpush.bf16.msra.mxu0 %v6360
        %7621 = vmatpush.bf16.msra.mxu0 %v6356
        %7622 = vmatpush.bf16.msra.mxu0 %v6352
        %7623 = vmatpush.bf16.msra.mxu0 %v6348
        %7624 = vmatmul.bf16.gmra.mxu0 %v7382
        %v7625 = vpop.f32.mrf.mxu0
        %v7626 = vadd.f32 %v7612, %v7625
        %v7627 = vpop.f32.mrf.mxu0
        %v7628 = vadd.f32 %v7614, %v7627
        %7629 = vdwg.mxu0
        %7630 = vmatpush.bf16.msra.mxu0 %v6408
        %7631 = vmatpush.bf16.msra.mxu0 %v6404
        %7632 = vmatpush.bf16.msra.mxu0 %v6400
        %7633 = vmatpush.bf16.msra.mxu0 %v6396
        %7634 = vmatpush.bf16.msra.mxu0 %v6392
        %7635 = vmatpush.bf16.msra.mxu0 %v6388
        %7636 = vmatpush.bf16.msra.mxu0 %v6384
        %7637 = vmatpush.bf16.msra.mxu0 %v6380
        %7638 = vmatmul.bf16.gmra.mxu0 %v7383
        %v7639 = vpop.f32.mrf.mxu0
        %v7640 = vadd.f32 %v7626, %v7639
        %v7641 = vpop.f32.mrf.mxu0
        %v7642 = vadd.f32 %v7628, %v7641
        %7643 = vdwg.mxu0
        %7644 = vmatpush.bf16.msra.mxu0 %v6440
        %7645 = vmatpush.bf16.msra.mxu0 %v6436
        %7646 = vmatpush.bf16.msra.mxu0 %v6432
        %7647 = vmatpush.bf16.msra.mxu0 %v6428
        %7648 = vmatpush.bf16.msra.mxu0 %v6424
        %7649 = vmatpush.bf16.msra.mxu0 %v6420
        %7650 = vmatpush.bf16.msra.mxu0 %v6416
        %7651 = vmatpush.bf16.msra.mxu0 %v6412
        %7652 = vmatmul.bf16.gmra.mxu0 %v7384
        %v7653 = vpop.f32.mrf.mxu0
        %v7654 = vadd.f32 %v7640, %v7653
        %v7655 = vpop.f32.mrf.mxu0
        %v7656 = vadd.f32 %v7642, %v7655
        %7657 = vdwg.mxu0
        %7658 = vmatpush.bf16.msra.mxu0 %v6472
        %7659 = vmatpush.bf16.msra.mxu0 %v6468
        %7660 = vmatpush.bf16.msra.mxu0 %v6464
        %7661 = vmatpush.bf16.msra.mxu0 %v6460
        %7662 = vmatpush.bf16.msra.mxu0 %v6456
        %7663 = vmatpush.bf16.msra.mxu0 %v6452
        %7664 = vmatpush.bf16.msra.mxu0 %v6448
        %7665 = vmatpush.bf16.msra.mxu0 %v6444
        %7666 = vmatmul.bf16.gmra.mxu0 %v7385
        %v7667 = vpop.f32.mrf.mxu0
        %v7668 = vadd.f32 %v7654, %v7667
        %v7669 = vpop.f32.mrf.mxu0
        %v7670 = vadd.f32 %v7656, %v7669
        %7671 = vdwg.mxu0
        %7672 = vmatpush.bf16.msra.mxu0 %v6504
        %7673 = vmatpush.bf16.msra.mxu0 %v6500
        %7674 = vmatpush.bf16.msra.mxu0 %v6496
        %7675 = vmatpush.bf16.msra.mxu0 %v6492
        %7676 = vmatpush.bf16.msra.mxu0 %v6488
        %7677 = vmatpush.bf16.msra.mxu0 %v6484
        %7678 = vmatpush.bf16.msra.mxu0 %v6480
        %7679 = vmatpush.bf16.msra.mxu0 %v6476
        %7680 = vmatmul.bf16.gmra.mxu0 %v7386
        %v7681 = vpop.f32.mrf.mxu0
        %v7682 = vadd.f32 %v7668, %v7681
        %v7683 = vpop.f32.mrf.mxu0
        %v7684 = vadd.f32 %v7670, %v7683
        %7685 = vdwg.mxu0
        %7686 = vmatpush.bf16.msra.mxu0 %v6536
        %7687 = vmatpush.bf16.msra.mxu0 %v6532
        %7688 = vmatpush.bf16.msra.mxu0 %v6528
        %7689 = vmatpush.bf16.msra.mxu0 %v6524
        %7690 = vmatpush.bf16.msra.mxu0 %v6520
        %7691 = vmatpush.bf16.msra.mxu0 %v6516
        %7692 = vmatpush.bf16.msra.mxu0 %v6512
        %7693 = vmatpush.bf16.msra.mxu0 %v6508
        %7694 = vmatmul.bf16.gmra.mxu0 %v7387
        %v7695 = vpop.f32.mrf.mxu0
        %v7696 = vadd.f32 %v7682, %v7695
        %v7697 = vpop.f32.mrf.mxu0
        %v7698 = vadd.f32 %v7684, %v7697
        %7699 = vdwg.mxu0
        %7700 = vmatpush.bf16.msra.mxu0 %v6568
        %7701 = vmatpush.bf16.msra.mxu0 %v6564
        %7702 = vmatpush.bf16.msra.mxu0 %v6560
        %7703 = vmatpush.bf16.msra.mxu0 %v6556
        %7704 = vmatpush.bf16.msra.mxu0 %v6552
        %7705 = vmatpush.bf16.msra.mxu0 %v6548
        %7706 = vmatpush.bf16.msra.mxu0 %v6544
        %7707 = vmatpush.bf16.msra.mxu0 %v6540
        %7708 = vmatmul.bf16.gmra.mxu0 %v7388
        %v7709 = vpop.f32.mrf.mxu0
        %v7710 = vadd.f32 %v7696, %v7709
        %v7711 = vpop.f32.mrf.mxu0
        %v7712 = vadd.f32 %v7698, %v7711
        %7713 = vdwg.mxu0
        %7714 = vmatpush.bf16.msra.mxu0 %v6600
        %7715 = vmatpush.bf16.msra.mxu0 %v6596
        %7716 = vmatpush.bf16.msra.mxu0 %v6592
        %7717 = vmatpush.bf16.msra.mxu0 %v6588
        %7718 = vmatpush.bf16.msra.mxu0 %v6584
        %7719 = vmatpush.bf16.msra.mxu0 %v6580
        %7720 = vmatpush.bf16.msra.mxu0 %v6576
        %7721 = vmatpush.bf16.msra.mxu0 %v6572
        %7722 = vmatmul.bf16.gmra.mxu0 %v7389
        %v7723 = vpop.f32.mrf.mxu0
        %v7724 = vadd.f32 %v7710, %v7723
        %v7725 = vpop.f32.mrf.mxu0
        %v7726 = vadd.f32 %v7712, %v7725
        %7727 = vdwg.mxu0
        %7728 = vmatpush.bf16.msra.mxu0 %v6632
        %7729 = vmatpush.bf16.msra.mxu0 %v6628
        %7730 = vmatpush.bf16.msra.mxu0 %v6624
        %7731 = vmatpush.bf16.msra.mxu0 %v6620
        %7732 = vmatpush.bf16.msra.mxu0 %v6616
        %7733 = vmatpush.bf16.msra.mxu0 %v6612
        %7734 = vmatpush.bf16.msra.mxu0 %v6608
        %7735 = vmatpush.bf16.msra.mxu0 %v6604
        %7736 = vmatmul.bf16.gmra.mxu0 %v7390
        %v7737 = vpop.f32.mrf.mxu0
        %v7738 = vadd.f32 %v7724, %v7737
        %v7739 = vpop.f32.mrf.mxu0
        %v7740 = vadd.f32 %v7726, %v7739
        %7741 = vdwg.mxu0
        %7742 = vmatpush.bf16.msra.mxu0 %v6664
        %7743 = vmatpush.bf16.msra.mxu0 %v6660
        %7744 = vmatpush.bf16.msra.mxu0 %v6656
        %7745 = vmatpush.bf16.msra.mxu0 %v6652
        %7746 = vmatpush.bf16.msra.mxu0 %v6648
        %7747 = vmatpush.bf16.msra.mxu0 %v6644
        %7748 = vmatpush.bf16.msra.mxu0 %v6640
        %7749 = vmatpush.bf16.msra.mxu0 %v6636
        %7750 = vmatmul.bf16.gmra.mxu0 %v7391
        %v7751 = vpop.f32.mrf.mxu0
        %v7752 = vadd.f32 %v7738, %v7751
        %v7753 = vpop.f32.mrf.mxu0
        %v7754 = vadd.f32 %v7740, %v7753
        %7755 = vdwg.mxu0
        %7756 = vmatpush.bf16.msra.mxu0 %v6696
        %7757 = vmatpush.bf16.msra.mxu0 %v6692
        %7758 = vmatpush.bf16.msra.mxu0 %v6688
        %7759 = vmatpush.bf16.msra.mxu0 %v6684
        %7760 = vmatpush.bf16.msra.mxu0 %v6680
        %7761 = vmatpush.bf16.msra.mxu0 %v6676
        %7762 = vmatpush.bf16.msra.mxu0 %v6672
        %7763 = vmatpush.bf16.msra.mxu0 %v6668
        %7764 = vmatmul.bf16.gmra.mxu0 %v7392
        %v7765 = vpop.f32.mrf.mxu0
        %v7766 = vadd.f32 %v7752, %v7765
        %v7767 = vpop.f32.mrf.mxu0
        %v7768 = vadd.f32 %v7754, %v7767
        %7769 = vdwg.mxu0
        %7770 = vmatpush.bf16.msra.mxu0 %v6728
        %7771 = vmatpush.bf16.msra.mxu0 %v6724
        %7772 = vmatpush.bf16.msra.mxu0 %v6720
        %7773 = vmatpush.bf16.msra.mxu0 %v6716
        %7774 = vmatpush.bf16.msra.mxu0 %v6712
        %7775 = vmatpush.bf16.msra.mxu0 %v6708
        %7776 = vmatpush.bf16.msra.mxu0 %v6704
        %7777 = vmatpush.bf16.msra.mxu0 %v6700
        %7778 = vmatmul.bf16.gmra.mxu0 %v7393
        %v7779 = vpop.f32.mrf.mxu0
        %v7780 = vadd.f32 %v7766, %v7779
        %v7781 = vpop.f32.mrf.mxu0
        %v7782 = vadd.f32 %v7768, %v7781
        %7783 = vdwg.mxu0
        %7784 = vmatpush.bf16.msra.mxu0 %v6760
        %7785 = vmatpush.bf16.msra.mxu0 %v6756
        %7786 = vmatpush.bf16.msra.mxu0 %v6752
        %7787 = vmatpush.bf16.msra.mxu0 %v6748
        %7788 = vmatpush.bf16.msra.mxu0 %v6744
        %7789 = vmatpush.bf16.msra.mxu0 %v6740
        %7790 = vmatpush.bf16.msra.mxu0 %v6736
        %7791 = vmatpush.bf16.msra.mxu0 %v6732
        %7792 = vmatmul.bf16.gmra.mxu0 %v7394
        %v7793 = vpop.f32.mrf.mxu0
        %v7794 = vadd.f32 %v7780, %v7793
        %v7795 = vpop.f32.mrf.mxu0
        %v7796 = vadd.f32 %v7782, %v7795
        %7797 = vdwg.mxu0
        %7798 = vmatpush.bf16.msra.mxu0 %v6792
        %7799 = vmatpush.bf16.msra.mxu0 %v6788
        %7800 = vmatpush.bf16.msra.mxu0 %v6784
        %7801 = vmatpush.bf16.msra.mxu0 %v6780
        %7802 = vmatpush.bf16.msra.mxu0 %v6776
        %7803 = vmatpush.bf16.msra.mxu0 %v6772
        %7804 = vmatpush.bf16.msra.mxu0 %v6768
        %7805 = vmatpush.bf16.msra.mxu0 %v6764
        %7806 = vmatmul.bf16.gmra.mxu0 %v7395
        %v7807 = vpop.f32.mrf.mxu0
        %v7808 = vadd.f32 %v7794, %v7807
        %v7809 = vpop.f32.mrf.mxu0
        %v7810 = vadd.f32 %v7796, %v7809
        %7811 = vdwg.mxu0
        %7812 = vmatpush.bf16.msra.mxu0 %v6824
        %7813 = vmatpush.bf16.msra.mxu0 %v6820
        %7814 = vmatpush.bf16.msra.mxu0 %v6816
        %7815 = vmatpush.bf16.msra.mxu0 %v6812
        %7816 = vmatpush.bf16.msra.mxu0 %v6808
        %7817 = vmatpush.bf16.msra.mxu0 %v6804
        %7818 = vmatpush.bf16.msra.mxu0 %v6800
        %7819 = vmatpush.bf16.msra.mxu0 %v6796
        %7820 = vmatmul.bf16.gmra.mxu0 %v7396
        %v7821 = vpop.f32.mrf.mxu0
        %v7822 = vadd.f32 %v7808, %v7821
        %v7823 = vpop.f32.mrf.mxu0
        %v7824 = vadd.f32 %v7810, %v7823
        %7825 = vdwg.mxu0
        %7826 = vmatpush.bf16.msra.mxu0 %v6856
        %7827 = vmatpush.bf16.msra.mxu0 %v6852
        %7828 = vmatpush.bf16.msra.mxu0 %v6848
        %7829 = vmatpush.bf16.msra.mxu0 %v6844
        %7830 = vmatpush.bf16.msra.mxu0 %v6840
        %7831 = vmatpush.bf16.msra.mxu0 %v6836
        %7832 = vmatpush.bf16.msra.mxu0 %v6832
        %7833 = vmatpush.bf16.msra.mxu0 %v6828
        %7834 = vmatmul.bf16.gmra.mxu0 %v7397
        %v7835 = vpop.f32.mrf.mxu0
        %v7836 = vadd.f32 %v7822, %v7835
        %v7837 = vpop.f32.mrf.mxu0
        %v7838 = vadd.f32 %v7824, %v7837
        %7839 = vdwg.mxu0
        %7840 = vmatpush.bf16.msra.mxu0 %v6888
        %7841 = vmatpush.bf16.msra.mxu0 %v6884
        %7842 = vmatpush.bf16.msra.mxu0 %v6880
        %7843 = vmatpush.bf16.msra.mxu0 %v6876
        %7844 = vmatpush.bf16.msra.mxu0 %v6872
        %7845 = vmatpush.bf16.msra.mxu0 %v6868
        %7846 = vmatpush.bf16.msra.mxu0 %v6864
        %7847 = vmatpush.bf16.msra.mxu0 %v6860
        %7848 = vmatmul.bf16.gmra.mxu0 %v7398
        %v7849 = vpop.f32.mrf.mxu0
        %v7850 = vadd.f32 %v7836, %v7849
        %v7851 = vpop.f32.mrf.mxu0
        %v7852 = vadd.f32 %v7838, %v7851
        %7853 = vdwg.mxu0
        %7854 = vmatpush.bf16.msra.mxu0 %v6920
        %7855 = vmatpush.bf16.msra.mxu0 %v6916
        %7856 = vmatpush.bf16.msra.mxu0 %v6912
        %7857 = vmatpush.bf16.msra.mxu0 %v6908
        %7858 = vmatpush.bf16.msra.mxu0 %v6904
        %7859 = vmatpush.bf16.msra.mxu0 %v6900
        %7860 = vmatpush.bf16.msra.mxu0 %v6896
        %7861 = vmatpush.bf16.msra.mxu0 %v6892
        %7862 = vmatmul.bf16.gmra.mxu0 %v7399
        %v7863 = vpop.f32.mrf.mxu0
        %v7864 = vadd.f32 %v7850, %v7863
        %v7865 = vpop.f32.mrf.mxu0
        %v7866 = vadd.f32 %v7852, %v7865
        %7867 = vdwg.mxu0
        %7868 = vmatpush.bf16.msra.mxu0 %v6952
        %7869 = vmatpush.bf16.msra.mxu0 %v6948
        %7870 = vmatpush.bf16.msra.mxu0 %v6944
        %7871 = vmatpush.bf16.msra.mxu0 %v6940
        %7872 = vmatpush.bf16.msra.mxu0 %v6936
        %7873 = vmatpush.bf16.msra.mxu0 %v6932
        %7874 = vmatpush.bf16.msra.mxu0 %v6928
        %7875 = vmatpush.bf16.msra.mxu0 %v6924
        %7876 = vmatmul.bf16.gmra.mxu0 %v7400
        %v7877 = vpop.f32.mrf.mxu0
        %v7878 = vadd.f32 %v7864, %v7877
        %v7879 = vpop.f32.mrf.mxu0
        %v7880 = vadd.f32 %v7866, %v7879
        %7881 = vdwg.mxu0
        %7882 = vmatpush.bf16.msra.mxu0 %v6984
        %7883 = vmatpush.bf16.msra.mxu0 %v6980
        %7884 = vmatpush.bf16.msra.mxu0 %v6976
        %7885 = vmatpush.bf16.msra.mxu0 %v6972
        %7886 = vmatpush.bf16.msra.mxu0 %v6968
        %7887 = vmatpush.bf16.msra.mxu0 %v6964
        %7888 = vmatpush.bf16.msra.mxu0 %v6960
        %7889 = vmatpush.bf16.msra.mxu0 %v6956
        %7890 = vmatmul.bf16.gmra.mxu0 %v7401
        %v7891 = vpop.f32.mrf.mxu0
        %v7892 = vadd.f32 %v7878, %v7891
        %v7893 = vpop.f32.mrf.mxu0
        %v7894 = vadd.f32 %v7880, %v7893
        %7895 = vdwg.mxu0
        %7896 = vmatpush.bf16.msra.mxu0 %v7016
        %7897 = vmatpush.bf16.msra.mxu0 %v7012
        %7898 = vmatpush.bf16.msra.mxu0 %v7008
        %7899 = vmatpush.bf16.msra.mxu0 %v7004
        %7900 = vmatpush.bf16.msra.mxu0 %v7000
        %7901 = vmatpush.bf16.msra.mxu0 %v6996
        %7902 = vmatpush.bf16.msra.mxu0 %v6992
        %7903 = vmatpush.bf16.msra.mxu0 %v6988
        %7904 = vmatmul.bf16.gmra.mxu0 %v7402
        %v7905 = vpop.f32.mrf.mxu0
        %v7906 = vadd.f32 %v7892, %v7905
        %v7907 = vpop.f32.mrf.mxu0
        %v7908 = vadd.f32 %v7894, %v7907
        %7909 = vdwg.mxu0
        %7910 = vmatpush.bf16.msra.mxu0 %v7048
        %7911 = vmatpush.bf16.msra.mxu0 %v7044
        %7912 = vmatpush.bf16.msra.mxu0 %v7040
        %7913 = vmatpush.bf16.msra.mxu0 %v7036
        %7914 = vmatpush.bf16.msra.mxu0 %v7032
        %7915 = vmatpush.bf16.msra.mxu0 %v7028
        %7916 = vmatpush.bf16.msra.mxu0 %v7024
        %7917 = vmatpush.bf16.msra.mxu0 %v7020
        %7918 = vmatmul.bf16.gmra.mxu0 %v7403
        %v7919 = vpop.f32.mrf.mxu0
        %v7920 = vadd.f32 %v7906, %v7919
        %v7921 = vpop.f32.mrf.mxu0
        %v7922 = vadd.f32 %v7908, %v7921
        %7923 = vdwg.mxu0
        %7924 = vmatpush.bf16.msra.mxu0 %v7080
        %7925 = vmatpush.bf16.msra.mxu0 %v7076
        %7926 = vmatpush.bf16.msra.mxu0 %v7072
        %7927 = vmatpush.bf16.msra.mxu0 %v7068
        %7928 = vmatpush.bf16.msra.mxu0 %v7064
        %7929 = vmatpush.bf16.msra.mxu0 %v7060
        %7930 = vmatpush.bf16.msra.mxu0 %v7056
        %7931 = vmatpush.bf16.msra.mxu0 %v7052
        %7932 = vmatmul.bf16.gmra.mxu0 %v7404
        %v7933 = vpop.f32.mrf.mxu0
        %v7934 = vadd.f32 %v7920, %v7933
        %v7935 = vpop.f32.mrf.mxu0
        %v7936 = vadd.f32 %v7922, %v7935
        %7937 = vdwg.mxu0
        %7938 = vmatpush.bf16.msra.mxu0 %v7112
        %7939 = vmatpush.bf16.msra.mxu0 %v7108
        %7940 = vmatpush.bf16.msra.mxu0 %v7104
        %7941 = vmatpush.bf16.msra.mxu0 %v7100
        %7942 = vmatpush.bf16.msra.mxu0 %v7096
        %7943 = vmatpush.bf16.msra.mxu0 %v7092
        %7944 = vmatpush.bf16.msra.mxu0 %v7088
        %7945 = vmatpush.bf16.msra.mxu0 %v7084
        %7946 = vmatmul.bf16.gmra.mxu0 %v7405
        %v7947 = vpop.f32.mrf.mxu0
        %v7948 = vadd.f32 %v7934, %v7947
        %v7949 = vpop.f32.mrf.mxu0
        %v7950 = vadd.f32 %v7936, %v7949
        %7951 = vdwg.mxu0
        %7952 = vmatpush.bf16.msra.mxu0 %v7144
        %7953 = vmatpush.bf16.msra.mxu0 %v7140
        %7954 = vmatpush.bf16.msra.mxu0 %v7136
        %7955 = vmatpush.bf16.msra.mxu0 %v7132
        %7956 = vmatpush.bf16.msra.mxu0 %v7128
        %7957 = vmatpush.bf16.msra.mxu0 %v7124
        %7958 = vmatpush.bf16.msra.mxu0 %v7120
        %7959 = vmatpush.bf16.msra.mxu0 %v7116
        %7960 = vmatmul.bf16.gmra.mxu0 %v7406
        %v7961 = vpop.f32.mrf.mxu0
        %v7962 = vadd.f32 %v7948, %v7961
        %v7963 = vpop.f32.mrf.mxu0
        %v7964 = vadd.f32 %v7950, %v7963
        %7965 = vdwg.mxu0
        %7966 = vmatpush.bf16.msra.mxu0 %v7176
        %7967 = vmatpush.bf16.msra.mxu0 %v7172
        %7968 = vmatpush.bf16.msra.mxu0 %v7168
        %7969 = vmatpush.bf16.msra.mxu0 %v7164
        %7970 = vmatpush.bf16.msra.mxu0 %v7160
        %7971 = vmatpush.bf16.msra.mxu0 %v7156
        %7972 = vmatpush.bf16.msra.mxu0 %v7152
        %7973 = vmatpush.bf16.msra.mxu0 %v7148
        %7974 = vmatmul.bf16.gmra.mxu0 %v7407
        %v7975 = vpop.f32.mrf.mxu0
        %v7976 = vadd.f32 %v7962, %v7975
        %v7977 = vpop.f32.mrf.mxu0
        %v7978 = vadd.f32 %v7964, %v7977
        %7979 = vdwg.mxu0
        %7980 = vmatpush.bf16.msra.mxu0 %v7208
        %7981 = vmatpush.bf16.msra.mxu0 %v7204
        %7982 = vmatpush.bf16.msra.mxu0 %v7200
        %7983 = vmatpush.bf16.msra.mxu0 %v7196
        %7984 = vmatpush.bf16.msra.mxu0 %v7192
        %7985 = vmatpush.bf16.msra.mxu0 %v7188
        %7986 = vmatpush.bf16.msra.mxu0 %v7184
        %7987 = vmatpush.bf16.msra.mxu0 %v7180
        %7988 = vmatmul.bf16.gmra.mxu0 %v7408
        %v7989 = vpop.f32.mrf.mxu0
        %v7990 = vadd.f32 %v7976, %v7989
        %v7991 = vpop.f32.mrf.mxu0
        %v7992 = vadd.f32 %v7978, %v7991
        %7993 = vdwg.mxu0
        %7994 = vmatpush.bf16.msra.mxu0 %v5993
        %7995 = vmatpush.bf16.msra.mxu0 %v5989
        %7996 = vmatpush.bf16.msra.mxu0 %v5985
        %7997 = vmatpush.bf16.msra.mxu0 %v5981
        %7998 = vmatpush.bf16.msra.mxu0 %v5977
        %7999 = vmatpush.bf16.msra.mxu0 %v5973
        %8000 = vmatpush.bf16.msra.mxu0 %v5969
        %8001 = vmatpush.bf16.msra.mxu0 %v5965
        %8002 = vmatmul.bf16.gmra.mxu0 %v7370
        %v8003 = vpop.f32.mrf.mxu0
        %v8004 = vadd.f32 0.0, %v8003
        %v8005 = vpop.f32.mrf.mxu0
        %v8006 = vadd.f32 0.0, %v8005
        %8007 = vdwg.mxu0
        %8008 = vmatpush.bf16.msra.mxu0 %v6025
        %8009 = vmatpush.bf16.msra.mxu0 %v6021
        %8010 = vmatpush.bf16.msra.mxu0 %v6017
        %8011 = vmatpush.bf16.msra.mxu0 %v6013
        %8012 = vmatpush.bf16.msra.mxu0 %v6009
        %8013 = vmatpush.bf16.msra.mxu0 %v6005
        %8014 = vmatpush.bf16.msra.mxu0 %v6001
        %8015 = vmatpush.bf16.msra.mxu0 %v5997
        %8016 = vmatmul.bf16.gmra.mxu0 %v7371
        %v8017 = vpop.f32.mrf.mxu0
        %v8018 = vadd.f32 %v8004, %v8017
        %v8019 = vpop.f32.mrf.mxu0
        %v8020 = vadd.f32 %v8006, %v8019
        %8021 = vdwg.mxu0
        %8022 = vmatpush.bf16.msra.mxu0 %v6057
        %8023 = vmatpush.bf16.msra.mxu0 %v6053
        %8024 = vmatpush.bf16.msra.mxu0 %v6049
        %8025 = vmatpush.bf16.msra.mxu0 %v6045
        %8026 = vmatpush.bf16.msra.mxu0 %v6041
        %8027 = vmatpush.bf16.msra.mxu0 %v6037
        %8028 = vmatpush.bf16.msra.mxu0 %v6033
        %8029 = vmatpush.bf16.msra.mxu0 %v6029
        %8030 = vmatmul.bf16.gmra.mxu0 %v7372
        %v8031 = vpop.f32.mrf.mxu0
        %v8032 = vadd.f32 %v8018, %v8031
        %v8033 = vpop.f32.mrf.mxu0
        %v8034 = vadd.f32 %v8020, %v8033
        %8035 = vdwg.mxu0
        %8036 = vmatpush.bf16.msra.mxu0 %v6089
        %8037 = vmatpush.bf16.msra.mxu0 %v6085
        %8038 = vmatpush.bf16.msra.mxu0 %v6081
        %8039 = vmatpush.bf16.msra.mxu0 %v6077
        %8040 = vmatpush.bf16.msra.mxu0 %v6073
        %8041 = vmatpush.bf16.msra.mxu0 %v6069
        %8042 = vmatpush.bf16.msra.mxu0 %v6065
        %8043 = vmatpush.bf16.msra.mxu0 %v6061
        %8044 = vmatmul.bf16.gmra.mxu0 %v7373
        %v8045 = vpop.f32.mrf.mxu0
        %v8046 = vadd.f32 %v8032, %v8045
        %v8047 = vpop.f32.mrf.mxu0
        %v8048 = vadd.f32 %v8034, %v8047
        %8049 = vdwg.mxu0
        %8050 = vmatpush.bf16.msra.mxu0 %v6121
        %8051 = vmatpush.bf16.msra.mxu0 %v6117
        %8052 = vmatpush.bf16.msra.mxu0 %v6113
        %8053 = vmatpush.bf16.msra.mxu0 %v6109
        %8054 = vmatpush.bf16.msra.mxu0 %v6105
        %8055 = vmatpush.bf16.msra.mxu0 %v6101
        %8056 = vmatpush.bf16.msra.mxu0 %v6097
        %8057 = vmatpush.bf16.msra.mxu0 %v6093
        %8058 = vmatmul.bf16.gmra.mxu0 %v7374
        %v8059 = vpop.f32.mrf.mxu0
        %v8060 = vadd.f32 %v8046, %v8059
        %v8061 = vpop.f32.mrf.mxu0
        %v8062 = vadd.f32 %v8048, %v8061
        %8063 = vdwg.mxu0
        %8064 = vmatpush.bf16.msra.mxu0 %v6153
        %8065 = vmatpush.bf16.msra.mxu0 %v6149
        %8066 = vmatpush.bf16.msra.mxu0 %v6145
        %8067 = vmatpush.bf16.msra.mxu0 %v6141
        %8068 = vmatpush.bf16.msra.mxu0 %v6137
        %8069 = vmatpush.bf16.msra.mxu0 %v6133
        %8070 = vmatpush.bf16.msra.mxu0 %v6129
        %8071 = vmatpush.bf16.msra.mxu0 %v6125
        %8072 = vmatmul.bf16.gmra.mxu0 %v7375
        %v8073 = vpop.f32.mrf.mxu0
        %v8074 = vadd.f32 %v8060, %v8073
        %v8075 = vpop.f32.mrf.mxu0
        %v8076 = vadd.f32 %v8062, %v8075
        %8077 = vdwg.mxu0
        %8078 = vmatpush.bf16.msra.mxu0 %v6185
        %8079 = vmatpush.bf16.msra.mxu0 %v6181
        %8080 = vmatpush.bf16.msra.mxu0 %v6177
        %8081 = vmatpush.bf16.msra.mxu0 %v6173
        %8082 = vmatpush.bf16.msra.mxu0 %v6169
        %8083 = vmatpush.bf16.msra.mxu0 %v6165
        %8084 = vmatpush.bf16.msra.mxu0 %v6161
        %8085 = vmatpush.bf16.msra.mxu0 %v6157
        %8086 = vmatmul.bf16.gmra.mxu0 %v7376
        %v8087 = vpop.f32.mrf.mxu0
        %v8088 = vadd.f32 %v8074, %v8087
        %v8089 = vpop.f32.mrf.mxu0
        %v8090 = vadd.f32 %v8076, %v8089
        %8091 = vdwg.mxu0
        %8092 = vmatpush.bf16.msra.mxu0 %v6217
        %8093 = vmatpush.bf16.msra.mxu0 %v6213
        %8094 = vmatpush.bf16.msra.mxu0 %v6209
        %8095 = vmatpush.bf16.msra.mxu0 %v6205
        %8096 = vmatpush.bf16.msra.mxu0 %v6201
        %8097 = vmatpush.bf16.msra.mxu0 %v6197
        %8098 = vmatpush.bf16.msra.mxu0 %v6193
        %8099 = vmatpush.bf16.msra.mxu0 %v6189
        %8100 = vmatmul.bf16.gmra.mxu0 %v7377
        %v8101 = vpop.f32.mrf.mxu0
        %v8102 = vadd.f32 %v8088, %v8101
        %v8103 = vpop.f32.mrf.mxu0
        %v8104 = vadd.f32 %v8090, %v8103
        %8105 = vdwg.mxu0
        %8106 = vmatpush.bf16.msra.mxu0 %v6249
        %8107 = vmatpush.bf16.msra.mxu0 %v6245
        %8108 = vmatpush.bf16.msra.mxu0 %v6241
        %8109 = vmatpush.bf16.msra.mxu0 %v6237
        %8110 = vmatpush.bf16.msra.mxu0 %v6233
        %8111 = vmatpush.bf16.msra.mxu0 %v6229
        %8112 = vmatpush.bf16.msra.mxu0 %v6225
        %8113 = vmatpush.bf16.msra.mxu0 %v6221
        %8114 = vmatmul.bf16.gmra.mxu0 %v7378
        %v8115 = vpop.f32.mrf.mxu0
        %v8116 = vadd.f32 %v8102, %v8115
        %v8117 = vpop.f32.mrf.mxu0
        %v8118 = vadd.f32 %v8104, %v8117
        %8119 = vdwg.mxu0
        %8120 = vmatpush.bf16.msra.mxu0 %v6281
        %8121 = vmatpush.bf16.msra.mxu0 %v6277
        %8122 = vmatpush.bf16.msra.mxu0 %v6273
        %8123 = vmatpush.bf16.msra.mxu0 %v6269
        %8124 = vmatpush.bf16.msra.mxu0 %v6265
        %8125 = vmatpush.bf16.msra.mxu0 %v6261
        %8126 = vmatpush.bf16.msra.mxu0 %v6257
        %8127 = vmatpush.bf16.msra.mxu0 %v6253
        %8128 = vmatmul.bf16.gmra.mxu0 %v7379
        %v8129 = vpop.f32.mrf.mxu0
        %v8130 = vadd.f32 %v8116, %v8129
        %v8131 = vpop.f32.mrf.mxu0
        %v8132 = vadd.f32 %v8118, %v8131
        %8133 = vdwg.mxu0
        %8134 = vmatpush.bf16.msra.mxu0 %v6313
        %8135 = vmatpush.bf16.msra.mxu0 %v6309
        %8136 = vmatpush.bf16.msra.mxu0 %v6305
        %8137 = vmatpush.bf16.msra.mxu0 %v6301
        %8138 = vmatpush.bf16.msra.mxu0 %v6297
        %8139 = vmatpush.bf16.msra.mxu0 %v6293
        %8140 = vmatpush.bf16.msra.mxu0 %v6289
        %8141 = vmatpush.bf16.msra.mxu0 %v6285
        %8142 = vmatmul.bf16.gmra.mxu0 %v7380
        %v8143 = vpop.f32.mrf.mxu0
        %v8144 = vadd.f32 %v8130, %v8143
        %v8145 = vpop.f32.mrf.mxu0
        %v8146 = vadd.f32 %v8132, %v8145
        %8147 = vdwg.mxu0
        %8148 = vmatpush.bf16.msra.mxu0 %v6345
        %8149 = vmatpush.bf16.msra.mxu0 %v6341
        %8150 = vmatpush.bf16.msra.mxu0 %v6337
        %8151 = vmatpush.bf16.msra.mxu0 %v6333
        %8152 = vmatpush.bf16.msra.mxu0 %v6329
        %8153 = vmatpush.bf16.msra.mxu0 %v6325
        %8154 = vmatpush.bf16.msra.mxu0 %v6321
        %8155 = vmatpush.bf16.msra.mxu0 %v6317
        %8156 = vmatmul.bf16.gmra.mxu0 %v7381
        %v8157 = vpop.f32.mrf.mxu0
        %v8158 = vadd.f32 %v8144, %v8157
        %v8159 = vpop.f32.mrf.mxu0
        %v8160 = vadd.f32 %v8146, %v8159
        %8161 = vdwg.mxu0
        %8162 = vmatpush.bf16.msra.mxu0 %v6377
        %8163 = vmatpush.bf16.msra.mxu0 %v6373
        %8164 = vmatpush.bf16.msra.mxu0 %v6369
        %8165 = vmatpush.bf16.msra.mxu0 %v6365
        %8166 = vmatpush.bf16.msra.mxu0 %v6361
        %8167 = vmatpush.bf16.msra.mxu0 %v6357
        %8168 = vmatpush.bf16.msra.mxu0 %v6353
        %8169 = vmatpush.bf16.msra.mxu0 %v6349
        %8170 = vmatmul.bf16.gmra.mxu0 %v7382
        %v8171 = vpop.f32.mrf.mxu0
        %v8172 = vadd.f32 %v8158, %v8171
        %v8173 = vpop.f32.mrf.mxu0
        %v8174 = vadd.f32 %v8160, %v8173
        %8175 = vdwg.mxu0
        %8176 = vmatpush.bf16.msra.mxu0 %v6409
        %8177 = vmatpush.bf16.msra.mxu0 %v6405
        %8178 = vmatpush.bf16.msra.mxu0 %v6401
        %8179 = vmatpush.bf16.msra.mxu0 %v6397
        %8180 = vmatpush.bf16.msra.mxu0 %v6393
        %8181 = vmatpush.bf16.msra.mxu0 %v6389
        %8182 = vmatpush.bf16.msra.mxu0 %v6385
        %8183 = vmatpush.bf16.msra.mxu0 %v6381
        %8184 = vmatmul.bf16.gmra.mxu0 %v7383
        %v8185 = vpop.f32.mrf.mxu0
        %v8186 = vadd.f32 %v8172, %v8185
        %v8187 = vpop.f32.mrf.mxu0
        %v8188 = vadd.f32 %v8174, %v8187
        %8189 = vdwg.mxu0
        %8190 = vmatpush.bf16.msra.mxu0 %v6441
        %8191 = vmatpush.bf16.msra.mxu0 %v6437
        %8192 = vmatpush.bf16.msra.mxu0 %v6433
        %8193 = vmatpush.bf16.msra.mxu0 %v6429
        %8194 = vmatpush.bf16.msra.mxu0 %v6425
        %8195 = vmatpush.bf16.msra.mxu0 %v6421
        %8196 = vmatpush.bf16.msra.mxu0 %v6417
        %8197 = vmatpush.bf16.msra.mxu0 %v6413
        %8198 = vmatmul.bf16.gmra.mxu0 %v7384
        %v8199 = vpop.f32.mrf.mxu0
        %v8200 = vadd.f32 %v8186, %v8199
        %v8201 = vpop.f32.mrf.mxu0
        %v8202 = vadd.f32 %v8188, %v8201
        %8203 = vdwg.mxu0
        %8204 = vmatpush.bf16.msra.mxu0 %v6473
        %8205 = vmatpush.bf16.msra.mxu0 %v6469
        %8206 = vmatpush.bf16.msra.mxu0 %v6465
        %8207 = vmatpush.bf16.msra.mxu0 %v6461
        %8208 = vmatpush.bf16.msra.mxu0 %v6457
        %8209 = vmatpush.bf16.msra.mxu0 %v6453
        %8210 = vmatpush.bf16.msra.mxu0 %v6449
        %8211 = vmatpush.bf16.msra.mxu0 %v6445
        %8212 = vmatmul.bf16.gmra.mxu0 %v7385
        %v8213 = vpop.f32.mrf.mxu0
        %v8214 = vadd.f32 %v8200, %v8213
        %v8215 = vpop.f32.mrf.mxu0
        %v8216 = vadd.f32 %v8202, %v8215
        %8217 = vdwg.mxu0
        %8218 = vmatpush.bf16.msra.mxu0 %v6505
        %8219 = vmatpush.bf16.msra.mxu0 %v6501
        %8220 = vmatpush.bf16.msra.mxu0 %v6497
        %8221 = vmatpush.bf16.msra.mxu0 %v6493
        %8222 = vmatpush.bf16.msra.mxu0 %v6489
        %8223 = vmatpush.bf16.msra.mxu0 %v6485
        %8224 = vmatpush.bf16.msra.mxu0 %v6481
        %8225 = vmatpush.bf16.msra.mxu0 %v6477
        %8226 = vmatmul.bf16.gmra.mxu0 %v7386
        %v8227 = vpop.f32.mrf.mxu0
        %v8228 = vadd.f32 %v8214, %v8227
        %v8229 = vpop.f32.mrf.mxu0
        %v8230 = vadd.f32 %v8216, %v8229
        %8231 = vdwg.mxu0
        %8232 = vmatpush.bf16.msra.mxu0 %v6537
        %8233 = vmatpush.bf16.msra.mxu0 %v6533
        %8234 = vmatpush.bf16.msra.mxu0 %v6529
        %8235 = vmatpush.bf16.msra.mxu0 %v6525
        %8236 = vmatpush.bf16.msra.mxu0 %v6521
        %8237 = vmatpush.bf16.msra.mxu0 %v6517
        %8238 = vmatpush.bf16.msra.mxu0 %v6513
        %8239 = vmatpush.bf16.msra.mxu0 %v6509
        %8240 = vmatmul.bf16.gmra.mxu0 %v7387
        %v8241 = vpop.f32.mrf.mxu0
        %v8242 = vadd.f32 %v8228, %v8241
        %v8243 = vpop.f32.mrf.mxu0
        %v8244 = vadd.f32 %v8230, %v8243
        %8245 = vdwg.mxu0
        %8246 = vmatpush.bf16.msra.mxu0 %v6569
        %8247 = vmatpush.bf16.msra.mxu0 %v6565
        %8248 = vmatpush.bf16.msra.mxu0 %v6561
        %8249 = vmatpush.bf16.msra.mxu0 %v6557
        %8250 = vmatpush.bf16.msra.mxu0 %v6553
        %8251 = vmatpush.bf16.msra.mxu0 %v6549
        %8252 = vmatpush.bf16.msra.mxu0 %v6545
        %8253 = vmatpush.bf16.msra.mxu0 %v6541
        %8254 = vmatmul.bf16.gmra.mxu0 %v7388
        %v8255 = vpop.f32.mrf.mxu0
        %v8256 = vadd.f32 %v8242, %v8255
        %v8257 = vpop.f32.mrf.mxu0
        %v8258 = vadd.f32 %v8244, %v8257
        %8259 = vdwg.mxu0
        %8260 = vmatpush.bf16.msra.mxu0 %v6601
        %8261 = vmatpush.bf16.msra.mxu0 %v6597
        %8262 = vmatpush.bf16.msra.mxu0 %v6593
        %8263 = vmatpush.bf16.msra.mxu0 %v6589
        %8264 = vmatpush.bf16.msra.mxu0 %v6585
        %8265 = vmatpush.bf16.msra.mxu0 %v6581
        %8266 = vmatpush.bf16.msra.mxu0 %v6577
        %8267 = vmatpush.bf16.msra.mxu0 %v6573
        %8268 = vmatmul.bf16.gmra.mxu0 %v7389
        %v8269 = vpop.f32.mrf.mxu0
        %v8270 = vadd.f32 %v8256, %v8269
        %v8271 = vpop.f32.mrf.mxu0
        %v8272 = vadd.f32 %v8258, %v8271
        %8273 = vdwg.mxu0
        %8274 = vmatpush.bf16.msra.mxu0 %v6633
        %8275 = vmatpush.bf16.msra.mxu0 %v6629
        %8276 = vmatpush.bf16.msra.mxu0 %v6625
        %8277 = vmatpush.bf16.msra.mxu0 %v6621
        %8278 = vmatpush.bf16.msra.mxu0 %v6617
        %8279 = vmatpush.bf16.msra.mxu0 %v6613
        %8280 = vmatpush.bf16.msra.mxu0 %v6609
        %8281 = vmatpush.bf16.msra.mxu0 %v6605
        %8282 = vmatmul.bf16.gmra.mxu0 %v7390
        %v8283 = vpop.f32.mrf.mxu0
        %v8284 = vadd.f32 %v8270, %v8283
        %v8285 = vpop.f32.mrf.mxu0
        %v8286 = vadd.f32 %v8272, %v8285
        %8287 = vdwg.mxu0
        %8288 = vmatpush.bf16.msra.mxu0 %v6665
        %8289 = vmatpush.bf16.msra.mxu0 %v6661
        %8290 = vmatpush.bf16.msra.mxu0 %v6657
        %8291 = vmatpush.bf16.msra.mxu0 %v6653
        %8292 = vmatpush.bf16.msra.mxu0 %v6649
        %8293 = vmatpush.bf16.msra.mxu0 %v6645
        %8294 = vmatpush.bf16.msra.mxu0 %v6641
        %8295 = vmatpush.bf16.msra.mxu0 %v6637
        %8296 = vmatmul.bf16.gmra.mxu0 %v7391
        %v8297 = vpop.f32.mrf.mxu0
        %v8298 = vadd.f32 %v8284, %v8297
        %v8299 = vpop.f32.mrf.mxu0
        %v8300 = vadd.f32 %v8286, %v8299
        %8301 = vdwg.mxu0
        %8302 = vmatpush.bf16.msra.mxu0 %v6697
        %8303 = vmatpush.bf16.msra.mxu0 %v6693
        %8304 = vmatpush.bf16.msra.mxu0 %v6689
        %8305 = vmatpush.bf16.msra.mxu0 %v6685
        %8306 = vmatpush.bf16.msra.mxu0 %v6681
        %8307 = vmatpush.bf16.msra.mxu0 %v6677
        %8308 = vmatpush.bf16.msra.mxu0 %v6673
        %8309 = vmatpush.bf16.msra.mxu0 %v6669
        %8310 = vmatmul.bf16.gmra.mxu0 %v7392
        %v8311 = vpop.f32.mrf.mxu0
        %v8312 = vadd.f32 %v8298, %v8311
        %v8313 = vpop.f32.mrf.mxu0
        %v8314 = vadd.f32 %v8300, %v8313
        %8315 = vdwg.mxu0
        %8316 = vmatpush.bf16.msra.mxu0 %v6729
        %8317 = vmatpush.bf16.msra.mxu0 %v6725
        %8318 = vmatpush.bf16.msra.mxu0 %v6721
        %8319 = vmatpush.bf16.msra.mxu0 %v6717
        %8320 = vmatpush.bf16.msra.mxu0 %v6713
        %8321 = vmatpush.bf16.msra.mxu0 %v6709
        %8322 = vmatpush.bf16.msra.mxu0 %v6705
        %8323 = vmatpush.bf16.msra.mxu0 %v6701
        %8324 = vmatmul.bf16.gmra.mxu0 %v7393
        %v8325 = vpop.f32.mrf.mxu0
        %v8326 = vadd.f32 %v8312, %v8325
        %v8327 = vpop.f32.mrf.mxu0
        %v8328 = vadd.f32 %v8314, %v8327
        %8329 = vdwg.mxu0
        %8330 = vmatpush.bf16.msra.mxu0 %v6761
        %8331 = vmatpush.bf16.msra.mxu0 %v6757
        %8332 = vmatpush.bf16.msra.mxu0 %v6753
        %8333 = vmatpush.bf16.msra.mxu0 %v6749
        %8334 = vmatpush.bf16.msra.mxu0 %v6745
        %8335 = vmatpush.bf16.msra.mxu0 %v6741
        %8336 = vmatpush.bf16.msra.mxu0 %v6737
        %8337 = vmatpush.bf16.msra.mxu0 %v6733
        %8338 = vmatmul.bf16.gmra.mxu0 %v7394
        %v8339 = vpop.f32.mrf.mxu0
        %v8340 = vadd.f32 %v8326, %v8339
        %v8341 = vpop.f32.mrf.mxu0
        %v8342 = vadd.f32 %v8328, %v8341
        %8343 = vdwg.mxu0
        %8344 = vmatpush.bf16.msra.mxu0 %v6793
        %8345 = vmatpush.bf16.msra.mxu0 %v6789
        %8346 = vmatpush.bf16.msra.mxu0 %v6785
        %8347 = vmatpush.bf16.msra.mxu0 %v6781
        %8348 = vmatpush.bf16.msra.mxu0 %v6777
        %8349 = vmatpush.bf16.msra.mxu0 %v6773
        %8350 = vmatpush.bf16.msra.mxu0 %v6769
        %8351 = vmatpush.bf16.msra.mxu0 %v6765
        %8352 = vmatmul.bf16.gmra.mxu0 %v7395
        %v8353 = vpop.f32.mrf.mxu0
        %v8354 = vadd.f32 %v8340, %v8353
        %v8355 = vpop.f32.mrf.mxu0
        %v8356 = vadd.f32 %v8342, %v8355
        %8357 = vdwg.mxu0
        %8358 = vmatpush.bf16.msra.mxu0 %v6825
        %8359 = vmatpush.bf16.msra.mxu0 %v6821
        %8360 = vmatpush.bf16.msra.mxu0 %v6817
        %8361 = vmatpush.bf16.msra.mxu0 %v6813
        %8362 = vmatpush.bf16.msra.mxu0 %v6809
        %8363 = vmatpush.bf16.msra.mxu0 %v6805
        %8364 = vmatpush.bf16.msra.mxu0 %v6801
        %8365 = vmatpush.bf16.msra.mxu0 %v6797
        %8366 = vmatmul.bf16.gmra.mxu0 %v7396
        %v8367 = vpop.f32.mrf.mxu0
        %v8368 = vadd.f32 %v8354, %v8367
        %v8369 = vpop.f32.mrf.mxu0
        %v8370 = vadd.f32 %v8356, %v8369
        %8371 = vdwg.mxu0
        %8372 = vmatpush.bf16.msra.mxu0 %v6857
        %8373 = vmatpush.bf16.msra.mxu0 %v6853
        %8374 = vmatpush.bf16.msra.mxu0 %v6849
        %8375 = vmatpush.bf16.msra.mxu0 %v6845
        %8376 = vmatpush.bf16.msra.mxu0 %v6841
        %8377 = vmatpush.bf16.msra.mxu0 %v6837
        %8378 = vmatpush.bf16.msra.mxu0 %v6833
        %8379 = vmatpush.bf16.msra.mxu0 %v6829
        %8380 = vmatmul.bf16.gmra.mxu0 %v7397
        %v8381 = vpop.f32.mrf.mxu0
        %v8382 = vadd.f32 %v8368, %v8381
        %v8383 = vpop.f32.mrf.mxu0
        %v8384 = vadd.f32 %v8370, %v8383
        %8385 = vdwg.mxu0
        %8386 = vmatpush.bf16.msra.mxu0 %v6889
        %8387 = vmatpush.bf16.msra.mxu0 %v6885
        %8388 = vmatpush.bf16.msra.mxu0 %v6881
        %8389 = vmatpush.bf16.msra.mxu0 %v6877
        %8390 = vmatpush.bf16.msra.mxu0 %v6873
        %8391 = vmatpush.bf16.msra.mxu0 %v6869
        %8392 = vmatpush.bf16.msra.mxu0 %v6865
        %8393 = vmatpush.bf16.msra.mxu0 %v6861
        %8394 = vmatmul.bf16.gmra.mxu0 %v7398
        %v8395 = vpop.f32.mrf.mxu0
        %v8396 = vadd.f32 %v8382, %v8395
        %v8397 = vpop.f32.mrf.mxu0
        %v8398 = vadd.f32 %v8384, %v8397
        %8399 = vdwg.mxu0
        %8400 = vmatpush.bf16.msra.mxu0 %v6921
        %8401 = vmatpush.bf16.msra.mxu0 %v6917
        %8402 = vmatpush.bf16.msra.mxu0 %v6913
        %8403 = vmatpush.bf16.msra.mxu0 %v6909
        %8404 = vmatpush.bf16.msra.mxu0 %v6905
        %8405 = vmatpush.bf16.msra.mxu0 %v6901
        %8406 = vmatpush.bf16.msra.mxu0 %v6897
        %8407 = vmatpush.bf16.msra.mxu0 %v6893
        %8408 = vmatmul.bf16.gmra.mxu0 %v7399
        %v8409 = vpop.f32.mrf.mxu0
        %v8410 = vadd.f32 %v8396, %v8409
        %v8411 = vpop.f32.mrf.mxu0
        %v8412 = vadd.f32 %v8398, %v8411
        %8413 = vdwg.mxu0
        %8414 = vmatpush.bf16.msra.mxu0 %v6953
        %8415 = vmatpush.bf16.msra.mxu0 %v6949
        %8416 = vmatpush.bf16.msra.mxu0 %v6945
        %8417 = vmatpush.bf16.msra.mxu0 %v6941
        %8418 = vmatpush.bf16.msra.mxu0 %v6937
        %8419 = vmatpush.bf16.msra.mxu0 %v6933
        %8420 = vmatpush.bf16.msra.mxu0 %v6929
        %8421 = vmatpush.bf16.msra.mxu0 %v6925
        %8422 = vmatmul.bf16.gmra.mxu0 %v7400
        %v8423 = vpop.f32.mrf.mxu0
        %v8424 = vadd.f32 %v8410, %v8423
        %v8425 = vpop.f32.mrf.mxu0
        %v8426 = vadd.f32 %v8412, %v8425
        %8427 = vdwg.mxu0
        %8428 = vmatpush.bf16.msra.mxu0 %v6985
        %8429 = vmatpush.bf16.msra.mxu0 %v6981
        %8430 = vmatpush.bf16.msra.mxu0 %v6977
        %8431 = vmatpush.bf16.msra.mxu0 %v6973
        %8432 = vmatpush.bf16.msra.mxu0 %v6969
        %8433 = vmatpush.bf16.msra.mxu0 %v6965
        %8434 = vmatpush.bf16.msra.mxu0 %v6961
        %8435 = vmatpush.bf16.msra.mxu0 %v6957
        %8436 = vmatmul.bf16.gmra.mxu0 %v7401
        %v8437 = vpop.f32.mrf.mxu0
        %v8438 = vadd.f32 %v8424, %v8437
        %v8439 = vpop.f32.mrf.mxu0
        %v8440 = vadd.f32 %v8426, %v8439
        %8441 = vdwg.mxu0
        %8442 = vmatpush.bf16.msra.mxu0 %v7017
        %8443 = vmatpush.bf16.msra.mxu0 %v7013
        %8444 = vmatpush.bf16.msra.mxu0 %v7009
        %8445 = vmatpush.bf16.msra.mxu0 %v7005
        %8446 = vmatpush.bf16.msra.mxu0 %v7001
        %8447 = vmatpush.bf16.msra.mxu0 %v6997
        %8448 = vmatpush.bf16.msra.mxu0 %v6993
        %8449 = vmatpush.bf16.msra.mxu0 %v6989
        %8450 = vmatmul.bf16.gmra.mxu0 %v7402
        %v8451 = vpop.f32.mrf.mxu0
        %v8452 = vadd.f32 %v8438, %v8451
        %v8453 = vpop.f32.mrf.mxu0
        %v8454 = vadd.f32 %v8440, %v8453
        %8455 = vdwg.mxu0
        %8456 = vmatpush.bf16.msra.mxu0 %v7049
        %8457 = vmatpush.bf16.msra.mxu0 %v7045
        %8458 = vmatpush.bf16.msra.mxu0 %v7041
        %8459 = vmatpush.bf16.msra.mxu0 %v7037
        %8460 = vmatpush.bf16.msra.mxu0 %v7033
        %8461 = vmatpush.bf16.msra.mxu0 %v7029
        %8462 = vmatpush.bf16.msra.mxu0 %v7025
        %8463 = vmatpush.bf16.msra.mxu0 %v7021
        %8464 = vmatmul.bf16.gmra.mxu0 %v7403
        %v8465 = vpop.f32.mrf.mxu0
        %v8466 = vadd.f32 %v8452, %v8465
        %v8467 = vpop.f32.mrf.mxu0
        %v8468 = vadd.f32 %v8454, %v8467
        %8469 = vdwg.mxu0
        %8470 = vmatpush.bf16.msra.mxu0 %v7081
        %8471 = vmatpush.bf16.msra.mxu0 %v7077
        %8472 = vmatpush.bf16.msra.mxu0 %v7073
        %8473 = vmatpush.bf16.msra.mxu0 %v7069
        %8474 = vmatpush.bf16.msra.mxu0 %v7065
        %8475 = vmatpush.bf16.msra.mxu0 %v7061
        %8476 = vmatpush.bf16.msra.mxu0 %v7057
        %8477 = vmatpush.bf16.msra.mxu0 %v7053
        %8478 = vmatmul.bf16.gmra.mxu0 %v7404
        %v8479 = vpop.f32.mrf.mxu0
        %v8480 = vadd.f32 %v8466, %v8479
        %v8481 = vpop.f32.mrf.mxu0
        %v8482 = vadd.f32 %v8468, %v8481
        %8483 = vdwg.mxu0
        %8484 = vmatpush.bf16.msra.mxu0 %v7113
        %8485 = vmatpush.bf16.msra.mxu0 %v7109
        %8486 = vmatpush.bf16.msra.mxu0 %v7105
        %8487 = vmatpush.bf16.msra.mxu0 %v7101
        %8488 = vmatpush.bf16.msra.mxu0 %v7097
        %8489 = vmatpush.bf16.msra.mxu0 %v7093
        %8490 = vmatpush.bf16.msra.mxu0 %v7089
        %8491 = vmatpush.bf16.msra.mxu0 %v7085
        %8492 = vmatmul.bf16.gmra.mxu0 %v7405
        %v8493 = vpop.f32.mrf.mxu0
        %v8494 = vadd.f32 %v8480, %v8493
        %v8495 = vpop.f32.mrf.mxu0
        %v8496 = vadd.f32 %v8482, %v8495
        %8497 = vdwg.mxu0
        %8498 = vmatpush.bf16.msra.mxu0 %v7145
        %8499 = vmatpush.bf16.msra.mxu0 %v7141
        %8500 = vmatpush.bf16.msra.mxu0 %v7137
        %8501 = vmatpush.bf16.msra.mxu0 %v7133
        %8502 = vmatpush.bf16.msra.mxu0 %v7129
        %8503 = vmatpush.bf16.msra.mxu0 %v7125
        %8504 = vmatpush.bf16.msra.mxu0 %v7121
        %8505 = vmatpush.bf16.msra.mxu0 %v7117
        %8506 = vmatmul.bf16.gmra.mxu0 %v7406
        %v8507 = vpop.f32.mrf.mxu0
        %v8508 = vadd.f32 %v8494, %v8507
        %v8509 = vpop.f32.mrf.mxu0
        %v8510 = vadd.f32 %v8496, %v8509
        %8511 = vdwg.mxu0
        %8512 = vmatpush.bf16.msra.mxu0 %v7177
        %8513 = vmatpush.bf16.msra.mxu0 %v7173
        %8514 = vmatpush.bf16.msra.mxu0 %v7169
        %8515 = vmatpush.bf16.msra.mxu0 %v7165
        %8516 = vmatpush.bf16.msra.mxu0 %v7161
        %8517 = vmatpush.bf16.msra.mxu0 %v7157
        %8518 = vmatpush.bf16.msra.mxu0 %v7153
        %8519 = vmatpush.bf16.msra.mxu0 %v7149
        %8520 = vmatmul.bf16.gmra.mxu0 %v7407
        %v8521 = vpop.f32.mrf.mxu0
        %v8522 = vadd.f32 %v8508, %v8521
        %v8523 = vpop.f32.mrf.mxu0
        %v8524 = vadd.f32 %v8510, %v8523
        %8525 = vdwg.mxu0
        %8526 = vmatpush.bf16.msra.mxu0 %v7209
        %8527 = vmatpush.bf16.msra.mxu0 %v7205
        %8528 = vmatpush.bf16.msra.mxu0 %v7201
        %8529 = vmatpush.bf16.msra.mxu0 %v7197
        %8530 = vmatpush.bf16.msra.mxu0 %v7193
        %8531 = vmatpush.bf16.msra.mxu0 %v7189
        %8532 = vmatpush.bf16.msra.mxu0 %v7185
        %8533 = vmatpush.bf16.msra.mxu0 %v7181
        %8534 = vmatmul.bf16.gmra.mxu0 %v7408
        %v8535 = vpop.f32.mrf.mxu0
        %v8536 = vadd.f32 %v8522, %v8535
        %v8537 = vpop.f32.mrf.mxu0
        %v8538 = vadd.f32 %v8524, %v8537
        %8539 = vdwg.mxu0
        %8540 = vmatpush.bf16.msra.mxu0 %v5994
        %8541 = vmatpush.bf16.msra.mxu0 %v5990
        %8542 = vmatpush.bf16.msra.mxu0 %v5986
        %8543 = vmatpush.bf16.msra.mxu0 %v5982
        %8544 = vmatpush.bf16.msra.mxu0 %v5978
        %8545 = vmatpush.bf16.msra.mxu0 %v5974
        %8546 = vmatpush.bf16.msra.mxu0 %v5970
        %8547 = vmatpush.bf16.msra.mxu0 %v5966
        %8548 = vmatmul.bf16.gmra.mxu0 %v7370
        %v8549 = vpop.f32.mrf.mxu0
        %v8550 = vadd.f32 0.0, %v8549
        %v8551 = vpop.f32.mrf.mxu0
        %v8552 = vadd.f32 0.0, %v8551
        %8553 = vdwg.mxu0
        %8554 = vmatpush.bf16.msra.mxu0 %v6026
        %8555 = vmatpush.bf16.msra.mxu0 %v6022
        %8556 = vmatpush.bf16.msra.mxu0 %v6018
        %8557 = vmatpush.bf16.msra.mxu0 %v6014
        %8558 = vmatpush.bf16.msra.mxu0 %v6010
        %8559 = vmatpush.bf16.msra.mxu0 %v6006
        %8560 = vmatpush.bf16.msra.mxu0 %v6002
        %8561 = vmatpush.bf16.msra.mxu0 %v5998
        %8562 = vmatmul.bf16.gmra.mxu0 %v7371
        %v8563 = vpop.f32.mrf.mxu0
        %v8564 = vadd.f32 %v8550, %v8563
        %v8565 = vpop.f32.mrf.mxu0
        %v8566 = vadd.f32 %v8552, %v8565
        %8567 = vdwg.mxu0
        %8568 = vmatpush.bf16.msra.mxu0 %v6058
        %8569 = vmatpush.bf16.msra.mxu0 %v6054
        %8570 = vmatpush.bf16.msra.mxu0 %v6050
        %8571 = vmatpush.bf16.msra.mxu0 %v6046
        %8572 = vmatpush.bf16.msra.mxu0 %v6042
        %8573 = vmatpush.bf16.msra.mxu0 %v6038
        %8574 = vmatpush.bf16.msra.mxu0 %v6034
        %8575 = vmatpush.bf16.msra.mxu0 %v6030
        %8576 = vmatmul.bf16.gmra.mxu0 %v7372
        %v8577 = vpop.f32.mrf.mxu0
        %v8578 = vadd.f32 %v8564, %v8577
        %v8579 = vpop.f32.mrf.mxu0
        %v8580 = vadd.f32 %v8566, %v8579
        %8581 = vdwg.mxu0
        %8582 = vmatpush.bf16.msra.mxu0 %v6090
        %8583 = vmatpush.bf16.msra.mxu0 %v6086
        %8584 = vmatpush.bf16.msra.mxu0 %v6082
        %8585 = vmatpush.bf16.msra.mxu0 %v6078
        %8586 = vmatpush.bf16.msra.mxu0 %v6074
        %8587 = vmatpush.bf16.msra.mxu0 %v6070
        %8588 = vmatpush.bf16.msra.mxu0 %v6066
        %8589 = vmatpush.bf16.msra.mxu0 %v6062
        %8590 = vmatmul.bf16.gmra.mxu0 %v7373
        %v8591 = vpop.f32.mrf.mxu0
        %v8592 = vadd.f32 %v8578, %v8591
        %v8593 = vpop.f32.mrf.mxu0
        %v8594 = vadd.f32 %v8580, %v8593
        %8595 = vdwg.mxu0
        %8596 = vmatpush.bf16.msra.mxu0 %v6122
        %8597 = vmatpush.bf16.msra.mxu0 %v6118
        %8598 = vmatpush.bf16.msra.mxu0 %v6114
        %8599 = vmatpush.bf16.msra.mxu0 %v6110
        %8600 = vmatpush.bf16.msra.mxu0 %v6106
        %8601 = vmatpush.bf16.msra.mxu0 %v6102
        %8602 = vmatpush.bf16.msra.mxu0 %v6098
        %8603 = vmatpush.bf16.msra.mxu0 %v6094
        %8604 = vmatmul.bf16.gmra.mxu0 %v7374
        %v8605 = vpop.f32.mrf.mxu0
        %v8606 = vadd.f32 %v8592, %v8605
        %v8607 = vpop.f32.mrf.mxu0
        %v8608 = vadd.f32 %v8594, %v8607
        %8609 = vdwg.mxu0
        %8610 = vmatpush.bf16.msra.mxu0 %v6154
        %8611 = vmatpush.bf16.msra.mxu0 %v6150
        %8612 = vmatpush.bf16.msra.mxu0 %v6146
        %8613 = vmatpush.bf16.msra.mxu0 %v6142
        %8614 = vmatpush.bf16.msra.mxu0 %v6138
        %8615 = vmatpush.bf16.msra.mxu0 %v6134
        %8616 = vmatpush.bf16.msra.mxu0 %v6130
        %8617 = vmatpush.bf16.msra.mxu0 %v6126
        %8618 = vmatmul.bf16.gmra.mxu0 %v7375
        %v8619 = vpop.f32.mrf.mxu0
        %v8620 = vadd.f32 %v8606, %v8619
        %v8621 = vpop.f32.mrf.mxu0
        %v8622 = vadd.f32 %v8608, %v8621
        %8623 = vdwg.mxu0
        %8624 = vmatpush.bf16.msra.mxu0 %v6186
        %8625 = vmatpush.bf16.msra.mxu0 %v6182
        %8626 = vmatpush.bf16.msra.mxu0 %v6178
        %8627 = vmatpush.bf16.msra.mxu0 %v6174
        %8628 = vmatpush.bf16.msra.mxu0 %v6170
        %8629 = vmatpush.bf16.msra.mxu0 %v6166
        %8630 = vmatpush.bf16.msra.mxu0 %v6162
        %8631 = vmatpush.bf16.msra.mxu0 %v6158
        %8632 = vmatmul.bf16.gmra.mxu0 %v7376
        %v8633 = vpop.f32.mrf.mxu0
        %v8634 = vadd.f32 %v8620, %v8633
        %v8635 = vpop.f32.mrf.mxu0
        %v8636 = vadd.f32 %v8622, %v8635
        %8637 = vdwg.mxu0
        %8638 = vmatpush.bf16.msra.mxu0 %v6218
        %8639 = vmatpush.bf16.msra.mxu0 %v6214
        %8640 = vmatpush.bf16.msra.mxu0 %v6210
        %8641 = vmatpush.bf16.msra.mxu0 %v6206
        %8642 = vmatpush.bf16.msra.mxu0 %v6202
        %8643 = vmatpush.bf16.msra.mxu0 %v6198
        %8644 = vmatpush.bf16.msra.mxu0 %v6194
        %8645 = vmatpush.bf16.msra.mxu0 %v6190
        %8646 = vmatmul.bf16.gmra.mxu0 %v7377
        %v8647 = vpop.f32.mrf.mxu0
        %v8648 = vadd.f32 %v8634, %v8647
        %v8649 = vpop.f32.mrf.mxu0
        %v8650 = vadd.f32 %v8636, %v8649
        %8651 = vdwg.mxu0
        %8652 = vmatpush.bf16.msra.mxu0 %v6250
        %8653 = vmatpush.bf16.msra.mxu0 %v6246
        %8654 = vmatpush.bf16.msra.mxu0 %v6242
        %8655 = vmatpush.bf16.msra.mxu0 %v6238
        %8656 = vmatpush.bf16.msra.mxu0 %v6234
        %8657 = vmatpush.bf16.msra.mxu0 %v6230
        %8658 = vmatpush.bf16.msra.mxu0 %v6226
        %8659 = vmatpush.bf16.msra.mxu0 %v6222
        %8660 = vmatmul.bf16.gmra.mxu0 %v7378
        %v8661 = vpop.f32.mrf.mxu0
        %v8662 = vadd.f32 %v8648, %v8661
        %v8663 = vpop.f32.mrf.mxu0
        %v8664 = vadd.f32 %v8650, %v8663
        %8665 = vdwg.mxu0
        %8666 = vmatpush.bf16.msra.mxu0 %v6282
        %8667 = vmatpush.bf16.msra.mxu0 %v6278
        %8668 = vmatpush.bf16.msra.mxu0 %v6274
        %8669 = vmatpush.bf16.msra.mxu0 %v6270
        %8670 = vmatpush.bf16.msra.mxu0 %v6266
        %8671 = vmatpush.bf16.msra.mxu0 %v6262
        %8672 = vmatpush.bf16.msra.mxu0 %v6258
        %8673 = vmatpush.bf16.msra.mxu0 %v6254
        %8674 = vmatmul.bf16.gmra.mxu0 %v7379
        %v8675 = vpop.f32.mrf.mxu0
        %v8676 = vadd.f32 %v8662, %v8675
        %v8677 = vpop.f32.mrf.mxu0
        %v8678 = vadd.f32 %v8664, %v8677
        %8679 = vdwg.mxu0
        %8680 = vmatpush.bf16.msra.mxu0 %v6314
        %8681 = vmatpush.bf16.msra.mxu0 %v6310
        %8682 = vmatpush.bf16.msra.mxu0 %v6306
        %8683 = vmatpush.bf16.msra.mxu0 %v6302
        %8684 = vmatpush.bf16.msra.mxu0 %v6298
        %8685 = vmatpush.bf16.msra.mxu0 %v6294
        %8686 = vmatpush.bf16.msra.mxu0 %v6290
        %8687 = vmatpush.bf16.msra.mxu0 %v6286
        %8688 = vmatmul.bf16.gmra.mxu0 %v7380
        %v8689 = vpop.f32.mrf.mxu0
        %v8690 = vadd.f32 %v8676, %v8689
        %v8691 = vpop.f32.mrf.mxu0
        %v8692 = vadd.f32 %v8678, %v8691
        %8693 = vdwg.mxu0
        %8694 = vmatpush.bf16.msra.mxu0 %v6346
        %8695 = vmatpush.bf16.msra.mxu0 %v6342
        %8696 = vmatpush.bf16.msra.mxu0 %v6338
        %8697 = vmatpush.bf16.msra.mxu0 %v6334
        %8698 = vmatpush.bf16.msra.mxu0 %v6330
        %8699 = vmatpush.bf16.msra.mxu0 %v6326
        %8700 = vmatpush.bf16.msra.mxu0 %v6322
        %8701 = vmatpush.bf16.msra.mxu0 %v6318
        %8702 = vmatmul.bf16.gmra.mxu0 %v7381
        %v8703 = vpop.f32.mrf.mxu0
        %v8704 = vadd.f32 %v8690, %v8703
        %v8705 = vpop.f32.mrf.mxu0
        %v8706 = vadd.f32 %v8692, %v8705
        %8707 = vdwg.mxu0
        %8708 = vmatpush.bf16.msra.mxu0 %v6378
        %8709 = vmatpush.bf16.msra.mxu0 %v6374
        %8710 = vmatpush.bf16.msra.mxu0 %v6370
        %8711 = vmatpush.bf16.msra.mxu0 %v6366
        %8712 = vmatpush.bf16.msra.mxu0 %v6362
        %8713 = vmatpush.bf16.msra.mxu0 %v6358
        %8714 = vmatpush.bf16.msra.mxu0 %v6354
        %8715 = vmatpush.bf16.msra.mxu0 %v6350
        %8716 = vmatmul.bf16.gmra.mxu0 %v7382
        %v8717 = vpop.f32.mrf.mxu0
        %v8718 = vadd.f32 %v8704, %v8717
        %v8719 = vpop.f32.mrf.mxu0
        %v8720 = vadd.f32 %v8706, %v8719
        %8721 = vdwg.mxu0
        %8722 = vmatpush.bf16.msra.mxu0 %v6410
        %8723 = vmatpush.bf16.msra.mxu0 %v6406
        %8724 = vmatpush.bf16.msra.mxu0 %v6402
        %8725 = vmatpush.bf16.msra.mxu0 %v6398
        %8726 = vmatpush.bf16.msra.mxu0 %v6394
        %8727 = vmatpush.bf16.msra.mxu0 %v6390
        %8728 = vmatpush.bf16.msra.mxu0 %v6386
        %8729 = vmatpush.bf16.msra.mxu0 %v6382
        %8730 = vmatmul.bf16.gmra.mxu0 %v7383
        %v8731 = vpop.f32.mrf.mxu0
        %v8732 = vadd.f32 %v8718, %v8731
        %v8733 = vpop.f32.mrf.mxu0
        %v8734 = vadd.f32 %v8720, %v8733
        %8735 = vdwg.mxu0
        %8736 = vmatpush.bf16.msra.mxu0 %v6442
        %8737 = vmatpush.bf16.msra.mxu0 %v6438
        %8738 = vmatpush.bf16.msra.mxu0 %v6434
        %8739 = vmatpush.bf16.msra.mxu0 %v6430
        %8740 = vmatpush.bf16.msra.mxu0 %v6426
        %8741 = vmatpush.bf16.msra.mxu0 %v6422
        %8742 = vmatpush.bf16.msra.mxu0 %v6418
        %8743 = vmatpush.bf16.msra.mxu0 %v6414
        %8744 = vmatmul.bf16.gmra.mxu0 %v7384
        %v8745 = vpop.f32.mrf.mxu0
        %v8746 = vadd.f32 %v8732, %v8745
        %v8747 = vpop.f32.mrf.mxu0
        %v8748 = vadd.f32 %v8734, %v8747
        %8749 = vdwg.mxu0
        %8750 = vmatpush.bf16.msra.mxu0 %v6474
        %8751 = vmatpush.bf16.msra.mxu0 %v6470
        %8752 = vmatpush.bf16.msra.mxu0 %v6466
        %8753 = vmatpush.bf16.msra.mxu0 %v6462
        %8754 = vmatpush.bf16.msra.mxu0 %v6458
        %8755 = vmatpush.bf16.msra.mxu0 %v6454
        %8756 = vmatpush.bf16.msra.mxu0 %v6450
        %8757 = vmatpush.bf16.msra.mxu0 %v6446
        %8758 = vmatmul.bf16.gmra.mxu0 %v7385
        %v8759 = vpop.f32.mrf.mxu0
        %v8760 = vadd.f32 %v8746, %v8759
        %v8761 = vpop.f32.mrf.mxu0
        %v8762 = vadd.f32 %v8748, %v8761
        %8763 = vdwg.mxu0
        %8764 = vmatpush.bf16.msra.mxu0 %v6506
        %8765 = vmatpush.bf16.msra.mxu0 %v6502
        %8766 = vmatpush.bf16.msra.mxu0 %v6498
        %8767 = vmatpush.bf16.msra.mxu0 %v6494
        %8768 = vmatpush.bf16.msra.mxu0 %v6490
        %8769 = vmatpush.bf16.msra.mxu0 %v6486
        %8770 = vmatpush.bf16.msra.mxu0 %v6482
        %8771 = vmatpush.bf16.msra.mxu0 %v6478
        %8772 = vmatmul.bf16.gmra.mxu0 %v7386
        %v8773 = vpop.f32.mrf.mxu0
        %v8774 = vadd.f32 %v8760, %v8773
        %v8775 = vpop.f32.mrf.mxu0
        %v8776 = vadd.f32 %v8762, %v8775
        %8777 = vdwg.mxu0
        %8778 = vmatpush.bf16.msra.mxu0 %v6538
        %8779 = vmatpush.bf16.msra.mxu0 %v6534
        %8780 = vmatpush.bf16.msra.mxu0 %v6530
        %8781 = vmatpush.bf16.msra.mxu0 %v6526
        %8782 = vmatpush.bf16.msra.mxu0 %v6522
        %8783 = vmatpush.bf16.msra.mxu0 %v6518
        %8784 = vmatpush.bf16.msra.mxu0 %v6514
        %8785 = vmatpush.bf16.msra.mxu0 %v6510
        %8786 = vmatmul.bf16.gmra.mxu0 %v7387
        %v8787 = vpop.f32.mrf.mxu0
        %v8788 = vadd.f32 %v8774, %v8787
        %v8789 = vpop.f32.mrf.mxu0
        %v8790 = vadd.f32 %v8776, %v8789
        %8791 = vdwg.mxu0
        %8792 = vmatpush.bf16.msra.mxu0 %v6570
        %8793 = vmatpush.bf16.msra.mxu0 %v6566
        %8794 = vmatpush.bf16.msra.mxu0 %v6562
        %8795 = vmatpush.bf16.msra.mxu0 %v6558
        %8796 = vmatpush.bf16.msra.mxu0 %v6554
        %8797 = vmatpush.bf16.msra.mxu0 %v6550
        %8798 = vmatpush.bf16.msra.mxu0 %v6546
        %8799 = vmatpush.bf16.msra.mxu0 %v6542
        %8800 = vmatmul.bf16.gmra.mxu0 %v7388
        %v8801 = vpop.f32.mrf.mxu0
        %v8802 = vadd.f32 %v8788, %v8801
        %v8803 = vpop.f32.mrf.mxu0
        %v8804 = vadd.f32 %v8790, %v8803
        %8805 = vdwg.mxu0
        %8806 = vmatpush.bf16.msra.mxu0 %v6602
        %8807 = vmatpush.bf16.msra.mxu0 %v6598
        %8808 = vmatpush.bf16.msra.mxu0 %v6594
        %8809 = vmatpush.bf16.msra.mxu0 %v6590
        %8810 = vmatpush.bf16.msra.mxu0 %v6586
        %8811 = vmatpush.bf16.msra.mxu0 %v6582
        %8812 = vmatpush.bf16.msra.mxu0 %v6578
        %8813 = vmatpush.bf16.msra.mxu0 %v6574
        %8814 = vmatmul.bf16.gmra.mxu0 %v7389
        %v8815 = vpop.f32.mrf.mxu0
        %v8816 = vadd.f32 %v8802, %v8815
        %v8817 = vpop.f32.mrf.mxu0
        %v8818 = vadd.f32 %v8804, %v8817
        %8819 = vdwg.mxu0
        %8820 = vmatpush.bf16.msra.mxu0 %v6634
        %8821 = vmatpush.bf16.msra.mxu0 %v6630
        %8822 = vmatpush.bf16.msra.mxu0 %v6626
        %8823 = vmatpush.bf16.msra.mxu0 %v6622
        %8824 = vmatpush.bf16.msra.mxu0 %v6618
        %8825 = vmatpush.bf16.msra.mxu0 %v6614
        %8826 = vmatpush.bf16.msra.mxu0 %v6610
        %8827 = vmatpush.bf16.msra.mxu0 %v6606
        %8828 = vmatmul.bf16.gmra.mxu0 %v7390
        %v8829 = vpop.f32.mrf.mxu0
        %v8830 = vadd.f32 %v8816, %v8829
        %v8831 = vpop.f32.mrf.mxu0
        %v8832 = vadd.f32 %v8818, %v8831
        %8833 = vdwg.mxu0
        %8834 = vmatpush.bf16.msra.mxu0 %v6666
        %8835 = vmatpush.bf16.msra.mxu0 %v6662
        %8836 = vmatpush.bf16.msra.mxu0 %v6658
        %8837 = vmatpush.bf16.msra.mxu0 %v6654
        %8838 = vmatpush.bf16.msra.mxu0 %v6650
        %8839 = vmatpush.bf16.msra.mxu0 %v6646
        %8840 = vmatpush.bf16.msra.mxu0 %v6642
        %8841 = vmatpush.bf16.msra.mxu0 %v6638
        %8842 = vmatmul.bf16.gmra.mxu0 %v7391
        %v8843 = vpop.f32.mrf.mxu0
        %v8844 = vadd.f32 %v8830, %v8843
        %v8845 = vpop.f32.mrf.mxu0
        %v8846 = vadd.f32 %v8832, %v8845
        %8847 = vdwg.mxu0
        %8848 = vmatpush.bf16.msra.mxu0 %v6698
        %8849 = vmatpush.bf16.msra.mxu0 %v6694
        %8850 = vmatpush.bf16.msra.mxu0 %v6690
        %8851 = vmatpush.bf16.msra.mxu0 %v6686
        %8852 = vmatpush.bf16.msra.mxu0 %v6682
        %8853 = vmatpush.bf16.msra.mxu0 %v6678
        %8854 = vmatpush.bf16.msra.mxu0 %v6674
        %8855 = vmatpush.bf16.msra.mxu0 %v6670
        %8856 = vmatmul.bf16.gmra.mxu0 %v7392
        %v8857 = vpop.f32.mrf.mxu0
        %v8858 = vadd.f32 %v8844, %v8857
        %v8859 = vpop.f32.mrf.mxu0
        %v8860 = vadd.f32 %v8846, %v8859
        %8861 = vdwg.mxu0
        %8862 = vmatpush.bf16.msra.mxu0 %v6730
        %8863 = vmatpush.bf16.msra.mxu0 %v6726
        %8864 = vmatpush.bf16.msra.mxu0 %v6722
        %8865 = vmatpush.bf16.msra.mxu0 %v6718
        %8866 = vmatpush.bf16.msra.mxu0 %v6714
        %8867 = vmatpush.bf16.msra.mxu0 %v6710
        %8868 = vmatpush.bf16.msra.mxu0 %v6706
        %8869 = vmatpush.bf16.msra.mxu0 %v6702
        %8870 = vmatmul.bf16.gmra.mxu0 %v7393
        %v8871 = vpop.f32.mrf.mxu0
        %v8872 = vadd.f32 %v8858, %v8871
        %v8873 = vpop.f32.mrf.mxu0
        %v8874 = vadd.f32 %v8860, %v8873
        %8875 = vdwg.mxu0
        %8876 = vmatpush.bf16.msra.mxu0 %v6762
        %8877 = vmatpush.bf16.msra.mxu0 %v6758
        %8878 = vmatpush.bf16.msra.mxu0 %v6754
        %8879 = vmatpush.bf16.msra.mxu0 %v6750
        %8880 = vmatpush.bf16.msra.mxu0 %v6746
        %8881 = vmatpush.bf16.msra.mxu0 %v6742
        %8882 = vmatpush.bf16.msra.mxu0 %v6738
        %8883 = vmatpush.bf16.msra.mxu0 %v6734
        %8884 = vmatmul.bf16.gmra.mxu0 %v7394
        %v8885 = vpop.f32.mrf.mxu0
        %v8886 = vadd.f32 %v8872, %v8885
        %v8887 = vpop.f32.mrf.mxu0
        %v8888 = vadd.f32 %v8874, %v8887
        %8889 = vdwg.mxu0
        %8890 = vmatpush.bf16.msra.mxu0 %v6794
        %8891 = vmatpush.bf16.msra.mxu0 %v6790
        %8892 = vmatpush.bf16.msra.mxu0 %v6786
        %8893 = vmatpush.bf16.msra.mxu0 %v6782
        %8894 = vmatpush.bf16.msra.mxu0 %v6778
        %8895 = vmatpush.bf16.msra.mxu0 %v6774
        %8896 = vmatpush.bf16.msra.mxu0 %v6770
        %8897 = vmatpush.bf16.msra.mxu0 %v6766
        %8898 = vmatmul.bf16.gmra.mxu0 %v7395
        %v8899 = vpop.f32.mrf.mxu0
        %v8900 = vadd.f32 %v8886, %v8899
        %v8901 = vpop.f32.mrf.mxu0
        %v8902 = vadd.f32 %v8888, %v8901
        %8903 = vdwg.mxu0
        %8904 = vmatpush.bf16.msra.mxu0 %v6826
        %8905 = vmatpush.bf16.msra.mxu0 %v6822
        %8906 = vmatpush.bf16.msra.mxu0 %v6818
        %8907 = vmatpush.bf16.msra.mxu0 %v6814
        %8908 = vmatpush.bf16.msra.mxu0 %v6810
        %8909 = vmatpush.bf16.msra.mxu0 %v6806
        %8910 = vmatpush.bf16.msra.mxu0 %v6802
        %8911 = vmatpush.bf16.msra.mxu0 %v6798
        %8912 = vmatmul.bf16.gmra.mxu0 %v7396
        %v8913 = vpop.f32.mrf.mxu0
        %v8914 = vadd.f32 %v8900, %v8913
        %v8915 = vpop.f32.mrf.mxu0
        %v8916 = vadd.f32 %v8902, %v8915
        %8917 = vdwg.mxu0
        %8918 = vmatpush.bf16.msra.mxu0 %v6858
        %8919 = vmatpush.bf16.msra.mxu0 %v6854
        %8920 = vmatpush.bf16.msra.mxu0 %v6850
        %8921 = vmatpush.bf16.msra.mxu0 %v6846
        %8922 = vmatpush.bf16.msra.mxu0 %v6842
        %8923 = vmatpush.bf16.msra.mxu0 %v6838
        %8924 = vmatpush.bf16.msra.mxu0 %v6834
        %8925 = vmatpush.bf16.msra.mxu0 %v6830
        %8926 = vmatmul.bf16.gmra.mxu0 %v7397
        %v8927 = vpop.f32.mrf.mxu0
        %v8928 = vadd.f32 %v8914, %v8927
        %v8929 = vpop.f32.mrf.mxu0
        %v8930 = vadd.f32 %v8916, %v8929
        %8931 = vdwg.mxu0
        %8932 = vmatpush.bf16.msra.mxu0 %v6890
        %8933 = vmatpush.bf16.msra.mxu0 %v6886
        %8934 = vmatpush.bf16.msra.mxu0 %v6882
        %8935 = vmatpush.bf16.msra.mxu0 %v6878
        %8936 = vmatpush.bf16.msra.mxu0 %v6874
        %8937 = vmatpush.bf16.msra.mxu0 %v6870
        %8938 = vmatpush.bf16.msra.mxu0 %v6866
        %8939 = vmatpush.bf16.msra.mxu0 %v6862
        %8940 = vmatmul.bf16.gmra.mxu0 %v7398
        %v8941 = vpop.f32.mrf.mxu0
        %v8942 = vadd.f32 %v8928, %v8941
        %v8943 = vpop.f32.mrf.mxu0
        %v8944 = vadd.f32 %v8930, %v8943
        %8945 = vdwg.mxu0
        %8946 = vmatpush.bf16.msra.mxu0 %v6922
        %8947 = vmatpush.bf16.msra.mxu0 %v6918
        %8948 = vmatpush.bf16.msra.mxu0 %v6914
        %8949 = vmatpush.bf16.msra.mxu0 %v6910
        %8950 = vmatpush.bf16.msra.mxu0 %v6906
        %8951 = vmatpush.bf16.msra.mxu0 %v6902
        %8952 = vmatpush.bf16.msra.mxu0 %v6898
        %8953 = vmatpush.bf16.msra.mxu0 %v6894
        %8954 = vmatmul.bf16.gmra.mxu0 %v7399
        %v8955 = vpop.f32.mrf.mxu0
        %v8956 = vadd.f32 %v8942, %v8955
        %v8957 = vpop.f32.mrf.mxu0
        %v8958 = vadd.f32 %v8944, %v8957
        %8959 = vdwg.mxu0
        %8960 = vmatpush.bf16.msra.mxu0 %v6954
        %8961 = vmatpush.bf16.msra.mxu0 %v6950
        %8962 = vmatpush.bf16.msra.mxu0 %v6946
        %8963 = vmatpush.bf16.msra.mxu0 %v6942
        %8964 = vmatpush.bf16.msra.mxu0 %v6938
        %8965 = vmatpush.bf16.msra.mxu0 %v6934
        %8966 = vmatpush.bf16.msra.mxu0 %v6930
        %8967 = vmatpush.bf16.msra.mxu0 %v6926
        %8968 = vmatmul.bf16.gmra.mxu0 %v7400
        %v8969 = vpop.f32.mrf.mxu0
        %v8970 = vadd.f32 %v8956, %v8969
        %v8971 = vpop.f32.mrf.mxu0
        %v8972 = vadd.f32 %v8958, %v8971
        %8973 = vdwg.mxu0
        %8974 = vmatpush.bf16.msra.mxu0 %v6986
        %8975 = vmatpush.bf16.msra.mxu0 %v6982
        %8976 = vmatpush.bf16.msra.mxu0 %v6978
        %8977 = vmatpush.bf16.msra.mxu0 %v6974
        %8978 = vmatpush.bf16.msra.mxu0 %v6970
        %8979 = vmatpush.bf16.msra.mxu0 %v6966
        %8980 = vmatpush.bf16.msra.mxu0 %v6962
        %8981 = vmatpush.bf16.msra.mxu0 %v6958
        %8982 = vmatmul.bf16.gmra.mxu0 %v7401
        %v8983 = vpop.f32.mrf.mxu0
        %v8984 = vadd.f32 %v8970, %v8983
        %v8985 = vpop.f32.mrf.mxu0
        %v8986 = vadd.f32 %v8972, %v8985
        %8987 = vdwg.mxu0
        %8988 = vmatpush.bf16.msra.mxu0 %v7018
        %8989 = vmatpush.bf16.msra.mxu0 %v7014
        %8990 = vmatpush.bf16.msra.mxu0 %v7010
        %8991 = vmatpush.bf16.msra.mxu0 %v7006
        %8992 = vmatpush.bf16.msra.mxu0 %v7002
        %8993 = vmatpush.bf16.msra.mxu0 %v6998
        %8994 = vmatpush.bf16.msra.mxu0 %v6994
        %8995 = vmatpush.bf16.msra.mxu0 %v6990
        %8996 = vmatmul.bf16.gmra.mxu0 %v7402
        %v8997 = vpop.f32.mrf.mxu0
        %v8998 = vadd.f32 %v8984, %v8997
        %v8999 = vpop.f32.mrf.mxu0
        %v9000 = vadd.f32 %v8986, %v8999
        %9001 = vdwg.mxu0
        %9002 = vmatpush.bf16.msra.mxu0 %v7050
        %9003 = vmatpush.bf16.msra.mxu0 %v7046
        %9004 = vmatpush.bf16.msra.mxu0 %v7042
        %9005 = vmatpush.bf16.msra.mxu0 %v7038
        %9006 = vmatpush.bf16.msra.mxu0 %v7034
        %9007 = vmatpush.bf16.msra.mxu0 %v7030
        %9008 = vmatpush.bf16.msra.mxu0 %v7026
        %9009 = vmatpush.bf16.msra.mxu0 %v7022
        %9010 = vmatmul.bf16.gmra.mxu0 %v7403
        %v9011 = vpop.f32.mrf.mxu0
        %v9012 = vadd.f32 %v8998, %v9011
        %v9013 = vpop.f32.mrf.mxu0
        %v9014 = vadd.f32 %v9000, %v9013
        %9015 = vdwg.mxu0
        %9016 = vmatpush.bf16.msra.mxu0 %v7082
        %9017 = vmatpush.bf16.msra.mxu0 %v7078
        %9018 = vmatpush.bf16.msra.mxu0 %v7074
        %9019 = vmatpush.bf16.msra.mxu0 %v7070
        %9020 = vmatpush.bf16.msra.mxu0 %v7066
        %9021 = vmatpush.bf16.msra.mxu0 %v7062
        %9022 = vmatpush.bf16.msra.mxu0 %v7058
        %9023 = vmatpush.bf16.msra.mxu0 %v7054
        %9024 = vmatmul.bf16.gmra.mxu0 %v7404
        %v9025 = vpop.f32.mrf.mxu0
        %v9026 = vadd.f32 %v9012, %v9025
        %v9027 = vpop.f32.mrf.mxu0
        %v9028 = vadd.f32 %v9014, %v9027
        %9029 = vdwg.mxu0
        %9030 = vmatpush.bf16.msra.mxu0 %v7114
        %9031 = vmatpush.bf16.msra.mxu0 %v7110
        %9032 = vmatpush.bf16.msra.mxu0 %v7106
        %9033 = vmatpush.bf16.msra.mxu0 %v7102
        %9034 = vmatpush.bf16.msra.mxu0 %v7098
        %9035 = vmatpush.bf16.msra.mxu0 %v7094
        %9036 = vmatpush.bf16.msra.mxu0 %v7090
        %9037 = vmatpush.bf16.msra.mxu0 %v7086
        %9038 = vmatmul.bf16.gmra.mxu0 %v7405
        %v9039 = vpop.f32.mrf.mxu0
        %v9040 = vadd.f32 %v9026, %v9039
        %v9041 = vpop.f32.mrf.mxu0
        %v9042 = vadd.f32 %v9028, %v9041
        %9043 = vdwg.mxu0
        %9044 = vmatpush.bf16.msra.mxu0 %v7146
        %9045 = vmatpush.bf16.msra.mxu0 %v7142
        %9046 = vmatpush.bf16.msra.mxu0 %v7138
        %9047 = vmatpush.bf16.msra.mxu0 %v7134
        %9048 = vmatpush.bf16.msra.mxu0 %v7130
        %9049 = vmatpush.bf16.msra.mxu0 %v7126
        %9050 = vmatpush.bf16.msra.mxu0 %v7122
        %9051 = vmatpush.bf16.msra.mxu0 %v7118
        %9052 = vmatmul.bf16.gmra.mxu0 %v7406
        %v9053 = vpop.f32.mrf.mxu0
        %v9054 = vadd.f32 %v9040, %v9053
        %v9055 = vpop.f32.mrf.mxu0
        %v9056 = vadd.f32 %v9042, %v9055
        %9057 = vdwg.mxu0
        %9058 = vmatpush.bf16.msra.mxu0 %v7178
        %9059 = vmatpush.bf16.msra.mxu0 %v7174
        %9060 = vmatpush.bf16.msra.mxu0 %v7170
        %9061 = vmatpush.bf16.msra.mxu0 %v7166
        %9062 = vmatpush.bf16.msra.mxu0 %v7162
        %9063 = vmatpush.bf16.msra.mxu0 %v7158
        %9064 = vmatpush.bf16.msra.mxu0 %v7154
        %9065 = vmatpush.bf16.msra.mxu0 %v7150
        %9066 = vmatmul.bf16.gmra.mxu0 %v7407
        %v9067 = vpop.f32.mrf.mxu0
        %v9068 = vadd.f32 %v9054, %v9067
        %v9069 = vpop.f32.mrf.mxu0
        %v9070 = vadd.f32 %v9056, %v9069
        %9071 = vdwg.mxu0
        %9072 = vmatpush.bf16.msra.mxu0 %v7210
        %9073 = vmatpush.bf16.msra.mxu0 %v7206
        %9074 = vmatpush.bf16.msra.mxu0 %v7202
        %9075 = vmatpush.bf16.msra.mxu0 %v7198
        %9076 = vmatpush.bf16.msra.mxu0 %v7194
        %9077 = vmatpush.bf16.msra.mxu0 %v7190
        %9078 = vmatpush.bf16.msra.mxu0 %v7186
        %9079 = vmatpush.bf16.msra.mxu0 %v7182
        %9080 = vmatmul.bf16.gmra.mxu0 %v7408
        %v9081 = vpop.f32.mrf.mxu0
        %v9082 = vadd.f32 %v9068, %v9081
        %v9083 = vpop.f32.mrf.mxu0
        %v9084 = vadd.f32 %v9070, %v9083
        %9085 = vdwg.mxu0
        %9086 = vmatpush.bf16.msra.mxu0 %v5995
        %9087 = vmatpush.bf16.msra.mxu0 %v5991
        %9088 = vmatpush.bf16.msra.mxu0 %v5987
        %9089 = vmatpush.bf16.msra.mxu0 %v5983
        %9090 = vmatpush.bf16.msra.mxu0 %v5979
        %9091 = vmatpush.bf16.msra.mxu0 %v5975
        %9092 = vmatpush.bf16.msra.mxu0 %v5971
        %9093 = vmatpush.bf16.msra.mxu0 %v5967
        %9094 = vmatmul.bf16.gmra.mxu0 %v7370
        %v9095 = vpop.f32.mrf.mxu0
        %v9096 = vadd.f32 0.0, %v9095
        %v9097 = vpop.f32.mrf.mxu0
        %v9098 = vadd.f32 0.0, %v9097
        %9099 = vdwg.mxu0
        %9100 = vmatpush.bf16.msra.mxu0 %v6027
        %9101 = vmatpush.bf16.msra.mxu0 %v6023
        %9102 = vmatpush.bf16.msra.mxu0 %v6019
        %9103 = vmatpush.bf16.msra.mxu0 %v6015
        %9104 = vmatpush.bf16.msra.mxu0 %v6011
        %9105 = vmatpush.bf16.msra.mxu0 %v6007
        %9106 = vmatpush.bf16.msra.mxu0 %v6003
        %9107 = vmatpush.bf16.msra.mxu0 %v5999
        %9108 = vmatmul.bf16.gmra.mxu0 %v7371
        %v9109 = vpop.f32.mrf.mxu0
        %v9110 = vadd.f32 %v9096, %v9109
        %v9111 = vpop.f32.mrf.mxu0
        %v9112 = vadd.f32 %v9098, %v9111
        %9113 = vdwg.mxu0
        %9114 = vmatpush.bf16.msra.mxu0 %v6059
        %9115 = vmatpush.bf16.msra.mxu0 %v6055
        %9116 = vmatpush.bf16.msra.mxu0 %v6051
        %9117 = vmatpush.bf16.msra.mxu0 %v6047
        %9118 = vmatpush.bf16.msra.mxu0 %v6043
        %9119 = vmatpush.bf16.msra.mxu0 %v6039
        %9120 = vmatpush.bf16.msra.mxu0 %v6035
        %9121 = vmatpush.bf16.msra.mxu0 %v6031
        %9122 = vmatmul.bf16.gmra.mxu0 %v7372
        %v9123 = vpop.f32.mrf.mxu0
        %v9124 = vadd.f32 %v9110, %v9123
        %v9125 = vpop.f32.mrf.mxu0
        %v9126 = vadd.f32 %v9112, %v9125
        %9127 = vdwg.mxu0
        %9128 = vmatpush.bf16.msra.mxu0 %v6091
        %9129 = vmatpush.bf16.msra.mxu0 %v6087
        %9130 = vmatpush.bf16.msra.mxu0 %v6083
        %9131 = vmatpush.bf16.msra.mxu0 %v6079
        %9132 = vmatpush.bf16.msra.mxu0 %v6075
        %9133 = vmatpush.bf16.msra.mxu0 %v6071
        %9134 = vmatpush.bf16.msra.mxu0 %v6067
        %9135 = vmatpush.bf16.msra.mxu0 %v6063
        %9136 = vmatmul.bf16.gmra.mxu0 %v7373
        %v9137 = vpop.f32.mrf.mxu0
        %v9138 = vadd.f32 %v9124, %v9137
        %v9139 = vpop.f32.mrf.mxu0
        %v9140 = vadd.f32 %v9126, %v9139
        %9141 = vdwg.mxu0
        %9142 = vmatpush.bf16.msra.mxu0 %v6123
        %9143 = vmatpush.bf16.msra.mxu0 %v6119
        %9144 = vmatpush.bf16.msra.mxu0 %v6115
        %9145 = vmatpush.bf16.msra.mxu0 %v6111
        %9146 = vmatpush.bf16.msra.mxu0 %v6107
        %9147 = vmatpush.bf16.msra.mxu0 %v6103
        %9148 = vmatpush.bf16.msra.mxu0 %v6099
        %9149 = vmatpush.bf16.msra.mxu0 %v6095
        %9150 = vmatmul.bf16.gmra.mxu0 %v7374
        %v9151 = vpop.f32.mrf.mxu0
        %v9152 = vadd.f32 %v9138, %v9151
        %v9153 = vpop.f32.mrf.mxu0
        %v9154 = vadd.f32 %v9140, %v9153
        %9155 = vdwg.mxu0
        %9156 = vmatpush.bf16.msra.mxu0 %v6155
        %9157 = vmatpush.bf16.msra.mxu0 %v6151
        %9158 = vmatpush.bf16.msra.mxu0 %v6147
        %9159 = vmatpush.bf16.msra.mxu0 %v6143
        %9160 = vmatpush.bf16.msra.mxu0 %v6139
        %9161 = vmatpush.bf16.msra.mxu0 %v6135
        %9162 = vmatpush.bf16.msra.mxu0 %v6131
        %9163 = vmatpush.bf16.msra.mxu0 %v6127
        %9164 = vmatmul.bf16.gmra.mxu0 %v7375
        %v9165 = vpop.f32.mrf.mxu0
        %v9166 = vadd.f32 %v9152, %v9165
        %v9167 = vpop.f32.mrf.mxu0
        %v9168 = vadd.f32 %v9154, %v9167
        %9169 = vdwg.mxu0
        %9170 = vmatpush.bf16.msra.mxu0 %v6187
        %9171 = vmatpush.bf16.msra.mxu0 %v6183
        %9172 = vmatpush.bf16.msra.mxu0 %v6179
        %9173 = vmatpush.bf16.msra.mxu0 %v6175
        %9174 = vmatpush.bf16.msra.mxu0 %v6171
        %9175 = vmatpush.bf16.msra.mxu0 %v6167
        %9176 = vmatpush.bf16.msra.mxu0 %v6163
        %9177 = vmatpush.bf16.msra.mxu0 %v6159
        %9178 = vmatmul.bf16.gmra.mxu0 %v7376
        %v9179 = vpop.f32.mrf.mxu0
        %v9180 = vadd.f32 %v9166, %v9179
        %v9181 = vpop.f32.mrf.mxu0
        %v9182 = vadd.f32 %v9168, %v9181
        %9183 = vdwg.mxu0
        %9184 = vmatpush.bf16.msra.mxu0 %v6219
        %9185 = vmatpush.bf16.msra.mxu0 %v6215
        %9186 = vmatpush.bf16.msra.mxu0 %v6211
        %9187 = vmatpush.bf16.msra.mxu0 %v6207
        %9188 = vmatpush.bf16.msra.mxu0 %v6203
        %9189 = vmatpush.bf16.msra.mxu0 %v6199
        %9190 = vmatpush.bf16.msra.mxu0 %v6195
        %9191 = vmatpush.bf16.msra.mxu0 %v6191
        %9192 = vmatmul.bf16.gmra.mxu0 %v7377
        %v9193 = vpop.f32.mrf.mxu0
        %v9194 = vadd.f32 %v9180, %v9193
        %v9195 = vpop.f32.mrf.mxu0
        %v9196 = vadd.f32 %v9182, %v9195
        %9197 = vdwg.mxu0
        %9198 = vmatpush.bf16.msra.mxu0 %v6251
        %9199 = vmatpush.bf16.msra.mxu0 %v6247
        %9200 = vmatpush.bf16.msra.mxu0 %v6243
        %9201 = vmatpush.bf16.msra.mxu0 %v6239
        %9202 = vmatpush.bf16.msra.mxu0 %v6235
        %9203 = vmatpush.bf16.msra.mxu0 %v6231
        %9204 = vmatpush.bf16.msra.mxu0 %v6227
        %9205 = vmatpush.bf16.msra.mxu0 %v6223
        %9206 = vmatmul.bf16.gmra.mxu0 %v7378
        %v9207 = vpop.f32.mrf.mxu0
        %v9208 = vadd.f32 %v9194, %v9207
        %v9209 = vpop.f32.mrf.mxu0
        %v9210 = vadd.f32 %v9196, %v9209
        %9211 = vdwg.mxu0
        %9212 = vmatpush.bf16.msra.mxu0 %v6283
        %9213 = vmatpush.bf16.msra.mxu0 %v6279
        %9214 = vmatpush.bf16.msra.mxu0 %v6275
        %9215 = vmatpush.bf16.msra.mxu0 %v6271
        %9216 = vmatpush.bf16.msra.mxu0 %v6267
        %9217 = vmatpush.bf16.msra.mxu0 %v6263
        %9218 = vmatpush.bf16.msra.mxu0 %v6259
        %9219 = vmatpush.bf16.msra.mxu0 %v6255
        %9220 = vmatmul.bf16.gmra.mxu0 %v7379
        %v9221 = vpop.f32.mrf.mxu0
        %v9222 = vadd.f32 %v9208, %v9221
        %v9223 = vpop.f32.mrf.mxu0
        %v9224 = vadd.f32 %v9210, %v9223
        %9225 = vdwg.mxu0
        %9226 = vmatpush.bf16.msra.mxu0 %v6315
        %9227 = vmatpush.bf16.msra.mxu0 %v6311
        %9228 = vmatpush.bf16.msra.mxu0 %v6307
        %9229 = vmatpush.bf16.msra.mxu0 %v6303
        %9230 = vmatpush.bf16.msra.mxu0 %v6299
        %9231 = vmatpush.bf16.msra.mxu0 %v6295
        %9232 = vmatpush.bf16.msra.mxu0 %v6291
        %9233 = vmatpush.bf16.msra.mxu0 %v6287
        %9234 = vmatmul.bf16.gmra.mxu0 %v7380
        %v9235 = vpop.f32.mrf.mxu0
        %v9236 = vadd.f32 %v9222, %v9235
        %v9237 = vpop.f32.mrf.mxu0
        %v9238 = vadd.f32 %v9224, %v9237
        %9239 = vdwg.mxu0
        %9240 = vmatpush.bf16.msra.mxu0 %v6347
        %9241 = vmatpush.bf16.msra.mxu0 %v6343
        %9242 = vmatpush.bf16.msra.mxu0 %v6339
        %9243 = vmatpush.bf16.msra.mxu0 %v6335
        %9244 = vmatpush.bf16.msra.mxu0 %v6331
        %9245 = vmatpush.bf16.msra.mxu0 %v6327
        %9246 = vmatpush.bf16.msra.mxu0 %v6323
        %9247 = vmatpush.bf16.msra.mxu0 %v6319
        %9248 = vmatmul.bf16.gmra.mxu0 %v7381
        %v9249 = vpop.f32.mrf.mxu0
        %v9250 = vadd.f32 %v9236, %v9249
        %v9251 = vpop.f32.mrf.mxu0
        %v9252 = vadd.f32 %v9238, %v9251
        %9253 = vdwg.mxu0
        %9254 = vmatpush.bf16.msra.mxu0 %v6379
        %9255 = vmatpush.bf16.msra.mxu0 %v6375
        %9256 = vmatpush.bf16.msra.mxu0 %v6371
        %9257 = vmatpush.bf16.msra.mxu0 %v6367
        %9258 = vmatpush.bf16.msra.mxu0 %v6363
        %9259 = vmatpush.bf16.msra.mxu0 %v6359
        %9260 = vmatpush.bf16.msra.mxu0 %v6355
        %9261 = vmatpush.bf16.msra.mxu0 %v6351
        %9262 = vmatmul.bf16.gmra.mxu0 %v7382
        %v9263 = vpop.f32.mrf.mxu0
        %v9264 = vadd.f32 %v9250, %v9263
        %v9265 = vpop.f32.mrf.mxu0
        %v9266 = vadd.f32 %v9252, %v9265
        %9267 = vdwg.mxu0
        %9268 = vmatpush.bf16.msra.mxu0 %v6411
        %9269 = vmatpush.bf16.msra.mxu0 %v6407
        %9270 = vmatpush.bf16.msra.mxu0 %v6403
        %9271 = vmatpush.bf16.msra.mxu0 %v6399
        %9272 = vmatpush.bf16.msra.mxu0 %v6395
        %9273 = vmatpush.bf16.msra.mxu0 %v6391
        %9274 = vmatpush.bf16.msra.mxu0 %v6387
        %9275 = vmatpush.bf16.msra.mxu0 %v6383
        %9276 = vmatmul.bf16.gmra.mxu0 %v7383
        %v9277 = vpop.f32.mrf.mxu0
        %v9278 = vadd.f32 %v9264, %v9277
        %v9279 = vpop.f32.mrf.mxu0
        %v9280 = vadd.f32 %v9266, %v9279
        %9281 = vdwg.mxu0
        %9282 = vmatpush.bf16.msra.mxu0 %v6443
        %9283 = vmatpush.bf16.msra.mxu0 %v6439
        %9284 = vmatpush.bf16.msra.mxu0 %v6435
        %9285 = vmatpush.bf16.msra.mxu0 %v6431
        %9286 = vmatpush.bf16.msra.mxu0 %v6427
        %9287 = vmatpush.bf16.msra.mxu0 %v6423
        %9288 = vmatpush.bf16.msra.mxu0 %v6419
        %9289 = vmatpush.bf16.msra.mxu0 %v6415
        %9290 = vmatmul.bf16.gmra.mxu0 %v7384
        %v9291 = vpop.f32.mrf.mxu0
        %v9292 = vadd.f32 %v9278, %v9291
        %v9293 = vpop.f32.mrf.mxu0
        %v9294 = vadd.f32 %v9280, %v9293
        %9295 = vdwg.mxu0
        %9296 = vmatpush.bf16.msra.mxu0 %v6475
        %9297 = vmatpush.bf16.msra.mxu0 %v6471
        %9298 = vmatpush.bf16.msra.mxu0 %v6467
        %9299 = vmatpush.bf16.msra.mxu0 %v6463
        %9300 = vmatpush.bf16.msra.mxu0 %v6459
        %9301 = vmatpush.bf16.msra.mxu0 %v6455
        %9302 = vmatpush.bf16.msra.mxu0 %v6451
        %9303 = vmatpush.bf16.msra.mxu0 %v6447
        %9304 = vmatmul.bf16.gmra.mxu0 %v7385
        %v9305 = vpop.f32.mrf.mxu0
        %v9306 = vadd.f32 %v9292, %v9305
        %v9307 = vpop.f32.mrf.mxu0
        %v9308 = vadd.f32 %v9294, %v9307
        %9309 = vdwg.mxu0
        %9310 = vmatpush.bf16.msra.mxu0 %v6507
        %9311 = vmatpush.bf16.msra.mxu0 %v6503
        %9312 = vmatpush.bf16.msra.mxu0 %v6499
        %9313 = vmatpush.bf16.msra.mxu0 %v6495
        %9314 = vmatpush.bf16.msra.mxu0 %v6491
        %9315 = vmatpush.bf16.msra.mxu0 %v6487
        %9316 = vmatpush.bf16.msra.mxu0 %v6483
        %9317 = vmatpush.bf16.msra.mxu0 %v6479
        %9318 = vmatmul.bf16.gmra.mxu0 %v7386
        %v9319 = vpop.f32.mrf.mxu0
        %v9320 = vadd.f32 %v9306, %v9319
        %v9321 = vpop.f32.mrf.mxu0
        %v9322 = vadd.f32 %v9308, %v9321
        %9323 = vdwg.mxu0
        %9324 = vmatpush.bf16.msra.mxu0 %v6539
        %9325 = vmatpush.bf16.msra.mxu0 %v6535
        %9326 = vmatpush.bf16.msra.mxu0 %v6531
        %9327 = vmatpush.bf16.msra.mxu0 %v6527
        %9328 = vmatpush.bf16.msra.mxu0 %v6523
        %9329 = vmatpush.bf16.msra.mxu0 %v6519
        %9330 = vmatpush.bf16.msra.mxu0 %v6515
        %9331 = vmatpush.bf16.msra.mxu0 %v6511
        %9332 = vmatmul.bf16.gmra.mxu0 %v7387
        %v9333 = vpop.f32.mrf.mxu0
        %v9334 = vadd.f32 %v9320, %v9333
        %v9335 = vpop.f32.mrf.mxu0
        %v9336 = vadd.f32 %v9322, %v9335
        %9337 = vdwg.mxu0
        %9338 = vmatpush.bf16.msra.mxu0 %v6571
        %9339 = vmatpush.bf16.msra.mxu0 %v6567
        %9340 = vmatpush.bf16.msra.mxu0 %v6563
        %9341 = vmatpush.bf16.msra.mxu0 %v6559
        %9342 = vmatpush.bf16.msra.mxu0 %v6555
        %9343 = vmatpush.bf16.msra.mxu0 %v6551
        %9344 = vmatpush.bf16.msra.mxu0 %v6547
        %9345 = vmatpush.bf16.msra.mxu0 %v6543
        %9346 = vmatmul.bf16.gmra.mxu0 %v7388
        %v9347 = vpop.f32.mrf.mxu0
        %v9348 = vadd.f32 %v9334, %v9347
        %v9349 = vpop.f32.mrf.mxu0
        %v9350 = vadd.f32 %v9336, %v9349
        %9351 = vdwg.mxu0
        %9352 = vmatpush.bf16.msra.mxu0 %v6603
        %9353 = vmatpush.bf16.msra.mxu0 %v6599
        %9354 = vmatpush.bf16.msra.mxu0 %v6595
        %9355 = vmatpush.bf16.msra.mxu0 %v6591
        %9356 = vmatpush.bf16.msra.mxu0 %v6587
        %9357 = vmatpush.bf16.msra.mxu0 %v6583
        %9358 = vmatpush.bf16.msra.mxu0 %v6579
        %9359 = vmatpush.bf16.msra.mxu0 %v6575
        %9360 = vmatmul.bf16.gmra.mxu0 %v7389
        %v9361 = vpop.f32.mrf.mxu0
        %v9362 = vadd.f32 %v9348, %v9361
        %v9363 = vpop.f32.mrf.mxu0
        %v9364 = vadd.f32 %v9350, %v9363
        %9365 = vdwg.mxu0
        %9366 = vmatpush.bf16.msra.mxu0 %v6635
        %9367 = vmatpush.bf16.msra.mxu0 %v6631
        %9368 = vmatpush.bf16.msra.mxu0 %v6627
        %9369 = vmatpush.bf16.msra.mxu0 %v6623
        %9370 = vmatpush.bf16.msra.mxu0 %v6619
        %9371 = vmatpush.bf16.msra.mxu0 %v6615
        %9372 = vmatpush.bf16.msra.mxu0 %v6611
        %9373 = vmatpush.bf16.msra.mxu0 %v6607
        %9374 = vmatmul.bf16.gmra.mxu0 %v7390
        %v9375 = vpop.f32.mrf.mxu0
        %v9376 = vadd.f32 %v9362, %v9375
        %v9377 = vpop.f32.mrf.mxu0
        %v9378 = vadd.f32 %v9364, %v9377
        %9379 = vdwg.mxu0
        %9380 = vmatpush.bf16.msra.mxu0 %v6667
        %9381 = vmatpush.bf16.msra.mxu0 %v6663
        %9382 = vmatpush.bf16.msra.mxu0 %v6659
        %9383 = vmatpush.bf16.msra.mxu0 %v6655
        %9384 = vmatpush.bf16.msra.mxu0 %v6651
        %9385 = vmatpush.bf16.msra.mxu0 %v6647
        %9386 = vmatpush.bf16.msra.mxu0 %v6643
        %9387 = vmatpush.bf16.msra.mxu0 %v6639
        %9388 = vmatmul.bf16.gmra.mxu0 %v7391
        %v9389 = vpop.f32.mrf.mxu0
        %v9390 = vadd.f32 %v9376, %v9389
        %v9391 = vpop.f32.mrf.mxu0
        %v9392 = vadd.f32 %v9378, %v9391
        %9393 = vdwg.mxu0
        %9394 = vmatpush.bf16.msra.mxu0 %v6699
        %9395 = vmatpush.bf16.msra.mxu0 %v6695
        %9396 = vmatpush.bf16.msra.mxu0 %v6691
        %9397 = vmatpush.bf16.msra.mxu0 %v6687
        %9398 = vmatpush.bf16.msra.mxu0 %v6683
        %9399 = vmatpush.bf16.msra.mxu0 %v6679
        %9400 = vmatpush.bf16.msra.mxu0 %v6675
        %9401 = vmatpush.bf16.msra.mxu0 %v6671
        %9402 = vmatmul.bf16.gmra.mxu0 %v7392
        %v9403 = vpop.f32.mrf.mxu0
        %v9404 = vadd.f32 %v9390, %v9403
        %v9405 = vpop.f32.mrf.mxu0
        %v9406 = vadd.f32 %v9392, %v9405
        %9407 = vdwg.mxu0
        %9408 = vmatpush.bf16.msra.mxu0 %v6731
        %9409 = vmatpush.bf16.msra.mxu0 %v6727
        %9410 = vmatpush.bf16.msra.mxu0 %v6723
        %9411 = vmatpush.bf16.msra.mxu0 %v6719
        %9412 = vmatpush.bf16.msra.mxu0 %v6715
        %9413 = vmatpush.bf16.msra.mxu0 %v6711
        %9414 = vmatpush.bf16.msra.mxu0 %v6707
        %9415 = vmatpush.bf16.msra.mxu0 %v6703
        %9416 = vmatmul.bf16.gmra.mxu0 %v7393
        %v9417 = vpop.f32.mrf.mxu0
        %v9418 = vadd.f32 %v9404, %v9417
        %v9419 = vpop.f32.mrf.mxu0
        %v9420 = vadd.f32 %v9406, %v9419
        %9421 = vdwg.mxu0
        %9422 = vmatpush.bf16.msra.mxu0 %v6763
        %9423 = vmatpush.bf16.msra.mxu0 %v6759
        %9424 = vmatpush.bf16.msra.mxu0 %v6755
        %9425 = vmatpush.bf16.msra.mxu0 %v6751
        %9426 = vmatpush.bf16.msra.mxu0 %v6747
        %9427 = vmatpush.bf16.msra.mxu0 %v6743
        %9428 = vmatpush.bf16.msra.mxu0 %v6739
        %9429 = vmatpush.bf16.msra.mxu0 %v6735
        %9430 = vmatmul.bf16.gmra.mxu0 %v7394
        %v9431 = vpop.f32.mrf.mxu0
        %v9432 = vadd.f32 %v9418, %v9431
        %v9433 = vpop.f32.mrf.mxu0
        %v9434 = vadd.f32 %v9420, %v9433
        %9435 = vdwg.mxu0
        %9436 = vmatpush.bf16.msra.mxu0 %v6795
        %9437 = vmatpush.bf16.msra.mxu0 %v6791
        %9438 = vmatpush.bf16.msra.mxu0 %v6787
        %9439 = vmatpush.bf16.msra.mxu0 %v6783
        %9440 = vmatpush.bf16.msra.mxu0 %v6779
        %9441 = vmatpush.bf16.msra.mxu0 %v6775
        %9442 = vmatpush.bf16.msra.mxu0 %v6771
        %9443 = vmatpush.bf16.msra.mxu0 %v6767
        %9444 = vmatmul.bf16.gmra.mxu0 %v7395
        %v9445 = vpop.f32.mrf.mxu0
        %v9446 = vadd.f32 %v9432, %v9445
        %v9447 = vpop.f32.mrf.mxu0
        %v9448 = vadd.f32 %v9434, %v9447
        %9449 = vdwg.mxu0
        %9450 = vmatpush.bf16.msra.mxu0 %v6827
        %9451 = vmatpush.bf16.msra.mxu0 %v6823
        %9452 = vmatpush.bf16.msra.mxu0 %v6819
        %9453 = vmatpush.bf16.msra.mxu0 %v6815
        %9454 = vmatpush.bf16.msra.mxu0 %v6811
        %9455 = vmatpush.bf16.msra.mxu0 %v6807
        %9456 = vmatpush.bf16.msra.mxu0 %v6803
        %9457 = vmatpush.bf16.msra.mxu0 %v6799
        %9458 = vmatmul.bf16.gmra.mxu0 %v7396
        %v9459 = vpop.f32.mrf.mxu0
        %v9460 = vadd.f32 %v9446, %v9459
        %v9461 = vpop.f32.mrf.mxu0
        %v9462 = vadd.f32 %v9448, %v9461
        %9463 = vdwg.mxu0
        %9464 = vmatpush.bf16.msra.mxu0 %v6859
        %9465 = vmatpush.bf16.msra.mxu0 %v6855
        %9466 = vmatpush.bf16.msra.mxu0 %v6851
        %9467 = vmatpush.bf16.msra.mxu0 %v6847
        %9468 = vmatpush.bf16.msra.mxu0 %v6843
        %9469 = vmatpush.bf16.msra.mxu0 %v6839
        %9470 = vmatpush.bf16.msra.mxu0 %v6835
        %9471 = vmatpush.bf16.msra.mxu0 %v6831
        %9472 = vmatmul.bf16.gmra.mxu0 %v7397
        %v9473 = vpop.f32.mrf.mxu0
        %v9474 = vadd.f32 %v9460, %v9473
        %v9475 = vpop.f32.mrf.mxu0
        %v9476 = vadd.f32 %v9462, %v9475
        %9477 = vdwg.mxu0
        %9478 = vmatpush.bf16.msra.mxu0 %v6891
        %9479 = vmatpush.bf16.msra.mxu0 %v6887
        %9480 = vmatpush.bf16.msra.mxu0 %v6883
        %9481 = vmatpush.bf16.msra.mxu0 %v6879
        %9482 = vmatpush.bf16.msra.mxu0 %v6875
        %9483 = vmatpush.bf16.msra.mxu0 %v6871
        %9484 = vmatpush.bf16.msra.mxu0 %v6867
        %9485 = vmatpush.bf16.msra.mxu0 %v6863
        %9486 = vmatmul.bf16.gmra.mxu0 %v7398
        %v9487 = vpop.f32.mrf.mxu0
        %v9488 = vadd.f32 %v9474, %v9487
        %v9489 = vpop.f32.mrf.mxu0
        %v9490 = vadd.f32 %v9476, %v9489
        %9491 = vdwg.mxu0
        %9492 = vmatpush.bf16.msra.mxu0 %v6923
        %9493 = vmatpush.bf16.msra.mxu0 %v6919
        %9494 = vmatpush.bf16.msra.mxu0 %v6915
        %9495 = vmatpush.bf16.msra.mxu0 %v6911
        %9496 = vmatpush.bf16.msra.mxu0 %v6907
        %9497 = vmatpush.bf16.msra.mxu0 %v6903
        %9498 = vmatpush.bf16.msra.mxu0 %v6899
        %9499 = vmatpush.bf16.msra.mxu0 %v6895
        %9500 = vmatmul.bf16.gmra.mxu0 %v7399
        %v9501 = vpop.f32.mrf.mxu0
        %v9502 = vadd.f32 %v9488, %v9501
        %v9503 = vpop.f32.mrf.mxu0
        %v9504 = vadd.f32 %v9490, %v9503
        %9505 = vdwg.mxu0
        %9506 = vmatpush.bf16.msra.mxu0 %v6955
        %9507 = vmatpush.bf16.msra.mxu0 %v6951
        %9508 = vmatpush.bf16.msra.mxu0 %v6947
        %9509 = vmatpush.bf16.msra.mxu0 %v6943
        %9510 = vmatpush.bf16.msra.mxu0 %v6939
        %9511 = vmatpush.bf16.msra.mxu0 %v6935
        %9512 = vmatpush.bf16.msra.mxu0 %v6931
        %9513 = vmatpush.bf16.msra.mxu0 %v6927
        %9514 = vmatmul.bf16.gmra.mxu0 %v7400
        %v9515 = vpop.f32.mrf.mxu0
        %v9516 = vadd.f32 %v9502, %v9515
        %v9517 = vpop.f32.mrf.mxu0
        %v9518 = vadd.f32 %v9504, %v9517
        %9519 = vdwg.mxu0
        %9520 = vmatpush.bf16.msra.mxu0 %v6987
        %9521 = vmatpush.bf16.msra.mxu0 %v6983
        %9522 = vmatpush.bf16.msra.mxu0 %v6979
        %9523 = vmatpush.bf16.msra.mxu0 %v6975
        %9524 = vmatpush.bf16.msra.mxu0 %v6971
        %9525 = vmatpush.bf16.msra.mxu0 %v6967
        %9526 = vmatpush.bf16.msra.mxu0 %v6963
        %9527 = vmatpush.bf16.msra.mxu0 %v6959
        %9528 = vmatmul.bf16.gmra.mxu0 %v7401
        %v9529 = vpop.f32.mrf.mxu0
        %v9530 = vadd.f32 %v9516, %v9529
        %v9531 = vpop.f32.mrf.mxu0
        %v9532 = vadd.f32 %v9518, %v9531
        %9533 = vdwg.mxu0
        %9534 = vmatpush.bf16.msra.mxu0 %v7019
        %9535 = vmatpush.bf16.msra.mxu0 %v7015
        %9536 = vmatpush.bf16.msra.mxu0 %v7011
        %9537 = vmatpush.bf16.msra.mxu0 %v7007
        %9538 = vmatpush.bf16.msra.mxu0 %v7003
        %9539 = vmatpush.bf16.msra.mxu0 %v6999
        %9540 = vmatpush.bf16.msra.mxu0 %v6995
        %9541 = vmatpush.bf16.msra.mxu0 %v6991
        %9542 = vmatmul.bf16.gmra.mxu0 %v7402
        %v9543 = vpop.f32.mrf.mxu0
        %v9544 = vadd.f32 %v9530, %v9543
        %v9545 = vpop.f32.mrf.mxu0
        %v9546 = vadd.f32 %v9532, %v9545
        %9547 = vdwg.mxu0
        %9548 = vmatpush.bf16.msra.mxu0 %v7051
        %9549 = vmatpush.bf16.msra.mxu0 %v7047
        %9550 = vmatpush.bf16.msra.mxu0 %v7043
        %9551 = vmatpush.bf16.msra.mxu0 %v7039
        %9552 = vmatpush.bf16.msra.mxu0 %v7035
        %9553 = vmatpush.bf16.msra.mxu0 %v7031
        %9554 = vmatpush.bf16.msra.mxu0 %v7027
        %9555 = vmatpush.bf16.msra.mxu0 %v7023
        %9556 = vmatmul.bf16.gmra.mxu0 %v7403
        %v9557 = vpop.f32.mrf.mxu0
        %v9558 = vadd.f32 %v9544, %v9557
        %v9559 = vpop.f32.mrf.mxu0
        %v9560 = vadd.f32 %v9546, %v9559
        %9561 = vdwg.mxu0
        %9562 = vmatpush.bf16.msra.mxu0 %v7083
        %9563 = vmatpush.bf16.msra.mxu0 %v7079
        %9564 = vmatpush.bf16.msra.mxu0 %v7075
        %9565 = vmatpush.bf16.msra.mxu0 %v7071
        %9566 = vmatpush.bf16.msra.mxu0 %v7067
        %9567 = vmatpush.bf16.msra.mxu0 %v7063
        %9568 = vmatpush.bf16.msra.mxu0 %v7059
        %9569 = vmatpush.bf16.msra.mxu0 %v7055
        %9570 = vmatmul.bf16.gmra.mxu0 %v7404
        %v9571 = vpop.f32.mrf.mxu0
        %v9572 = vadd.f32 %v9558, %v9571
        %v9573 = vpop.f32.mrf.mxu0
        %v9574 = vadd.f32 %v9560, %v9573
        %9575 = vdwg.mxu0
        %9576 = vmatpush.bf16.msra.mxu0 %v7115
        %9577 = vmatpush.bf16.msra.mxu0 %v7111
        %9578 = vmatpush.bf16.msra.mxu0 %v7107
        %9579 = vmatpush.bf16.msra.mxu0 %v7103
        %9580 = vmatpush.bf16.msra.mxu0 %v7099
        %9581 = vmatpush.bf16.msra.mxu0 %v7095
        %9582 = vmatpush.bf16.msra.mxu0 %v7091
        %9583 = vmatpush.bf16.msra.mxu0 %v7087
        %9584 = vmatmul.bf16.gmra.mxu0 %v7405
        %v9585 = vpop.f32.mrf.mxu0
        %v9586 = vadd.f32 %v9572, %v9585
        %v9587 = vpop.f32.mrf.mxu0
        %v9588 = vadd.f32 %v9574, %v9587
        %9589 = vdwg.mxu0
        %9590 = vmatpush.bf16.msra.mxu0 %v7147
        %9591 = vmatpush.bf16.msra.mxu0 %v7143
        %9592 = vmatpush.bf16.msra.mxu0 %v7139
        %9593 = vmatpush.bf16.msra.mxu0 %v7135
        %9594 = vmatpush.bf16.msra.mxu0 %v7131
        %9595 = vmatpush.bf16.msra.mxu0 %v7127
        %9596 = vmatpush.bf16.msra.mxu0 %v7123
        %9597 = vmatpush.bf16.msra.mxu0 %v7119
        %9598 = vmatmul.bf16.gmra.mxu0 %v7406
        %v9599 = vpop.f32.mrf.mxu0
        %v9600 = vadd.f32 %v9586, %v9599
        %v9601 = vpop.f32.mrf.mxu0
        %v9602 = vadd.f32 %v9588, %v9601
        %9603 = vdwg.mxu0
        %9604 = vmatpush.bf16.msra.mxu0 %v7179
        %9605 = vmatpush.bf16.msra.mxu0 %v7175
        %9606 = vmatpush.bf16.msra.mxu0 %v7171
        %9607 = vmatpush.bf16.msra.mxu0 %v7167
        %9608 = vmatpush.bf16.msra.mxu0 %v7163
        %9609 = vmatpush.bf16.msra.mxu0 %v7159
        %9610 = vmatpush.bf16.msra.mxu0 %v7155
        %9611 = vmatpush.bf16.msra.mxu0 %v7151
        %9612 = vmatmul.bf16.gmra.mxu0 %v7407
        %v9613 = vpop.f32.mrf.mxu0
        %v9614 = vadd.f32 %v9600, %v9613
        %v9615 = vpop.f32.mrf.mxu0
        %v9616 = vadd.f32 %v9602, %v9615
        %9617 = vdwg.mxu0
        %9618 = vmatpush.bf16.msra.mxu0 %v7211
        %9619 = vmatpush.bf16.msra.mxu0 %v7207
        %9620 = vmatpush.bf16.msra.mxu0 %v7203
        %9621 = vmatpush.bf16.msra.mxu0 %v7199
        %9622 = vmatpush.bf16.msra.mxu0 %v7195
        %9623 = vmatpush.bf16.msra.mxu0 %v7191
        %9624 = vmatpush.bf16.msra.mxu0 %v7187
        %9625 = vmatpush.bf16.msra.mxu0 %v7183
        %9626 = vmatmul.bf16.gmra.mxu0 %v7408
        %v9627 = vpop.f32.mrf.mxu0
        %v9628 = vadd.f32 %v9614, %v9627
        %v9629 = vpop.f32.mrf.mxu0
        %v9630 = vadd.f32 %v9616, %v9629
        %9631 = vdwg.mxu0
        %v9632 = vld [vmem:[%s280] sm:$0xf]
        %v9634 = vperm.slane %v9632, 0
        %v9635 = vperm.slane %v9632, 1
        %v9636 = vperm.slane %v9632, 2
        %v9637 = vperm.slane %v9632, 3
        %v9642 = vmul.f32 %v7990, %v9634
        %v9643 = vmul.f32 %v8536, %v9635
        %v9644 = vmul.f32 %v9082, %v9636
        %v9645 = vmul.f32 %v9628, %v9637
        %v9646 = vmul.f32 %v7992, %v9634
        %v9647 = vmul.f32 %v8538, %v9635
        %v9648 = vmul.f32 %v9084, %v9636
        %v9649 = vmul.f32 %v9630, %v9637
        %v9650 = vld [vmem:[%s290] sm:$0xf]
        %v9652 = vperm.slane %v9650, 0
        %v9653 = vperm.slane %v9650, 1
        %v9654 = vperm.slane %v9650, 2
        %v9655 = vperm.slane %v9650, 3
        %v9660 = vadd.f32 %v9642, %v9652
        %v9661 = vadd.f32 %v9643, %v9653
        %v9662 = vadd.f32 %v9644, %v9654
        %v9663 = vadd.f32 %v9645, %v9655
        %v9664 = vadd.f32 %v9646, %v9652
        %v9665 = vadd.f32 %v9647, %v9653
        %v9666 = vadd.f32 %v9648, %v9654
        %v9667 = vadd.f32 %v9649, %v9655
        %v9668 = vmax.f32 %v9660, 0.0
        %v9669 = vmax.f32 %v9661, 0.0
        %v9670 = vmax.f32 %v9662, 0.0
        %v9671 = vmax.f32 %v9663, 0.0
        %v9672 = vmax.f32 %v9664, 0.0
        %v9673 = vmax.f32 %v9665, 0.0
        %v9674 = vmax.f32 %v9666, 0.0
        %v9675 = vmax.f32 %v9667, 0.0
        %v9676 = vld [vmem:[%s340] sm:$0xff]
        %v9677 = vld [vmem:[%s340 + $0x8] sm:$0xff]
        %v9678 = vld [vmem:[%s340 + $0x10] sm:$0xff]
        %v9679 = vld [vmem:[%s340 + $0x18] sm:$0xff]
        %v9680 = vld [vmem:[%s340 + $0x20] sm:$0xff]
        %v9681 = vld [vmem:[%s340 + $0x28] sm:$0xff]
        %v9682 = vld [vmem:[%s340 + $0x30] sm:$0xff]
        %v9683 = vld [vmem:[%s340 + $0x38] sm:$0xff]
        %v9684 = vld [vmem:[%s340 + $0x40] sm:$0xff]
        %v9685 = vld [vmem:[%s340 + $0x48] sm:$0xff]
        %v9686 = vld [vmem:[%s340 + $0x50] sm:$0xff]
        %v9687 = vld [vmem:[%s340 + $0x58] sm:$0xff]
        %v9688 = vld [vmem:[%s340 + $0x60] sm:$0xff]
        %v9689 = vld [vmem:[%s340 + $0x68] sm:$0xff]
        %v9690 = vld [vmem:[%s340 + $0x70] sm:$0xff]
        %v9691 = vld [vmem:[%s340 + $0x78] sm:$0xff]
        %v9692 = vld [vmem:[%s340 + $0x80] sm:$0xff]
        %v9693 = vld [vmem:[%s340 + $0x88] sm:$0xff]
        %v9694 = vld [vmem:[%s340 + $0x90] sm:$0xff]
        %v9695 = vld [vmem:[%s340 + $0x98] sm:$0xff]
        %v9696 = vld [vmem:[%s340 + $0xa0] sm:$0xff]
        %v9697 = vld [vmem:[%s340 + $0xa8] sm:$0xff]
        %v9698 = vld [vmem:[%s340 + $0xb0] sm:$0xff]
        %v9699 = vld [vmem:[%s340 + $0xb8] sm:$0xff]
        %v9700 = vld [vmem:[%s340 + $0xc0] sm:$0xff]
        %v9701 = vld [vmem:[%s340 + $0xc8] sm:$0xff]
        %v9702 = vld [vmem:[%s340 + $0xd0] sm:$0xff]
        %v9703 = vld [vmem:[%s340 + $0xd8] sm:$0xff]
        %v9704 = vld [vmem:[%s340 + $0xe0] sm:$0xff]
        %v9705 = vld [vmem:[%s340 + $0xe8] sm:$0xff]
        %v9706 = vld [vmem:[%s340 + $0xf0] sm:$0xff]
        %v9707 = vld [vmem:[%s340 + $0xf8] sm:$0xff]
        %v9708 = vld [vmem:[%s340 + $0x100] sm:$0xff]
        %v9709 = vld [vmem:[%s340 + $0x108] sm:$0xff]
        %v9710 = vld [vmem:[%s340 + $0x110] sm:$0xff]
        %v9711 = vld [vmem:[%s340 + $0x118] sm:$0xff]
        %v9712 = vld [vmem:[%s340 + $0x120] sm:$0xff]
        %v9713 = vld [vmem:[%s340 + $0x128] sm:$0xff]
        %v9714 = vld [vmem:[%s340 + $0x130] sm:$0xff]
        %v9715 = vld [vmem:[%s340 + $0x138] sm:$0xff]
        %v9716 = vld [vmem:[%s340 + $0x140] sm:$0xff]
        %v9717 = vld [vmem:[%s340 + $0x148] sm:$0xff]
        %v9718 = vld [vmem:[%s340 + $0x150] sm:$0xff]
        %v9719 = vld [vmem:[%s340 + $0x158] sm:$0xff]
        %v9720 = vld [vmem:[%s340 + $0x160] sm:$0xff]
        %v9721 = vld [vmem:[%s340 + $0x168] sm:$0xff]
        %v9722 = vld [vmem:[%s340 + $0x170] sm:$0xff]
        %v9723 = vld [vmem:[%s340 + $0x178] sm:$0xff]
        %v9724 = vld [vmem:[%s340 + $0x180] sm:$0xff]
        %v9725 = vld [vmem:[%s340 + $0x188] sm:$0xff]
        %v9726 = vld [vmem:[%s340 + $0x190] sm:$0xff]
        %v9727 = vld [vmem:[%s340 + $0x198] sm:$0xff]
        %v9728 = vld [vmem:[%s340 + $0x1a0] sm:$0xff]
        %v9729 = vld [vmem:[%s340 + $0x1a8] sm:$0xff]
        %v9730 = vld [vmem:[%s340 + $0x1b0] sm:$0xff]
        %v9731 = vld [vmem:[%s340 + $0x1b8] sm:$0xff]
        %v9732 = vld [vmem:[%s340 + $0x1c0] sm:$0xff]
        %v9733 = vld [vmem:[%s340 + $0x1c8] sm:$0xff]
        %v9734 = vld [vmem:[%s340 + $0x1d0] sm:$0xff]
        %v9735 = vld [vmem:[%s340 + $0x1d8] sm:$0xff]
        %v9736 = vld [vmem:[%s340 + $0x1e0] sm:$0xff]
        %v9737 = vld [vmem:[%s340 + $0x1e8] sm:$0xff]
        %v9738 = vld [vmem:[%s340 + $0x1f0] sm:$0xff]
        %v9739 = vld [vmem:[%s340 + $0x1f8] sm:$0xff]
        %9740 = vmatpush.msra.mxu0 %v9691
        %9741 = vmatpush.msra.mxu0 %v9690
        %9742 = vmatpush.msra.mxu0 %v9689
        %9743 = vmatpush.msra.mxu0 %v9688
        %9744 = vmatpush.msra.mxu0 %v9687
        %9745 = vmatpush.msra.mxu0 %v9686
        %9746 = vmatpush.msra.mxu0 %v9685
        %9747 = vmatpush.msra.mxu0 %v9684
        %9748 = vmatpush.msra.mxu0 %v9683
        %9749 = vmatpush.msra.mxu0 %v9682
        %9750 = vmatpush.msra.mxu0 %v9681
        %9751 = vmatpush.msra.mxu0 %v9680
        %9752 = vmatpush.msra.mxu0 %v9679
        %9753 = vmatpush.msra.mxu0 %v9678
        %9754 = vmatpush.msra.mxu0 %v9677
        %9755 = vmatpush.msra.mxu0 %v9676
        %9756 = vmatmul.f32.gmra.mxu0 %v9668
        %v9757 = vpop.f32.mrf.mxu0
        %v9758 = vadd.f32 0.0, %v9757
        %9759 = vmatmul.f32.gmra.mxu0 %v9672
        %v9760 = vpop.f32.mrf.mxu0
        %v9761 = vadd.f32 0.0, %v9760
        %9762 = vdwg.mxu0
        %9763 = vmatpush.msra.mxu0 %v9707
        %9764 = vmatpush.msra.mxu0 %v9706
        %9765 = vmatpush.msra.mxu0 %v9705
        %9766 = vmatpush.msra.mxu0 %v9704
        %9767 = vmatpush.msra.mxu0 %v9703
        %9768 = vmatpush.msra.mxu0 %v9702
        %9769 = vmatpush.msra.mxu0 %v9701
        %9770 = vmatpush.msra.mxu0 %v9700
        %9771 = vmatpush.msra.mxu0 %v9699
        %9772 = vmatpush.msra.mxu0 %v9698
        %9773 = vmatpush.msra.mxu0 %v9697
        %9774 = vmatpush.msra.mxu0 %v9696
        %9775 = vmatpush.msra.mxu0 %v9695
        %9776 = vmatpush.msra.mxu0 %v9694
        %9777 = vmatpush.msra.mxu0 %v9693
        %9778 = vmatpush.msra.mxu0 %v9692
        %9779 = vmatmul.f32.gmra.mxu0 %v9669
        %v9780 = vpop.f32.mrf.mxu0
        %v9781 = vadd.f32 %v9758, %v9780
        %9782 = vmatmul.f32.gmra.mxu0 %v9673
        %v9783 = vpop.f32.mrf.mxu0
        %v9784 = vadd.f32 %v9761, %v9783
        %9785 = vdwg.mxu0
        %9786 = vmatpush.msra.mxu0 %v9723
        %9787 = vmatpush.msra.mxu0 %v9722
        %9788 = vmatpush.msra.mxu0 %v9721
        %9789 = vmatpush.msra.mxu0 %v9720
        %9790 = vmatpush.msra.mxu0 %v9719
        %9791 = vmatpush.msra.mxu0 %v9718
        %9792 = vmatpush.msra.mxu0 %v9717
        %9793 = vmatpush.msra.mxu0 %v9716
        %9794 = vmatpush.msra.mxu0 %v9715
        %9795 = vmatpush.msra.mxu0 %v9714
        %9796 = vmatpush.msra.mxu0 %v9713
        %9797 = vmatpush.msra.mxu0 %v9712
        %9798 = vmatpush.msra.mxu0 %v9711
        %9799 = vmatpush.msra.mxu0 %v9710
        %9800 = vmatpush.msra.mxu0 %v9709
        %9801 = vmatpush.msra.mxu0 %v9708
        %9802 = vmatmul.f32.gmra.mxu0 %v9670
        %v9803 = vpop.f32.mrf.mxu0
        %v9804 = vadd.f32 %v9781, %v9803
        %9805 = vmatmul.f32.gmra.mxu0 %v9674
        %v9806 = vpop.f32.mrf.mxu0
        %v9807 = vadd.f32 %v9784, %v9806
        %9808 = vdwg.mxu0
        %9809 = vmatpush.msra.mxu0 %v9739
        %9810 = vmatpush.msra.mxu0 %v9738
        %9811 = vmatpush.msra.mxu0 %v9737
        %9812 = vmatpush.msra.mxu0 %v9736
        %9813 = vmatpush.msra.mxu0 %v9735
        %9814 = vmatpush.msra.mxu0 %v9734
        %9815 = vmatpush.msra.mxu0 %v9733
        %9816 = vmatpush.msra.mxu0 %v9732
        %9817 = vmatpush.msra.mxu0 %v9731
        %9818 = vmatpush.msra.mxu0 %v9730
        %9819 = vmatpush.msra.mxu0 %v9729
        %9820 = vmatpush.msra.mxu0 %v9728
        %9821 = vmatpush.msra.mxu0 %v9727
        %9822 = vmatpush.msra.mxu0 %v9726
        %9823 = vmatpush.msra.mxu0 %v9725
        %9824 = vmatpush.msra.mxu0 %v9724
        %9825 = vmatmul.f32.gmra.mxu0 %v9671
        %v9826 = vpop.f32.mrf.mxu0
        %v9827 = vadd.f32 %v9804, %v9826
        %9828 = vmatmul.f32.gmra.mxu0 %v9675
        %v9829 = vpop.f32.mrf.mxu0
        %v9830 = vadd.f32 %v9807, %v9829
        %9831 = vdwg.mxu0
        %vm9832 = vcmask 48128
        %9833 = vst.msk [vmem:[%s346] sm:$0xff] %vm9832, %v9827
        %9834 = vst.msk [vmem:[%s346 + $0x8] sm:$0xff] %vm9832, %v9830
        %s9835 = smul.u32 2, %s22
        %p9836 = scmp.lt.s32.totalorder %s9835, 3
        %s9837 = scalar_select %p9836, %s9835, 3
        %s9838 = smul.addr %s9837, 8
        %s9839 = scalar_lea.vmem %s5, %s9838
        // Predicated region
        $region53: #{fcn1_forward.1} parent=39 // pred_check
          %p9840 = pneg %p165
        $region54: #{fcn1_forward.1} parent=39 // pred_check_branch
          %9842 = sbr.rel (%p9840) target = $region56
        $region55: #{fcn1_forward.1} parent=39 // pred_region
          %s9843 = smul.u32 2, %s22
        $region56: #{fcn1_forward.1} parent=39 // pred_fallthru
          _
      $region40: #{fcn1_forward.1} parent=5 // pred_fallthru
        _
      %p9844 = scmp.le.s32.totalorder 2, %s17
      // Predicated region
      $region57: #{fcn1_forward.1} parent=5 // pred_check
        %p9845 = pneg %p9844
      $region58: #{fcn1_forward.1} parent=5 // pred_check_branch
        %9847 = sbr.rel (%p9845) target = $region60
      $region59: #{fcn1_forward.1} parent=5 // pred_region
        %s9848 = ssub.s32 %s17, 2
        // Predicated region
        $region61: #{fcn1_forward.1} parent=59 // pred_check
          %p9849 = pneg %p171
        $region62: #{fcn1_forward.1} parent=59 // pred_check_branch
          %9851 = sbr.rel (%p9849) target = $region64
        $region63: #{fcn1_forward.1} parent=59 // pred_region
          %s9852 = smul.u32 2, %s23
          %p9853 = scmp.lt.s32.totalorder %s9852, 3
          %s9854 = scalar_select %p9853, %s9852, 3
          %s9855 = smul.addr %s9854, 8
          %s9856 = scalar_lea.vmem %s5, %s9855
        $region64: #{fcn1_forward.1} parent=59 // pred_fallthru
          _
      $region60: #{fcn1_forward.1} parent=5 // pred_fallthru
        _
    $region6: #{fcn1_forward.1} parent=1 // loop_footer
      %s21 = sadd.s32 1, %s17
    $region7: #{fcn1_forward.1} parent=1 // loop_footer_branch
      %16 = sbr.rel target = $region3
    $region8: #{fcn1_forward.1} parent=1 // loop_exit
      _
    %9857 = vsyncpa [#allocation3], 1
    %s9858 = scalar_lea.sflag [#allocation3], 1
    %9859 = vsyncpa %s9858, 1
    %9860 = vsyncpa [#allocation5], 1
    %s9861 = scalar_lea.sflag [#allocation5], 1
    %9862 = vsyncpa %s9861, 1

</llo_original>
